<compile_context>
chip_gen: v7x
topology: tpu7x:2x2x1
jax: 0.10.0
libtpu: 0.0.40
codegen_flags: <defaults>
</compile_context>

<pallas_src>
import functools
import math

import jax
import jax.numpy as jnp
from jax.experimental import pallas as pl
from jax.experimental.pallas import tpu as pltpu

LN_EPS = 1e-5


def _layernorm(x, gamma, beta):
    # x: (T, D); gamma/beta: (1, D); normalize over last dim (== nn.LayerNorm(D))
    mu = jnp.mean(x, axis=-1, keepdims=True)
    var = jnp.mean((x - mu) ** 2, axis=-1, keepdims=True)
    return (x - mu) * jax.lax.rsqrt(var + LN_EPS) * gamma + beta


def _attention_block(x_q, x_kv, wq, bq, wk, bk, wv, bv, wo, bo, g, be,
                     *, num_heads, mm_dtype):
    """One MHA + residual + LayerNorm.  x_q: (Tq, D) query/residual rows,
    x_kv: (S, D) key/value rows.  Weight refs hold head-fused matrices."""
    Tq, D = x_q.shape
    dk = D // num_heads
    inv_scale = 1.0 / math.sqrt(dk)

    xm = x_q.astype(mm_dtype)
    km = x_kv.astype(mm_dtype)

    # Fused full-width projections: one (.,D)@(D,D) MXU matmul each for Q/K/V.
    q = jnp.dot(xm, wq[...].astype(mm_dtype), preferred_element_type=jnp.float32) + bq[...]
    k = jnp.dot(km, wk[...].astype(mm_dtype), preferred_element_type=jnp.float32) + bk[...]
    v = jnp.dot(km, wv[...].astype(mm_dtype), preferred_element_type=jnp.float32) + bv[...]

    # Per-head score / softmax / AV.  Heads are static lane slices of the fused
    # projections (cheap, layout-safe).  H is small here; for H >= 16 move heads
    # to a grid axis (or a batched einsum) instead of a static unroll.
    heads = []
    for h in range(num_heads):
        sl = slice(h * dk, (h + 1) * dk)
        q_h = q[:, sl]
        k_h = k[:, sl]
        v_h = v[:, sl]
        # scores = q_h @ k_h^T  (contract over dk, no materialized transpose)
        s = jax.lax.dot_general(q_h.astype(mm_dtype), k_h.astype(mm_dtype),
                                (((1,), (1,)), ((), ())),
                                preferred_element_type=jnp.float32) * inv_scale
        s = s - jnp.max(s, axis=-1, keepdims=True)
        p = jnp.exp(s)
        p = p * pl.reciprocal(jnp.sum(p, axis=-1, keepdims=True), approx=True)
        heads.append(jnp.dot(p.astype(mm_dtype), v_h.astype(mm_dtype),
                             preferred_element_type=jnp.float32))      # (Tq, dv)
    ctx = jnp.concatenate(heads, axis=-1)                              # (Tq, H*dv) == (Tq, D)

    # Fused output projection: single (Tq,D)@(D,D) matmul (contraction dim = D).
    proj = jnp.dot(ctx.astype(mm_dtype), wo[...].astype(mm_dtype),
                   preferred_element_type=jnp.float32) + bo[...]
    # TODO(synk): nn.Dropout is identity here (inference / eval mode)
    return _layernorm(x_q + proj, g[...], be[...])


def _ffn_block(x, w1, b1, w2, b2, g, be, *, mm_dtype):
    h = jnp.dot(x.astype(mm_dtype), w1[...].astype(mm_dtype),
                preferred_element_type=jnp.float32) + b1[...]
    h = jnp.maximum(h, 0.0)                                            # ReLU
    y = jnp.dot(h.astype(mm_dtype), w2[...].astype(mm_dtype),
                preferred_element_type=jnp.float32) + b2[...]
    return _layernorm(x + y, g[...], be[...])


# --------------------------------------------------------------------------- #
# Fused decoder-layer kernel: one (batch, T-tile) grid step does all 3 stages.
# --------------------------------------------------------------------------- #
def decoder_layer_kernel(
    tgt_tile_ref, tgt_full_ref, mem_ref,
    # self-attention (head-fused weights)
    wq1, bq1, wk1, bk1, wv1, bv1, wo1, bo1, g1, be1,
    # cross-attention (head-fused weights)
    wq2, bq2, wk2, bk2, wv2, bv2, wo2, bo2, g2, be2,
    # feed-forward
    w1, b1, w2, b2, g3, be3,
    o_ref, *, num_heads, mm_dtype):
    x_tile = tgt_tile_ref[0].astype(jnp.float32)   # (TILE_T, D) query / residual rows
    x_full = tgt_full_ref[0].astype(jnp.float32)   # (T, D)      self-attn K/V source
    mem = mem_ref[0].astype(jnp.float32)           # (S, D)      cross-attn K/V source

    # 1) self-attention + residual + LayerNorm
    y = _attention_block(x_tile, x_full, wq1, bq1, wk1, bk1, wv1, bv1,
                         wo1, bo1, g1, be1, num_heads=num_heads, mm_dtype=mm_dtype)
    # 2) cross-attention + residual + LayerNorm
    y = _attention_block(y, mem, wq2, bq2, wk2, bk2, wv2, bv2,
                         wo2, bo2, g2, be2, num_heads=num_heads, mm_dtype=mm_dtype)
    # 3) feed-forward + residual + LayerNorm
    y = _ffn_block(y, w1, b1, w2, b2, g3, be3, mm_dtype=mm_dtype)

    o_ref[0] = y.astype(o_ref.dtype)


# --------------------------------------------------------------------------- #
# Wrapper: fuse per-head weights, build grid / BlockSpecs, launch once.
# --------------------------------------------------------------------------- #
def _const_spec(arr):
    # Whole-array block, constant block index (weights resident across the grid).
    # TODO(synk): for multi-MiB weights use pipeline_mode=pl.Buffered(1) or a
    # one-time manual DMA to avoid double-buffering them in VMEM.
    n = arr.ndim
    return pl.BlockSpec(arr.shape, lambda b, t, _n=n: (0,) * _n)


def _fuse_mha_params(wq, bq, wk, bk, wv, bv, wo, bo, g, be):
    """Stack per-head projection weights into full-width matrices."""
    H, D, dk = wq.shape
    dv = wo.shape[1]

    def fuse_in(w, b):  # (H, D, dk), (H, dk) -> (D, H*dk), (1, H*dk)
        return jnp.transpose(w, (1, 0, 2)).reshape(D, H * dk), b.reshape(1, H * dk)

    wq_a, bq_a = fuse_in(wq, bq)
    wk_a, bk_a = fuse_in(wk, bk)
    wv_a, bv_a = fuse_in(wv, bv)
    wo_a = wo.reshape(H * dv, D)          # rows h*dv:(h+1)*dv == head h (torch concat order)
    bo_a = bo.reshape(1, D)
    return (wq_a, bq_a, wk_a, bk_a, wv_a, bv_a, wo_a, bo_a,
            g.reshape(1, D), be.reshape(1, D))


def transformer_decoder_layer(tgt, memory, params, *, num_heads,
                              tile_t=128, matmul_dtype=jnp.float32):
    """matmul_dtype=jnp.bfloat16 is recommended on v6e/v7x; f32 here so the demo
    matches the f32 reference tightly."""
    B, T, D = tgt.shape
    S = memory.shape[1]
    tile_t = min(tile_t, T)
    assert T % tile_t == 0, "T must be divisible by tile_t"

    a1 = _fuse_mha_params(*params["attn1"])
    a2 = _fuse_mha_params(*params["attn2"])
    w1, b1, w2, b2, g3, be3 = params["ffn"]
    F = w1.shape[1]
    ffn = (w1, b1.reshape(1, F), w2, b2.reshape(1, D),
           g3.reshape(1, D), be3.reshape(1, D))
    weights = (*a1, *a2, *ffn)

    kernel = functools.partial(decoder_layer_kernel,
                               num_heads=num_heads, mm_dtype=matmul_dtype)

    grid = (B, T // tile_t)
    in_specs = [
        pl.BlockSpec((1, tile_t, D), lambda b, t: (b, t, 0)),  # tgt query tile
        pl.BlockSpec((1, T, D), lambda b, t: (b, 0, 0)),       # full tgt (self-attn K/V)
        pl.BlockSpec((1, S, D), lambda b, t: (b, 0, 0)),       # memory   (cross-attn K/V)
    ] + [_const_spec(w) for w in weights]

    return pl.pallas_call(
        kernel,
        out_shape=jax.ShapeDtypeStruct((B, T, D), tgt.dtype),
        grid=grid,
        in_specs=in_specs,
        out_specs=pl.BlockSpec((1, tile_t, D), lambda b, t: (b, t, 0)),
        compiler_params=pltpu.CompilerParams(
            dimension_semantics=("parallel", "parallel"),
            vmem_limit_bytes=64 * 1024 * 1024,
        ),
    )(tgt, tgt, memory, *weights)


# --------------------------------------------------------------------------- #
# Pure-JAX reference (per-head math, no Pallas) for a correctness check
# --------------------------------------------------------------------------- #
def _ref_ln(x, g, b):
    mu = jnp.mean(x, axis=-1, keepdims=True)
    var = jnp.mean((x - mu) ** 2, axis=-1, keepdims=True)
    return (x - mu) / jnp.sqrt(var + LN_EPS) * g + b


def _ref_mha(x, mem, wq, bq, wk, bk, wv, bv, wo, bo, g, bt):
    q = jnp.einsum("btd,hdk->bhtk", x, wq) + bq[None, :, None, :]
    k = jnp.einsum("bsd,hdk->bhsk", mem, wk) + bk[None, :, None, :]
    v = jnp.einsum("bsd,hdk->bhsk", mem, wv) + bv[None, :, None, :]
    s = jnp.einsum("bhtk,bhsk->bhts", q, k) / jnp.sqrt(jnp.float32(q.shape[-1]))
    p = jax.nn.softmax(s, axis=-1)
    h = jnp.einsum("bhts,bhsv->bhtv", p, v)
    proj = jnp.einsum("bhtv,hvd->btd", h, wo) + bo
    return _ref_ln(x + proj, g, bt)


def _ref_ffn(x, w1, b1, w2, b2, g, bt):
    y = jnp.maximum(x @ w1 + b1, 0.0) @ w2 + b2
    return _ref_ln(x + y, g, bt)


def _ref_decoder_layer(tgt, memory, params):
    tgt = _ref_mha(tgt, tgt, *params["attn1"])
    tgt = _ref_mha(tgt, memory, *params["attn2"])
    return _ref_ffn(tgt, *params["ffn"])


# --------------------------------------------------------------------------- #
# Deterministic parameter construction (synthetic; shapes follow the module)
# --------------------------------------------------------------------------- #
def make_params(key, dim_model, num_heads, dim_ff):
    dk = dv = dim_model // num_heads
    keys = jax.random.split(key, 32)
    ki = iter(keys)

    def w(shape, scale=0.1):
        return jax.random.normal(next(ki), shape, jnp.float32) * scale

    def mha_params():
        return (w((num_heads, dim_model, dk)), w((num_heads, dk)),   # Wq, bq
                w((num_heads, dim_model, dk)), w((num_heads, dk)),   # Wk, bk
                w((num_heads, dim_model, dv)), w((num_heads, dv)),   # Wv, bv
                w((num_heads, dv, dim_model)), w((dim_model,)),      # Wo, bo
                jnp.ones((dim_model,), jnp.float32),                 # LN gamma
                jnp.zeros((dim_model,), jnp.float32))                # LN beta

    ffn = (w((dim_model, dim_ff)), w((dim_ff,)),
           w((dim_ff, dim_model)), w((dim_model,)),
           jnp.ones((dim_model,), jnp.float32),
           jnp.zeros((dim_model,), jnp.float32))

    return {"attn1": mha_params(), "attn2": mha_params(), "ffn": ffn}


if __name__ == "__main__":
    # Small but lane-dense shapes: dim_model=128 (1 vreg lane width), heads=8
    # (dk=dv=16), ffn=256, batch=2, tgt/memory seq=16.
    B, T, S, D, H, F = 2, 16, 16, 128, 8, 256

    key = jax.random.PRNGKey(0)
    k_tgt, k_mem, k_par = jax.random.split(key, 3)
    tgt = jax.random.normal(k_tgt, (B, T, D), jnp.float32)
    memory = jax.random.normal(k_mem, (B, S, D), jnp.float32)
    params = make_params(k_par, D, H, F)

    out = jax.block_until_ready(
        transformer_decoder_layer(tgt, memory, params, num_heads=H))
    ref = jax.block_until_ready(_ref_decoder_layer(tgt, memory, params))

    assert out.shape == (B, T, D)
    max_err = float(jnp.max(jnp.abs(out - ref)))
    assert jnp.allclose(out, ref, rtol=5e-3, atol=5e-3), max_err
    print("KERNEL_OK")
</pallas_src>

<mosaic_0001>
module attributes {stable_mosaic.version = 11 : i64} {
  func.func @decoder_layer_kernel(%arg0: i32, %arg1: i32, %arg2: memref<1x16x128xf32, #tpu.memory_space<vmem>>, %arg3: memref<1x16x128xf32, #tpu.memory_space<vmem>>, %arg4: memref<1x16x128xf32, #tpu.memory_space<vmem>>, %arg5: memref<128x128xf32, #tpu.memory_space<vmem>>, %arg6: memref<1x128xf32, #tpu.memory_space<vmem>>, %arg7: memref<128x128xf32, #tpu.memory_space<vmem>>, %arg8: memref<1x128xf32, #tpu.memory_space<vmem>>, %arg9: memref<128x128xf32, #tpu.memory_space<vmem>>, %arg10: memref<1x128xf32, #tpu.memory_space<vmem>>, %arg11: memref<128x128xf32, #tpu.memory_space<vmem>>, %arg12: memref<1x128xf32, #tpu.memory_space<vmem>>, %arg13: memref<1x128xf32, #tpu.memory_space<vmem>>, %arg14: memref<1x128xf32, #tpu.memory_space<vmem>>, %arg15: memref<128x128xf32, #tpu.memory_space<vmem>>, %arg16: memref<1x128xf32, #tpu.memory_space<vmem>>, %arg17: memref<128x128xf32, #tpu.memory_space<vmem>>, %arg18: memref<1x128xf32, #tpu.memory_space<vmem>>, %arg19: memref<128x128xf32, #tpu.memory_space<vmem>>, %arg20: memref<1x128xf32, #tpu.memory_space<vmem>>, %arg21: memref<128x128xf32, #tpu.memory_space<vmem>>, %arg22: memref<1x128xf32, #tpu.memory_space<vmem>>, %arg23: memref<1x128xf32, #tpu.memory_space<vmem>>, %arg24: memref<1x128xf32, #tpu.memory_space<vmem>>, %arg25: memref<128x256xf32, #tpu.memory_space<vmem>>, %arg26: memref<1x256xf32, #tpu.memory_space<vmem>>, %arg27: memref<256x128xf32, #tpu.memory_space<vmem>>, %arg28: memref<1x128xf32, #tpu.memory_space<vmem>>, %arg29: memref<1x128xf32, #tpu.memory_space<vmem>>, %arg30: memref<1x128xf32, #tpu.memory_space<vmem>>, %arg31: memref<1x16x128xf32, #tpu.memory_space<vmem>>) attributes {dimension_semantics = [#tpu.dimension_semantics<parallel>, #tpu.dimension_semantics<parallel>], iteration_bounds = array<i64: 2, 1>, scalar_prefetch = 0 : i64, scratch_operands = 0 : i64, tpu.core_type = #tpu.core_type<tc>, window_params = [{transform_indices = @transform_0, window_bounds = array<i64: 1, 16, 128>}, {transform_indices = @transform_1, window_bounds = array<i64: 1, 16, 128>}, {transform_indices = @transform_2, window_bounds = array<i64: 1, 16, 128>}, {pipeline_mode = #tpu.pipeline_mode<synchronous>, transform_indices = @transform_3, window_bounds = array<i64: 128, 128>}, {pipeline_mode = #tpu.pipeline_mode<synchronous>, transform_indices = @transform_4, window_bounds = array<i64: 1, 128>}, {pipeline_mode = #tpu.pipeline_mode<synchronous>, transform_indices = @transform_5, window_bounds = array<i64: 128, 128>}, {pipeline_mode = #tpu.pipeline_mode<synchronous>, transform_indices = @transform_6, window_bounds = array<i64: 1, 128>}, {pipeline_mode = #tpu.pipeline_mode<synchronous>, transform_indices = @transform_7, window_bounds = array<i64: 128, 128>}, {pipeline_mode = #tpu.pipeline_mode<synchronous>, transform_indices = @transform_8, window_bounds = array<i64: 1, 128>}, {pipeline_mode = #tpu.pipeline_mode<synchronous>, transform_indices = @transform_9, window_bounds = array<i64: 128, 128>}, {pipeline_mode = #tpu.pipeline_mode<synchronous>, transform_indices = @transform_10, window_bounds = array<i64: 1, 128>}, {pipeline_mode = #tpu.pipeline_mode<synchronous>, transform_indices = @transform_11, window_bounds = array<i64: 1, 128>}, {pipeline_mode = #tpu.pipeline_mode<synchronous>, transform_indices = @transform_12, window_bounds = array<i64: 1, 128>}, {pipeline_mode = #tpu.pipeline_mode<synchronous>, transform_indices = @transform_13, window_bounds = array<i64: 128, 128>}, {pipeline_mode = #tpu.pipeline_mode<synchronous>, transform_indices = @transform_14, window_bounds = array<i64: 1, 128>}, {pipeline_mode = #tpu.pipeline_mode<synchronous>, transform_indices = @transform_15, window_bounds = array<i64: 128, 128>}, {pipeline_mode = #tpu.pipeline_mode<synchronous>, transform_indices = @transform_16, window_bounds = array<i64: 1, 128>}, {pipeline_mode = #tpu.pipeline_mode<synchronous>, transform_indices = @transform_17, window_bounds = array<i64: 128, 128>}, {pipeline_mode = #tpu.pipeline_mode<synchronous>, transform_indices = @transform_18, window_bounds = array<i64: 1, 128>}, {pipeline_mode = #tpu.pipeline_mode<synchronous>, transform_indices = @transform_19, window_bounds = array<i64: 128, 128>}, {pipeline_mode = #tpu.pipeline_mode<synchronous>, transform_indices = @transform_20, window_bounds = array<i64: 1, 128>}, {pipeline_mode = #tpu.pipeline_mode<synchronous>, transform_indices = @transform_21, window_bounds = array<i64: 1, 128>}, {pipeline_mode = #tpu.pipeline_mode<synchronous>, transform_indices = @transform_22, window_bounds = array<i64: 1, 128>}, {pipeline_mode = #tpu.pipeline_mode<synchronous>, transform_indices = @transform_23, window_bounds = array<i64: 128, 256>}, {pipeline_mode = #tpu.pipeline_mode<synchronous>, transform_indices = @transform_24, window_bounds = array<i64: 1, 256>}, {pipeline_mode = #tpu.pipeline_mode<synchronous>, transform_indices = @transform_25, window_bounds = array<i64: 256, 128>}, {pipeline_mode = #tpu.pipeline_mode<synchronous>, transform_indices = @transform_26, window_bounds = array<i64: 1, 128>}, {pipeline_mode = #tpu.pipeline_mode<synchronous>, transform_indices = @transform_27, window_bounds = array<i64: 1, 128>}, {pipeline_mode = #tpu.pipeline_mode<synchronous>, transform_indices = @transform_28, window_bounds = array<i64: 1, 128>}, {transform_indices = @transform_29, window_bounds = array<i64: 1, 16, 128>}]} {
    %c0 = arith.constant 0 : index
    %c0_0 = arith.constant 0 : index
    %c0_1 = arith.constant 0 : index
    %0 = vector.load %arg2[%c0, %c0_0, %c0_1] : memref<1x16x128xf32, #tpu.memory_space<vmem>>, vector<1x16x128xf32>
    %1 = vector.shape_cast %0 : vector<1x16x128xf32> to vector<16x128xf32>
    %c0_2 = arith.constant 0 : index
    %c0_3 = arith.constant 0 : index
    %c0_4 = arith.constant 0 : index
    %2 = vector.load %arg3[%c0_2, %c0_3, %c0_4] : memref<1x16x128xf32, #tpu.memory_space<vmem>>, vector<1x16x128xf32>
    %3 = vector.shape_cast %2 : vector<1x16x128xf32> to vector<16x128xf32>
    %c0_5 = arith.constant 0 : index
    %c0_6 = arith.constant 0 : index
    %c0_7 = arith.constant 0 : index
    %4 = vector.load %arg4[%c0_5, %c0_6, %c0_7] : memref<1x16x128xf32, #tpu.memory_space<vmem>>, vector<1x16x128xf32>
    %5 = vector.shape_cast %4 : vector<1x16x128xf32> to vector<16x128xf32>
    %c0_8 = arith.constant 0 : index
    %c0_9 = arith.constant 0 : index
    %6 = vector.load %arg5[%c0_8, %c0_9] : memref<128x128xf32, #tpu.memory_space<vmem>>, vector<128x128xf32>
    %cst = arith.constant dense<0.000000e+00> : vector<16x128xf32>
    %7 = tpu.matmul %1, %6, %cst {dimension_numbers = #tpu.dot_dimension_numbers<[1], [0], [0], [1], [0, 0, 1, 1], [], []>} : vector<16x128xf32>, vector<128x128xf32>, vector<16x128xf32> -> vector<16x128xf32>
    %c0_10 = arith.constant 0 : index
    %c0_11 = arith.constant 0 : index
    %8 = vector.load %arg6[%c0_10, %c0_11] : memref<1x128xf32, #tpu.memory_space<vmem>>, vector<1x128xf32>
    %9 = vector.broadcast %8 : vector<1x128xf32> to vector<16x128xf32>
    %10 = arith.addf %7, %9 : vector<16x128xf32>
    %c0_12 = arith.constant 0 : index
    %c0_13 = arith.constant 0 : index
    %11 = vector.load %arg7[%c0_12, %c0_13] : memref<128x128xf32, #tpu.memory_space<vmem>>, vector<128x128xf32>
    %cst_14 = arith.constant dense<0.000000e+00> : vector<16x128xf32>
    %12 = tpu.matmul %3, %11, %cst_14 {dimension_numbers = #tpu.dot_dimension_numbers<[1], [0], [0], [1], [0, 0, 1, 1], [], []>} : vector<16x128xf32>, vector<128x128xf32>, vector<16x128xf32> -> vector<16x128xf32>
    %c0_15 = arith.constant 0 : index
    %c0_16 = arith.constant 0 : index
    %13 = vector.load %arg8[%c0_15, %c0_16] : memref<1x128xf32, #tpu.memory_space<vmem>>, vector<1x128xf32>
    %14 = vector.broadcast %13 : vector<1x128xf32> to vector<16x128xf32>
    %15 = arith.addf %12, %14 : vector<16x128xf32>
    %c0_17 = arith.constant 0 : index
    %c0_18 = arith.constant 0 : index
    %16 = vector.load %arg9[%c0_17, %c0_18] : memref<128x128xf32, #tpu.memory_space<vmem>>, vector<128x128xf32>
    %cst_19 = arith.constant dense<0.000000e+00> : vector<16x128xf32>
    %17 = tpu.matmul %3, %16, %cst_19 {dimension_numbers = #tpu.dot_dimension_numbers<[1], [0], [0], [1], [0, 0, 1, 1], [], []>} : vector<16x128xf32>, vector<128x128xf32>, vector<16x128xf32> -> vector<16x128xf32>
    %c0_20 = arith.constant 0 : index
    %c0_21 = arith.constant 0 : index
    %18 = vector.load %arg10[%c0_20, %c0_21] : memref<1x128xf32, #tpu.memory_space<vmem>>, vector<1x128xf32>
    %19 = vector.broadcast %18 : vector<1x128xf32> to vector<16x128xf32>
    %20 = arith.addf %17, %19 : vector<16x128xf32>
    %21 = vector.extract_strided_slice %10 {offsets = [0, 0], sizes = [16, 16], strides = [1, 1]} : vector<16x128xf32> to vector<16x16xf32>
    %22 = vector.extract_strided_slice %15 {offsets = [0, 0], sizes = [16, 16], strides = [1, 1]} : vector<16x128xf32> to vector<16x16xf32>
    %23 = vector.extract_strided_slice %20 {offsets = [0, 0], sizes = [16, 16], strides = [1, 1]} : vector<16x128xf32> to vector<16x16xf32>
    %cst_22 = arith.constant dense<0.000000e+00> : vector<16x16xf32>
    %24 = tpu.matmul %21, %22, %cst_22 {dimension_numbers = #tpu.dot_dimension_numbers<[1], [1], [0], [0], [0, 0, 1, 0], [], []>} : vector<16x16xf32>, vector<16x16xf32>, vector<16x16xf32> -> vector<16x16xf32>
    %cst_23 = arith.constant 2.500000e-01 : f32
    %25 = vector.broadcast %cst_23 : f32 to vector<16x16xf32>
    %26 = arith.mulf %24, %25 : vector<16x16xf32>
    %cst_24 = arith.constant dense<0xFF800000> : vector<16xf32>
    %27 = vector.multi_reduction <maximumf>, %26, %cst_24 [1] : vector<16x16xf32> to vector<16xf32>
    %28 = vector.shape_cast %27 : vector<16xf32> to vector<16x1xf32>
    %29 = vector.broadcast %28 : vector<16x1xf32> to vector<16x16xf32>
    %30 = arith.subf %26, %29 : vector<16x16xf32>
    %31 = math.exp %30 : vector<16x16xf32>
    %cst_25 = arith.constant dense<0.000000e+00> : vector<16xf32>
    %32 = vector.multi_reduction <add>, %31, %cst_25 [1] : vector<16x16xf32> to vector<16xf32>
    %33 = vector.shape_cast %32 : vector<16xf32> to vector<16x1xf32>
    %34 = tpu.reciprocal %33 {approx = true} : vector<16x1xf32> -> vector<16x1xf32>
    %35 = vector.broadcast %34 : vector<16x1xf32> to vector<16x16xf32>
    %36 = arith.mulf %31, %35 : vector<16x16xf32>
    %cst_26 = arith.constant dense<0.000000e+00> : vector<16x16xf32>
    %37 = tpu.matmul %36, %23, %cst_26 {dimension_numbers = #tpu.dot_dimension_numbers<[1], [0], [0], [1], [0, 0, 1, 1], [], []>} : vector<16x16xf32>, vector<16x16xf32>, vector<16x16xf32> -> vector<16x16xf32>
    %38 = vector.extract_strided_slice %10 {offsets = [0, 16], sizes = [16, 16], strides = [1, 1]} : vector<16x128xf32> to vector<16x16xf32>
    %39 = vector.extract_strided_slice %15 {offsets = [0, 16], sizes = [16, 16], strides = [1, 1]} : vector<16x128xf32> to vector<16x16xf32>
    %40 = vector.extract_strided_slice %20 {offsets = [0, 16], sizes = [16, 16], strides = [1, 1]} : vector<16x128xf32> to vector<16x16xf32>
    %cst_27 = arith.constant dense<0.000000e+00> : vector<16x16xf32>
    %41 = tpu.matmul %38, %39, %cst_27 {dimension_numbers = #tpu.dot_dimension_numbers<[1], [1], [0], [0], [0, 0, 1, 0], [], []>} : vector<16x16xf32>, vector<16x16xf32>, vector<16x16xf32> -> vector<16x16xf32>
    %cst_28 = arith.constant 2.500000e-01 : f32
    %42 = vector.broadcast %cst_28 : f32 to vector<16x16xf32>
    %43 = arith.mulf %41, %42 : vector<16x16xf32>
    %cst_29 = arith.constant dense<0xFF800000> : vector<16xf32>
    %44 = vector.multi_reduction <maximumf>, %43, %cst_29 [1] : vector<16x16xf32> to vector<16xf32>
    %45 = vector.shape_cast %44 : vector<16xf32> to vector<16x1xf32>
    %46 = vector.broadcast %45 : vector<16x1xf32> to vector<16x16xf32>
    %47 = arith.subf %43, %46 : vector<16x16xf32>
    %48 = math.exp %47 : vector<16x16xf32>
    %cst_30 = arith.constant dense<0.000000e+00> : vector<16xf32>
    %49 = vector.multi_reduction <add>, %48, %cst_30 [1] : vector<16x16xf32> to vector<16xf32>
    %50 = vector.shape_cast %49 : vector<16xf32> to vector<16x1xf32>
    %51 = tpu.reciprocal %50 {approx = true} : vector<16x1xf32> -> vector<16x1xf32>
    %52 = vector.broadcast %51 : vector<16x1xf32> to vector<16x16xf32>
    %53 = arith.mulf %48, %52 : vector<16x16xf32>
    %cst_31 = arith.constant dense<0.000000e+00> : vector<16x16xf32>
    %54 = tpu.matmul %53, %40, %cst_31 {dimension_numbers = #tpu.dot_dimension_numbers<[1], [0], [0], [1], [0, 0, 1, 1], [], []>} : vector<16x16xf32>, vector<16x16xf32>, vector<16x16xf32> -> vector<16x16xf32>
    %55 = vector.extract_strided_slice %10 {offsets = [0, 32], sizes = [16, 16], strides = [1, 1]} : vector<16x128xf32> to vector<16x16xf32>
    %56 = vector.extract_strided_slice %15 {offsets = [0, 32], sizes = [16, 16], strides = [1, 1]} : vector<16x128xf32> to vector<16x16xf32>
    %57 = vector.extract_strided_slice %20 {offsets = [0, 32], sizes = [16, 16], strides = [1, 1]} : vector<16x128xf32> to vector<16x16xf32>
    %cst_32 = arith.constant dense<0.000000e+00> : vector<16x16xf32>
    %58 = tpu.matmul %55, %56, %cst_32 {dimension_numbers = #tpu.dot_dimension_numbers<[1], [1], [0], [0], [0, 0, 1, 0], [], []>} : vector<16x16xf32>, vector<16x16xf32>, vector<16x16xf32> -> vector<16x16xf32>
    %cst_33 = arith.constant 2.500000e-01 : f32
    %59 = vector.broadcast %cst_33 : f32 to vector<16x16xf32>
    %60 = arith.mulf %58, %59 : vector<16x16xf32>
    %cst_34 = arith.constant dense<0xFF800000> : vector<16xf32>
    %61 = vector.multi_reduction <maximumf>, %60, %cst_34 [1] : vector<16x16xf32> to vector<16xf32>
    %62 = vector.shape_cast %61 : vector<16xf32> to vector<16x1xf32>
    %63 = vector.broadcast %62 : vector<16x1xf32> to vector<16x16xf32>
    %64 = arith.subf %60, %63 : vector<16x16xf32>
    %65 = math.exp %64 : vector<16x16xf32>
    %cst_35 = arith.constant dense<0.000000e+00> : vector<16xf32>
    %66 = vector.multi_reduction <add>, %65, %cst_35 [1] : vector<16x16xf32> to vector<16xf32>
    %67 = vector.shape_cast %66 : vector<16xf32> to vector<16x1xf32>
    %68 = tpu.reciprocal %67 {approx = true} : vector<16x1xf32> -> vector<16x1xf32>
    %69 = vector.broadcast %68 : vector<16x1xf32> to vector<16x16xf32>
    %70 = arith.mulf %65, %69 : vector<16x16xf32>
    %cst_36 = arith.constant dense<0.000000e+00> : vector<16x16xf32>
    %71 = tpu.matmul %70, %57, %cst_36 {dimension_numbers = #tpu.dot_dimension_numbers<[1], [0], [0], [1], [0, 0, 1, 1], [], []>} : vector<16x16xf32>, vector<16x16xf32>, vector<16x16xf32> -> vector<16x16xf32>
    %72 = vector.extract_strided_slice %10 {offsets = [0, 48], sizes = [16, 16], strides = [1, 1]} : vector<16x128xf32> to vector<16x16xf32>
    %73 = vector.extract_strided_slice %15 {offsets = [0, 48], sizes = [16, 16], strides = [1, 1]} : vector<16x128xf32> to vector<16x16xf32>
    %74 = vector.extract_strided_slice %20 {offsets = [0, 48], sizes = [16, 16], strides = [1, 1]} : vector<16x128xf32> to vector<16x16xf32>
    %cst_37 = arith.constant dense<0.000000e+00> : vector<16x16xf32>
    %75 = tpu.matmul %72, %73, %cst_37 {dimension_numbers = #tpu.dot_dimension_numbers<[1], [1], [0], [0], [0, 0, 1, 0], [], []>} : vector<16x16xf32>, vector<16x16xf32>, vector<16x16xf32> -> vector<16x16xf32>
    %cst_38 = arith.constant 2.500000e-01 : f32
    %76 = vector.broadcast %cst_38 : f32 to vector<16x16xf32>
    %77 = arith.mulf %75, %76 : vector<16x16xf32>
    %cst_39 = arith.constant dense<0xFF800000> : vector<16xf32>
    %78 = vector.multi_reduction <maximumf>, %77, %cst_39 [1] : vector<16x16xf32> to vector<16xf32>
    %79 = vector.shape_cast %78 : vector<16xf32> to vector<16x1xf32>
    %80 = vector.broadcast %79 : vector<16x1xf32> to vector<16x16xf32>
    %81 = arith.subf %77, %80 : vector<16x16xf32>
    %82 = math.exp %81 : vector<16x16xf32>
    %cst_40 = arith.constant dense<0.000000e+00> : vector<16xf32>
    %83 = vector.multi_reduction <add>, %82, %cst_40 [1] : vector<16x16xf32> to vector<16xf32>
    %84 = vector.shape_cast %83 : vector<16xf32> to vector<16x1xf32>
    %85 = tpu.reciprocal %84 {approx = true} : vector<16x1xf32> -> vector<16x1xf32>
    %86 = vector.broadcast %85 : vector<16x1xf32> to vector<16x16xf32>
    %87 = arith.mulf %82, %86 : vector<16x16xf32>
    %cst_41 = arith.constant dense<0.000000e+00> : vector<16x16xf32>
    %88 = tpu.matmul %87, %74, %cst_41 {dimension_numbers = #tpu.dot_dimension_numbers<[1], [0], [0], [1], [0, 0, 1, 1], [], []>} : vector<16x16xf32>, vector<16x16xf32>, vector<16x16xf32> -> vector<16x16xf32>
    %89 = vector.extract_strided_slice %10 {offsets = [0, 64], sizes = [16, 16], strides = [1, 1]} : vector<16x128xf32> to vector<16x16xf32>
    %90 = vector.extract_strided_slice %15 {offsets = [0, 64], sizes = [16, 16], strides = [1, 1]} : vector<16x128xf32> to vector<16x16xf32>
    %91 = vector.extract_strided_slice %20 {offsets = [0, 64], sizes = [16, 16], strides = [1, 1]} : vector<16x128xf32> to vector<16x16xf32>
    %cst_42 = arith.constant dense<0.000000e+00> : vector<16x16xf32>
    %92 = tpu.matmul %89, %90, %cst_42 {dimension_numbers = #tpu.dot_dimension_numbers<[1], [1], [0], [0], [0, 0, 1, 0], [], []>} : vector<16x16xf32>, vector<16x16xf32>, vector<16x16xf32> -> vector<16x16xf32>
    %cst_43 = arith.constant 2.500000e-01 : f32
    %93 = vector.broadcast %cst_43 : f32 to vector<16x16xf32>
    %94 = arith.mulf %92, %93 : vector<16x16xf32>
    %cst_44 = arith.constant dense<0xFF800000> : vector<16xf32>
    %95 = vector.multi_reduction <maximumf>, %94, %cst_44 [1] : vector<16x16xf32> to vector<16xf32>
    %96 = vector.shape_cast %95 : vector<16xf32> to vector<16x1xf32>
    %97 = vector.broadcast %96 : vector<16x1xf32> to vector<16x16xf32>
    %98 = arith.subf %94, %97 : vector<16x16xf32>
    %99 = math.exp %98 : vector<16x16xf32>
    %cst_45 = arith.constant dense<0.000000e+00> : vector<16xf32>
    %100 = vector.multi_reduction <add>, %99, %cst_45 [1] : vector<16x16xf32> to vector<16xf32>
    %101 = vector.shape_cast %100 : vector<16xf32> to vector<16x1xf32>
    %102 = tpu.reciprocal %101 {approx = true} : vector<16x1xf32> -> vector<16x1xf32>
    %103 = vector.broadcast %102 : vector<16x1xf32> to vector<16x16xf32>
    %104 = arith.mulf %99, %103 : vector<16x16xf32>
    %cst_46 = arith.constant dense<0.000000e+00> : vector<16x16xf32>
    %105 = tpu.matmul %104, %91, %cst_46 {dimension_numbers = #tpu.dot_dimension_numbers<[1], [0], [0], [1], [0, 0, 1, 1], [], []>} : vector<16x16xf32>, vector<16x16xf32>, vector<16x16xf32> -> vector<16x16xf32>
    %106 = vector.extract_strided_slice %10 {offsets = [0, 80], sizes = [16, 16], strides = [1, 1]} : vector<16x128xf32> to vector<16x16xf32>
    %107 = vector.extract_strided_slice %15 {offsets = [0, 80], sizes = [16, 16], strides = [1, 1]} : vector<16x128xf32> to vector<16x16xf32>
    %108 = vector.extract_strided_slice %20 {offsets = [0, 80], sizes = [16, 16], strides = [1, 1]} : vector<16x128xf32> to vector<16x16xf32>
    %cst_47 = arith.constant dense<0.000000e+00> : vector<16x16xf32>
    %109 = tpu.matmul %106, %107, %cst_47 {dimension_numbers = #tpu.dot_dimension_numbers<[1], [1], [0], [0], [0, 0, 1, 0], [], []>} : vector<16x16xf32>, vector<16x16xf32>, vector<16x16xf32> -> vector<16x16xf32>
    %cst_48 = arith.constant 2.500000e-01 : f32
    %110 = vector.broadcast %cst_48 : f32 to vector<16x16xf32>
    %111 = arith.mulf %109, %110 : vector<16x16xf32>
    %cst_49 = arith.constant dense<0xFF800000> : vector<16xf32>
    %112 = vector.multi_reduction <maximumf>, %111, %cst_49 [1] : vector<16x16xf32> to vector<16xf32>
    %113 = vector.shape_cast %112 : vector<16xf32> to vector<16x1xf32>
    %114 = vector.broadcast %113 : vector<16x1xf32> to vector<16x16xf32>
    %115 = arith.subf %111, %114 : vector<16x16xf32>
    %116 = math.exp %115 : vector<16x16xf32>
    %cst_50 = arith.constant dense<0.000000e+00> : vector<16xf32>
    %117 = vector.multi_reduction <add>, %116, %cst_50 [1] : vector<16x16xf32> to vector<16xf32>
    %118 = vector.shape_cast %117 : vector<16xf32> to vector<16x1xf32>
    %119 = tpu.reciprocal %118 {approx = true} : vector<16x1xf32> -> vector<16x1xf32>
    %120 = vector.broadcast %119 : vector<16x1xf32> to vector<16x16xf32>
    %121 = arith.mulf %116, %120 : vector<16x16xf32>
    %cst_51 = arith.constant dense<0.000000e+00> : vector<16x16xf32>
    %122 = tpu.matmul %121, %108, %cst_51 {dimension_numbers = #tpu.dot_dimension_numbers<[1], [0], [0], [1], [0, 0, 1, 1], [], []>} : vector<16x16xf32>, vector<16x16xf32>, vector<16x16xf32> -> vector<16x16xf32>
    %123 = vector.extract_strided_slice %10 {offsets = [0, 96], sizes = [16, 16], strides = [1, 1]} : vector<16x128xf32> to vector<16x16xf32>
    %124 = vector.extract_strided_slice %15 {offsets = [0, 96], sizes = [16, 16], strides = [1, 1]} : vector<16x128xf32> to vector<16x16xf32>
    %125 = vector.extract_strided_slice %20 {offsets = [0, 96], sizes = [16, 16], strides = [1, 1]} : vector<16x128xf32> to vector<16x16xf32>
    %cst_52 = arith.constant dense<0.000000e+00> : vector<16x16xf32>
    %126 = tpu.matmul %123, %124, %cst_52 {dimension_numbers = #tpu.dot_dimension_numbers<[1], [1], [0], [0], [0, 0, 1, 0], [], []>} : vector<16x16xf32>, vector<16x16xf32>, vector<16x16xf32> -> vector<16x16xf32>
    %cst_53 = arith.constant 2.500000e-01 : f32
    %127 = vector.broadcast %cst_53 : f32 to vector<16x16xf32>
    %128 = arith.mulf %126, %127 : vector<16x16xf32>
    %cst_54 = arith.constant dense<0xFF800000> : vector<16xf32>
    %129 = vector.multi_reduction <maximumf>, %128, %cst_54 [1] : vector<16x16xf32> to vector<16xf32>
    %130 = vector.shape_cast %129 : vector<16xf32> to vector<16x1xf32>
    %131 = vector.broadcast %130 : vector<16x1xf32> to vector<16x16xf32>
    %132 = arith.subf %128, %131 : vector<16x16xf32>
    %133 = math.exp %132 : vector<16x16xf32>
    %cst_55 = arith.constant dense<0.000000e+00> : vector<16xf32>
    %134 = vector.multi_reduction <add>, %133, %cst_55 [1] : vector<16x16xf32> to vector<16xf32>
    %135 = vector.shape_cast %134 : vector<16xf32> to vector<16x1xf32>
    %136 = tpu.reciprocal %135 {approx = true} : vector<16x1xf32> -> vector<16x1xf32>
    %137 = vector.broadcast %136 : vector<16x1xf32> to vector<16x16xf32>
    %138 = arith.mulf %133, %137 : vector<16x16xf32>
    %cst_56 = arith.constant dense<0.000000e+00> : vector<16x16xf32>
    %139 = tpu.matmul %138, %125, %cst_56 {dimension_numbers = #tpu.dot_dimension_numbers<[1], [0], [0], [1], [0, 0, 1, 1], [], []>} : vector<16x16xf32>, vector<16x16xf32>, vector<16x16xf32> -> vector<16x16xf32>
    %140 = vector.extract_strided_slice %10 {offsets = [0, 112], sizes = [16, 16], strides = [1, 1]} : vector<16x128xf32> to vector<16x16xf32>
    %141 = vector.extract_strided_slice %15 {offsets = [0, 112], sizes = [16, 16], strides = [1, 1]} : vector<16x128xf32> to vector<16x16xf32>
    %142 = vector.extract_strided_slice %20 {offsets = [0, 112], sizes = [16, 16], strides = [1, 1]} : vector<16x128xf32> to vector<16x16xf32>
    %cst_57 = arith.constant dense<0.000000e+00> : vector<16x16xf32>
    %143 = tpu.matmul %140, %141, %cst_57 {dimension_numbers = #tpu.dot_dimension_numbers<[1], [1], [0], [0], [0, 0, 1, 0], [], []>} : vector<16x16xf32>, vector<16x16xf32>, vector<16x16xf32> -> vector<16x16xf32>
    %cst_58 = arith.constant 2.500000e-01 : f32
    %144 = vector.broadcast %cst_58 : f32 to vector<16x16xf32>
    %145 = arith.mulf %143, %144 : vector<16x16xf32>
    %cst_59 = arith.constant dense<0xFF800000> : vector<16xf32>
    %146 = vector.multi_reduction <maximumf>, %145, %cst_59 [1] : vector<16x16xf32> to vector<16xf32>
    %147 = vector.shape_cast %146 : vector<16xf32> to vector<16x1xf32>
    %148 = vector.broadcast %147 : vector<16x1xf32> to vector<16x16xf32>
    %149 = arith.subf %145, %148 : vector<16x16xf32>
    %150 = math.exp %149 : vector<16x16xf32>
    %cst_60 = arith.constant dense<0.000000e+00> : vector<16xf32>
    %151 = vector.multi_reduction <add>, %150, %cst_60 [1] : vector<16x16xf32> to vector<16xf32>
    %152 = vector.shape_cast %151 : vector<16xf32> to vector<16x1xf32>
    %153 = tpu.reciprocal %152 {approx = true} : vector<16x1xf32> -> vector<16x1xf32>
    %154 = vector.broadcast %153 : vector<16x1xf32> to vector<16x16xf32>
    %155 = arith.mulf %150, %154 : vector<16x16xf32>
    %cst_61 = arith.constant dense<0.000000e+00> : vector<16x16xf32>
    %156 = tpu.matmul %155, %142, %cst_61 {dimension_numbers = #tpu.dot_dimension_numbers<[1], [0], [0], [1], [0, 0, 1, 1], [], []>} : vector<16x16xf32>, vector<16x16xf32>, vector<16x16xf32> -> vector<16x16xf32>
    %157 = tpu.concatenate %37, %54, %71, %88, %105, %122, %139, %156 in 1 : vector<16x16xf32>, vector<16x16xf32>, vector<16x16xf32>, vector<16x16xf32>, vector<16x16xf32>, vector<16x16xf32>, vector<16x16xf32>, vector<16x16xf32> -> vector<16x128xf32>
    %c0_62 = arith.constant 0 : index
    %c0_63 = arith.constant 0 : index
    %158 = vector.load %arg11[%c0_62, %c0_63] : memref<128x128xf32, #tpu.memory_space<vmem>>, vector<128x128xf32>
    %cst_64 = arith.constant dense<0.000000e+00> : vector<16x128xf32>
    %159 = tpu.matmul %157, %158, %cst_64 {dimension_numbers = #tpu.dot_dimension_numbers<[1], [0], [0], [1], [0, 0, 1, 1], [], []>} : vector<16x128xf32>, vector<128x128xf32>, vector<16x128xf32> -> vector<16x128xf32>
    %c0_65 = arith.constant 0 : index
    %c0_66 = arith.constant 0 : index
    %160 = vector.load %arg12[%c0_65, %c0_66] : memref<1x128xf32, #tpu.memory_space<vmem>>, vector<1x128xf32>
    %161 = vector.broadcast %160 : vector<1x128xf32> to vector<16x128xf32>
    %162 = arith.addf %159, %161 : vector<16x128xf32>
    %163 = arith.addf %1, %162 : vector<16x128xf32>
    %c0_67 = arith.constant 0 : index
    %c0_68 = arith.constant 0 : index
    %164 = vector.load %arg13[%c0_67, %c0_68] : memref<1x128xf32, #tpu.memory_space<vmem>>, vector<1x128xf32>
    %c0_69 = arith.constant 0 : index
    %c0_70 = arith.constant 0 : index
    %165 = vector.load %arg14[%c0_69, %c0_70] : memref<1x128xf32, #tpu.memory_space<vmem>>, vector<1x128xf32>
    %cst_71 = arith.constant dense<0.000000e+00> : vector<16xf32>
    %166 = vector.multi_reduction <add>, %163, %cst_71 [1] : vector<16x128xf32> to vector<16xf32>
    %167 = vector.shape_cast %166 : vector<16xf32> to vector<16x1xf32>
    %cst_72 = arith.constant 1.280000e+02 : f32
    %168 = vector.broadcast %cst_72 : f32 to vector<16x1xf32>
    %169 = arith.divf %167, %168 : vector<16x1xf32>
    %170 = vector.broadcast %169 : vector<16x1xf32> to vector<16x128xf32>
    %171 = arith.subf %163, %170 : vector<16x128xf32>
    %172 = arith.mulf %171, %171 : vector<16x128xf32>
    %cst_73 = arith.constant dense<0.000000e+00> : vector<16xf32>
    %173 = vector.multi_reduction <add>, %172, %cst_73 [1] : vector<16x128xf32> to vector<16xf32>
    %174 = vector.shape_cast %173 : vector<16xf32> to vector<16x1xf32>
    %cst_74 = arith.constant 1.280000e+02 : f32
    %175 = vector.broadcast %cst_74 : f32 to vector<16x1xf32>
    %176 = arith.divf %174, %175 : vector<16x1xf32>
    %177 = vector.broadcast %169 : vector<16x1xf32> to vector<16x128xf32>
    %178 = arith.subf %163, %177 : vector<16x128xf32>
    %cst_75 = arith.constant 9.99999974E-6 : f32
    %179 = vector.broadcast %cst_75 : f32 to vector<16x1xf32>
    %180 = arith.addf %176, %179 : vector<16x1xf32>
    %181 = math.rsqrt %180 : vector<16x1xf32>
    %182 = vector.broadcast %181 : vector<16x1xf32> to vector<16x128xf32>
    %183 = arith.mulf %178, %182 : vector<16x128xf32>
    %184 = vector.broadcast %164 : vector<1x128xf32> to vector<16x128xf32>
    %185 = arith.mulf %183, %184 : vector<16x128xf32>
    %186 = vector.broadcast %165 : vector<1x128xf32> to vector<16x128xf32>
    %187 = arith.addf %185, %186 : vector<16x128xf32>
    %c0_76 = arith.constant 0 : index
    %c0_77 = arith.constant 0 : index
    %188 = vector.load %arg15[%c0_76, %c0_77] : memref<128x128xf32, #tpu.memory_space<vmem>>, vector<128x128xf32>
    %cst_78 = arith.constant dense<0.000000e+00> : vector<16x128xf32>
    %189 = tpu.matmul %187, %188, %cst_78 {dimension_numbers = #tpu.dot_dimension_numbers<[1], [0], [0], [1], [0, 0, 1, 1], [], []>} : vector<16x128xf32>, vector<128x128xf32>, vector<16x128xf32> -> vector<16x128xf32>
    %c0_79 = arith.constant 0 : index
    %c0_80 = arith.constant 0 : index
    %190 = vector.load %arg16[%c0_79, %c0_80] : memref<1x128xf32, #tpu.memory_space<vmem>>, vector<1x128xf32>
    %191 = vector.broadcast %190 : vector<1x128xf32> to vector<16x128xf32>
    %192 = arith.addf %189, %191 : vector<16x128xf32>
    %c0_81 = arith.constant 0 : index
    %c0_82 = arith.constant 0 : index
    %193 = vector.load %arg17[%c0_81, %c0_82] : memref<128x128xf32, #tpu.memory_space<vmem>>, vector<128x128xf32>
    %cst_83 = arith.constant dense<0.000000e+00> : vector<16x128xf32>
    %194 = tpu.matmul %5, %193, %cst_83 {dimension_numbers = #tpu.dot_dimension_numbers<[1], [0], [0], [1], [0, 0, 1, 1], [], []>} : vector<16x128xf32>, vector<128x128xf32>, vector<16x128xf32> -> vector<16x128xf32>
    %c0_84 = arith.constant 0 : index
    %c0_85 = arith.constant 0 : index
    %195 = vector.load %arg18[%c0_84, %c0_85] : memref<1x128xf32, #tpu.memory_space<vmem>>, vector<1x128xf32>
    %196 = vector.broadcast %195 : vector<1x128xf32> to vector<16x128xf32>
    %197 = arith.addf %194, %196 : vector<16x128xf32>
    %c0_86 = arith.constant 0 : index
    %c0_87 = arith.constant 0 : index
    %198 = vector.load %arg19[%c0_86, %c0_87] : memref<128x128xf32, #tpu.memory_space<vmem>>, vector<128x128xf32>
    %cst_88 = arith.constant dense<0.000000e+00> : vector<16x128xf32>
    %199 = tpu.matmul %5, %198, %cst_88 {dimension_numbers = #tpu.dot_dimension_numbers<[1], [0], [0], [1], [0, 0, 1, 1], [], []>} : vector<16x128xf32>, vector<128x128xf32>, vector<16x128xf32> -> vector<16x128xf32>
    %c0_89 = arith.constant 0 : index
    %c0_90 = arith.constant 0 : index
    %200 = vector.load %arg20[%c0_89, %c0_90] : memref<1x128xf32, #tpu.memory_space<vmem>>, vector<1x128xf32>
    %201 = vector.broadcast %200 : vector<1x128xf32> to vector<16x128xf32>
    %202 = arith.addf %199, %201 : vector<16x128xf32>
    %203 = vector.extract_strided_slice %192 {offsets = [0, 0], sizes = [16, 16], strides = [1, 1]} : vector<16x128xf32> to vector<16x16xf32>
    %204 = vector.extract_strided_slice %197 {offsets = [0, 0], sizes = [16, 16], strides = [1, 1]} : vector<16x128xf32> to vector<16x16xf32>
    %205 = vector.extract_strided_slice %202 {offsets = [0, 0], sizes = [16, 16], strides = [1, 1]} : vector<16x128xf32> to vector<16x16xf32>
    %cst_91 = arith.constant dense<0.000000e+00> : vector<16x16xf32>
    %206 = tpu.matmul %203, %204, %cst_91 {dimension_numbers = #tpu.dot_dimension_numbers<[1], [1], [0], [0], [0, 0, 1, 0], [], []>} : vector<16x16xf32>, vector<16x16xf32>, vector<16x16xf32> -> vector<16x16xf32>
    %cst_92 = arith.constant 2.500000e-01 : f32
    %207 = vector.broadcast %cst_92 : f32 to vector<16x16xf32>
    %208 = arith.mulf %206, %207 : vector<16x16xf32>
    %cst_93 = arith.constant dense<0xFF800000> : vector<16xf32>
    %209 = vector.multi_reduction <maximumf>, %208, %cst_93 [1] : vector<16x16xf32> to vector<16xf32>
    %210 = vector.shape_cast %209 : vector<16xf32> to vector<16x1xf32>
    %211 = vector.broadcast %210 : vector<16x1xf32> to vector<16x16xf32>
    %212 = arith.subf %208, %211 : vector<16x16xf32>
    %213 = math.exp %212 : vector<16x16xf32>
    %cst_94 = arith.constant dense<0.000000e+00> : vector<16xf32>
    %214 = vector.multi_reduction <add>, %213, %cst_94 [1] : vector<16x16xf32> to vector<16xf32>
    %215 = vector.shape_cast %214 : vector<16xf32> to vector<16x1xf32>
    %216 = tpu.reciprocal %215 {approx = true} : vector<16x1xf32> -> vector<16x1xf32>
    %217 = vector.broadcast %216 : vector<16x1xf32> to vector<16x16xf32>
    %218 = arith.mulf %213, %217 : vector<16x16xf32>
    %cst_95 = arith.constant dense<0.000000e+00> : vector<16x16xf32>
    %219 = tpu.matmul %218, %205, %cst_95 {dimension_numbers = #tpu.dot_dimension_numbers<[1], [0], [0], [1], [0, 0, 1, 1], [], []>} : vector<16x16xf32>, vector<16x16xf32>, vector<16x16xf32> -> vector<16x16xf32>
    %220 = vector.extract_strided_slice %192 {offsets = [0, 16], sizes = [16, 16], strides = [1, 1]} : vector<16x128xf32> to vector<16x16xf32>
    %221 = vector.extract_strided_slice %197 {offsets = [0, 16], sizes = [16, 16], strides = [1, 1]} : vector<16x128xf32> to vector<16x16xf32>
    %222 = vector.extract_strided_slice %202 {offsets = [0, 16], sizes = [16, 16], strides = [1, 1]} : vector<16x128xf32> to vector<16x16xf32>
    %cst_96 = arith.constant dense<0.000000e+00> : vector<16x16xf32>
    %223 = tpu.matmul %220, %221, %cst_96 {dimension_numbers = #tpu.dot_dimension_numbers<[1], [1], [0], [0], [0, 0, 1, 0], [], []>} : vector<16x16xf32>, vector<16x16xf32>, vector<16x16xf32> -> vector<16x16xf32>
    %cst_97 = arith.constant 2.500000e-01 : f32
    %224 = vector.broadcast %cst_97 : f32 to vector<16x16xf32>
    %225 = arith.mulf %223, %224 : vector<16x16xf32>
    %cst_98 = arith.constant dense<0xFF800000> : vector<16xf32>
    %226 = vector.multi_reduction <maximumf>, %225, %cst_98 [1] : vector<16x16xf32> to vector<16xf32>
    %227 = vector.shape_cast %226 : vector<16xf32> to vector<16x1xf32>
    %228 = vector.broadcast %227 : vector<16x1xf32> to vector<16x16xf32>
    %229 = arith.subf %225, %228 : vector<16x16xf32>
    %230 = math.exp %229 : vector<16x16xf32>
    %cst_99 = arith.constant dense<0.000000e+00> : vector<16xf32>
    %231 = vector.multi_reduction <add>, %230, %cst_99 [1] : vector<16x16xf32> to vector<16xf32>
    %232 = vector.shape_cast %231 : vector<16xf32> to vector<16x1xf32>
    %233 = tpu.reciprocal %232 {approx = true} : vector<16x1xf32> -> vector<16x1xf32>
    %234 = vector.broadcast %233 : vector<16x1xf32> to vector<16x16xf32>
    %235 = arith.mulf %230, %234 : vector<16x16xf32>
    %cst_100 = arith.constant dense<0.000000e+00> : vector<16x16xf32>
    %236 = tpu.matmul %235, %222, %cst_100 {dimension_numbers = #tpu.dot_dimension_numbers<[1], [0], [0], [1], [0, 0, 1, 1], [], []>} : vector<16x16xf32>, vector<16x16xf32>, vector<16x16xf32> -> vector<16x16xf32>
    %237 = vector.extract_strided_slice %192 {offsets = [0, 32], sizes = [16, 16], strides = [1, 1]} : vector<16x128xf32> to vector<16x16xf32>
    %238 = vector.extract_strided_slice %197 {offsets = [0, 32], sizes = [16, 16], strides = [1, 1]} : vector<16x128xf32> to vector<16x16xf32>
    %239 = vector.extract_strided_slice %202 {offsets = [0, 32], sizes = [16, 16], strides = [1, 1]} : vector<16x128xf32> to vector<16x16xf32>
    %cst_101 = arith.constant dense<0.000000e+00> : vector<16x16xf32>
    %240 = tpu.matmul %237, %238, %cst_101 {dimension_numbers = #tpu.dot_dimension_numbers<[1], [1], [0], [0], [0, 0, 1, 0], [], []>} : vector<16x16xf32>, vector<16x16xf32>, vector<16x16xf32> -> vector<16x16xf32>
    %cst_102 = arith.constant 2.500000e-01 : f32
    %241 = vector.broadcast %cst_102 : f32 to vector<16x16xf32>
    %242 = arith.mulf %240, %241 : vector<16x16xf32>
    %cst_103 = arith.constant dense<0xFF800000> : vector<16xf32>
    %243 = vector.multi_reduction <maximumf>, %242, %cst_103 [1] : vector<16x16xf32> to vector<16xf32>
    %244 = vector.shape_cast %243 : vector<16xf32> to vector<16x1xf32>
    %245 = vector.broadcast %244 : vector<16x1xf32> to vector<16x16xf32>
    %246 = arith.subf %242, %245 : vector<16x16xf32>
    %247 = math.exp %246 : vector<16x16xf32>
    %cst_104 = arith.constant dense<0.000000e+00> : vector<16xf32>
    %248 = vector.multi_reduction <add>, %247, %cst_104 [1] : vector<16x16xf32> to vector<16xf32>
    %249 = vector.shape_cast %248 : vector<16xf32> to vector<16x1xf32>
    %250 = tpu.reciprocal %249 {approx = true} : vector<16x1xf32> -> vector<16x1xf32>
    %251 = vector.broadcast %250 : vector<16x1xf32> to vector<16x16xf32>
    %252 = arith.mulf %247, %251 : vector<16x16xf32>
    %cst_105 = arith.constant dense<0.000000e+00> : vector<16x16xf32>
    %253 = tpu.matmul %252, %239, %cst_105 {dimension_numbers = #tpu.dot_dimension_numbers<[1], [0], [0], [1], [0, 0, 1, 1], [], []>} : vector<16x16xf32>, vector<16x16xf32>, vector<16x16xf32> -> vector<16x16xf32>
    %254 = vector.extract_strided_slice %192 {offsets = [0, 48], sizes = [16, 16], strides = [1, 1]} : vector<16x128xf32> to vector<16x16xf32>
    %255 = vector.extract_strided_slice %197 {offsets = [0, 48], sizes = [16, 16], strides = [1, 1]} : vector<16x128xf32> to vector<16x16xf32>
    %256 = vector.extract_strided_slice %202 {offsets = [0, 48], sizes = [16, 16], strides = [1, 1]} : vector<16x128xf32> to vector<16x16xf32>
    %cst_106 = arith.constant dense<0.000000e+00> : vector<16x16xf32>
    %257 = tpu.matmul %254, %255, %cst_106 {dimension_numbers = #tpu.dot_dimension_numbers<[1], [1], [0], [0], [0, 0, 1, 0], [], []>} : vector<16x16xf32>, vector<16x16xf32>, vector<16x16xf32> -> vector<16x16xf32>
    %cst_107 = arith.constant 2.500000e-01 : f32
    %258 = vector.broadcast %cst_107 : f32 to vector<16x16xf32>
    %259 = arith.mulf %257, %258 : vector<16x16xf32>
    %cst_108 = arith.constant dense<0xFF800000> : vector<16xf32>
    %260 = vector.multi_reduction <maximumf>, %259, %cst_108 [1] : vector<16x16xf32> to vector<16xf32>
    %261 = vector.shape_cast %260 : vector<16xf32> to vector<16x1xf32>
    %262 = vector.broadcast %261 : vector<16x1xf32> to vector<16x16xf32>
    %263 = arith.subf %259, %262 : vector<16x16xf32>
    %264 = math.exp %263 : vector<16x16xf32>
    %cst_109 = arith.constant dense<0.000000e+00> : vector<16xf32>
    %265 = vector.multi_reduction <add>, %264, %cst_109 [1] : vector<16x16xf32> to vector<16xf32>
    %266 = vector.shape_cast %265 : vector<16xf32> to vector<16x1xf32>
    %267 = tpu.reciprocal %266 {approx = true} : vector<16x1xf32> -> vector<16x1xf32>
    %268 = vector.broadcast %267 : vector<16x1xf32> to vector<16x16xf32>
    %269 = arith.mulf %264, %268 : vector<16x16xf32>
    %cst_110 = arith.constant dense<0.000000e+00> : vector<16x16xf32>
    %270 = tpu.matmul %269, %256, %cst_110 {dimension_numbers = #tpu.dot_dimension_numbers<[1], [0], [0], [1], [0, 0, 1, 1], [], []>} : vector<16x16xf32>, vector<16x16xf32>, vector<16x16xf32> -> vector<16x16xf32>
    %271 = vector.extract_strided_slice %192 {offsets = [0, 64], sizes = [16, 16], strides = [1, 1]} : vector<16x128xf32> to vector<16x16xf32>
    %272 = vector.extract_strided_slice %197 {offsets = [0, 64], sizes = [16, 16], strides = [1, 1]} : vector<16x128xf32> to vector<16x16xf32>
    %273 = vector.extract_strided_slice %202 {offsets = [0, 64], sizes = [16, 16], strides = [1, 1]} : vector<16x128xf32> to vector<16x16xf32>
    %cst_111 = arith.constant dense<0.000000e+00> : vector<16x16xf32>
    %274 = tpu.matmul %271, %272, %cst_111 {dimension_numbers = #tpu.dot_dimension_numbers<[1], [1], [0], [0], [0, 0, 1, 0], [], []>} : vector<16x16xf32>, vector<16x16xf32>, vector<16x16xf32> -> vector<16x16xf32>
    %cst_112 = arith.constant 2.500000e-01 : f32
    %275 = vector.broadcast %cst_112 : f32 to vector<16x16xf32>
    %276 = arith.mulf %274, %275 : vector<16x16xf32>
    %cst_113 = arith.constant dense<0xFF800000> : vector<16xf32>
    %277 = vector.multi_reduction <maximumf>, %276, %cst_113 [1] : vector<16x16xf32> to vector<16xf32>
    %278 = vector.shape_cast %277 : vector<16xf32> to vector<16x1xf32>
    %279 = vector.broadcast %278 : vector<16x1xf32> to vector<16x16xf32>
    %280 = arith.subf %276, %279 : vector<16x16xf32>
    %281 = math.exp %280 : vector<16x16xf32>
    %cst_114 = arith.constant dense<0.000000e+00> : vector<16xf32>
    %282 = vector.multi_reduction <add>, %281, %cst_114 [1] : vector<16x16xf32> to vector<16xf32>
    %283 = vector.shape_cast %282 : vector<16xf32> to vector<16x1xf32>
    %284 = tpu.reciprocal %283 {approx = true} : vector<16x1xf32> -> vector<16x1xf32>
    %285 = vector.broadcast %284 : vector<16x1xf32> to vector<16x16xf32>
    %286 = arith.mulf %281, %285 : vector<16x16xf32>
    %cst_115 = arith.constant dense<0.000000e+00> : vector<16x16xf32>
    %287 = tpu.matmul %286, %273, %cst_115 {dimension_numbers = #tpu.dot_dimension_numbers<[1], [0], [0], [1], [0, 0, 1, 1], [], []>} : vector<16x16xf32>, vector<16x16xf32>, vector<16x16xf32> -> vector<16x16xf32>
    %288 = vector.extract_strided_slice %192 {offsets = [0, 80], sizes = [16, 16], strides = [1, 1]} : vector<16x128xf32> to vector<16x16xf32>
    %289 = vector.extract_strided_slice %197 {offsets = [0, 80], sizes = [16, 16], strides = [1, 1]} : vector<16x128xf32> to vector<16x16xf32>
    %290 = vector.extract_strided_slice %202 {offsets = [0, 80], sizes = [16, 16], strides = [1, 1]} : vector<16x128xf32> to vector<16x16xf32>
    %cst_116 = arith.constant dense<0.000000e+00> : vector<16x16xf32>
    %291 = tpu.matmul %288, %289, %cst_116 {dimension_numbers = #tpu.dot_dimension_numbers<[1], [1], [0], [0], [0, 0, 1, 0], [], []>} : vector<16x16xf32>, vector<16x16xf32>, vector<16x16xf32> -> vector<16x16xf32>
    %cst_117 = arith.constant 2.500000e-01 : f32
    %292 = vector.broadcast %cst_117 : f32 to vector<16x16xf32>
    %293 = arith.mulf %291, %292 : vector<16x16xf32>
    %cst_118 = arith.constant dense<0xFF800000> : vector<16xf32>
    %294 = vector.multi_reduction <maximumf>, %293, %cst_118 [1] : vector<16x16xf32> to vector<16xf32>
    %295 = vector.shape_cast %294 : vector<16xf32> to vector<16x1xf32>
    %296 = vector.broadcast %295 : vector<16x1xf32> to vector<16x16xf32>
    %297 = arith.subf %293, %296 : vector<16x16xf32>
    %298 = math.exp %297 : vector<16x16xf32>
    %cst_119 = arith.constant dense<0.000000e+00> : vector<16xf32>
    %299 = vector.multi_reduction <add>, %298, %cst_119 [1] : vector<16x16xf32> to vector<16xf32>
    %300 = vector.shape_cast %299 : vector<16xf32> to vector<16x1xf32>
    %301 = tpu.reciprocal %300 {approx = true} : vector<16x1xf32> -> vector<16x1xf32>
    %302 = vector.broadcast %301 : vector<16x1xf32> to vector<16x16xf32>
    %303 = arith.mulf %298, %302 : vector<16x16xf32>
    %cst_120 = arith.constant dense<0.000000e+00> : vector<16x16xf32>
    %304 = tpu.matmul %303, %290, %cst_120 {dimension_numbers = #tpu.dot_dimension_numbers<[1], [0], [0], [1], [0, 0, 1, 1], [], []>} : vector<16x16xf32>, vector<16x16xf32>, vector<16x16xf32> -> vector<16x16xf32>
    %305 = vector.extract_strided_slice %192 {offsets = [0, 96], sizes = [16, 16], strides = [1, 1]} : vector<16x128xf32> to vector<16x16xf32>
    %306 = vector.extract_strided_slice %197 {offsets = [0, 96], sizes = [16, 16], strides = [1, 1]} : vector<16x128xf32> to vector<16x16xf32>
    %307 = vector.extract_strided_slice %202 {offsets = [0, 96], sizes = [16, 16], strides = [1, 1]} : vector<16x128xf32> to vector<16x16xf32>
    %cst_121 = arith.constant dense<0.000000e+00> : vector<16x16xf32>
    %308 = tpu.matmul %305, %306, %cst_121 {dimension_numbers = #tpu.dot_dimension_numbers<[1], [1], [0], [0], [0, 0, 1, 0], [], []>} : vector<16x16xf32>, vector<16x16xf32>, vector<16x16xf32> -> vector<16x16xf32>
    %cst_122 = arith.constant 2.500000e-01 : f32
    %309 = vector.broadcast %cst_122 : f32 to vector<16x16xf32>
    %310 = arith.mulf %308, %309 : vector<16x16xf32>
    %cst_123 = arith.constant dense<0xFF800000> : vector<16xf32>
    %311 = vector.multi_reduction <maximumf>, %310, %cst_123 [1] : vector<16x16xf32> to vector<16xf32>
    %312 = vector.shape_cast %311 : vector<16xf32> to vector<16x1xf32>
    %313 = vector.broadcast %312 : vector<16x1xf32> to vector<16x16xf32>
    %314 = arith.subf %310, %313 : vector<16x16xf32>
    %315 = math.exp %314 : vector<16x16xf32>
    %cst_124 = arith.constant dense<0.000000e+00> : vector<16xf32>
    %316 = vector.multi_reduction <add>, %315, %cst_124 [1] : vector<16x16xf32> to vector<16xf32>
    %317 = vector.shape_cast %316 : vector<16xf32> to vector<16x1xf32>
    %318 = tpu.reciprocal %317 {approx = true} : vector<16x1xf32> -> vector<16x1xf32>
    %319 = vector.broadcast %318 : vector<16x1xf32> to vector<16x16xf32>
    %320 = arith.mulf %315, %319 : vector<16x16xf32>
    %cst_125 = arith.constant dense<0.000000e+00> : vector<16x16xf32>
    %321 = tpu.matmul %320, %307, %cst_125 {dimension_numbers = #tpu.dot_dimension_numbers<[1], [0], [0], [1], [0, 0, 1, 1], [], []>} : vector<16x16xf32>, vector<16x16xf32>, vector<16x16xf32> -> vector<16x16xf32>
    %322 = vector.extract_strided_slice %192 {offsets = [0, 112], sizes = [16, 16], strides = [1, 1]} : vector<16x128xf32> to vector<16x16xf32>
    %323 = vector.extract_strided_slice %197 {offsets = [0, 112], sizes = [16, 16], strides = [1, 1]} : vector<16x128xf32> to vector<16x16xf32>
    %324 = vector.extract_strided_slice %202 {offsets = [0, 112], sizes = [16, 16], strides = [1, 1]} : vector<16x128xf32> to vector<16x16xf32>
    %cst_126 = arith.constant dense<0.000000e+00> : vector<16x16xf32>
    %325 = tpu.matmul %322, %323, %cst_126 {dimension_numbers = #tpu.dot_dimension_numbers<[1], [1], [0], [0], [0, 0, 1, 0], [], []>} : vector<16x16xf32>, vector<16x16xf32>, vector<16x16xf32> -> vector<16x16xf32>
    %cst_127 = arith.constant 2.500000e-01 : f32
    %326 = vector.broadcast %cst_127 : f32 to vector<16x16xf32>
    %327 = arith.mulf %325, %326 : vector<16x16xf32>
    %cst_128 = arith.constant dense<0xFF800000> : vector<16xf32>
    %328 = vector.multi_reduction <maximumf>, %327, %cst_128 [1] : vector<16x16xf32> to vector<16xf32>
    %329 = vector.shape_cast %328 : vector<16xf32> to vector<16x1xf32>
    %330 = vector.broadcast %329 : vector<16x1xf32> to vector<16x16xf32>
    %331 = arith.subf %327, %330 : vector<16x16xf32>
    %332 = math.exp %331 : vector<16x16xf32>
    %cst_129 = arith.constant dense<0.000000e+00> : vector<16xf32>
    %333 = vector.multi_reduction <add>, %332, %cst_129 [1] : vector<16x16xf32> to vector<16xf32>
    %334 = vector.shape_cast %333 : vector<16xf32> to vector<16x1xf32>
    %335 = tpu.reciprocal %334 {approx = true} : vector<16x1xf32> -> vector<16x1xf32>
    %336 = vector.broadcast %335 : vector<16x1xf32> to vector<16x16xf32>
    %337 = arith.mulf %332, %336 : vector<16x16xf32>
    %cst_130 = arith.constant dense<0.000000e+00> : vector<16x16xf32>
    %338 = tpu.matmul %337, %324, %cst_130 {dimension_numbers = #tpu.dot_dimension_numbers<[1], [0], [0], [1], [0, 0, 1, 1], [], []>} : vector<16x16xf32>, vector<16x16xf32>, vector<16x16xf32> -> vector<16x16xf32>
    %339 = tpu.concatenate %219, %236, %253, %270, %287, %304, %321, %338 in 1 : vector<16x16xf32>, vector<16x16xf32>, vector<16x16xf32>, vector<16x16xf32>, vector<16x16xf32>, vector<16x16xf32>, vector<16x16xf32>, vector<16x16xf32> -> vector<16x128xf32>
    %c0_131 = arith.constant 0 : index
    %c0_132 = arith.constant 0 : index
    %340 = vector.load %arg21[%c0_131, %c0_132] : memref<128x128xf32, #tpu.memory_space<vmem>>, vector<128x128xf32>
    %cst_133 = arith.constant dense<0.000000e+00> : vector<16x128xf32>
    %341 = tpu.matmul %339, %340, %cst_133 {dimension_numbers = #tpu.dot_dimension_numbers<[1], [0], [0], [1], [0, 0, 1, 1], [], []>} : vector<16x128xf32>, vector<128x128xf32>, vector<16x128xf32> -> vector<16x128xf32>
    %c0_134 = arith.constant 0 : index
    %c0_135 = arith.constant 0 : index
    %342 = vector.load %arg22[%c0_134, %c0_135] : memref<1x128xf32, #tpu.memory_space<vmem>>, vector<1x128xf32>
    %343 = vector.broadcast %342 : vector<1x128xf32> to vector<16x128xf32>
    %344 = arith.addf %341, %343 : vector<16x128xf32>
    %345 = arith.addf %187, %344 : vector<16x128xf32>
    %c0_136 = arith.constant 0 : index
    %c0_137 = arith.constant 0 : index
    %346 = vector.load %arg23[%c0_136, %c0_137] : memref<1x128xf32, #tpu.memory_space<vmem>>, vector<1x128xf32>
    %c0_138 = arith.constant 0 : index
    %c0_139 = arith.constant 0 : index
    %347 = vector.load %arg24[%c0_138, %c0_139] : memref<1x128xf32, #tpu.memory_space<vmem>>, vector<1x128xf32>
    %cst_140 = arith.constant dense<0.000000e+00> : vector<16xf32>
    %348 = vector.multi_reduction <add>, %345, %cst_140 [1] : vector<16x128xf32> to vector<16xf32>
    %349 = vector.shape_cast %348 : vector<16xf32> to vector<16x1xf32>
    %cst_141 = arith.constant 1.280000e+02 : f32
    %350 = vector.broadcast %cst_141 : f32 to vector<16x1xf32>
    %351 = arith.divf %349, %350 : vector<16x1xf32>
    %352 = vector.broadcast %351 : vector<16x1xf32> to vector<16x128xf32>
    %353 = arith.subf %345, %352 : vector<16x128xf32>
    %354 = arith.mulf %353, %353 : vector<16x128xf32>
    %cst_142 = arith.constant dense<0.000000e+00> : vector<16xf32>
    %355 = vector.multi_reduction <add>, %354, %cst_142 [1] : vector<16x128xf32> to vector<16xf32>
    %356 = vector.shape_cast %355 : vector<16xf32> to vector<16x1xf32>
    %cst_143 = arith.constant 1.280000e+02 : f32
    %357 = vector.broadcast %cst_143 : f32 to vector<16x1xf32>
    %358 = arith.divf %356, %357 : vector<16x1xf32>
    %359 = vector.broadcast %351 : vector<16x1xf32> to vector<16x128xf32>
    %360 = arith.subf %345, %359 : vector<16x128xf32>
    %cst_144 = arith.constant 9.99999974E-6 : f32
    %361 = vector.broadcast %cst_144 : f32 to vector<16x1xf32>
    %362 = arith.addf %358, %361 : vector<16x1xf32>
    %363 = math.rsqrt %362 : vector<16x1xf32>
    %364 = vector.broadcast %363 : vector<16x1xf32> to vector<16x128xf32>
    %365 = arith.mulf %360, %364 : vector<16x128xf32>
    %366 = vector.broadcast %346 : vector<1x128xf32> to vector<16x128xf32>
    %367 = arith.mulf %365, %366 : vector<16x128xf32>
    %368 = vector.broadcast %347 : vector<1x128xf32> to vector<16x128xf32>
    %369 = arith.addf %367, %368 : vector<16x128xf32>
    %c0_145 = arith.constant 0 : index
    %c0_146 = arith.constant 0 : index
    %370 = vector.load %arg25[%c0_145, %c0_146] : memref<128x256xf32, #tpu.memory_space<vmem>>, vector<128x256xf32>
    %cst_147 = arith.constant dense<0.000000e+00> : vector<16x256xf32>
    %371 = tpu.matmul %369, %370, %cst_147 {dimension_numbers = #tpu.dot_dimension_numbers<[1], [0], [0], [1], [0, 0, 1, 1], [], []>} : vector<16x128xf32>, vector<128x256xf32>, vector<16x256xf32> -> vector<16x256xf32>
    %c0_148 = arith.constant 0 : index
    %c0_149 = arith.constant 0 : index
    %372 = vector.load %arg26[%c0_148, %c0_149] : memref<1x256xf32, #tpu.memory_space<vmem>>, vector<1x256xf32>
    %373 = vector.broadcast %372 : vector<1x256xf32> to vector<16x256xf32>
    %374 = arith.addf %371, %373 : vector<16x256xf32>
    %cst_150 = arith.constant 0.000000e+00 : f32
    %375 = vector.broadcast %cst_150 : f32 to vector<16x256xf32>
    %376 = arith.maximumf %374, %375 : vector<16x256xf32>
    %c0_151 = arith.constant 0 : index
    %c0_152 = arith.constant 0 : index
    %377 = vector.load %arg27[%c0_151, %c0_152] : memref<256x128xf32, #tpu.memory_space<vmem>>, vector<256x128xf32>
    %cst_153 = arith.constant dense<0.000000e+00> : vector<16x128xf32>
    %378 = tpu.matmul %376, %377, %cst_153 {dimension_numbers = #tpu.dot_dimension_numbers<[1], [0], [0], [1], [0, 0, 1, 1], [], []>} : vector<16x256xf32>, vector<256x128xf32>, vector<16x128xf32> -> vector<16x128xf32>
    %c0_154 = arith.constant 0 : index
    %c0_155 = arith.constant 0 : index
    %379 = vector.load %arg28[%c0_154, %c0_155] : memref<1x128xf32, #tpu.memory_space<vmem>>, vector<1x128xf32>
    %380 = vector.broadcast %379 : vector<1x128xf32> to vector<16x128xf32>
    %381 = arith.addf %378, %380 : vector<16x128xf32>
    %382 = arith.addf %369, %381 : vector<16x128xf32>
    %c0_156 = arith.constant 0 : index
    %c0_157 = arith.constant 0 : index
    %383 = vector.load %arg29[%c0_156, %c0_157] : memref<1x128xf32, #tpu.memory_space<vmem>>, vector<1x128xf32>
    %c0_158 = arith.constant 0 : index
    %c0_159 = arith.constant 0 : index
    %384 = vector.load %arg30[%c0_158, %c0_159] : memref<1x128xf32, #tpu.memory_space<vmem>>, vector<1x128xf32>
    %cst_160 = arith.constant dense<0.000000e+00> : vector<16xf32>
    %385 = vector.multi_reduction <add>, %382, %cst_160 [1] : vector<16x128xf32> to vector<16xf32>
    %386 = vector.shape_cast %385 : vector<16xf32> to vector<16x1xf32>
    %cst_161 = arith.constant 1.280000e+02 : f32
    %387 = vector.broadcast %cst_161 : f32 to vector<16x1xf32>
    %388 = arith.divf %386, %387 : vector<16x1xf32>
    %389 = vector.broadcast %388 : vector<16x1xf32> to vector<16x128xf32>
    %390 = arith.subf %382, %389 : vector<16x128xf32>
    %391 = arith.mulf %390, %390 : vector<16x128xf32>
    %cst_162 = arith.constant dense<0.000000e+00> : vector<16xf32>
    %392 = vector.multi_reduction <add>, %391, %cst_162 [1] : vector<16x128xf32> to vector<16xf32>
    %393 = vector.shape_cast %392 : vector<16xf32> to vector<16x1xf32>
    %cst_163 = arith.constant 1.280000e+02 : f32
    %394 = vector.broadcast %cst_163 : f32 to vector<16x1xf32>
    %395 = arith.divf %393, %394 : vector<16x1xf32>
    %396 = vector.broadcast %388 : vector<16x1xf32> to vector<16x128xf32>
    %397 = arith.subf %382, %396 : vector<16x128xf32>
    %cst_164 = arith.constant 9.99999974E-6 : f32
    %398 = vector.broadcast %cst_164 : f32 to vector<16x1xf32>
    %399 = arith.addf %395, %398 : vector<16x1xf32>
    %400 = math.rsqrt %399 : vector<16x1xf32>
    %401 = vector.broadcast %400 : vector<16x1xf32> to vector<16x128xf32>
    %402 = arith.mulf %397, %401 : vector<16x128xf32>
    %403 = vector.broadcast %383 : vector<1x128xf32> to vector<16x128xf32>
    %404 = arith.mulf %402, %403 : vector<16x128xf32>
    %405 = vector.broadcast %384 : vector<1x128xf32> to vector<16x128xf32>
    %406 = arith.addf %404, %405 : vector<16x128xf32>
    %c0_165 = arith.constant 0 : index
    %c0_166 = arith.constant 0 : index
    %c0_167 = arith.constant 0 : index
    %407 = vector.load %arg31[%c0_165, %c0_166, %c0_167] : memref<1x16x128xf32, #tpu.memory_space<vmem>>, vector<1x16x128xf32>
    %408 = vector.shape_cast %407 : vector<1x16x128xf32> to vector<16x128xf32>
    %409 = vector.shape_cast %406 : vector<16x128xf32> to vector<1x16x128xf32>
    tpu.vector_store %arg31[%c0_165, %c0_166, %c0_167], %409 {strides = array<i32>} : memref<1x16x128xf32, #tpu.memory_space<vmem>>, vector<1x16x128xf32>,
    return
  }
  func.func @transform_0(%arg0: i32, %arg1: i32) -> (i32, i32, i32) {
    %c0_i32 = arith.constant 0 : i32
    %c0_i32_0 = arith.constant 0 : i32
    return %arg0, %arg1, %c0_i32 : i32, i32, i32
  }
  func.func @transform_1(%arg0: i32, %arg1: i32) -> (i32, i32, i32) {
    %c0_i32 = arith.constant 0 : i32
    %c0_i32_0 = arith.constant 0 : i32
    %c0_i32_1 = arith.constant 0 : i32
    return %arg0, %c0_i32, %c0_i32_0 : i32, i32, i32
  }
  func.func @transform_2(%arg0: i32, %arg1: i32) -> (i32, i32, i32) {
    %c0_i32 = arith.constant 0 : i32
    %c0_i32_0 = arith.constant 0 : i32
    %c0_i32_1 = arith.constant 0 : i32
    return %arg0, %c0_i32, %c0_i32_0 : i32, i32, i32
  }
  func.func @transform_3(%arg0: i32, %arg1: i32) -> (i32, i32) {
    %c0_i32 = arith.constant 0 : i32
    %c0_i32_0 = arith.constant 0 : i32
    %c0_i32_1 = arith.constant 0 : i32
    return %c0_i32, %c0_i32_0 : i32, i32
  }
  func.func @transform_4(%arg0: i32, %arg1: i32) -> (i32, i32) {
    %c0_i32 = arith.constant 0 : i32
    %c0_i32_0 = arith.constant 0 : i32
    %c0_i32_1 = arith.constant 0 : i32
    return %c0_i32, %c0_i32_0 : i32, i32
  }
  func.func @transform_5(%arg0: i32, %arg1: i32) -> (i32, i32) {
    %c0_i32 = arith.constant 0 : i32
    %c0_i32_0 = arith.constant 0 : i32
    %c0_i32_1 = arith.constant 0 : i32
    return %c0_i32, %c0_i32_0 : i32, i32
  }
  func.func @transform_6(%arg0: i32, %arg1: i32) -> (i32, i32) {
    %c0_i32 = arith.constant 0 : i32
    %c0_i32_0 = arith.constant 0 : i32
    %c0_i32_1 = arith.constant 0 : i32
    return %c0_i32, %c0_i32_0 : i32, i32
  }
  func.func @transform_7(%arg0: i32, %arg1: i32) -> (i32, i32) {
    %c0_i32 = arith.constant 0 : i32
    %c0_i32_0 = arith.constant 0 : i32
    %c0_i32_1 = arith.constant 0 : i32
    return %c0_i32, %c0_i32_0 : i32, i32
  }
  func.func @transform_8(%arg0: i32, %arg1: i32) -> (i32, i32) {
    %c0_i32 = arith.constant 0 : i32
    %c0_i32_0 = arith.constant 0 : i32
    %c0_i32_1 = arith.constant 0 : i32
    return %c0_i32, %c0_i32_0 : i32, i32
  }
  func.func @transform_9(%arg0: i32, %arg1: i32) -> (i32, i32) {
    %c0_i32 = arith.constant 0 : i32
    %c0_i32_0 = arith.constant 0 : i32
    %c0_i32_1 = arith.constant 0 : i32
    return %c0_i32, %c0_i32_0 : i32, i32
  }
  func.func @transform_10(%arg0: i32, %arg1: i32) -> (i32, i32) {
    %c0_i32 = arith.constant 0 : i32
    %c0_i32_0 = arith.constant 0 : i32
    %c0_i32_1 = arith.constant 0 : i32
    return %c0_i32, %c0_i32_0 : i32, i32
  }
  func.func @transform_11(%arg0: i32, %arg1: i32) -> (i32, i32) {
    %c0_i32 = arith.constant 0 : i32
    %c0_i32_0 = arith.constant 0 : i32
    %c0_i32_1 = arith.constant 0 : i32
    return %c0_i32, %c0_i32_0 : i32, i32
  }
  func.func @transform_12(%arg0: i32, %arg1: i32) -> (i32, i32) {
    %c0_i32 = arith.constant 0 : i32
    %c0_i32_0 = arith.constant 0 : i32
    %c0_i32_1 = arith.constant 0 : i32
    return %c0_i32, %c0_i32_0 : i32, i32
  }
  func.func @transform_13(%arg0: i32, %arg1: i32) -> (i32, i32) {
    %c0_i32 = arith.constant 0 : i32
    %c0_i32_0 = arith.constant 0 : i32
    %c0_i32_1 = arith.constant 0 : i32
    return %c0_i32, %c0_i32_0 : i32, i32
  }
  func.func @transform_14(%arg0: i32, %arg1: i32) -> (i32, i32) {
    %c0_i32 = arith.constant 0 : i32
    %c0_i32_0 = arith.constant 0 : i32
    %c0_i32_1 = arith.constant 0 : i32
    return %c0_i32, %c0_i32_0 : i32, i32
  }
  func.func @transform_15(%arg0: i32, %arg1: i32) -> (i32, i32) {
    %c0_i32 = arith.constant 0 : i32
    %c0_i32_0 = arith.constant 0 : i32
    %c0_i32_1 = arith.constant 0 : i32
    return %c0_i32, %c0_i32_0 : i32, i32
  }
  func.func @transform_16(%arg0: i32, %arg1: i32) -> (i32, i32) {
    %c0_i32 = arith.constant 0 : i32
    %c0_i32_0 = arith.constant 0 : i32
    %c0_i32_1 = arith.constant 0 : i32
    return %c0_i32, %c0_i32_0 : i32, i32
  }
  func.func @transform_17(%arg0: i32, %arg1: i32) -> (i32, i32) {
    %c0_i32 = arith.constant 0 : i32
    %c0_i32_0 = arith.constant 0 : i32
    %c0_i32_1 = arith.constant 0 : i32
    return %c0_i32, %c0_i32_0 : i32, i32
  }
  func.func @transform_18(%arg0: i32, %arg1: i32) -> (i32, i32) {
    %c0_i32 = arith.constant 0 : i32
    %c0_i32_0 = arith.constant 0 : i32
    %c0_i32_1 = arith.constant 0 : i32
    return %c0_i32, %c0_i32_0 : i32, i32
  }
  func.func @transform_19(%arg0: i32, %arg1: i32) -> (i32, i32) {
    %c0_i32 = arith.constant 0 : i32
    %c0_i32_0 = arith.constant 0 : i32
    %c0_i32_1 = arith.constant 0 : i32
    return %c0_i32, %c0_i32_0 : i32, i32
  }
  func.func @transform_20(%arg0: i32, %arg1: i32) -> (i32, i32) {
    %c0_i32 = arith.constant 0 : i32
    %c0_i32_0 = arith.constant 0 : i32
    %c0_i32_1 = arith.constant 0 : i32
    return %c0_i32, %c0_i32_0 : i32, i32
  }
  func.func @transform_21(%arg0: i32, %arg1: i32) -> (i32, i32) {
    %c0_i32 = arith.constant 0 : i32
    %c0_i32_0 = arith.constant 0 : i32
    %c0_i32_1 = arith.constant 0 : i32
    return %c0_i32, %c0_i32_0 : i32, i32
  }
  func.func @transform_22(%arg0: i32, %arg1: i32) -> (i32, i32) {
    %c0_i32 = arith.constant 0 : i32
    %c0_i32_0 = arith.constant 0 : i32
    %c0_i32_1 = arith.constant 0 : i32
    return %c0_i32, %c0_i32_0 : i32, i32
  }
  func.func @transform_23(%arg0: i32, %arg1: i32) -> (i32, i32) {
    %c0_i32 = arith.constant 0 : i32
    %c0_i32_0 = arith.constant 0 : i32
    %c0_i32_1 = arith.constant 0 : i32
    return %c0_i32, %c0_i32_0 : i32, i32
  }
  func.func @transform_24(%arg0: i32, %arg1: i32) -> (i32, i32) {
    %c0_i32 = arith.constant 0 : i32
    %c0_i32_0 = arith.constant 0 : i32
    %c0_i32_1 = arith.constant 0 : i32
    return %c0_i32, %c0_i32_0 : i32, i32
  }
  func.func @transform_25(%arg0: i32, %arg1: i32) -> (i32, i32) {
    %c0_i32 = arith.constant 0 : i32
    %c0_i32_0 = arith.constant 0 : i32
    %c0_i32_1 = arith.constant 0 : i32
    return %c0_i32, %c0_i32_0 : i32, i32
  }
  func.func @transform_26(%arg0: i32, %arg1: i32) -> (i32, i32) {
    %c0_i32 = arith.constant 0 : i32
    %c0_i32_0 = arith.constant 0 : i32
    %c0_i32_1 = arith.constant 0 : i32
    return %c0_i32, %c0_i32_0 : i32, i32
  }
  func.func @transform_27(%arg0: i32, %arg1: i32) -> (i32, i32) {
    %c0_i32 = arith.constant 0 : i32
    %c0_i32_0 = arith.constant 0 : i32
    %c0_i32_1 = arith.constant 0 : i32
    return %c0_i32, %c0_i32_0 : i32, i32
  }
  func.func @transform_28(%arg0: i32, %arg1: i32) -> (i32, i32) {
    %c0_i32 = arith.constant 0 : i32
    %c0_i32_0 = arith.constant 0 : i32
    %c0_i32_1 = arith.constant 0 : i32
    return %c0_i32, %c0_i32_0 : i32, i32
  }
  func.func @transform_29(%arg0: i32, %arg1: i32) -> (i32, i32, i32) {
    %c0_i32 = arith.constant 0 : i32
    %c0_i32_0 = arith.constant 0 : i32
    return %arg0, %arg1, %c0_i32 : i32, i32, i32
  }
}

</mosaic_0001>

<llo_original>
// kernel: tpu_custom_call.1
$region0: #{tpu_custom_call.1}
  #allocation0 [shape = 'u32[]', space=smem, size = 0x4, offset = 0x4, fixed_abs, tag = 'smem constant byte address 0x4 - core index']
  #allocation1 [shape = 'u32[144,128]{1,0:T(1,128)}', space=vmem, size = 0x12000, scoped, tag = 'internal scratch']
  %s0 = inlined_call_operand.smem [shape: u32[30], index: -1, kind: input, shape index: {}]
  %s1 = sld [smem:[%s0]]
  %s2 = scalar_lea.smem %s0, 1
  %s3 = sld [smem:[%s2]]
  %s4 = scalar_lea.smem %s0, 2
  %s5 = sld [smem:[%s4]]
  %s6 = scalar_lea.smem %s0, 3
  %s7 = sld [smem:[%s6]]
  %s8 = scalar_lea.smem %s0, 4
  %s9 = sld [smem:[%s8]]
  %s10 = scalar_lea.smem %s0, 5
  %s11 = sld [smem:[%s10]]
  %s12 = scalar_lea.smem %s0, 6
  %s13 = sld [smem:[%s12]]
  %s14 = scalar_lea.smem %s0, 7
  %s15 = sld [smem:[%s14]]
  %s16 = scalar_lea.smem %s0, 8
  %s17 = sld [smem:[%s16]]
  %s18 = scalar_lea.smem %s0, 9
  %s19 = sld [smem:[%s18]]
  %s20 = scalar_lea.smem %s0, 10
  %s21 = sld [smem:[%s20]]
  %s22 = scalar_lea.smem %s0, 11
  %s23 = sld [smem:[%s22]]
  %s24 = scalar_lea.smem %s0, 12
  %s25 = sld [smem:[%s24]]
  %s26 = scalar_lea.smem %s0, 13
  %s27 = sld [smem:[%s26]]
  %s28 = scalar_lea.smem %s0, 14
  %s29 = sld [smem:[%s28]]
  %s30 = scalar_lea.smem %s0, 15
  %s31 = sld [smem:[%s30]]
  %s32 = scalar_lea.smem %s0, 16
  %s33 = sld [smem:[%s32]]
  %s34 = scalar_lea.smem %s0, 17
  %s35 = sld [smem:[%s34]]
  %s36 = scalar_lea.smem %s0, 18
  %s37 = sld [smem:[%s36]]
  %s38 = scalar_lea.smem %s0, 19
  %s39 = sld [smem:[%s38]]
  %s40 = scalar_lea.smem %s0, 20
  %s41 = sld [smem:[%s40]]
  %s42 = scalar_lea.smem %s0, 21
  %s43 = sld [smem:[%s42]]
  %s44 = scalar_lea.smem %s0, 22
  %s45 = sld [smem:[%s44]]
  %s46 = scalar_lea.smem %s0, 23
  %s47 = sld [smem:[%s46]]
  %s48 = scalar_lea.smem %s0, 24
  %s49 = sld [smem:[%s48]]
  %s50 = scalar_lea.smem %s0, 25
  %s51 = sld [smem:[%s50]]
  %s52 = scalar_lea.smem %s0, 26
  %s53 = sld [smem:[%s52]]
  %s54 = scalar_lea.smem %s0, 27
  %s55 = sld [smem:[%s54]]
  %s56 = scalar_lea.smem %s0, 28
  %s57 = sld [smem:[%s56]]
  %s58 = scalar_lea.smem %s0, 29
  %s59 = sld [smem:[%s58]]
  %s60 = sld [smem:[#allocation0]]
  $region265: #{tpu_custom_call.1} parent=0
    _
  %s62 = ssub.s32 1, %s60
  %s63 = scalar_select 0, %s62, %s60
  $region1: #{tpu_custom_call.1} parent=0
    #allocation2 [shape = 'u8[16384]{0}', space=vmem, size = 0x4000, scoped, tag = 'input window, operand 0']
    #allocation3 [shape = 's32[2]{0}', space=sflag, size = 0x8, scoped, tag = 'scoped memory for tpu_custom_call.1']
    #allocation4 [shape = 's32[2]{0}', space=sflag, size = 0x8, scoped, tag = 'scoped memory for tpu_custom_call.1']
    #allocation5 [shape = 'u8[16384]{0}', space=vmem, size = 0x4000, scoped, tag = 'input window, operand 1']
    #allocation6 [shape = 's32[2]{0}', space=sflag, size = 0x8, scoped, tag = 'scoped memory for tpu_custom_call.1']
    #allocation7 [shape = 'u8[16384]{0}', space=vmem, size = 0x4000, scoped, tag = 'input window, operand 2']
    #allocation8 [shape = 'u8[65536]{0}', space=vmem, size = 0x10000, scoped, tag = 'input window, operand 3, single buffered']
    #allocation9 [shape = 's32[1]{0}', space=sflag, size = 0x4, scoped, tag = 'scoped memory for tpu_custom_call.1']
    #allocation10 [shape = 'u8[512]{0}', space=vmem, size = 0x400, scoped, tag = 'input window, operand 4, single buffered']
    #allocation11 [shape = 'u8[65536]{0}', space=vmem, size = 0x10000, scoped, tag = 'input window, operand 5, single buffered']
    #allocation12 [shape = 's32[1]{0}', space=sflag, size = 0x4, scoped, tag = 'scoped memory for tpu_custom_call.1']
    #allocation13 [shape = 'u8[512]{0}', space=vmem, size = 0x400, scoped, tag = 'input window, operand 6, single buffered']
    #allocation14 [shape = 'u8[65536]{0}', space=vmem, size = 0x10000, scoped, tag = 'input window, operand 7, single buffered']
    #allocation15 [shape = 's32[1]{0}', space=sflag, size = 0x4, scoped, tag = 'scoped memory for tpu_custom_call.1']
    #allocation16 [shape = 'u8[512]{0}', space=vmem, size = 0x400, scoped, tag = 'input window, operand 8, single buffered']
    #allocation17 [shape = 'u8[65536]{0}', space=vmem, size = 0x10000, scoped, tag = 'input window, operand 9, single buffered']
    #allocation18 [shape = 's32[1]{0}', space=sflag, size = 0x4, scoped, tag = 'scoped memory for tpu_custom_call.1']
    #allocation19 [shape = 'u8[512]{0}', space=vmem, size = 0x400, scoped, tag = 'input window, operand 10, single buffered']
    #allocation20 [shape = 'u8[512]{0}', space=vmem, size = 0x400, scoped, tag = 'input window, operand 11, single buffered']
    #allocation21 [shape = 's32[1]{0}', space=sflag, size = 0x4, scoped, tag = 'scoped memory for tpu_custom_call.1']
    #allocation22 [shape = 'u8[512]{0}', space=vmem, size = 0x400, scoped, tag = 'input window, operand 12, single buffered']
    #allocation23 [shape = 'u8[65536]{0}', space=vmem, size = 0x10000, scoped, tag = 'input window, operand 13, single buffered']
    #allocation24 [shape = 's32[1]{0}', space=sflag, size = 0x4, scoped, tag = 'scoped memory for tpu_custom_call.1']
    #allocation25 [shape = 'u8[512]{0}', space=vmem, size = 0x400, scoped, tag = 'input window, operand 14, single buffered']
    #allocation26 [shape = 'u8[65536]{0}', space=vmem, size = 0x10000, scoped, tag = 'input window, operand 15, single buffered']
    #allocation27 [shape = 's32[1]{0}', space=sflag, size = 0x4, scoped, tag = 'scoped memory for tpu_custom_call.1']
    #allocation28 [shape = 'u8[512]{0}', space=vmem, size = 0x400, scoped, tag = 'input window, operand 16, single buffered']
    #allocation29 [shape = 'u8[65536]{0}', space=vmem, size = 0x10000, scoped, tag = 'input window, operand 17, single buffered']
    #allocation30 [shape = 's32[1]{0}', space=sflag, size = 0x4, scoped, tag = 'scoped memory for tpu_custom_call.1']
    #allocation31 [shape = 'u8[512]{0}', space=vmem, size = 0x400, scoped, tag = 'input window, operand 18, single buffered']
    #allocation32 [shape = 'u8[65536]{0}', space=vmem, size = 0x10000, scoped, tag = 'input window, operand 19, single buffered']
    #allocation33 [shape = 's32[1]{0}', space=sflag, size = 0x4, scoped, tag = 'scoped memory for tpu_custom_call.1']
    #allocation34 [shape = 'u8[512]{0}', space=vmem, size = 0x400, scoped, tag = 'input window, operand 20, single buffered']
    #allocation35 [shape = 'u8[512]{0}', space=vmem, size = 0x400, scoped, tag = 'input window, operand 21, single buffered']
    #allocation36 [shape = 's32[1]{0}', space=sflag, size = 0x4, scoped, tag = 'scoped memory for tpu_custom_call.1']
    #allocation37 [shape = 'u8[512]{0}', space=vmem, size = 0x400, scoped, tag = 'input window, operand 22, single buffered']
    #allocation38 [shape = 'u8[131072]{0}', space=vmem, size = 0x20000, scoped, tag = 'input window, operand 23, single buffered']
    #allocation39 [shape = 's32[1]{0}', space=sflag, size = 0x4, scoped, tag = 'scoped memory for tpu_custom_call.1']
    #allocation40 [shape = 'u8[1024]{0}', space=vmem, size = 0x400, scoped, tag = 'input window, operand 24, single buffered']
    #allocation41 [shape = 'u8[131072]{0}', space=vmem, size = 0x20000, scoped, tag = 'input window, operand 25, single buffered']
    #allocation42 [shape = 's32[1]{0}', space=sflag, size = 0x4, scoped, tag = 'scoped memory for tpu_custom_call.1']
    #allocation43 [shape = 'u8[512]{0}', space=vmem, size = 0x400, scoped, tag = 'input window, operand 26, single buffered']
    #allocation44 [shape = 'u8[512]{0}', space=vmem, size = 0x400, scoped, tag = 'input window, operand 27, single buffered']
    #allocation45 [shape = 's32[1]{0}', space=sflag, size = 0x4, scoped, tag = 'scoped memory for tpu_custom_call.1']
    #allocation46 [shape = 'u8[512]{0}', space=vmem, size = 0x400, scoped, tag = 'input window, operand 28, single buffered']
    #allocation47 [shape = 'u8[16384]{0}', space=vmem, size = 0x4000, scoped, tag = 'output window, operand 0']
    %64 = vsyncpa [#allocation3], 0
    %s65 = scalar_lea.sflag [#allocation3], 1
    %66 = vsyncpa %s65, 0
    %67 = vsyncpa [#allocation6], 0
    %s68 = scalar_lea.sflag [#allocation6], 1
    %69 = vsyncpa %s68, 0
    %70 = vsyncpa [#allocation9], 0
    %71 = vsyncpa [#allocation12], 0
    %72 = vsyncpa [#allocation15], 0
    %73 = vsyncpa [#allocation18], 0
    %74 = vsyncpa [#allocation21], 0
    %75 = vsyncpa [#allocation24], 0
    %76 = vsyncpa [#allocation27], 0
    %77 = vsyncpa [#allocation30], 0
    %78 = vsyncpa [#allocation33], 0
    %79 = vsyncpa [#allocation36], 0
    %80 = vsyncpa [#allocation39], 0
    %81 = vsyncpa [#allocation42], 0
    %82 = vsyncpa [#allocation45], 0
    %83 = vsyncpa [#allocation4], 0
    %s84 = scalar_lea.sflag [#allocation4], 1
    %85 = vsyncpa %s84, 0
    loop: start=0, step=1, limit=4
    $region2: #{tpu_custom_call.1} parent=1 // loop_pre_header
      _
    $region3: #{tpu_custom_call.1} parent=1 // loop_header
      %s87 = sphi 0, %s91
      %p88 = scmp.ge.s32.totalorder %s87, 4
      %s94 = sphi 0, %s106
      %s95 = sphi 0, %s102
      %s96 = sphi 0, %s94
      %s97 = sphi 0, %s95
      %s98 = sphi 0, %s96
      %s99 = sphi 0, %s97
      %s111 = sphi 0, %s113
      %s114 = sphi 0, %s111
      %s115 = sphi 0, %s114
      %s131 = sphi 0, %s115
      %s137 = sphi 0, %s139
      %s140 = sphi 0, %s137
      %s141 = sphi 0, %s140
      %s157 = sphi 0, %s141
      %s163 = sphi 0, %s165
      %s166 = sphi 0, %s163
      %s167 = sphi 0, %s166
      %s183 = sphi 0, %s167
      %s187 = sphi 0, %s187
      %s189 = sphi 0, %s187
      %s190 = sphi 0, %s189
      %s204 = sphi 0, %s190
      %s208 = sphi 0, %s208
      %s210 = sphi 0, %s208
      %s211 = sphi 0, %s210
      %s225 = sphi 0, %s211
      %s229 = sphi 0, %s229
      %s231 = sphi 0, %s229
      %s232 = sphi 0, %s231
      %s246 = sphi 0, %s232
      %s250 = sphi 0, %s250
      %s252 = sphi 0, %s250
      %s253 = sphi 0, %s252
      %s267 = sphi 0, %s253
      %s271 = sphi 0, %s271
      %s273 = sphi 0, %s271
      %s274 = sphi 0, %s273
      %s288 = sphi 0, %s274
      %s292 = sphi 0, %s292
      %s294 = sphi 0, %s292
      %s295 = sphi 0, %s294
      %s309 = sphi 0, %s295
      %s313 = sphi 0, %s313
      %s315 = sphi 0, %s313
      %s316 = sphi 0, %s315
      %s330 = sphi 0, %s316
      %s334 = sphi 0, %s334
      %s336 = sphi 0, %s334
      %s337 = sphi 0, %s336
      %s351 = sphi 0, %s337
      %s355 = sphi 0, %s355
      %s357 = sphi 0, %s355
      %s358 = sphi 0, %s357
      %s372 = sphi 0, %s358
      %s376 = sphi 0, %s376
      %s378 = sphi 0, %s376
      %s379 = sphi 0, %s378
      %s393 = sphi 0, %s379
      %s397 = sphi 0, %s397
      %s399 = sphi 0, %s397
      %s400 = sphi 0, %s399
      %s414 = sphi 0, %s400
      %s418 = sphi 0, %s418
      %s420 = sphi 0, %s418
      %s421 = sphi 0, %s420
      %s435 = sphi 0, %s421
      %s439 = sphi 0, %s439
      %s441 = sphi 0, %s439
      %s442 = sphi 0, %s441
      %s456 = sphi 0, %s442
      %s460 = sphi 0, %s460
      %s462 = sphi 0, %s460
      %s463 = sphi 0, %s462
      %s477 = sphi 0, %s463
      %s481 = sphi 0, %s481
      %s483 = sphi 0, %s481
      %s484 = sphi 0, %s483
      %s498 = sphi 0, %s484
      %s502 = sphi 0, %s502
      %s504 = sphi 0, %s502
      %s505 = sphi 0, %s504
      %s519 = sphi 0, %s505
      %s523 = sphi 0, %s523
      %s525 = sphi 0, %s523
      %s526 = sphi 0, %s525
      %s540 = sphi 0, %s526
      %s544 = sphi 0, %s544
      %s546 = sphi 0, %s544
      %s547 = sphi 0, %s546
      %s561 = sphi 0, %s547
      %s565 = sphi 0, %s565
      %s567 = sphi 0, %s565
      %s568 = sphi 0, %s567
      %s582 = sphi 0, %s568
      %s586 = sphi 0, %s586
      %s588 = sphi 0, %s586
      %s589 = sphi 0, %s588
      %s603 = sphi 0, %s589
      %s607 = sphi 0, %s607
      %s609 = sphi 0, %s607
      %s610 = sphi 0, %s609
      %s624 = sphi 0, %s610
      %s628 = sphi 0, %s628
      %s630 = sphi 0, %s628
      %s631 = sphi 0, %s630
      %s645 = sphi 0, %s631
      %s649 = sphi 0, %s649
      %s651 = sphi 0, %s649
      %s652 = sphi 0, %s651
      %s666 = sphi 0, %s652
      %s670 = sphi 0, %s670
      %s672 = sphi 0, %s670
      %s673 = sphi 0, %s672
      %s687 = sphi 0, %s673
      %s691 = sphi 0, %s691
      %s693 = sphi 0, %s691
      %s694 = sphi 0, %s693
      %s708 = sphi 0, %s694
      %s712 = sphi 0, %s712
      %s714 = sphi 0, %s712
      %s715 = sphi 0, %s714
      %s729 = sphi 0, %s715
      %s737 = sphi 0, %s739
      %s740 = sphi 0, %s737
      %s741 = sphi 0, %s740
      %s757 = sphi 0, %s741
    $region4: #{tpu_custom_call.1} parent=1 // loop_header_branch
      %90 = sbr.rel (%p88) target = $region8
    $region5: #{tpu_custom_call.1} parent=1 // loop_body
      %s92 = ssub.s32 %s87, 1
      %s93 = ssub.s32 %s87, 2
      %s100 = sadd.s32 1, %s95
      %p101 = scmp.ge.s32.totalorder %s100, 1
      %s102 = scalar_select %p101, 0, %s100
      %s103 = sadd.s32 1, %s94
      %s104 = scalar_select %p101, %s103, %s94
      %p105 = scmp.ge.s32.totalorder %s104, 2
      %s106 = scalar_select %p105, 0, %s104
      %s107 = ssub.s32 %s94, %s106
      %s108 = ssub.s32 %s95, %s102
      %s109 = sor.u32 %s107, %s108
      %p110 = scmp.eq.s32.totalorder %s109, 0
      %s112 = sadd.s32 %s111, 1
      %s113 = scalar_select %p110, %s111, %s112
      %p116 = pneg %p110
      %p117 = scmp.eq.s32.totalorder %s87, 1
      %p118 = por %p116, %p117
      %p119 = scmp.ne.s32.totalorder %s111, %s114
      %p120 = scmp.eq.s32.totalorder %s87, 0
      %p121 = por %p119, %p120
      %p122 = scmp.ne.s32.totalorder %s111, %s114
      %p123 = scmp.eq.s32.totalorder %s92, 1
      %p124 = por %p122, %p123
      %p125 = scmp.ne.s32.totalorder %s114, %s115
      %p126 = scmp.eq.s32.totalorder %s92, 0
      %p127 = por %p125, %p126
      %p128 = scmp.ne.s32.totalorder %s114, %s115
      %p129 = scmp.eq.s32.totalorder %s93, 1
      %p130 = por %p128, %p129
      %p132 = scmp.ne.s32.totalorder %s115, %s131
      %p133 = scmp.eq.s32.totalorder %s93, 0
      %p134 = por %p132, %p133
      %s135 = ssub.s32 %s94, %s106
      %p136 = scmp.eq.s32.totalorder %s135, 0
      %s138 = sadd.s32 %s137, 1
      %s139 = scalar_select %p136, %s137, %s138
      %p142 = pneg %p136
      %p143 = scmp.eq.s32.totalorder %s87, 1
      %p144 = por %p142, %p143
      %p145 = scmp.ne.s32.totalorder %s137, %s140
      %p146 = scmp.eq.s32.totalorder %s87, 0
      %p147 = por %p145, %p146
      %p148 = scmp.ne.s32.totalorder %s137, %s140
      %p149 = scmp.eq.s32.totalorder %s92, 1
      %p150 = por %p148, %p149
      %p151 = scmp.ne.s32.totalorder %s140, %s141
      %p152 = scmp.eq.s32.totalorder %s92, 0
      %p153 = por %p151, %p152
      %p154 = scmp.ne.s32.totalorder %s140, %s141
      %p155 = scmp.eq.s32.totalorder %s93, 1
      %p156 = por %p154, %p155
      %p158 = scmp.ne.s32.totalorder %s141, %s157
      %p159 = scmp.eq.s32.totalorder %s93, 0
      %p160 = por %p158, %p159
      %s161 = ssub.s32 %s94, %s106
      %p162 = scmp.eq.s32.totalorder %s161, 0
      %s164 = sadd.s32 %s163, 1
      %s165 = scalar_select %p162, %s163, %s164
      %p168 = pneg %p162
      %p169 = scmp.eq.s32.totalorder %s87, 1
      %p170 = por %p168, %p169
      %p171 = scmp.ne.s32.totalorder %s163, %s166
      %p172 = scmp.eq.s32.totalorder %s87, 0
      %p173 = por %p171, %p172
      %p174 = scmp.ne.s32.totalorder %s163, %s166
      %p175 = scmp.eq.s32.totalorder %s92, 1
      %p176 = por %p174, %p175
      %p177 = scmp.ne.s32.totalorder %s166, %s167
      %p178 = scmp.eq.s32.totalorder %s92, 0
      %p179 = por %p177, %p178
      %p180 = scmp.ne.s32.totalorder %s166, %s167
      %p181 = scmp.eq.s32.totalorder %s93, 1
      %p182 = por %p180, %p181
      %p184 = scmp.ne.s32.totalorder %s167, %s183
      %p185 = scmp.eq.s32.totalorder %s93, 0
      %p186 = por %p184, %p185
      %s188 = sadd.s32 %s187, 1
      %p191 = scmp.eq.s32.totalorder %s87, 1
      %p192 = scmp.ne.s32.totalorder %s187, %s189
      %p193 = scmp.eq.s32.totalorder %s87, 0
      %p194 = por %p192, %p193
      %p195 = scmp.ne.s32.totalorder %s187, %s189
      %p196 = scmp.eq.s32.totalorder %s92, 1
      %p197 = por %p195, %p196
      %p198 = scmp.ne.s32.totalorder %s189, %s190
      %p199 = scmp.eq.s32.totalorder %s92, 0
      %p200 = por %p198, %p199
      %p201 = scmp.ne.s32.totalorder %s189, %s190
      %p202 = scmp.eq.s32.totalorder %s93, 1
      %p203 = por %p201, %p202
      %p205 = scmp.ne.s32.totalorder %s190, %s204
      %p206 = scmp.eq.s32.totalorder %s93, 0
      %p207 = por %p205, %p206
      %s209 = sadd.s32 %s208, 1
      %p212 = scmp.eq.s32.totalorder %s87, 1
      %p213 = scmp.ne.s32.totalorder %s208, %s210
      %p214 = scmp.eq.s32.totalorder %s87, 0
      %p215 = por %p213, %p214
      %p216 = scmp.ne.s32.totalorder %s208, %s210
      %p217 = scmp.eq.s32.totalorder %s92, 1
      %p218 = por %p216, %p217
      %p219 = scmp.ne.s32.totalorder %s210, %s211
      %p220 = scmp.eq.s32.totalorder %s92, 0
      %p221 = por %p219, %p220
      %p222 = scmp.ne.s32.totalorder %s210, %s211
      %p223 = scmp.eq.s32.totalorder %s93, 1
      %p224 = por %p222, %p223
      %p226 = scmp.ne.s32.totalorder %s211, %s225
      %p227 = scmp.eq.s32.totalorder %s93, 0
      %p228 = por %p226, %p227
      %s230 = sadd.s32 %s229, 1
      %p233 = scmp.eq.s32.totalorder %s87, 1
      %p234 = scmp.ne.s32.totalorder %s229, %s231
      %p235 = scmp.eq.s32.totalorder %s87, 0
      %p236 = por %p234, %p235
      %p237 = scmp.ne.s32.totalorder %s229, %s231
      %p238 = scmp.eq.s32.totalorder %s92, 1
      %p239 = por %p237, %p238
      %p240 = scmp.ne.s32.totalorder %s231, %s232
      %p241 = scmp.eq.s32.totalorder %s92, 0
      %p242 = por %p240, %p241
      %p243 = scmp.ne.s32.totalorder %s231, %s232
      %p244 = scmp.eq.s32.totalorder %s93, 1
      %p245 = por %p243, %p244
      %p247 = scmp.ne.s32.totalorder %s232, %s246
      %p248 = scmp.eq.s32.totalorder %s93, 0
      %p249 = por %p247, %p248
      %s251 = sadd.s32 %s250, 1
      %p254 = scmp.eq.s32.totalorder %s87, 1
      %p255 = scmp.ne.s32.totalorder %s250, %s252
      %p256 = scmp.eq.s32.totalorder %s87, 0
      %p257 = por %p255, %p256
      %p258 = scmp.ne.s32.totalorder %s250, %s252
      %p259 = scmp.eq.s32.totalorder %s92, 1
      %p260 = por %p258, %p259
      %p261 = scmp.ne.s32.totalorder %s252, %s253
      %p262 = scmp.eq.s32.totalorder %s92, 0
      %p263 = por %p261, %p262
      %p264 = scmp.ne.s32.totalorder %s252, %s253
      %p265 = scmp.eq.s32.totalorder %s93, 1
      %p266 = por %p264, %p265
      %p268 = scmp.ne.s32.totalorder %s253, %s267
      %p269 = scmp.eq.s32.totalorder %s93, 0
      %p270 = por %p268, %p269
      %s272 = sadd.s32 %s271, 1
      %p275 = scmp.eq.s32.totalorder %s87, 1
      %p276 = scmp.ne.s32.totalorder %s271, %s273
      %p277 = scmp.eq.s32.totalorder %s87, 0
      %p278 = por %p276, %p277
      %p279 = scmp.ne.s32.totalorder %s271, %s273
      %p280 = scmp.eq.s32.totalorder %s92, 1
      %p281 = por %p279, %p280
      %p282 = scmp.ne.s32.totalorder %s273, %s274
      %p283 = scmp.eq.s32.totalorder %s92, 0
      %p284 = por %p282, %p283
      %p285 = scmp.ne.s32.totalorder %s273, %s274
      %p286 = scmp.eq.s32.totalorder %s93, 1
      %p287 = por %p285, %p286
      %p289 = scmp.ne.s32.totalorder %s274, %s288
      %p290 = scmp.eq.s32.totalorder %s93, 0
      %p291 = por %p289, %p290
      %s293 = sadd.s32 %s292, 1
      %p296 = scmp.eq.s32.totalorder %s87, 1
      %p297 = scmp.ne.s32.totalorder %s292, %s294
      %p298 = scmp.eq.s32.totalorder %s87, 0
      %p299 = por %p297, %p298
      %p300 = scmp.ne.s32.totalorder %s292, %s294
      %p301 = scmp.eq.s32.totalorder %s92, 1
      %p302 = por %p300, %p301
      %p303 = scmp.ne.s32.totalorder %s294, %s295
      %p304 = scmp.eq.s32.totalorder %s92, 0
      %p305 = por %p303, %p304
      %p306 = scmp.ne.s32.totalorder %s294, %s295
      %p307 = scmp.eq.s32.totalorder %s93, 1
      %p308 = por %p306, %p307
      %p310 = scmp.ne.s32.totalorder %s295, %s309
      %p311 = scmp.eq.s32.totalorder %s93, 0
      %p312 = por %p310, %p311
      %s314 = sadd.s32 %s313, 1
      %p317 = scmp.eq.s32.totalorder %s87, 1
      %p318 = scmp.ne.s32.totalorder %s313, %s315
      %p319 = scmp.eq.s32.totalorder %s87, 0
      %p320 = por %p318, %p319
      %p321 = scmp.ne.s32.totalorder %s313, %s315
      %p322 = scmp.eq.s32.totalorder %s92, 1
      %p323 = por %p321, %p322
      %p324 = scmp.ne.s32.totalorder %s315, %s316
      %p325 = scmp.eq.s32.totalorder %s92, 0
      %p326 = por %p324, %p325
      %p327 = scmp.ne.s32.totalorder %s315, %s316
      %p328 = scmp.eq.s32.totalorder %s93, 1
      %p329 = por %p327, %p328
      %p331 = scmp.ne.s32.totalorder %s316, %s330
      %p332 = scmp.eq.s32.totalorder %s93, 0
      %p333 = por %p331, %p332
      %s335 = sadd.s32 %s334, 1
      %p338 = scmp.eq.s32.totalorder %s87, 1
      %p339 = scmp.ne.s32.totalorder %s334, %s336
      %p340 = scmp.eq.s32.totalorder %s87, 0
      %p341 = por %p339, %p340
      %p342 = scmp.ne.s32.totalorder %s334, %s336
      %p343 = scmp.eq.s32.totalorder %s92, 1
      %p344 = por %p342, %p343
      %p345 = scmp.ne.s32.totalorder %s336, %s337
      %p346 = scmp.eq.s32.totalorder %s92, 0
      %p347 = por %p345, %p346
      %p348 = scmp.ne.s32.totalorder %s336, %s337
      %p349 = scmp.eq.s32.totalorder %s93, 1
      %p350 = por %p348, %p349
      %p352 = scmp.ne.s32.totalorder %s337, %s351
      %p353 = scmp.eq.s32.totalorder %s93, 0
      %p354 = por %p352, %p353
      %s356 = sadd.s32 %s355, 1
      %p359 = scmp.eq.s32.totalorder %s87, 1
      %p360 = scmp.ne.s32.totalorder %s355, %s357
      %p361 = scmp.eq.s32.totalorder %s87, 0
      %p362 = por %p360, %p361
      %p363 = scmp.ne.s32.totalorder %s355, %s357
      %p364 = scmp.eq.s32.totalorder %s92, 1
      %p365 = por %p363, %p364
      %p366 = scmp.ne.s32.totalorder %s357, %s358
      %p367 = scmp.eq.s32.totalorder %s92, 0
      %p368 = por %p366, %p367
      %p369 = scmp.ne.s32.totalorder %s357, %s358
      %p370 = scmp.eq.s32.totalorder %s93, 1
      %p371 = por %p369, %p370
      %p373 = scmp.ne.s32.totalorder %s358, %s372
      %p374 = scmp.eq.s32.totalorder %s93, 0
      %p375 = por %p373, %p374
      %s377 = sadd.s32 %s376, 1
      %p380 = scmp.eq.s32.totalorder %s87, 1
      %p381 = scmp.ne.s32.totalorder %s376, %s378
      %p382 = scmp.eq.s32.totalorder %s87, 0
      %p383 = por %p381, %p382
      %p384 = scmp.ne.s32.totalorder %s376, %s378
      %p385 = scmp.eq.s32.totalorder %s92, 1
      %p386 = por %p384, %p385
      %p387 = scmp.ne.s32.totalorder %s378, %s379
      %p388 = scmp.eq.s32.totalorder %s92, 0
      %p389 = por %p387, %p388
      %p390 = scmp.ne.s32.totalorder %s378, %s379
      %p391 = scmp.eq.s32.totalorder %s93, 1
      %p392 = por %p390, %p391
      %p394 = scmp.ne.s32.totalorder %s379, %s393
      %p395 = scmp.eq.s32.totalorder %s93, 0
      %p396 = por %p394, %p395
      %s398 = sadd.s32 %s397, 1
      %p401 = scmp.eq.s32.totalorder %s87, 1
      %p402 = scmp.ne.s32.totalorder %s397, %s399
      %p403 = scmp.eq.s32.totalorder %s87, 0
      %p404 = por %p402, %p403
      %p405 = scmp.ne.s32.totalorder %s397, %s399
      %p406 = scmp.eq.s32.totalorder %s92, 1
      %p407 = por %p405, %p406
      %p408 = scmp.ne.s32.totalorder %s399, %s400
      %p409 = scmp.eq.s32.totalorder %s92, 0
      %p410 = por %p408, %p409
      %p411 = scmp.ne.s32.totalorder %s399, %s400
      %p412 = scmp.eq.s32.totalorder %s93, 1
      %p413 = por %p411, %p412
      %p415 = scmp.ne.s32.totalorder %s400, %s414
      %p416 = scmp.eq.s32.totalorder %s93, 0
      %p417 = por %p415, %p416
      %s419 = sadd.s32 %s418, 1
      %p422 = scmp.eq.s32.totalorder %s87, 1
      %p423 = scmp.ne.s32.totalorder %s418, %s420
      %p424 = scmp.eq.s32.totalorder %s87, 0
      %p425 = por %p423, %p424
      %p426 = scmp.ne.s32.totalorder %s418, %s420
      %p427 = scmp.eq.s32.totalorder %s92, 1
      %p428 = por %p426, %p427
      %p429 = scmp.ne.s32.totalorder %s420, %s421
      %p430 = scmp.eq.s32.totalorder %s92, 0
      %p431 = por %p429, %p430
      %p432 = scmp.ne.s32.totalorder %s420, %s421
      %p433 = scmp.eq.s32.totalorder %s93, 1
      %p434 = por %p432, %p433
      %p436 = scmp.ne.s32.totalorder %s421, %s435
      %p437 = scmp.eq.s32.totalorder %s93, 0
      %p438 = por %p436, %p437
      %s440 = sadd.s32 %s439, 1
      %p443 = scmp.eq.s32.totalorder %s87, 1
      %p444 = scmp.ne.s32.totalorder %s439, %s441
      %p445 = scmp.eq.s32.totalorder %s87, 0
      %p446 = por %p444, %p445
      %p447 = scmp.ne.s32.totalorder %s439, %s441
      %p448 = scmp.eq.s32.totalorder %s92, 1
      %p449 = por %p447, %p448
      %p450 = scmp.ne.s32.totalorder %s441, %s442
      %p451 = scmp.eq.s32.totalorder %s92, 0
      %p452 = por %p450, %p451
      %p453 = scmp.ne.s32.totalorder %s441, %s442
      %p454 = scmp.eq.s32.totalorder %s93, 1
      %p455 = por %p453, %p454
      %p457 = scmp.ne.s32.totalorder %s442, %s456
      %p458 = scmp.eq.s32.totalorder %s93, 0
      %p459 = por %p457, %p458
      %s461 = sadd.s32 %s460, 1
      %p464 = scmp.eq.s32.totalorder %s87, 1
      %p465 = scmp.ne.s32.totalorder %s460, %s462
      %p466 = scmp.eq.s32.totalorder %s87, 0
      %p467 = por %p465, %p466
      %p468 = scmp.ne.s32.totalorder %s460, %s462
      %p469 = scmp.eq.s32.totalorder %s92, 1
      %p470 = por %p468, %p469
      %p471 = scmp.ne.s32.totalorder %s462, %s463
      %p472 = scmp.eq.s32.totalorder %s92, 0
      %p473 = por %p471, %p472
      %p474 = scmp.ne.s32.totalorder %s462, %s463
      %p475 = scmp.eq.s32.totalorder %s93, 1
      %p476 = por %p474, %p475
      %p478 = scmp.ne.s32.totalorder %s463, %s477
      %p479 = scmp.eq.s32.totalorder %s93, 0
      %p480 = por %p478, %p479
      %s482 = sadd.s32 %s481, 1
      %p485 = scmp.eq.s32.totalorder %s87, 1
      %p486 = scmp.ne.s32.totalorder %s481, %s483
      %p487 = scmp.eq.s32.totalorder %s87, 0
      %p488 = por %p486, %p487
      %p489 = scmp.ne.s32.totalorder %s481, %s483
      %p490 = scmp.eq.s32.totalorder %s92, 1
      %p491 = por %p489, %p490
      %p492 = scmp.ne.s32.totalorder %s483, %s484
      %p493 = scmp.eq.s32.totalorder %s92, 0
      %p494 = por %p492, %p493
      %p495 = scmp.ne.s32.totalorder %s483, %s484
      %p496 = scmp.eq.s32.totalorder %s93, 1
      %p497 = por %p495, %p496
      %p499 = scmp.ne.s32.totalorder %s484, %s498
      %p500 = scmp.eq.s32.totalorder %s93, 0
      %p501 = por %p499, %p500
      %s503 = sadd.s32 %s502, 1
      %p506 = scmp.eq.s32.totalorder %s87, 1
      %p507 = scmp.ne.s32.totalorder %s502, %s504
      %p508 = scmp.eq.s32.totalorder %s87, 0
      %p509 = por %p507, %p508
      %p510 = scmp.ne.s32.totalorder %s502, %s504
      %p511 = scmp.eq.s32.totalorder %s92, 1
      %p512 = por %p510, %p511
      %p513 = scmp.ne.s32.totalorder %s504, %s505
      %p514 = scmp.eq.s32.totalorder %s92, 0
      %p515 = por %p513, %p514
      %p516 = scmp.ne.s32.totalorder %s504, %s505
      %p517 = scmp.eq.s32.totalorder %s93, 1
      %p518 = por %p516, %p517
      %p520 = scmp.ne.s32.totalorder %s505, %s519
      %p521 = scmp.eq.s32.totalorder %s93, 0
      %p522 = por %p520, %p521
      %s524 = sadd.s32 %s523, 1
      %p527 = scmp.eq.s32.totalorder %s87, 1
      %p528 = scmp.ne.s32.totalorder %s523, %s525
      %p529 = scmp.eq.s32.totalorder %s87, 0
      %p530 = por %p528, %p529
      %p531 = scmp.ne.s32.totalorder %s523, %s525
      %p532 = scmp.eq.s32.totalorder %s92, 1
      %p533 = por %p531, %p532
      %p534 = scmp.ne.s32.totalorder %s525, %s526
      %p535 = scmp.eq.s32.totalorder %s92, 0
      %p536 = por %p534, %p535
      %p537 = scmp.ne.s32.totalorder %s525, %s526
      %p538 = scmp.eq.s32.totalorder %s93, 1
      %p539 = por %p537, %p538
      %p541 = scmp.ne.s32.totalorder %s526, %s540
      %p542 = scmp.eq.s32.totalorder %s93, 0
      %p543 = por %p541, %p542
      %s545 = sadd.s32 %s544, 1
      %p548 = scmp.eq.s32.totalorder %s87, 1
      %p549 = scmp.ne.s32.totalorder %s544, %s546
      %p550 = scmp.eq.s32.totalorder %s87, 0
      %p551 = por %p549, %p550
      %p552 = scmp.ne.s32.totalorder %s544, %s546
      %p553 = scmp.eq.s32.totalorder %s92, 1
      %p554 = por %p552, %p553
      %p555 = scmp.ne.s32.totalorder %s546, %s547
      %p556 = scmp.eq.s32.totalorder %s92, 0
      %p557 = por %p555, %p556
      %p558 = scmp.ne.s32.totalorder %s546, %s547
      %p559 = scmp.eq.s32.totalorder %s93, 1
      %p560 = por %p558, %p559
      %p562 = scmp.ne.s32.totalorder %s547, %s561
      %p563 = scmp.eq.s32.totalorder %s93, 0
      %p564 = por %p562, %p563
      %s566 = sadd.s32 %s565, 1
      %p569 = scmp.eq.s32.totalorder %s87, 1
      %p570 = scmp.ne.s32.totalorder %s565, %s567
      %p571 = scmp.eq.s32.totalorder %s87, 0
      %p572 = por %p570, %p571
      %p573 = scmp.ne.s32.totalorder %s565, %s567
      %p574 = scmp.eq.s32.totalorder %s92, 1
      %p575 = por %p573, %p574
      %p576 = scmp.ne.s32.totalorder %s567, %s568
      %p577 = scmp.eq.s32.totalorder %s92, 0
      %p578 = por %p576, %p577
      %p579 = scmp.ne.s32.totalorder %s567, %s568
      %p580 = scmp.eq.s32.totalorder %s93, 1
      %p581 = por %p579, %p580
      %p583 = scmp.ne.s32.totalorder %s568, %s582
      %p584 = scmp.eq.s32.totalorder %s93, 0
      %p585 = por %p583, %p584
      %s587 = sadd.s32 %s586, 1
      %p590 = scmp.eq.s32.totalorder %s87, 1
      %p591 = scmp.ne.s32.totalorder %s586, %s588
      %p592 = scmp.eq.s32.totalorder %s87, 0
      %p593 = por %p591, %p592
      %p594 = scmp.ne.s32.totalorder %s586, %s588
      %p595 = scmp.eq.s32.totalorder %s92, 1
      %p596 = por %p594, %p595
      %p597 = scmp.ne.s32.totalorder %s588, %s589
      %p598 = scmp.eq.s32.totalorder %s92, 0
      %p599 = por %p597, %p598
      %p600 = scmp.ne.s32.totalorder %s588, %s589
      %p601 = scmp.eq.s32.totalorder %s93, 1
      %p602 = por %p600, %p601
      %p604 = scmp.ne.s32.totalorder %s589, %s603
      %p605 = scmp.eq.s32.totalorder %s93, 0
      %p606 = por %p604, %p605
      %s608 = sadd.s32 %s607, 1
      %p611 = scmp.eq.s32.totalorder %s87, 1
      %p612 = scmp.ne.s32.totalorder %s607, %s609
      %p613 = scmp.eq.s32.totalorder %s87, 0
      %p614 = por %p612, %p613
      %p615 = scmp.ne.s32.totalorder %s607, %s609
      %p616 = scmp.eq.s32.totalorder %s92, 1
      %p617 = por %p615, %p616
      %p618 = scmp.ne.s32.totalorder %s609, %s610
      %p619 = scmp.eq.s32.totalorder %s92, 0
      %p620 = por %p618, %p619
      %p621 = scmp.ne.s32.totalorder %s609, %s610
      %p622 = scmp.eq.s32.totalorder %s93, 1
      %p623 = por %p621, %p622
      %p625 = scmp.ne.s32.totalorder %s610, %s624
      %p626 = scmp.eq.s32.totalorder %s93, 0
      %p627 = por %p625, %p626
      %s629 = sadd.s32 %s628, 1
      %p632 = scmp.eq.s32.totalorder %s87, 1
      %p633 = scmp.ne.s32.totalorder %s628, %s630
      %p634 = scmp.eq.s32.totalorder %s87, 0
      %p635 = por %p633, %p634
      %p636 = scmp.ne.s32.totalorder %s628, %s630
      %p637 = scmp.eq.s32.totalorder %s92, 1
      %p638 = por %p636, %p637
      %p639 = scmp.ne.s32.totalorder %s630, %s631
      %p640 = scmp.eq.s32.totalorder %s92, 0
      %p641 = por %p639, %p640
      %p642 = scmp.ne.s32.totalorder %s630, %s631
      %p643 = scmp.eq.s32.totalorder %s93, 1
      %p644 = por %p642, %p643
      %p646 = scmp.ne.s32.totalorder %s631, %s645
      %p647 = scmp.eq.s32.totalorder %s93, 0
      %p648 = por %p646, %p647
      %s650 = sadd.s32 %s649, 1
      %p653 = scmp.eq.s32.totalorder %s87, 1
      %p654 = scmp.ne.s32.totalorder %s649, %s651
      %p655 = scmp.eq.s32.totalorder %s87, 0
      %p656 = por %p654, %p655
      %p657 = scmp.ne.s32.totalorder %s649, %s651
      %p658 = scmp.eq.s32.totalorder %s92, 1
      %p659 = por %p657, %p658
      %p660 = scmp.ne.s32.totalorder %s651, %s652
      %p661 = scmp.eq.s32.totalorder %s92, 0
      %p662 = por %p660, %p661
      %p663 = scmp.ne.s32.totalorder %s651, %s652
      %p664 = scmp.eq.s32.totalorder %s93, 1
      %p665 = por %p663, %p664
      %p667 = scmp.ne.s32.totalorder %s652, %s666
      %p668 = scmp.eq.s32.totalorder %s93, 0
      %p669 = por %p667, %p668
      %s671 = sadd.s32 %s670, 1
      %p674 = scmp.eq.s32.totalorder %s87, 1
      %p675 = scmp.ne.s32.totalorder %s670, %s672
      %p676 = scmp.eq.s32.totalorder %s87, 0
      %p677 = por %p675, %p676
      %p678 = scmp.ne.s32.totalorder %s670, %s672
      %p679 = scmp.eq.s32.totalorder %s92, 1
      %p680 = por %p678, %p679
      %p681 = scmp.ne.s32.totalorder %s672, %s673
      %p682 = scmp.eq.s32.totalorder %s92, 0
      %p683 = por %p681, %p682
      %p684 = scmp.ne.s32.totalorder %s672, %s673
      %p685 = scmp.eq.s32.totalorder %s93, 1
      %p686 = por %p684, %p685
      %p688 = scmp.ne.s32.totalorder %s673, %s687
      %p689 = scmp.eq.s32.totalorder %s93, 0
      %p690 = por %p688, %p689
      %s692 = sadd.s32 %s691, 1
      %p695 = scmp.eq.s32.totalorder %s87, 1
      %p696 = scmp.ne.s32.totalorder %s691, %s693
      %p697 = scmp.eq.s32.totalorder %s87, 0
      %p698 = por %p696, %p697
      %p699 = scmp.ne.s32.totalorder %s691, %s693
      %p700 = scmp.eq.s32.totalorder %s92, 1
      %p701 = por %p699, %p700
      %p702 = scmp.ne.s32.totalorder %s693, %s694
      %p703 = scmp.eq.s32.totalorder %s92, 0
      %p704 = por %p702, %p703
      %p705 = scmp.ne.s32.totalorder %s693, %s694
      %p706 = scmp.eq.s32.totalorder %s93, 1
      %p707 = por %p705, %p706
      %p709 = scmp.ne.s32.totalorder %s694, %s708
      %p710 = scmp.eq.s32.totalorder %s93, 0
      %p711 = por %p709, %p710
      %s713 = sadd.s32 %s712, 1
      %p716 = scmp.eq.s32.totalorder %s87, 1
      %p717 = scmp.ne.s32.totalorder %s712, %s714
      %p718 = scmp.eq.s32.totalorder %s87, 0
      %p719 = por %p717, %p718
      %p720 = scmp.ne.s32.totalorder %s712, %s714
      %p721 = scmp.eq.s32.totalorder %s92, 1
      %p722 = por %p720, %p721
      %p723 = scmp.ne.s32.totalorder %s714, %s715
      %p724 = scmp.eq.s32.totalorder %s92, 0
      %p725 = por %p723, %p724
      %p726 = scmp.ne.s32.totalorder %s714, %s715
      %p727 = scmp.eq.s32.totalorder %s93, 1
      %p728 = por %p726, %p727
      %p730 = scmp.ne.s32.totalorder %s715, %s729
      %p731 = scmp.eq.s32.totalorder %s93, 0
      %p732 = por %p730, %p731
      %s733 = ssub.s32 %s94, %s106
      %s734 = ssub.s32 %s95, %s102
      %s735 = sor.u32 %s733, %s734
      %p736 = scmp.eq.s32.totalorder %s735, 0
      %s738 = sadd.s32 %s737, 1
      %s739 = scalar_select %p736, %s737, %s738
      %p742 = pneg %p736
      %p743 = scmp.eq.s32.totalorder %s87, 1
      %p744 = por %p742, %p743
      %p745 = scmp.ne.s32.totalorder %s737, %s740
      %p746 = scmp.eq.s32.totalorder %s87, 0
      %p747 = por %p745, %p746
      %p748 = scmp.ne.s32.totalorder %s737, %s740
      %p749 = scmp.eq.s32.totalorder %s92, 1
      %p750 = por %p748, %p749
      %p751 = scmp.ne.s32.totalorder %s740, %s741
      %p752 = scmp.eq.s32.totalorder %s92, 0
      %p753 = por %p751, %p752
      %p754 = scmp.ne.s32.totalorder %s740, %s741
      %p755 = scmp.eq.s32.totalorder %s93, 1
      %p756 = por %p754, %p755
      %p758 = scmp.ne.s32.totalorder %s741, %s757
      %p759 = scmp.eq.s32.totalorder %s93, 0
      %p760 = por %p758, %p759
      %p761 = scmp.le.s32.totalorder 1, %s87
      %p762 = scmp.lt.s32.totalorder %s87, 3
      %p763 = pnand %p761, %p762
      %p764 = pneg %p763
      // Predicated region
      $region9: #{tpu_custom_call.1} parent=5 // pred_check
        _
      $region10: #{tpu_custom_call.1} parent=5 // pred_check_branch
        %766 = sbr.rel (%p763) target = $region12
      $region11: #{tpu_custom_call.1} parent=5 // pred_region
        %s767 = ssub.s32 %s87, 1
        // Predicated region
        $region13: #{tpu_custom_call.1} parent=11 // pred_check
          %p768 = pneg %p200
        $region14: #{tpu_custom_call.1} parent=11 // pred_check_branch
          %770 = sbr.rel (%p768) target = $region16
        $region15: #{tpu_custom_call.1} parent=11 // pred_region
          %s772 = ssub.s32 2048, 2048
          %773 = vsyncadd [#allocation9], %s772
          %s774 = sshll.u32 [#allocation8], 4
          %s775 = int_to_ptr.vmem [resolvable:$true] %s774
          %780 = dma.hbm_to_vmem [thread:$0]  %s7, 2048, %s775, [#allocation9], 128, 128, 8
        $region16: #{tpu_custom_call.1} parent=11 // pred_fallthru
          _
        // Predicated region
        $region17: #{tpu_custom_call.1} parent=11 // pred_check
          %p781 = pneg %p221
        $region18: #{tpu_custom_call.1} parent=11 // pred_check_branch
          %783 = sbr.rel (%p781) target = $region20
        $region19: #{tpu_custom_call.1} parent=11 // pred_region
          %s785 = ssub.s32 16, 16
          %786 = vsyncadd [#allocation9], %s785
          %s788 = sshll.u32 [#allocation10], 4
          %s789 = int_to_ptr.vmem [resolvable:$true] %s788
          %791 = dma.hbm_to_vmem [thread:$0]  %s9, 16, %s789, [#allocation9]
        $region20: #{tpu_custom_call.1} parent=11 // pred_fallthru
          _
        // Predicated region
        $region21: #{tpu_custom_call.1} parent=11 // pred_check
          %p792 = pneg %p242
        $region22: #{tpu_custom_call.1} parent=11 // pred_check_branch
          %794 = sbr.rel (%p792) target = $region24
        $region23: #{tpu_custom_call.1} parent=11 // pred_region
          %s796 = ssub.s32 2048, 2048
          %797 = vsyncadd [#allocation12], %s796
          %s798 = sshll.u32 [#allocation11], 4
          %s799 = int_to_ptr.vmem [resolvable:$true] %s798
          %804 = dma.hbm_to_vmem [thread:$0]  %s11, 2048, %s799, [#allocation12], 128, 128, 8
        $region24: #{tpu_custom_call.1} parent=11 // pred_fallthru
          _
        // Predicated region
        $region25: #{tpu_custom_call.1} parent=11 // pred_check
          %p805 = pneg %p263
        $region26: #{tpu_custom_call.1} parent=11 // pred_check_branch
          %807 = sbr.rel (%p805) target = $region28
        $region27: #{tpu_custom_call.1} parent=11 // pred_region
          %s809 = ssub.s32 16, 16
          %810 = vsyncadd [#allocation12], %s809
          %s812 = sshll.u32 [#allocation13], 4
          %s813 = int_to_ptr.vmem [resolvable:$true] %s812
          %815 = dma.hbm_to_vmem [thread:$0]  %s13, 16, %s813, [#allocation12]
        $region28: #{tpu_custom_call.1} parent=11 // pred_fallthru
          _
        // Predicated region
        $region29: #{tpu_custom_call.1} parent=11 // pred_check
          %p816 = pneg %p284
        $region30: #{tpu_custom_call.1} parent=11 // pred_check_branch
          %818 = sbr.rel (%p816) target = $region32
        $region31: #{tpu_custom_call.1} parent=11 // pred_region
          %s820 = ssub.s32 2048, 2048
          %821 = vsyncadd [#allocation15], %s820
          %s822 = sshll.u32 [#allocation14], 4
          %s823 = int_to_ptr.vmem [resolvable:$true] %s822
          %828 = dma.hbm_to_vmem [thread:$0]  %s15, 2048, %s823, [#allocation15], 128, 128, 8
        $region32: #{tpu_custom_call.1} parent=11 // pred_fallthru
          _
        // Predicated region
        $region33: #{tpu_custom_call.1} parent=11 // pred_check
          %p829 = pneg %p305
        $region34: #{tpu_custom_call.1} parent=11 // pred_check_branch
          %831 = sbr.rel (%p829) target = $region36
        $region35: #{tpu_custom_call.1} parent=11 // pred_region
          %s833 = ssub.s32 16, 16
          %834 = vsyncadd [#allocation15], %s833
          %s836 = sshll.u32 [#allocation16], 4
          %s837 = int_to_ptr.vmem [resolvable:$true] %s836
          %839 = dma.hbm_to_vmem [thread:$0]  %s17, 16, %s837, [#allocation15]
        $region36: #{tpu_custom_call.1} parent=11 // pred_fallthru
          _
        // Predicated region
        $region37: #{tpu_custom_call.1} parent=11 // pred_check
          %p840 = pneg %p326
        $region38: #{tpu_custom_call.1} parent=11 // pred_check_branch
          %842 = sbr.rel (%p840) target = $region40
        $region39: #{tpu_custom_call.1} parent=11 // pred_region
          %s844 = ssub.s32 2048, 2048
          %845 = vsyncadd [#allocation18], %s844
          %s846 = sshll.u32 [#allocation17], 4
          %s847 = int_to_ptr.vmem [resolvable:$true] %s846
          %852 = dma.hbm_to_vmem [thread:$0]  %s19, 2048, %s847, [#allocation18], 128, 128, 8
        $region40: #{tpu_custom_call.1} parent=11 // pred_fallthru
          _
        // Predicated region
        $region41: #{tpu_custom_call.1} parent=11 // pred_check
          %p853 = pneg %p347
        $region42: #{tpu_custom_call.1} parent=11 // pred_check_branch
          %855 = sbr.rel (%p853) target = $region44
        $region43: #{tpu_custom_call.1} parent=11 // pred_region
          %s857 = ssub.s32 16, 16
          %858 = vsyncadd [#allocation18], %s857
          %s860 = sshll.u32 [#allocation19], 4
          %s861 = int_to_ptr.vmem [resolvable:$true] %s860
          %863 = dma.hbm_to_vmem [thread:$0]  %s21, 16, %s861, [#allocation18]
        $region44: #{tpu_custom_call.1} parent=11 // pred_fallthru
          _
        // Predicated region
        $region45: #{tpu_custom_call.1} parent=11 // pred_check
          %p864 = pneg %p368
        $region46: #{tpu_custom_call.1} parent=11 // pred_check_branch
          %866 = sbr.rel (%p864) target = $region48
        $region47: #{tpu_custom_call.1} parent=11 // pred_region
          %s868 = ssub.s32 16, 16
          %869 = vsyncadd [#allocation21], %s868
          %s871 = sshll.u32 [#allocation20], 4
          %s872 = int_to_ptr.vmem [resolvable:$true] %s871
          %874 = dma.hbm_to_vmem [thread:$0]  %s23, 16, %s872, [#allocation21]
        $region48: #{tpu_custom_call.1} parent=11 // pred_fallthru
          _
        // Predicated region
        $region49: #{tpu_custom_call.1} parent=11 // pred_check
          %p875 = pneg %p389
        $region50: #{tpu_custom_call.1} parent=11 // pred_check_branch
          %877 = sbr.rel (%p875) target = $region52
        $region51: #{tpu_custom_call.1} parent=11 // pred_region
          %s879 = ssub.s32 16, 16
          %880 = vsyncadd [#allocation21], %s879
          %s882 = sshll.u32 [#allocation22], 4
          %s883 = int_to_ptr.vmem [resolvable:$true] %s882
          %885 = dma.hbm_to_vmem [thread:$0]  %s25, 16, %s883, [#allocation21]
        $region52: #{tpu_custom_call.1} parent=11 // pred_fallthru
          _
        // Predicated region
        $region53: #{tpu_custom_call.1} parent=11 // pred_check
          %p886 = pneg %p410
        $region54: #{tpu_custom_call.1} parent=11 // pred_check_branch
          %888 = sbr.rel (%p886) target = $region56
        $region55: #{tpu_custom_call.1} parent=11 // pred_region
          %s890 = ssub.s32 2048, 2048
          %891 = vsyncadd [#allocation24], %s890
          %s892 = sshll.u32 [#allocation23], 4
          %s893 = int_to_ptr.vmem [resolvable:$true] %s892
          %898 = dma.hbm_to_vmem [thread:$0]  %s27, 2048, %s893, [#allocation24], 128, 128, 8
        $region56: #{tpu_custom_call.1} parent=11 // pred_fallthru
          _
        // Predicated region
        $region57: #{tpu_custom_call.1} parent=11 // pred_check
          %p899 = pneg %p431
        $region58: #{tpu_custom_call.1} parent=11 // pred_check_branch
          %901 = sbr.rel (%p899) target = $region60
        $region59: #{tpu_custom_call.1} parent=11 // pred_region
          %s903 = ssub.s32 16, 16
          %904 = vsyncadd [#allocation24], %s903
          %s906 = sshll.u32 [#allocation25], 4
          %s907 = int_to_ptr.vmem [resolvable:$true] %s906
          %909 = dma.hbm_to_vmem [thread:$0]  %s29, 16, %s907, [#allocation24]
        $region60: #{tpu_custom_call.1} parent=11 // pred_fallthru
          _
        // Predicated region
        $region61: #{tpu_custom_call.1} parent=11 // pred_check
          %p910 = pneg %p452
        $region62: #{tpu_custom_call.1} parent=11 // pred_check_branch
          %912 = sbr.rel (%p910) target = $region64
        $region63: #{tpu_custom_call.1} parent=11 // pred_region
          %s914 = ssub.s32 2048, 2048
          %915 = vsyncadd [#allocation27], %s914
          %s916 = sshll.u32 [#allocation26], 4
          %s917 = int_to_ptr.vmem [resolvable:$true] %s916
          %922 = dma.hbm_to_vmem [thread:$0]  %s31, 2048, %s917, [#allocation27], 128, 128, 8
        $region64: #{tpu_custom_call.1} parent=11 // pred_fallthru
          _
        // Predicated region
        $region65: #{tpu_custom_call.1} parent=11 // pred_check
          %p923 = pneg %p473
        $region66: #{tpu_custom_call.1} parent=11 // pred_check_branch
          %925 = sbr.rel (%p923) target = $region68
        $region67: #{tpu_custom_call.1} parent=11 // pred_region
          %s927 = ssub.s32 16, 16
          %928 = vsyncadd [#allocation27], %s927
          %s930 = sshll.u32 [#allocation28], 4
          %s931 = int_to_ptr.vmem [resolvable:$true] %s930
          %933 = dma.hbm_to_vmem [thread:$0]  %s33, 16, %s931, [#allocation27]
        $region68: #{tpu_custom_call.1} parent=11 // pred_fallthru
          _
        // Predicated region
        $region69: #{tpu_custom_call.1} parent=11 // pred_check
          %p934 = pneg %p494
        $region70: #{tpu_custom_call.1} parent=11 // pred_check_branch
          %936 = sbr.rel (%p934) target = $region72
        $region71: #{tpu_custom_call.1} parent=11 // pred_region
          %s938 = ssub.s32 2048, 2048
          %939 = vsyncadd [#allocation30], %s938
          %s940 = sshll.u32 [#allocation29], 4
          %s941 = int_to_ptr.vmem [resolvable:$true] %s940
          %946 = dma.hbm_to_vmem [thread:$0]  %s35, 2048, %s941, [#allocation30], 128, 128, 8
        $region72: #{tpu_custom_call.1} parent=11 // pred_fallthru
          _
        // Predicated region
        $region73: #{tpu_custom_call.1} parent=11 // pred_check
          %p947 = pneg %p515
        $region74: #{tpu_custom_call.1} parent=11 // pred_check_branch
          %949 = sbr.rel (%p947) target = $region76
        $region75: #{tpu_custom_call.1} parent=11 // pred_region
          %s951 = ssub.s32 16, 16
          %952 = vsyncadd [#allocation30], %s951
          %s954 = sshll.u32 [#allocation31], 4
          %s955 = int_to_ptr.vmem [resolvable:$true] %s954
          %957 = dma.hbm_to_vmem [thread:$0]  %s37, 16, %s955, [#allocation30]
        $region76: #{tpu_custom_call.1} parent=11 // pred_fallthru
          _
        // Predicated region
        $region77: #{tpu_custom_call.1} parent=11 // pred_check
          %p958 = pneg %p536
        $region78: #{tpu_custom_call.1} parent=11 // pred_check_branch
          %960 = sbr.rel (%p958) target = $region80
        $region79: #{tpu_custom_call.1} parent=11 // pred_region
          %s962 = ssub.s32 2048, 2048
          %963 = vsyncadd [#allocation33], %s962
          %s964 = sshll.u32 [#allocation32], 4
          %s965 = int_to_ptr.vmem [resolvable:$true] %s964
          %970 = dma.hbm_to_vmem [thread:$0]  %s39, 2048, %s965, [#allocation33], 128, 128, 8
        $region80: #{tpu_custom_call.1} parent=11 // pred_fallthru
          _
        // Predicated region
        $region81: #{tpu_custom_call.1} parent=11 // pred_check
          %p971 = pneg %p557
        $region82: #{tpu_custom_call.1} parent=11 // pred_check_branch
          %973 = sbr.rel (%p971) target = $region84
        $region83: #{tpu_custom_call.1} parent=11 // pred_region
          %s975 = ssub.s32 16, 16
          %976 = vsyncadd [#allocation33], %s975
          %s978 = sshll.u32 [#allocation34], 4
          %s979 = int_to_ptr.vmem [resolvable:$true] %s978
          %981 = dma.hbm_to_vmem [thread:$0]  %s41, 16, %s979, [#allocation33]
        $region84: #{tpu_custom_call.1} parent=11 // pred_fallthru
          _
        // Predicated region
        $region85: #{tpu_custom_call.1} parent=11 // pred_check
          %p982 = pneg %p578
        $region86: #{tpu_custom_call.1} parent=11 // pred_check_branch
          %984 = sbr.rel (%p982) target = $region88
        $region87: #{tpu_custom_call.1} parent=11 // pred_region
          %s986 = ssub.s32 16, 16
          %987 = vsyncadd [#allocation36], %s986
          %s989 = sshll.u32 [#allocation35], 4
          %s990 = int_to_ptr.vmem [resolvable:$true] %s989
          %992 = dma.hbm_to_vmem [thread:$0]  %s43, 16, %s990, [#allocation36]
        $region88: #{tpu_custom_call.1} parent=11 // pred_fallthru
          _
        // Predicated region
        $region89: #{tpu_custom_call.1} parent=11 // pred_check
          %p993 = pneg %p599
        $region90: #{tpu_custom_call.1} parent=11 // pred_check_branch
          %995 = sbr.rel (%p993) target = $region92
        $region91: #{tpu_custom_call.1} parent=11 // pred_region
          %s997 = ssub.s32 16, 16
          %998 = vsyncadd [#allocation36], %s997
          %s1000 = sshll.u32 [#allocation37], 4
          %s1001 = int_to_ptr.vmem [resolvable:$true] %s1000
          %1003 = dma.hbm_to_vmem [thread:$0]  %s45, 16, %s1001, [#allocation36]
        $region92: #{tpu_custom_call.1} parent=11 // pred_fallthru
          _
        // Predicated region
        $region93: #{tpu_custom_call.1} parent=11 // pred_check
          %p1004 = pneg %p620
        $region94: #{tpu_custom_call.1} parent=11 // pred_check_branch
          %1006 = sbr.rel (%p1004) target = $region96
        $region95: #{tpu_custom_call.1} parent=11 // pred_region
          %s1008 = ssub.s32 4096, 4096
          %1009 = vsyncadd [#allocation39], %s1008
          %s1010 = sshll.u32 [#allocation38], 4
          %s1011 = int_to_ptr.vmem [resolvable:$true] %s1010
          %1016 = dma.hbm_to_vmem [thread:$0]  %s47, 4096, %s1011, [#allocation39], 256, 256, 16
        $region96: #{tpu_custom_call.1} parent=11 // pred_fallthru
          _
        // Predicated region
        $region97: #{tpu_custom_call.1} parent=11 // pred_check
          %p1017 = pneg %p641
        $region98: #{tpu_custom_call.1} parent=11 // pred_check_branch
          %1019 = sbr.rel (%p1017) target = $region100
        $region99: #{tpu_custom_call.1} parent=11 // pred_region
          %s1021 = ssub.s32 32, 32
          %1022 = vsyncadd [#allocation39], %s1021
          %s1024 = sshll.u32 [#allocation40], 4
          %s1025 = int_to_ptr.vmem [resolvable:$true] %s1024
          %1027 = dma.hbm_to_vmem [thread:$0]  %s49, 32, %s1025, [#allocation39]
        $region100: #{tpu_custom_call.1} parent=11 // pred_fallthru
          _
        // Predicated region
        $region101: #{tpu_custom_call.1} parent=11 // pred_check
          %p1028 = pneg %p662
        $region102: #{tpu_custom_call.1} parent=11 // pred_check_branch
          %1030 = sbr.rel (%p1028) target = $region104
        $region103: #{tpu_custom_call.1} parent=11 // pred_region
          %s1032 = ssub.s32 4096, 4096
          %1033 = vsyncadd [#allocation42], %s1032
          %s1034 = sshll.u32 [#allocation41], 4
          %s1035 = int_to_ptr.vmem [resolvable:$true] %s1034
          %1040 = dma.hbm_to_vmem [thread:$0]  %s51, 4096, %s1035, [#allocation42], 128, 128, 8
        $region104: #{tpu_custom_call.1} parent=11 // pred_fallthru
          _
        // Predicated region
        $region105: #{tpu_custom_call.1} parent=11 // pred_check
          %p1041 = pneg %p683
        $region106: #{tpu_custom_call.1} parent=11 // pred_check_branch
          %1043 = sbr.rel (%p1041) target = $region108
        $region107: #{tpu_custom_call.1} parent=11 // pred_region
          %s1045 = ssub.s32 16, 16
          %1046 = vsyncadd [#allocation42], %s1045
          %s1048 = sshll.u32 [#allocation43], 4
          %s1049 = int_to_ptr.vmem [resolvable:$true] %s1048
          %1051 = dma.hbm_to_vmem [thread:$0]  %s53, 16, %s1049, [#allocation42]
        $region108: #{tpu_custom_call.1} parent=11 // pred_fallthru
          _
        // Predicated region
        $region109: #{tpu_custom_call.1} parent=11 // pred_check
          %p1052 = pneg %p704
        $region110: #{tpu_custom_call.1} parent=11 // pred_check_branch
          %1054 = sbr.rel (%p1052) target = $region112
        $region111: #{tpu_custom_call.1} parent=11 // pred_region
          %s1056 = ssub.s32 16, 16
          %1057 = vsyncadd [#allocation45], %s1056
          %s1059 = sshll.u32 [#allocation44], 4
          %s1060 = int_to_ptr.vmem [resolvable:$true] %s1059
          %1062 = dma.hbm_to_vmem [thread:$0]  %s55, 16, %s1060, [#allocation45]
        $region112: #{tpu_custom_call.1} parent=11 // pred_fallthru
          _
        // Predicated region
        $region113: #{tpu_custom_call.1} parent=11 // pred_check
          %p1063 = pneg %p725
        $region114: #{tpu_custom_call.1} parent=11 // pred_check_branch
          %1065 = sbr.rel (%p1063) target = $region116
        $region115: #{tpu_custom_call.1} parent=11 // pred_region
          %s1067 = ssub.s32 16, 16
          %1068 = vsyncadd [#allocation45], %s1067
          %s1070 = sshll.u32 [#allocation46], 4
          %s1071 = int_to_ptr.vmem [resolvable:$true] %s1070
          %1073 = dma.hbm_to_vmem [thread:$0]  %s57, 16, %s1071, [#allocation45]
        $region116: #{tpu_custom_call.1} parent=11 // pred_fallthru
          _
      $region12: #{tpu_custom_call.1} parent=5 // pred_fallthru
        _
      %p1074 = scmp.lt.s32.totalorder %s87, 2
      // Predicated region
      $region117: #{tpu_custom_call.1} parent=5 // pred_check
        %p1075 = pneg %p1074
      $region118: #{tpu_custom_call.1} parent=5 // pred_check_branch
        %1077 = sbr.rel (%p1075) target = $region120
      $region119: #{tpu_custom_call.1} parent=5 // pred_region
        // Predicated region
        $region121: #{tpu_custom_call.1} parent=119 // pred_check
          %p1078 = pneg %p121
        $region122: #{tpu_custom_call.1} parent=119 // pred_check_branch
          %1080 = sbr.rel (%p1078) target = $region124
        $region123: #{tpu_custom_call.1} parent=119 // pred_region
          %s1081 = sand.u32 %s111, 1
          %s1082 = scalar_lea.sflag [#allocation3], %s1081
          %s1083 = sand.u32 %s111, 1
          %s1084 = smul.addr %s1083, 16
          %s1085 = scalar_lea.vmem [#allocation2], %s1084
          %s1086 = smul.u32 2, %s95
          %s1088 = ssub.s32 256, 256
          %1089 = vsyncadd %s1082, %s1088
          %s1090 = smul.addr %s94, 2
          %s1091 = sadd.s32 %s1086, %s1090
          %s1092 = smul.addr %s1091, 128
          %s1093 = scalar_lea.hbm %s1, %s1092
          %s1094 = sshll.u32 %s1085, 4
          %s1095 = int_to_ptr.vmem [resolvable:$true] %s1094
          %1100 = dma.hbm_to_vmem [thread:$0]  %s1093, 256, %s1095, %s1082, 128, 128, 8
        $region124: #{tpu_custom_call.1} parent=119 // pred_fallthru
          _
        // Predicated region
        $region125: #{tpu_custom_call.1} parent=119 // pred_check
          %p1101 = pneg %p147
        $region126: #{tpu_custom_call.1} parent=119 // pred_check_branch
          %1103 = sbr.rel (%p1101) target = $region128
        $region127: #{tpu_custom_call.1} parent=119 // pred_region
          %s1104 = sand.u32 %s87, 1
          %s1105 = scalar_lea.sflag [#allocation6], %s1104
          %s1106 = sand.u32 %s137, 1
          %s1107 = smul.addr %s1106, 16
          %s1108 = scalar_lea.vmem [#allocation5], %s1107
          %s1110 = ssub.s32 256, 256
          %1111 = vsyncadd %s1105, %s1110
          %s1112 = smul.addr %s94, 2
          %s1113 = smul.addr %s1112, 128
          %s1114 = scalar_lea.hbm %s3, %s1113
          %s1115 = sshll.u32 %s1108, 4
          %s1116 = int_to_ptr.vmem [resolvable:$true] %s1115
          %1121 = dma.hbm_to_vmem [thread:$0]  %s1114, 256, %s1116, %s1105, 128, 128, 8
        $region128: #{tpu_custom_call.1} parent=119 // pred_fallthru
          _
        // Predicated region
        $region129: #{tpu_custom_call.1} parent=119 // pred_check
          %p1122 = pneg %p173
        $region130: #{tpu_custom_call.1} parent=119 // pred_check_branch
          %1124 = sbr.rel (%p1122) target = $region132
        $region131: #{tpu_custom_call.1} parent=119 // pred_region
          %s1125 = sand.u32 %s87, 1
          %s1126 = scalar_lea.sflag [#allocation6], %s1125
          %s1127 = sand.u32 %s163, 1
          %s1128 = smul.addr %s1127, 16
          %s1129 = scalar_lea.vmem [#allocation7], %s1128
          %s1131 = ssub.s32 256, 256
          %1132 = vsyncadd %s1126, %s1131
          %s1133 = smul.addr %s94, 2
          %s1134 = smul.addr %s1133, 128
          %s1135 = scalar_lea.hbm %s5, %s1134
          %s1136 = sshll.u32 %s1129, 4
          %s1137 = int_to_ptr.vmem [resolvable:$true] %s1136
          %1142 = dma.hbm_to_vmem [thread:$0]  %s1135, 256, %s1137, %s1126, 128, 128, 8
        $region132: #{tpu_custom_call.1} parent=119 // pred_fallthru
          _
      $region120: #{tpu_custom_call.1} parent=5 // pred_fallthru
        _
      %p1143 = scmp.le.s32.totalorder 1, %s87
      %p1144 = scmp.lt.s32.totalorder %s87, 3
      %p1145 = pnand %p1143, %p1144
      %p1146 = pneg %p1145
      // Predicated region
      $region133: #{tpu_custom_call.1} parent=5 // pred_check
        _
      $region134: #{tpu_custom_call.1} parent=5 // pred_check_branch
        %1148 = sbr.rel (%p1145) target = $region136
      $region135: #{tpu_custom_call.1} parent=5 // pred_region
        %s1149 = ssub.s32 %s87, 1
        %s1150 = sand.u32 %s114, 1
        %s1151 = scalar_lea.sflag [#allocation3], %s1150
        %s1152 = sand.u32 %s114, 1
        %s1153 = smul.addr %s1152, 16
        %s1154 = scalar_lea.vmem [#allocation2], %s1153
        // Predicated region
        $region137: #{tpu_custom_call.1} parent=135 // pred_check
          %p1155 = pneg %p127
        $region138: #{tpu_custom_call.1} parent=135 // pred_check_branch
          %1157 = sbr.rel (%p1155) target = $region140
        $region139: #{tpu_custom_call.1} parent=135 // pred_region
          %1158 = dma.done %s1151, 256
        $region140: #{tpu_custom_call.1} parent=135 // pred_fallthru
          _
        %s1159 = sand.u32 %s92, 1
        %s1160 = scalar_lea.sflag [#allocation6], %s1159
        %s1161 = sand.u32 %s140, 1
        %s1162 = smul.addr %s1161, 16
        %s1163 = scalar_lea.vmem [#allocation5], %s1162
        // Predicated region
        $region141: #{tpu_custom_call.1} parent=135 // pred_check
          %p1164 = pneg %p153
        $region142: #{tpu_custom_call.1} parent=135 // pred_check_branch
          %1166 = sbr.rel (%p1164) target = $region144
        $region143: #{tpu_custom_call.1} parent=135 // pred_region
          %1167 = dma.done %s1160, 256
        $region144: #{tpu_custom_call.1} parent=135 // pred_fallthru
          _
        %s1168 = sand.u32 %s92, 1
        %s1169 = scalar_lea.sflag [#allocation6], %s1168
        %s1170 = sand.u32 %s166, 1
        %s1171 = smul.addr %s1170, 16
        %s1172 = scalar_lea.vmem [#allocation7], %s1171
        // Predicated region
        $region145: #{tpu_custom_call.1} parent=135 // pred_check
          %p1173 = pneg %p179
        $region146: #{tpu_custom_call.1} parent=135 // pred_check_branch
          %1175 = sbr.rel (%p1173) target = $region148
        $region147: #{tpu_custom_call.1} parent=135 // pred_region
          %1176 = dma.done %s1169, 256
        $region148: #{tpu_custom_call.1} parent=135 // pred_fallthru
          _
        // Predicated region
        $region149: #{tpu_custom_call.1} parent=135 // pred_check
          %p1177 = pneg %p200
        $region150: #{tpu_custom_call.1} parent=135 // pred_check_branch
          %1179 = sbr.rel (%p1177) target = $region152
        $region151: #{tpu_custom_call.1} parent=135 // pred_region
          %1180 = dma.done [#allocation9], 2048
        $region152: #{tpu_custom_call.1} parent=135 // pred_fallthru
          _
        // Predicated region
        $region153: #{tpu_custom_call.1} parent=135 // pred_check
          %p1181 = pneg %p221
        $region154: #{tpu_custom_call.1} parent=135 // pred_check_branch
          %1183 = sbr.rel (%p1181) target = $region156
        $region155: #{tpu_custom_call.1} parent=135 // pred_region
          %1184 = dma.done [#allocation9], 16
        $region156: #{tpu_custom_call.1} parent=135 // pred_fallthru
          _
        // Predicated region
        $region157: #{tpu_custom_call.1} parent=135 // pred_check
          %p1185 = pneg %p242
        $region158: #{tpu_custom_call.1} parent=135 // pred_check_branch
          %1187 = sbr.rel (%p1185) target = $region160
        $region159: #{tpu_custom_call.1} parent=135 // pred_region
          %1188 = dma.done [#allocation12], 2048
        $region160: #{tpu_custom_call.1} parent=135 // pred_fallthru
          _
        // Predicated region
        $region161: #{tpu_custom_call.1} parent=135 // pred_check
          %p1189 = pneg %p263
        $region162: #{tpu_custom_call.1} parent=135 // pred_check_branch
          %1191 = sbr.rel (%p1189) target = $region164
        $region163: #{tpu_custom_call.1} parent=135 // pred_region
          %1192 = dma.done [#allocation12], 16
        $region164: #{tpu_custom_call.1} parent=135 // pred_fallthru
          _
        // Predicated region
        $region165: #{tpu_custom_call.1} parent=135 // pred_check
          %p1193 = pneg %p284
        $region166: #{tpu_custom_call.1} parent=135 // pred_check_branch
          %1195 = sbr.rel (%p1193) target = $region168
        $region167: #{tpu_custom_call.1} parent=135 // pred_region
          %1196 = dma.done [#allocation15], 2048
        $region168: #{tpu_custom_call.1} parent=135 // pred_fallthru
          _
        // Predicated region
        $region169: #{tpu_custom_call.1} parent=135 // pred_check
          %p1197 = pneg %p305
        $region170: #{tpu_custom_call.1} parent=135 // pred_check_branch
          %1199 = sbr.rel (%p1197) target = $region172
        $region171: #{tpu_custom_call.1} parent=135 // pred_region
          %1200 = dma.done [#allocation15], 16
        $region172: #{tpu_custom_call.1} parent=135 // pred_fallthru
          _
        // Predicated region
        $region173: #{tpu_custom_call.1} parent=135 // pred_check
          %p1201 = pneg %p326
        $region174: #{tpu_custom_call.1} parent=135 // pred_check_branch
          %1203 = sbr.rel (%p1201) target = $region176
        $region175: #{tpu_custom_call.1} parent=135 // pred_region
          %1204 = dma.done [#allocation18], 2048
        $region176: #{tpu_custom_call.1} parent=135 // pred_fallthru
          _
        // Predicated region
        $region177: #{tpu_custom_call.1} parent=135 // pred_check
          %p1205 = pneg %p347
        $region178: #{tpu_custom_call.1} parent=135 // pred_check_branch
          %1207 = sbr.rel (%p1205) target = $region180
        $region179: #{tpu_custom_call.1} parent=135 // pred_region
          %1208 = dma.done [#allocation18], 16
        $region180: #{tpu_custom_call.1} parent=135 // pred_fallthru
          _
        // Predicated region
        $region181: #{tpu_custom_call.1} parent=135 // pred_check
          %p1209 = pneg %p368
        $region182: #{tpu_custom_call.1} parent=135 // pred_check_branch
          %1211 = sbr.rel (%p1209) target = $region184
        $region183: #{tpu_custom_call.1} parent=135 // pred_region
          %1212 = dma.done [#allocation21], 16
        $region184: #{tpu_custom_call.1} parent=135 // pred_fallthru
          _
        // Predicated region
        $region185: #{tpu_custom_call.1} parent=135 // pred_check
          %p1213 = pneg %p389
        $region186: #{tpu_custom_call.1} parent=135 // pred_check_branch
          %1215 = sbr.rel (%p1213) target = $region188
        $region187: #{tpu_custom_call.1} parent=135 // pred_region
          %1216 = dma.done [#allocation21], 16
        $region188: #{tpu_custom_call.1} parent=135 // pred_fallthru
          _
        // Predicated region
        $region189: #{tpu_custom_call.1} parent=135 // pred_check
          %p1217 = pneg %p410
        $region190: #{tpu_custom_call.1} parent=135 // pred_check_branch
          %1219 = sbr.rel (%p1217) target = $region192
        $region191: #{tpu_custom_call.1} parent=135 // pred_region
          %1220 = dma.done [#allocation24], 2048
        $region192: #{tpu_custom_call.1} parent=135 // pred_fallthru
          _
        // Predicated region
        $region193: #{tpu_custom_call.1} parent=135 // pred_check
          %p1221 = pneg %p431
        $region194: #{tpu_custom_call.1} parent=135 // pred_check_branch
          %1223 = sbr.rel (%p1221) target = $region196
        $region195: #{tpu_custom_call.1} parent=135 // pred_region
          %1224 = dma.done [#allocation24], 16
        $region196: #{tpu_custom_call.1} parent=135 // pred_fallthru
          _
        // Predicated region
        $region197: #{tpu_custom_call.1} parent=135 // pred_check
          %p1225 = pneg %p452
        $region198: #{tpu_custom_call.1} parent=135 // pred_check_branch
          %1227 = sbr.rel (%p1225) target = $region200
        $region199: #{tpu_custom_call.1} parent=135 // pred_region
          %1228 = dma.done [#allocation27], 2048
        $region200: #{tpu_custom_call.1} parent=135 // pred_fallthru
          _
        // Predicated region
        $region201: #{tpu_custom_call.1} parent=135 // pred_check
          %p1229 = pneg %p473
        $region202: #{tpu_custom_call.1} parent=135 // pred_check_branch
          %1231 = sbr.rel (%p1229) target = $region204
        $region203: #{tpu_custom_call.1} parent=135 // pred_region
          %1232 = dma.done [#allocation27], 16
        $region204: #{tpu_custom_call.1} parent=135 // pred_fallthru
          _
        // Predicated region
        $region205: #{tpu_custom_call.1} parent=135 // pred_check
          %p1233 = pneg %p494
        $region206: #{tpu_custom_call.1} parent=135 // pred_check_branch
          %1235 = sbr.rel (%p1233) target = $region208
        $region207: #{tpu_custom_call.1} parent=135 // pred_region
          %1236 = dma.done [#allocation30], 2048
        $region208: #{tpu_custom_call.1} parent=135 // pred_fallthru
          _
        // Predicated region
        $region209: #{tpu_custom_call.1} parent=135 // pred_check
          %p1237 = pneg %p515
        $region210: #{tpu_custom_call.1} parent=135 // pred_check_branch
          %1239 = sbr.rel (%p1237) target = $region212
        $region211: #{tpu_custom_call.1} parent=135 // pred_region
          %1240 = dma.done [#allocation30], 16
        $region212: #{tpu_custom_call.1} parent=135 // pred_fallthru
          _
        // Predicated region
        $region213: #{tpu_custom_call.1} parent=135 // pred_check
          %p1241 = pneg %p536
        $region214: #{tpu_custom_call.1} parent=135 // pred_check_branch
          %1243 = sbr.rel (%p1241) target = $region216
        $region215: #{tpu_custom_call.1} parent=135 // pred_region
          %1244 = dma.done [#allocation33], 2048
        $region216: #{tpu_custom_call.1} parent=135 // pred_fallthru
          _
        // Predicated region
        $region217: #{tpu_custom_call.1} parent=135 // pred_check
          %p1245 = pneg %p557
        $region218: #{tpu_custom_call.1} parent=135 // pred_check_branch
          %1247 = sbr.rel (%p1245) target = $region220
        $region219: #{tpu_custom_call.1} parent=135 // pred_region
          %1248 = dma.done [#allocation33], 16
        $region220: #{tpu_custom_call.1} parent=135 // pred_fallthru
          _
        // Predicated region
        $region221: #{tpu_custom_call.1} parent=135 // pred_check
          %p1249 = pneg %p578
        $region222: #{tpu_custom_call.1} parent=135 // pred_check_branch
          %1251 = sbr.rel (%p1249) target = $region224
        $region223: #{tpu_custom_call.1} parent=135 // pred_region
          %1252 = dma.done [#allocation36], 16
        $region224: #{tpu_custom_call.1} parent=135 // pred_fallthru
          _
        // Predicated region
        $region225: #{tpu_custom_call.1} parent=135 // pred_check
          %p1253 = pneg %p599
        $region226: #{tpu_custom_call.1} parent=135 // pred_check_branch
          %1255 = sbr.rel (%p1253) target = $region228
        $region227: #{tpu_custom_call.1} parent=135 // pred_region
          %1256 = dma.done [#allocation36], 16
        $region228: #{tpu_custom_call.1} parent=135 // pred_fallthru
          _
        // Predicated region
        $region229: #{tpu_custom_call.1} parent=135 // pred_check
          %p1257 = pneg %p620
        $region230: #{tpu_custom_call.1} parent=135 // pred_check_branch
          %1259 = sbr.rel (%p1257) target = $region232
        $region231: #{tpu_custom_call.1} parent=135 // pred_region
          %1260 = dma.done [#allocation39], 4096
        $region232: #{tpu_custom_call.1} parent=135 // pred_fallthru
          _
        // Predicated region
        $region233: #{tpu_custom_call.1} parent=135 // pred_check
          %p1261 = pneg %p641
        $region234: #{tpu_custom_call.1} parent=135 // pred_check_branch
          %1263 = sbr.rel (%p1261) target = $region236
        $region235: #{tpu_custom_call.1} parent=135 // pred_region
          %1264 = dma.done [#allocation39], 32
        $region236: #{tpu_custom_call.1} parent=135 // pred_fallthru
          _
        // Predicated region
        $region237: #{tpu_custom_call.1} parent=135 // pred_check
          %p1265 = pneg %p662
        $region238: #{tpu_custom_call.1} parent=135 // pred_check_branch
          %1267 = sbr.rel (%p1265) target = $region240
        $region239: #{tpu_custom_call.1} parent=135 // pred_region
          %1268 = dma.done [#allocation42], 4096
        $region240: #{tpu_custom_call.1} parent=135 // pred_fallthru
          _
        // Predicated region
        $region241: #{tpu_custom_call.1} parent=135 // pred_check
          %p1269 = pneg %p683
        $region242: #{tpu_custom_call.1} parent=135 // pred_check_branch
          %1271 = sbr.rel (%p1269) target = $region244
        $region243: #{tpu_custom_call.1} parent=135 // pred_region
          %1272 = dma.done [#allocation42], 16
        $region244: #{tpu_custom_call.1} parent=135 // pred_fallthru
          _
        // Predicated region
        $region245: #{tpu_custom_call.1} parent=135 // pred_check
          %p1273 = pneg %p704
        $region246: #{tpu_custom_call.1} parent=135 // pred_check_branch
          %1275 = sbr.rel (%p1273) target = $region248
        $region247: #{tpu_custom_call.1} parent=135 // pred_region
          %1276 = dma.done [#allocation45], 16
        $region248: #{tpu_custom_call.1} parent=135 // pred_fallthru
          _
        // Predicated region
        $region249: #{tpu_custom_call.1} parent=135 // pred_check
          %p1277 = pneg %p725
        $region250: #{tpu_custom_call.1} parent=135 // pred_check_branch
          %1279 = sbr.rel (%p1277) target = $region252
        $region251: #{tpu_custom_call.1} parent=135 // pred_region
          %1280 = dma.done [#allocation45], 16
        $region252: #{tpu_custom_call.1} parent=135 // pred_fallthru
          _
        %s1281 = sand.u32 %s114, 1
        %s1282 = scalar_lea.sflag [#allocation3], %s1281
        %s1283 = sand.u32 %s114, 1
        %s1284 = smul.addr %s1283, 16
        %s1285 = scalar_lea.vmem [#allocation2], %s1284
        %p1286 = pneg %p127
        %p1287 = pneg %p124
        %s1288 = sand.u32 %s92, 1
        %s1289 = scalar_lea.sflag [#allocation6], %s1288
        %s1290 = sand.u32 %s140, 1
        %s1291 = smul.addr %s1290, 16
        %s1292 = scalar_lea.vmem [#allocation5], %s1291
        %p1293 = pneg %p153
        %p1294 = pneg %p150
        %s1295 = sand.u32 %s92, 1
        %s1296 = scalar_lea.sflag [#allocation6], %s1295
        %s1297 = sand.u32 %s166, 1
        %s1298 = smul.addr %s1297, 16
        %s1299 = scalar_lea.vmem [#allocation7], %s1298
        %p1300 = pneg %p179
        %p1301 = pneg %p176
        %p1302 = pneg %p200
        %p1303 = pneg %p197
        %p1304 = pneg %p221
        %p1305 = pneg %p218
        %p1306 = pneg %p242
        %p1307 = pneg %p239
        %p1308 = pneg %p263
        %p1309 = pneg %p260
        %p1310 = pneg %p284
        %p1311 = pneg %p281
        %p1312 = pneg %p305
        %p1313 = pneg %p302
        %p1314 = pneg %p326
        %p1315 = pneg %p323
        %p1316 = pneg %p347
        %p1317 = pneg %p344
        %p1318 = pneg %p368
        %p1319 = pneg %p365
        %p1320 = pneg %p389
        %p1321 = pneg %p386
        %p1322 = pneg %p410
        %p1323 = pneg %p407
        %p1324 = pneg %p431
        %p1325 = pneg %p428
        %p1326 = pneg %p452
        %p1327 = pneg %p449
        %p1328 = pneg %p473
        %p1329 = pneg %p470
        %p1330 = pneg %p494
        %p1331 = pneg %p491
        %p1332 = pneg %p515
        %p1333 = pneg %p512
        %p1334 = pneg %p536
        %p1335 = pneg %p533
        %p1336 = pneg %p557
        %p1337 = pneg %p554
        %p1338 = pneg %p578
        %p1339 = pneg %p575
        %p1340 = pneg %p599
        %p1341 = pneg %p596
        %p1342 = pneg %p620
        %p1343 = pneg %p617
        %p1344 = pneg %p641
        %p1345 = pneg %p638
        %p1346 = pneg %p662
        %p1347 = pneg %p659
        %p1348 = pneg %p683
        %p1349 = pneg %p680
        %p1350 = pneg %p704
        %p1351 = pneg %p701
        %p1352 = pneg %p725
        %p1353 = pneg %p722
        %p1354 = pneg %p753
        %p1355 = pneg %p750
        %s1356 = sand.u32 %s740, 1
        %s1357 = scalar_lea.sflag [#allocation4], %s1356
        %s1358 = sand.u32 %s740, 1
        %s1359 = smul.addr %s1358, 16
        %s1360 = scalar_lea.vmem [#allocation47], %s1359
        %s1361 = smul.u32 2, %s97
        %s1362 = smul.u32 2, %s97
        %v1363 = vld [vmem:[%s1154] sm:$0xff]
        %v1364 = vld [vmem:[%s1154 + $0x8] sm:$0xff]
        %v1365 = vld [vmem:[%s1163] sm:$0xff]
        %v1366 = vld [vmem:[%s1163 + $0x8] sm:$0xff]
        %v1367 = vld [vmem:[%s1172] sm:$0xff]
        %v1368 = vld [vmem:[%s1172 + $0x8] sm:$0xff]
        %v1369 = vld [vmem:[#allocation8] sm:$0xff]
        %v1370 = vld [vmem:[#allocation8 + $0x8] sm:$0xff]
        %v1371 = vld [vmem:[#allocation8 + $0x10] sm:$0xff]
        %v1372 = vld [vmem:[#allocation8 + $0x18] sm:$0xff]
        %v1373 = vld [vmem:[#allocation8 + $0x20] sm:$0xff]
        %v1374 = vld [vmem:[#allocation8 + $0x28] sm:$0xff]
        %v1375 = vld [vmem:[#allocation8 + $0x30] sm:$0xff]
        %v1376 = vld [vmem:[#allocation8 + $0x38] sm:$0xff]
        %v1377 = vld [vmem:[#allocation8 + $0x40] sm:$0xff]
        %v1378 = vld [vmem:[#allocation8 + $0x48] sm:$0xff]
        %v1379 = vld [vmem:[#allocation8 + $0x50] sm:$0xff]
        %v1380 = vld [vmem:[#allocation8 + $0x58] sm:$0xff]
        %v1381 = vld [vmem:[#allocation8 + $0x60] sm:$0xff]
        %v1382 = vld [vmem:[#allocation8 + $0x68] sm:$0xff]
        %v1383 = vld [vmem:[#allocation8 + $0x70] sm:$0xff]
        %v1384 = vld [vmem:[#allocation8 + $0x78] sm:$0xff]
        %v1385 = vld [vmem:[#allocation10] sm:$0x1]
        %v1387 = vlaneseq
        %v1388 = vshrl.u32 %v1387, 7
        %v1389 = vsub.s32 0, %v1388
        %v1390 = vrot.slane %v1385, %v1389
        %1392 = vmatprep.subr.mxu0 0.0
        %1393 = vmatpush1.msra.mxu0 %v1369
        %1394 = vmatprep.subr.mxu0 0.0
        %1395 = vmatpush1.msra.mxu0 %v1370
        %1396 = vmatprep.subr.mxu0 0.0
        %1397 = vmatpush1.msra.mxu0 %v1371
        %1398 = vmatprep.subr.mxu0 0.0
        %1399 = vmatpush1.msra.mxu0 %v1372
        %1400 = vmatprep.subr.mxu0 0.0
        %1401 = vmatpush1.msra.mxu0 %v1373
        %1402 = vmatprep.subr.mxu0 0.0
        %1403 = vmatpush1.msra.mxu0 %v1374
        %1404 = vmatprep.subr.mxu0 0.0
        %1405 = vmatpush1.msra.mxu0 %v1375
        %1406 = vmatprep.subr.mxu0 0.0
        %1407 = vmatpush1.msra.mxu0 %v1376
        %1408 = vmatprep.subr.mxu0 0.0
        %1409 = vmatpush1.msra.mxu0 %v1377
        %1410 = vmatprep.subr.mxu0 0.0
        %1411 = vmatpush1.msra.mxu0 %v1378
        %1412 = vmatprep.subr.mxu0 0.0
        %1413 = vmatpush1.msra.mxu0 %v1379
        %1414 = vmatprep.subr.mxu0 0.0
        %1415 = vmatpush1.msra.mxu0 %v1380
        %1416 = vmatprep.subr.mxu0 0.0
        %1417 = vmatpush1.msra.mxu0 %v1381
        %1418 = vmatprep.subr.mxu0 0.0
        %1419 = vmatpush1.msra.mxu0 %v1382
        %1420 = vmatprep.subr.mxu0 0.0
        %1421 = vmatpush1.msra.mxu0 %v1383
        %1422 = vmatprep.subr.mxu0 0.0
        %1423 = vmatpush1.msra.mxu0 %v1384
        %1424 = vmatprep.subr.mxu0 0.0
        %1425 = vmatpush1.msra.mxu0 0.0
        %1426 = vmatprep.subr.mxu0 0.0
        %1427 = vmatpush1.msra.mxu0 0.0
        %1428 = vmatprep.subr.mxu0 0.0
        %1429 = vmatpush1.msra.mxu0 0.0
        %1430 = vmatprep.subr.mxu0 0.0
        %1431 = vmatpush1.msra.mxu0 0.0
        %1432 = vmatprep.subr.mxu0 0.0
        %1433 = vmatpush1.msra.mxu0 0.0
        %1434 = vmatprep.subr.mxu0 0.0
        %1435 = vmatpush1.msra.mxu0 0.0
        %1436 = vmatprep.subr.mxu0 0.0
        %1437 = vmatpush1.msra.mxu0 0.0
        %1438 = vmatprep.subr.mxu0 0.0
        %1439 = vmatpush1.msra.mxu0 0.0
        %1440 = vmatprep.subr.mxu0 0.0
        %1441 = vmatpush1.msra.mxu0 0.0
        %1442 = vmatprep.subr.mxu0 0.0
        %1443 = vmatpush1.msra.mxu0 0.0
        %1444 = vmatprep.subr.mxu0 0.0
        %1445 = vmatpush1.msra.mxu0 0.0
        %1446 = vmatprep.subr.mxu0 0.0
        %1447 = vmatpush1.msra.mxu0 0.0
        %1448 = vmatprep.subr.mxu0 0.0
        %1449 = vmatpush1.msra.mxu0 0.0
        %1450 = vmatprep.subr.mxu0 0.0
        %1451 = vmatpush1.msra.mxu0 0.0
        %1452 = vmatprep.subr.mxu0 0.0
        %1453 = vmatpush1.msra.mxu0 0.0
        %1454 = vmatprep.subr.mxu0 0.0
        %1455 = vmatpush1.msra.mxu0 0.0
        %1456 = vmatprep.mubr.f32.mxu0 0.0
        %1457 = vmatmul.mubr.f32.gmra.mrb[0].mxu0 %v1363
        %v1458 = vpop.f32.mrb[0].mxu0
        %v1459 = vadd.f32 %v1390, %v1458
        %v1460 = vpop.f32.mrb[0].mxu0
        %1461 = vmatprep.mubr.f32.mxu0 0.0
        %1462 = vmatmul.mubr.f32.gmra.mrb[0].mxu0 %v1364
        %v1463 = vpop.f32.mrb[0].mxu0
        %v1464 = vadd.f32 %v1390, %v1463
        %v1465 = vpop.f32.mrb[0].mxu0
        %1466 = vdwg.mxu0
        %v1467 = vld [vmem:[#allocation11] sm:$0xff]
        %v1468 = vld [vmem:[#allocation11 + $0x8] sm:$0xff]
        %v1469 = vld [vmem:[#allocation11 + $0x10] sm:$0xff]
        %v1470 = vld [vmem:[#allocation11 + $0x18] sm:$0xff]
        %v1471 = vld [vmem:[#allocation11 + $0x20] sm:$0xff]
        %v1472 = vld [vmem:[#allocation11 + $0x28] sm:$0xff]
        %v1473 = vld [vmem:[#allocation11 + $0x30] sm:$0xff]
        %v1474 = vld [vmem:[#allocation11 + $0x38] sm:$0xff]
        %v1475 = vld [vmem:[#allocation11 + $0x40] sm:$0xff]
        %v1476 = vld [vmem:[#allocation11 + $0x48] sm:$0xff]
        %v1477 = vld [vmem:[#allocation11 + $0x50] sm:$0xff]
        %v1478 = vld [vmem:[#allocation11 + $0x58] sm:$0xff]
        %v1479 = vld [vmem:[#allocation11 + $0x60] sm:$0xff]
        %v1480 = vld [vmem:[#allocation11 + $0x68] sm:$0xff]
        %v1481 = vld [vmem:[#allocation11 + $0x70] sm:$0xff]
        %v1482 = vld [vmem:[#allocation11 + $0x78] sm:$0xff]
        %v1483 = vld [vmem:[#allocation13] sm:$0x1]
        %v1485 = vlaneseq
        %v1486 = vshrl.u32 %v1485, 7
        %v1487 = vsub.s32 0, %v1486
        %v1488 = vrot.slane %v1483, %v1487
        %1490 = vmatprep.subr.mxu0 0.0
        %1491 = vmatpush1.msra.mxu0 %v1467
        %1492 = vmatprep.subr.mxu0 0.0
        %1493 = vmatpush1.msra.mxu0 %v1468
        %1494 = vmatprep.subr.mxu0 0.0
        %1495 = vmatpush1.msra.mxu0 %v1469
        %1496 = vmatprep.subr.mxu0 0.0
        %1497 = vmatpush1.msra.mxu0 %v1470
        %1498 = vmatprep.subr.mxu0 0.0
        %1499 = vmatpush1.msra.mxu0 %v1471
        %1500 = vmatprep.subr.mxu0 0.0
        %1501 = vmatpush1.msra.mxu0 %v1472
        %1502 = vmatprep.subr.mxu0 0.0
        %1503 = vmatpush1.msra.mxu0 %v1473
        %1504 = vmatprep.subr.mxu0 0.0
        %1505 = vmatpush1.msra.mxu0 %v1474
        %1506 = vmatprep.subr.mxu0 0.0
        %1507 = vmatpush1.msra.mxu0 %v1475
        %1508 = vmatprep.subr.mxu0 0.0
        %1509 = vmatpush1.msra.mxu0 %v1476
        %1510 = vmatprep.subr.mxu0 0.0
        %1511 = vmatpush1.msra.mxu0 %v1477
        %1512 = vmatprep.subr.mxu0 0.0
        %1513 = vmatpush1.msra.mxu0 %v1478
        %1514 = vmatprep.subr.mxu0 0.0
        %1515 = vmatpush1.msra.mxu0 %v1479
        %1516 = vmatprep.subr.mxu0 0.0
        %1517 = vmatpush1.msra.mxu0 %v1480
        %1518 = vmatprep.subr.mxu0 0.0
        %1519 = vmatpush1.msra.mxu0 %v1481
        %1520 = vmatprep.subr.mxu0 0.0
        %1521 = vmatpush1.msra.mxu0 %v1482
        %1522 = vmatprep.subr.mxu0 0.0
        %1523 = vmatpush1.msra.mxu0 0.0
        %1524 = vmatprep.subr.mxu0 0.0
        %1525 = vmatpush1.msra.mxu0 0.0
        %1526 = vmatprep.subr.mxu0 0.0
        %1527 = vmatpush1.msra.mxu0 0.0
        %1528 = vmatprep.subr.mxu0 0.0
        %1529 = vmatpush1.msra.mxu0 0.0
        %1530 = vmatprep.subr.mxu0 0.0
        %1531 = vmatpush1.msra.mxu0 0.0
        %1532 = vmatprep.subr.mxu0 0.0
        %1533 = vmatpush1.msra.mxu0 0.0
        %1534 = vmatprep.subr.mxu0 0.0
        %1535 = vmatpush1.msra.mxu0 0.0
        %1536 = vmatprep.subr.mxu0 0.0
        %1537 = vmatpush1.msra.mxu0 0.0
        %1538 = vmatprep.subr.mxu0 0.0
        %1539 = vmatpush1.msra.mxu0 0.0
        %1540 = vmatprep.subr.mxu0 0.0
        %1541 = vmatpush1.msra.mxu0 0.0
        %1542 = vmatprep.subr.mxu0 0.0
        %1543 = vmatpush1.msra.mxu0 0.0
        %1544 = vmatprep.subr.mxu0 0.0
        %1545 = vmatpush1.msra.mxu0 0.0
        %1546 = vmatprep.subr.mxu0 0.0
        %1547 = vmatpush1.msra.mxu0 0.0
        %1548 = vmatprep.subr.mxu0 0.0
        %1549 = vmatpush1.msra.mxu0 0.0
        %1550 = vmatprep.subr.mxu0 0.0
        %1551 = vmatpush1.msra.mxu0 0.0
        %1552 = vmatprep.subr.mxu0 0.0
        %1553 = vmatpush1.msra.mxu0 0.0
        %1554 = vmatprep.mubr.f32.mxu0 0.0
        %1555 = vmatmul.mubr.f32.gmra.mrb[0].mxu0 %v1365
        %v1556 = vpop.f32.mrb[0].mxu0
        %v1557 = vadd.f32 %v1488, %v1556
        %v1558 = vpop.f32.mrb[0].mxu0
        %1559 = vmatprep.mubr.f32.mxu0 0.0
        %1560 = vmatmul.mubr.f32.gmra.mrb[0].mxu0 %v1366
        %v1561 = vpop.f32.mrb[0].mxu0
        %v1562 = vadd.f32 %v1488, %v1561
        %v1563 = vpop.f32.mrb[0].mxu0
        %1564 = vdwg.mxu0
        %v1565 = vld [vmem:[#allocation14] sm:$0xff]
        %v1566 = vld [vmem:[#allocation14 + $0x8] sm:$0xff]
        %v1567 = vld [vmem:[#allocation14 + $0x10] sm:$0xff]
        %v1568 = vld [vmem:[#allocation14 + $0x18] sm:$0xff]
        %v1569 = vld [vmem:[#allocation14 + $0x20] sm:$0xff]
        %v1570 = vld [vmem:[#allocation14 + $0x28] sm:$0xff]
        %v1571 = vld [vmem:[#allocation14 + $0x30] sm:$0xff]
        %v1572 = vld [vmem:[#allocation14 + $0x38] sm:$0xff]
        %v1573 = vld [vmem:[#allocation14 + $0x40] sm:$0xff]
        %v1574 = vld [vmem:[#allocation14 + $0x48] sm:$0xff]
        %v1575 = vld [vmem:[#allocation14 + $0x50] sm:$0xff]
        %v1576 = vld [vmem:[#allocation14 + $0x58] sm:$0xff]
        %v1577 = vld [vmem:[#allocation14 + $0x60] sm:$0xff]
        %v1578 = vld [vmem:[#allocation14 + $0x68] sm:$0xff]
        %v1579 = vld [vmem:[#allocation14 + $0x70] sm:$0xff]
        %v1580 = vld [vmem:[#allocation14 + $0x78] sm:$0xff]
        %v1581 = vld [vmem:[#allocation16] sm:$0x1]
        %v1583 = vlaneseq
        %v1584 = vshrl.u32 %v1583, 7
        %v1585 = vsub.s32 0, %v1584
        %v1586 = vrot.slane %v1581, %v1585
        %1588 = vmatprep.subr.mxu0 0.0
        %1589 = vmatpush1.msra.mxu0 %v1565
        %1590 = vmatprep.subr.mxu0 0.0
        %1591 = vmatpush1.msra.mxu0 %v1566
        %1592 = vmatprep.subr.mxu0 0.0
        %1593 = vmatpush1.msra.mxu0 %v1567
        %1594 = vmatprep.subr.mxu0 0.0
        %1595 = vmatpush1.msra.mxu0 %v1568
        %1596 = vmatprep.subr.mxu0 0.0
        %1597 = vmatpush1.msra.mxu0 %v1569
        %1598 = vmatprep.subr.mxu0 0.0
        %1599 = vmatpush1.msra.mxu0 %v1570
        %1600 = vmatprep.subr.mxu0 0.0
        %1601 = vmatpush1.msra.mxu0 %v1571
        %1602 = vmatprep.subr.mxu0 0.0
        %1603 = vmatpush1.msra.mxu0 %v1572
        %1604 = vmatprep.subr.mxu0 0.0
        %1605 = vmatpush1.msra.mxu0 %v1573
        %1606 = vmatprep.subr.mxu0 0.0
        %1607 = vmatpush1.msra.mxu0 %v1574
        %1608 = vmatprep.subr.mxu0 0.0
        %1609 = vmatpush1.msra.mxu0 %v1575
        %1610 = vmatprep.subr.mxu0 0.0
        %1611 = vmatpush1.msra.mxu0 %v1576
        %1612 = vmatprep.subr.mxu0 0.0
        %1613 = vmatpush1.msra.mxu0 %v1577
        %1614 = vmatprep.subr.mxu0 0.0
        %1615 = vmatpush1.msra.mxu0 %v1578
        %1616 = vmatprep.subr.mxu0 0.0
        %1617 = vmatpush1.msra.mxu0 %v1579
        %1618 = vmatprep.subr.mxu0 0.0
        %1619 = vmatpush1.msra.mxu0 %v1580
        %1620 = vmatprep.subr.mxu0 0.0
        %1621 = vmatpush1.msra.mxu0 0.0
        %1622 = vmatprep.subr.mxu0 0.0
        %1623 = vmatpush1.msra.mxu0 0.0
        %1624 = vmatprep.subr.mxu0 0.0
        %1625 = vmatpush1.msra.mxu0 0.0
        %1626 = vmatprep.subr.mxu0 0.0
        %1627 = vmatpush1.msra.mxu0 0.0
        %1628 = vmatprep.subr.mxu0 0.0
        %1629 = vmatpush1.msra.mxu0 0.0
        %1630 = vmatprep.subr.mxu0 0.0
        %1631 = vmatpush1.msra.mxu0 0.0
        %1632 = vmatprep.subr.mxu0 0.0
        %1633 = vmatpush1.msra.mxu0 0.0
        %1634 = vmatprep.subr.mxu0 0.0
        %1635 = vmatpush1.msra.mxu0 0.0
        %1636 = vmatprep.subr.mxu0 0.0
        %1637 = vmatpush1.msra.mxu0 0.0
        %1638 = vmatprep.subr.mxu0 0.0
        %1639 = vmatpush1.msra.mxu0 0.0
        %1640 = vmatprep.subr.mxu0 0.0
        %1641 = vmatpush1.msra.mxu0 0.0
        %1642 = vmatprep.subr.mxu0 0.0
        %1643 = vmatpush1.msra.mxu0 0.0
        %1644 = vmatprep.subr.mxu0 0.0
        %1645 = vmatpush1.msra.mxu0 0.0
        %1646 = vmatprep.subr.mxu0 0.0
        %1647 = vmatpush1.msra.mxu0 0.0
        %1648 = vmatprep.subr.mxu0 0.0
        %1649 = vmatpush1.msra.mxu0 0.0
        %1650 = vmatprep.subr.mxu0 0.0
        %1651 = vmatpush1.msra.mxu0 0.0
        %1652 = vmatprep.mubr.f32.mxu0 0.0
        %1653 = vmatmul.mubr.f32.gmra.mrb[0].mxu0 %v1365
        %v1654 = vpop.f32.mrb[0].mxu0
        %v1655 = vadd.f32 %v1586, %v1654
        %v1656 = vpop.f32.mrb[0].mxu0
        %1657 = vmatprep.mubr.f32.mxu0 0.0
        %1658 = vmatmul.mubr.f32.gmra.mrb[0].mxu0 %v1366
        %v1659 = vpop.f32.mrb[0].mxu0
        %v1660 = vadd.f32 %v1586, %v1659
        %v1661 = vpop.f32.mrb[0].mxu0
        %1662 = vdwg.mxu0
        %vm1663 = vcmask 130048
        %v1665 = vsel %vm1663, %v1459, 0
        %v1668 = vsel %vm1663, %v1464, 0
        %v1671 = vsel %vm1663, %v1557, 0
        %v1674 = vsel %vm1663, %v1562, 0
        %1676 = vmatprep.subr.mxu0 0.0
        %1677 = vmatpush1.xpose.msra.mxu0 %v1671
        %1678 = vmatprep.subr.mxu0 0.0
        %1679 = vmatpush1.xpose.msra.mxu0 %v1674
        %1680 = vmatprep.subr.mxu0 0.0
        %1681 = vmatpush1.xpose.msra.mxu0 0.0
        %1682 = vmatprep.subr.mxu0 0.0
        %1683 = vmatpush1.xpose.msra.mxu0 0.0
        %1684 = vmatprep.subr.mxu0 0.0
        %1685 = vmatpush1.xpose.msra.mxu0 0.0
        %1686 = vmatprep.subr.mxu0 0.0
        %1687 = vmatpush1.xpose.msra.mxu0 0.0
        %1688 = vmatprep.subr.mxu0 0.0
        %1689 = vmatpush1.xpose.msra.mxu0 0.0
        %1690 = vmatprep.subr.mxu0 0.0
        %1691 = vmatpush1.xpose.msra.mxu0 0.0
        %1692 = vmatprep.subr.mxu0 0.0
        %1693 = vmatpush1.xpose.msra.mxu0 0.0
        %1694 = vmatprep.subr.mxu0 0.0
        %1695 = vmatpush1.xpose.msra.mxu0 0.0
        %1696 = vmatprep.subr.mxu0 0.0
        %1697 = vmatpush1.xpose.msra.mxu0 0.0
        %1698 = vmatprep.subr.mxu0 0.0
        %1699 = vmatpush1.xpose.msra.mxu0 0.0
        %1700 = vmatprep.subr.mxu0 0.0
        %1701 = vmatpush1.xpose.msra.mxu0 0.0
        %1702 = vmatprep.subr.mxu0 0.0
        %1703 = vmatpush1.xpose.msra.mxu0 0.0
        %1704 = vmatprep.subr.mxu0 0.0
        %1705 = vmatpush1.xpose.msra.mxu0 0.0
        %1706 = vmatprep.subr.mxu0 0.0
        %1707 = vmatpush1.xpose.msra.mxu0 0.0
        %1708 = vmatprep.subr.mxu0 0.0
        %1709 = vmatpush1.xpose.msra.mxu0 0.0
        %1710 = vmatprep.subr.mxu0 0.0
        %1711 = vmatpush1.xpose.msra.mxu0 0.0
        %1712 = vmatprep.subr.mxu0 0.0
        %1713 = vmatpush1.xpose.msra.mxu0 0.0
        %1714 = vmatprep.subr.mxu0 0.0
        %1715 = vmatpush1.xpose.msra.mxu0 0.0
        %1716 = vmatprep.subr.mxu0 0.0
        %1717 = vmatpush1.xpose.msra.mxu0 0.0
        %1718 = vmatprep.subr.mxu0 0.0
        %1719 = vmatpush1.xpose.msra.mxu0 0.0
        %1720 = vmatprep.subr.mxu0 0.0
        %1721 = vmatpush1.xpose.msra.mxu0 0.0
        %1722 = vmatprep.subr.mxu0 0.0
        %1723 = vmatpush1.xpose.msra.mxu0 0.0
        %1724 = vmatprep.subr.mxu0 0.0
        %1725 = vmatpush1.xpose.msra.mxu0 0.0
        %1726 = vmatprep.subr.mxu0 0.0
        %1727 = vmatpush1.xpose.msra.mxu0 0.0
        %1728 = vmatprep.subr.mxu0 0.0
        %1729 = vmatpush1.xpose.msra.mxu0 0.0
        %1730 = vmatprep.subr.mxu0 0.0
        %1731 = vmatpush1.xpose.msra.mxu0 0.0
        %1732 = vmatprep.subr.mxu0 0.0
        %1733 = vmatpush1.xpose.msra.mxu0 0.0
        %1734 = vmatprep.subr.mxu0 0.0
        %1735 = vmatpush1.xpose.msra.mxu0 0.0
        %1736 = vmatprep.subr.mxu0 0.0
        %1737 = vmatpush1.xpose.msra.mxu0 0.0
        %1738 = vmatprep.subr.mxu0 0.0
        %1739 = vmatpush1.xpose.msra.mxu0 0.0
        %1740 = vmatprep.mubr.f32.mxu0 0.0
        %1741 = vmatmul.mubr.f32.gmra.mrb[0].mxu0 %v1665
        %v1742 = vpop.f32.mrb[0].mxu0
        %v1743 = vadd.f32 0.0, %v1742
        %v1744 = vpop.f32.mrb[0].mxu0
        %1745 = vmatprep.mubr.f32.mxu0 0.0
        %1746 = vmatmul.mubr.f32.gmra.mrb[0].mxu0 %v1668
        %v1747 = vpop.f32.mrb[0].mxu0
        %v1748 = vadd.f32 0.0, %v1747
        %v1749 = vpop.f32.mrb[0].mxu0
        %1750 = vdwg.mxu0
        %v1751 = vmul.f32 %v1743, 0.25
        %v1752 = vmul.f32 %v1748, 0.25
        %v1753 = vsel %vm1663, %v1751, -inf
        %1754 = vmax.xlane.f32.xlu0 %v1753
        %v1755 = vpop.xlane.xlu0 %1754
        %v1756 = vsel %vm1663, %v1752, -inf
        %1757 = vmax.xlane.f32.xlu0 %v1756
        %v1758 = vpop.xlane.xlu0 %1757
        %v1759 = vsub.f32 %v1751, %v1755
        %v1760 = vsub.f32 %v1752, %v1758
        %v1761 = vmul.f32 %v1759, 1.442695
        %v1762 = vpow.pop %v1761
        %v1763 = vmul.f32 %v1760, 1.442695
        %v1764 = vpow.pop %v1763
        %v1765 = vsel %vm1663, %v1762, 0.0
        %1766 = vadd.xlane.f32.xlu0 %v1765
        %v1767 = vpop.xlane.xlu0 %1766
        %v1768 = vsel %vm1663, %v1764, 0.0
        %1769 = vadd.xlane.f32.xlu0 %v1768
        %v1770 = vpop.xlane.xlu0 %1769
        %v1771 = vrcp.pop %v1767
        %v1772 = vrcp.pop %v1770
        %v1773 = vmul.f32 %v1762, %v1771
        %v1774 = vmul.f32 %v1764, %v1772
        %v1776 = vsel %vm1663, %v1773, 0
        %v1779 = vsel %vm1663, %v1774, 0
        %1781 = vmatprep.subr.mxu0 0.0
        %1782 = vmatpush1.msra.mxu0 %v1655
        %1783 = vmatprep.subr.mxu0 0.0
        %1784 = vmatpush1.msra.mxu0 %v1660
        %1785 = vmatprep.subr.mxu0 0.0
        %1786 = vmatpush1.msra.mxu0 0.0
        %1787 = vmatprep.subr.mxu0 0.0
        %1788 = vmatpush1.msra.mxu0 0.0
        %1789 = vmatprep.subr.mxu0 0.0
        %1790 = vmatpush1.msra.mxu0 0.0
        %1791 = vmatprep.subr.mxu0 0.0
        %1792 = vmatpush1.msra.mxu0 0.0
        %1793 = vmatprep.subr.mxu0 0.0
        %1794 = vmatpush1.msra.mxu0 0.0
        %1795 = vmatprep.subr.mxu0 0.0
        %1796 = vmatpush1.msra.mxu0 0.0
        %1797 = vmatprep.subr.mxu0 0.0
        %1798 = vmatpush1.msra.mxu0 0.0
        %1799 = vmatprep.subr.mxu0 0.0
        %1800 = vmatpush1.msra.mxu0 0.0
        %1801 = vmatprep.subr.mxu0 0.0
        %1802 = vmatpush1.msra.mxu0 0.0
        %1803 = vmatprep.subr.mxu0 0.0
        %1804 = vmatpush1.msra.mxu0 0.0
        %1805 = vmatprep.subr.mxu0 0.0
        %1806 = vmatpush1.msra.mxu0 0.0
        %1807 = vmatprep.subr.mxu0 0.0
        %1808 = vmatpush1.msra.mxu0 0.0
        %1809 = vmatprep.subr.mxu0 0.0
        %1810 = vmatpush1.msra.mxu0 0.0
        %1811 = vmatprep.subr.mxu0 0.0
        %1812 = vmatpush1.msra.mxu0 0.0
        %1813 = vmatprep.subr.mxu0 0.0
        %1814 = vmatpush1.msra.mxu0 0.0
        %1815 = vmatprep.subr.mxu0 0.0
        %1816 = vmatpush1.msra.mxu0 0.0
        %1817 = vmatprep.subr.mxu0 0.0
        %1818 = vmatpush1.msra.mxu0 0.0
        %1819 = vmatprep.subr.mxu0 0.0
        %1820 = vmatpush1.msra.mxu0 0.0
        %1821 = vmatprep.subr.mxu0 0.0
        %1822 = vmatpush1.msra.mxu0 0.0
        %1823 = vmatprep.subr.mxu0 0.0
        %1824 = vmatpush1.msra.mxu0 0.0
        %1825 = vmatprep.subr.mxu0 0.0
        %1826 = vmatpush1.msra.mxu0 0.0
        %1827 = vmatprep.subr.mxu0 0.0
        %1828 = vmatpush1.msra.mxu0 0.0
        %1829 = vmatprep.subr.mxu0 0.0
        %1830 = vmatpush1.msra.mxu0 0.0
        %1831 = vmatprep.subr.mxu0 0.0
        %1832 = vmatpush1.msra.mxu0 0.0
        %1833 = vmatprep.subr.mxu0 0.0
        %1834 = vmatpush1.msra.mxu0 0.0
        %1835 = vmatprep.subr.mxu0 0.0
        %1836 = vmatpush1.msra.mxu0 0.0
        %1837 = vmatprep.subr.mxu0 0.0
        %1838 = vmatpush1.msra.mxu0 0.0
        %1839 = vmatprep.subr.mxu0 0.0
        %1840 = vmatpush1.msra.mxu0 0.0
        %1841 = vmatprep.subr.mxu0 0.0
        %1842 = vmatpush1.msra.mxu0 0.0
        %1843 = vmatprep.subr.mxu0 0.0
        %1844 = vmatpush1.msra.mxu0 0.0
        %1845 = vmatprep.mubr.f32.mxu0 0.0
        %1846 = vmatmul.mubr.f32.gmra.mrb[0].mxu0 %v1776
        %v1847 = vpop.f32.mrb[0].mxu0
        %v1848 = vadd.f32 0.0, %v1847
        %v1849 = vpop.f32.mrb[0].mxu0
        %1850 = vmatprep.mubr.f32.mxu0 0.0
        %1851 = vmatmul.mubr.f32.gmra.mrb[0].mxu0 %v1779
        %v1852 = vpop.f32.mrb[0].mxu0
        %v1853 = vadd.f32 0.0, %v1852
        %v1854 = vpop.f32.mrb[0].mxu0
        %1855 = vdwg.mxu0
        %1856 = vrot.lane.b32.xlu0 %v1459, 112
        %v1857 = vpop.permute.xlu0 %1856
        %1858 = vrot.lane.b32.xlu0 %v1464, 112
        %v1859 = vpop.permute.xlu0 %1858
        %1860 = vrot.lane.b32.xlu0 %v1557, 112
        %v1861 = vpop.permute.xlu0 %1860
        %1862 = vrot.lane.b32.xlu0 %v1562, 112
        %v1863 = vpop.permute.xlu0 %1862
        %v1864 = vsel %vm1663, %v1857, 0
        %v1866 = vsel %vm1663, %v1859, 0
        %v1868 = vsel %vm1663, %v1861, 0
        %v1870 = vsel %vm1663, %v1863, 0
        %1872 = vmatprep.subr.mxu0 0.0
        %1873 = vmatpush1.xpose.msra.mxu0 %v1868
        %1874 = vmatprep.subr.mxu0 0.0
        %1875 = vmatpush1.xpose.msra.mxu0 %v1870
        %1876 = vmatprep.subr.mxu0 0.0
        %1877 = vmatpush1.xpose.msra.mxu0 0.0
        %1878 = vmatprep.subr.mxu0 0.0
        %1879 = vmatpush1.xpose.msra.mxu0 0.0
        %1880 = vmatprep.subr.mxu0 0.0
        %1881 = vmatpush1.xpose.msra.mxu0 0.0
        %1882 = vmatprep.subr.mxu0 0.0
        %1883 = vmatpush1.xpose.msra.mxu0 0.0
        %1884 = vmatprep.subr.mxu0 0.0
        %1885 = vmatpush1.xpose.msra.mxu0 0.0
        %1886 = vmatprep.subr.mxu0 0.0
        %1887 = vmatpush1.xpose.msra.mxu0 0.0
        %1888 = vmatprep.subr.mxu0 0.0
        %1889 = vmatpush1.xpose.msra.mxu0 0.0
        %1890 = vmatprep.subr.mxu0 0.0
        %1891 = vmatpush1.xpose.msra.mxu0 0.0
        %1892 = vmatprep.subr.mxu0 0.0
        %1893 = vmatpush1.xpose.msra.mxu0 0.0
        %1894 = vmatprep.subr.mxu0 0.0
        %1895 = vmatpush1.xpose.msra.mxu0 0.0
        %1896 = vmatprep.subr.mxu0 0.0
        %1897 = vmatpush1.xpose.msra.mxu0 0.0
        %1898 = vmatprep.subr.mxu0 0.0
        %1899 = vmatpush1.xpose.msra.mxu0 0.0
        %1900 = vmatprep.subr.mxu0 0.0
        %1901 = vmatpush1.xpose.msra.mxu0 0.0
        %1902 = vmatprep.subr.mxu0 0.0
        %1903 = vmatpush1.xpose.msra.mxu0 0.0
        %1904 = vmatprep.subr.mxu0 0.0
        %1905 = vmatpush1.xpose.msra.mxu0 0.0
        %1906 = vmatprep.subr.mxu0 0.0
        %1907 = vmatpush1.xpose.msra.mxu0 0.0
        %1908 = vmatprep.subr.mxu0 0.0
        %1909 = vmatpush1.xpose.msra.mxu0 0.0
        %1910 = vmatprep.subr.mxu0 0.0
        %1911 = vmatpush1.xpose.msra.mxu0 0.0
        %1912 = vmatprep.subr.mxu0 0.0
        %1913 = vmatpush1.xpose.msra.mxu0 0.0
        %1914 = vmatprep.subr.mxu0 0.0
        %1915 = vmatpush1.xpose.msra.mxu0 0.0
        %1916 = vmatprep.subr.mxu0 0.0
        %1917 = vmatpush1.xpose.msra.mxu0 0.0
        %1918 = vmatprep.subr.mxu0 0.0
        %1919 = vmatpush1.xpose.msra.mxu0 0.0
        %1920 = vmatprep.subr.mxu0 0.0
        %1921 = vmatpush1.xpose.msra.mxu0 0.0
        %1922 = vmatprep.subr.mxu0 0.0
        %1923 = vmatpush1.xpose.msra.mxu0 0.0
        %1924 = vmatprep.subr.mxu0 0.0
        %1925 = vmatpush1.xpose.msra.mxu0 0.0
        %1926 = vmatprep.subr.mxu0 0.0
        %1927 = vmatpush1.xpose.msra.mxu0 0.0
        %1928 = vmatprep.subr.mxu0 0.0
        %1929 = vmatpush1.xpose.msra.mxu0 0.0
        %1930 = vmatprep.subr.mxu0 0.0
        %1931 = vmatpush1.xpose.msra.mxu0 0.0
        %1932 = vmatprep.subr.mxu0 0.0
        %1933 = vmatpush1.xpose.msra.mxu0 0.0
        %1934 = vmatprep.subr.mxu0 0.0
        %1935 = vmatpush1.xpose.msra.mxu0 0.0
        %1936 = vmatprep.mubr.f32.mxu0 0.0
        %1937 = vmatmul.mubr.f32.gmra.mrb[0].mxu0 %v1864
        %v1938 = vpop.f32.mrb[0].mxu0
        %v1939 = vadd.f32 0.0, %v1938
        %v1940 = vpop.f32.mrb[0].mxu0
        %1941 = vmatprep.mubr.f32.mxu0 0.0
        %1942 = vmatmul.mubr.f32.gmra.mrb[0].mxu0 %v1866
        %v1943 = vpop.f32.mrb[0].mxu0
        %v1944 = vadd.f32 0.0, %v1943
        %v1945 = vpop.f32.mrb[0].mxu0
        %1946 = vdwg.mxu0
        %v1947 = vmul.f32 %v1939, 0.25
        %v1948 = vmul.f32 %v1944, 0.25
        %v1949 = vsel %vm1663, %v1947, -inf
        %1950 = vmax.xlane.f32.xlu0 %v1949
        %v1951 = vpop.xlane.xlu0 %1950
        %v1952 = vsel %vm1663, %v1948, -inf
        %1953 = vmax.xlane.f32.xlu0 %v1952
        %v1954 = vpop.xlane.xlu0 %1953
        %v1955 = vsub.f32 %v1947, %v1951
        %v1956 = vsub.f32 %v1948, %v1954
        %v1957 = vmul.f32 %v1955, 1.442695
        %v1958 = vpow.pop %v1957
        %v1959 = vmul.f32 %v1956, 1.442695
        %v1960 = vpow.pop %v1959
        %v1961 = vsel %vm1663, %v1958, 0.0
        %1962 = vadd.xlane.f32.xlu0 %v1961
        %v1963 = vpop.xlane.xlu0 %1962
        %v1964 = vsel %vm1663, %v1960, 0.0
        %1965 = vadd.xlane.f32.xlu0 %v1964
        %v1966 = vpop.xlane.xlu0 %1965
        %v1967 = vrcp.pop %v1963
        %v1968 = vrcp.pop %v1966
        %v1969 = vmul.f32 %v1958, %v1967
        %v1970 = vmul.f32 %v1960, %v1968
        %1973 = vrot.lane.b32.xlu0 %v1655, 112
        %v1974 = vpop.permute.xlu0 %1973
        %1975 = vrot.lane.b32.xlu0 %v1660, 112
        %v1976 = vpop.permute.xlu0 %1975
        %v1980 = vsel %vm1663, %v1969, 0
        %v1983 = vsel %vm1663, %v1970, 0
        %1985 = vmatprep.subr.mxu0 0.0
        %1986 = vmatpush1.msra.mxu0 %v1974
        %1987 = vmatprep.subr.mxu0 0.0
        %1988 = vmatpush1.msra.mxu0 %v1976
        %1989 = vmatprep.subr.mxu0 0.0
        %1990 = vmatpush1.msra.mxu0 0.0
        %1991 = vmatprep.subr.mxu0 0.0
        %1992 = vmatpush1.msra.mxu0 0.0
        %1993 = vmatprep.subr.mxu0 0.0
        %1994 = vmatpush1.msra.mxu0 0.0
        %1995 = vmatprep.subr.mxu0 0.0
        %1996 = vmatpush1.msra.mxu0 0.0
        %1997 = vmatprep.subr.mxu0 0.0
        %1998 = vmatpush1.msra.mxu0 0.0
        %1999 = vmatprep.subr.mxu0 0.0
        %2000 = vmatpush1.msra.mxu0 0.0
        %2001 = vmatprep.subr.mxu0 0.0
        %2002 = vmatpush1.msra.mxu0 0.0
        %2003 = vmatprep.subr.mxu0 0.0
        %2004 = vmatpush1.msra.mxu0 0.0
        %2005 = vmatprep.subr.mxu0 0.0
        %2006 = vmatpush1.msra.mxu0 0.0
        %2007 = vmatprep.subr.mxu0 0.0
        %2008 = vmatpush1.msra.mxu0 0.0
        %2009 = vmatprep.subr.mxu0 0.0
        %2010 = vmatpush1.msra.mxu0 0.0
        %2011 = vmatprep.subr.mxu0 0.0
        %2012 = vmatpush1.msra.mxu0 0.0
        %2013 = vmatprep.subr.mxu0 0.0
        %2014 = vmatpush1.msra.mxu0 0.0
        %2015 = vmatprep.subr.mxu0 0.0
        %2016 = vmatpush1.msra.mxu0 0.0
        %2017 = vmatprep.subr.mxu0 0.0
        %2018 = vmatpush1.msra.mxu0 0.0
        %2019 = vmatprep.subr.mxu0 0.0
        %2020 = vmatpush1.msra.mxu0 0.0
        %2021 = vmatprep.subr.mxu0 0.0
        %2022 = vmatpush1.msra.mxu0 0.0
        %2023 = vmatprep.subr.mxu0 0.0
        %2024 = vmatpush1.msra.mxu0 0.0
        %2025 = vmatprep.subr.mxu0 0.0
        %2026 = vmatpush1.msra.mxu0 0.0
        %2027 = vmatprep.subr.mxu0 0.0
        %2028 = vmatpush1.msra.mxu0 0.0
        %2029 = vmatprep.subr.mxu0 0.0
        %2030 = vmatpush1.msra.mxu0 0.0
        %2031 = vmatprep.subr.mxu0 0.0
        %2032 = vmatpush1.msra.mxu0 0.0
        %2033 = vmatprep.subr.mxu0 0.0
        %2034 = vmatpush1.msra.mxu0 0.0
        %2035 = vmatprep.subr.mxu0 0.0
        %2036 = vmatpush1.msra.mxu0 0.0
        %2037 = vmatprep.subr.mxu0 0.0
        %2038 = vmatpush1.msra.mxu0 0.0
        %2039 = vmatprep.subr.mxu0 0.0
        %2040 = vmatpush1.msra.mxu0 0.0
        %2041 = vmatprep.subr.mxu0 0.0
        %2042 = vmatpush1.msra.mxu0 0.0
        %2043 = vmatprep.subr.mxu0 0.0
        %2044 = vmatpush1.msra.mxu0 0.0
        %2045 = vmatprep.subr.mxu0 0.0
        %2046 = vmatpush1.msra.mxu0 0.0
        %2047 = vmatprep.subr.mxu0 0.0
        %2048 = vmatpush1.msra.mxu0 0.0
        %2049 = vmatprep.mubr.f32.mxu0 0.0
        %2050 = vmatmul.mubr.f32.gmra.mrb[0].mxu0 %v1980
        %v2051 = vpop.f32.mrb[0].mxu0
        %v2052 = vadd.f32 0.0, %v2051
        %v2053 = vpop.f32.mrb[0].mxu0
        %2054 = vmatprep.mubr.f32.mxu0 0.0
        %2055 = vmatmul.mubr.f32.gmra.mrb[0].mxu0 %v1983
        %v2056 = vpop.f32.mrb[0].mxu0
        %v2057 = vadd.f32 0.0, %v2056
        %v2058 = vpop.f32.mrb[0].mxu0
        %2059 = vdwg.mxu0
        %2060 = vrot.lane.b32.xlu0 %v1459, 96
        %v2061 = vpop.permute.xlu0 %2060
        %2062 = vrot.lane.b32.xlu0 %v1464, 96
        %v2063 = vpop.permute.xlu0 %2062
        %2064 = vrot.lane.b32.xlu0 %v1557, 96
        %v2065 = vpop.permute.xlu0 %2064
        %2066 = vrot.lane.b32.xlu0 %v1562, 96
        %v2067 = vpop.permute.xlu0 %2066
        %v2068 = vsel %vm1663, %v2061, 0
        %v2070 = vsel %vm1663, %v2063, 0
        %v2072 = vsel %vm1663, %v2065, 0
        %v2074 = vsel %vm1663, %v2067, 0
        %2076 = vmatprep.subr.mxu0 0.0
        %2077 = vmatpush1.xpose.msra.mxu0 %v2072
        %2078 = vmatprep.subr.mxu0 0.0
        %2079 = vmatpush1.xpose.msra.mxu0 %v2074
        %2080 = vmatprep.subr.mxu0 0.0
        %2081 = vmatpush1.xpose.msra.mxu0 0.0
        %2082 = vmatprep.subr.mxu0 0.0
        %2083 = vmatpush1.xpose.msra.mxu0 0.0
        %2084 = vmatprep.subr.mxu0 0.0
        %2085 = vmatpush1.xpose.msra.mxu0 0.0
        %2086 = vmatprep.subr.mxu0 0.0
        %2087 = vmatpush1.xpose.msra.mxu0 0.0
        %2088 = vmatprep.subr.mxu0 0.0
        %2089 = vmatpush1.xpose.msra.mxu0 0.0
        %2090 = vmatprep.subr.mxu0 0.0
        %2091 = vmatpush1.xpose.msra.mxu0 0.0
        %2092 = vmatprep.subr.mxu0 0.0
        %2093 = vmatpush1.xpose.msra.mxu0 0.0
        %2094 = vmatprep.subr.mxu0 0.0
        %2095 = vmatpush1.xpose.msra.mxu0 0.0
        %2096 = vmatprep.subr.mxu0 0.0
        %2097 = vmatpush1.xpose.msra.mxu0 0.0
        %2098 = vmatprep.subr.mxu0 0.0
        %2099 = vmatpush1.xpose.msra.mxu0 0.0
        %2100 = vmatprep.subr.mxu0 0.0
        %2101 = vmatpush1.xpose.msra.mxu0 0.0
        %2102 = vmatprep.subr.mxu0 0.0
        %2103 = vmatpush1.xpose.msra.mxu0 0.0
        %2104 = vmatprep.subr.mxu0 0.0
        %2105 = vmatpush1.xpose.msra.mxu0 0.0
        %2106 = vmatprep.subr.mxu0 0.0
        %2107 = vmatpush1.xpose.msra.mxu0 0.0
        %2108 = vmatprep.subr.mxu0 0.0
        %2109 = vmatpush1.xpose.msra.mxu0 0.0
        %2110 = vmatprep.subr.mxu0 0.0
        %2111 = vmatpush1.xpose.msra.mxu0 0.0
        %2112 = vmatprep.subr.mxu0 0.0
        %2113 = vmatpush1.xpose.msra.mxu0 0.0
        %2114 = vmatprep.subr.mxu0 0.0
        %2115 = vmatpush1.xpose.msra.mxu0 0.0
        %2116 = vmatprep.subr.mxu0 0.0
        %2117 = vmatpush1.xpose.msra.mxu0 0.0
        %2118 = vmatprep.subr.mxu0 0.0
        %2119 = vmatpush1.xpose.msra.mxu0 0.0
        %2120 = vmatprep.subr.mxu0 0.0
        %2121 = vmatpush1.xpose.msra.mxu0 0.0
        %2122 = vmatprep.subr.mxu0 0.0
        %2123 = vmatpush1.xpose.msra.mxu0 0.0
        %2124 = vmatprep.subr.mxu0 0.0
        %2125 = vmatpush1.xpose.msra.mxu0 0.0
        %2126 = vmatprep.subr.mxu0 0.0
        %2127 = vmatpush1.xpose.msra.mxu0 0.0
        %2128 = vmatprep.subr.mxu0 0.0
        %2129 = vmatpush1.xpose.msra.mxu0 0.0
        %2130 = vmatprep.subr.mxu0 0.0
        %2131 = vmatpush1.xpose.msra.mxu0 0.0
        %2132 = vmatprep.subr.mxu0 0.0
        %2133 = vmatpush1.xpose.msra.mxu0 0.0
        %2134 = vmatprep.subr.mxu0 0.0
        %2135 = vmatpush1.xpose.msra.mxu0 0.0
        %2136 = vmatprep.subr.mxu0 0.0
        %2137 = vmatpush1.xpose.msra.mxu0 0.0
        %2138 = vmatprep.subr.mxu0 0.0
        %2139 = vmatpush1.xpose.msra.mxu0 0.0
        %2140 = vmatprep.mubr.f32.mxu0 0.0
        %2141 = vmatmul.mubr.f32.gmra.mrb[0].mxu0 %v2068
        %v2142 = vpop.f32.mrb[0].mxu0
        %v2143 = vadd.f32 0.0, %v2142
        %v2144 = vpop.f32.mrb[0].mxu0
        %2145 = vmatprep.mubr.f32.mxu0 0.0
        %2146 = vmatmul.mubr.f32.gmra.mrb[0].mxu0 %v2070
        %v2147 = vpop.f32.mrb[0].mxu0
        %v2148 = vadd.f32 0.0, %v2147
        %v2149 = vpop.f32.mrb[0].mxu0
        %2150 = vdwg.mxu0
        %v2151 = vmul.f32 %v2143, 0.25
        %v2152 = vmul.f32 %v2148, 0.25
        %v2153 = vsel %vm1663, %v2151, -inf
        %2154 = vmax.xlane.f32.xlu0 %v2153
        %v2155 = vpop.xlane.xlu0 %2154
        %v2156 = vsel %vm1663, %v2152, -inf
        %2157 = vmax.xlane.f32.xlu0 %v2156
        %v2158 = vpop.xlane.xlu0 %2157
        %v2159 = vsub.f32 %v2151, %v2155
        %v2160 = vsub.f32 %v2152, %v2158
        %v2161 = vmul.f32 %v2159, 1.442695
        %v2162 = vpow.pop %v2161
        %v2163 = vmul.f32 %v2160, 1.442695
        %v2164 = vpow.pop %v2163
        %v2165 = vsel %vm1663, %v2162, 0.0
        %2166 = vadd.xlane.f32.xlu0 %v2165
        %v2167 = vpop.xlane.xlu0 %2166
        %v2168 = vsel %vm1663, %v2164, 0.0
        %2169 = vadd.xlane.f32.xlu0 %v2168
        %v2170 = vpop.xlane.xlu0 %2169
        %v2171 = vrcp.pop %v2167
        %v2172 = vrcp.pop %v2170
        %v2173 = vmul.f32 %v2162, %v2171
        %v2174 = vmul.f32 %v2164, %v2172
        %2175 = vrot.lane.b32.xlu0 %v1655, 96
        %v2176 = vpop.permute.xlu0 %2175
        %2177 = vrot.lane.b32.xlu0 %v1660, 96
        %v2178 = vpop.permute.xlu0 %2177
        %v2182 = vsel %vm1663, %v2173, 0
        %v2185 = vsel %vm1663, %v2174, 0
        %2187 = vmatprep.subr.mxu0 0.0
        %2188 = vmatpush1.msra.mxu0 %v2176
        %2189 = vmatprep.subr.mxu0 0.0
        %2190 = vmatpush1.msra.mxu0 %v2178
        %2191 = vmatprep.subr.mxu0 0.0
        %2192 = vmatpush1.msra.mxu0 0.0
        %2193 = vmatprep.subr.mxu0 0.0
        %2194 = vmatpush1.msra.mxu0 0.0
        %2195 = vmatprep.subr.mxu0 0.0
        %2196 = vmatpush1.msra.mxu0 0.0
        %2197 = vmatprep.subr.mxu0 0.0
        %2198 = vmatpush1.msra.mxu0 0.0
        %2199 = vmatprep.subr.mxu0 0.0
        %2200 = vmatpush1.msra.mxu0 0.0
        %2201 = vmatprep.subr.mxu0 0.0
        %2202 = vmatpush1.msra.mxu0 0.0
        %2203 = vmatprep.subr.mxu0 0.0
        %2204 = vmatpush1.msra.mxu0 0.0
        %2205 = vmatprep.subr.mxu0 0.0
        %2206 = vmatpush1.msra.mxu0 0.0
        %2207 = vmatprep.subr.mxu0 0.0
        %2208 = vmatpush1.msra.mxu0 0.0
        %2209 = vmatprep.subr.mxu0 0.0
        %2210 = vmatpush1.msra.mxu0 0.0
        %2211 = vmatprep.subr.mxu0 0.0
        %2212 = vmatpush1.msra.mxu0 0.0
        %2213 = vmatprep.subr.mxu0 0.0
        %2214 = vmatpush1.msra.mxu0 0.0
        %2215 = vmatprep.subr.mxu0 0.0
        %2216 = vmatpush1.msra.mxu0 0.0
        %2217 = vmatprep.subr.mxu0 0.0
        %2218 = vmatpush1.msra.mxu0 0.0
        %2219 = vmatprep.subr.mxu0 0.0
        %2220 = vmatpush1.msra.mxu0 0.0
        %2221 = vmatprep.subr.mxu0 0.0
        %2222 = vmatpush1.msra.mxu0 0.0
        %2223 = vmatprep.subr.mxu0 0.0
        %2224 = vmatpush1.msra.mxu0 0.0
        %2225 = vmatprep.subr.mxu0 0.0
        %2226 = vmatpush1.msra.mxu0 0.0
        %2227 = vmatprep.subr.mxu0 0.0
        %2228 = vmatpush1.msra.mxu0 0.0
        %2229 = vmatprep.subr.mxu0 0.0
        %2230 = vmatpush1.msra.mxu0 0.0
        %2231 = vmatprep.subr.mxu0 0.0
        %2232 = vmatpush1.msra.mxu0 0.0
        %2233 = vmatprep.subr.mxu0 0.0
        %2234 = vmatpush1.msra.mxu0 0.0
        %2235 = vmatprep.subr.mxu0 0.0
        %2236 = vmatpush1.msra.mxu0 0.0
        %2237 = vmatprep.subr.mxu0 0.0
        %2238 = vmatpush1.msra.mxu0 0.0
        %2239 = vmatprep.subr.mxu0 0.0
        %2240 = vmatpush1.msra.mxu0 0.0
        %2241 = vmatprep.subr.mxu0 0.0
        %2242 = vmatpush1.msra.mxu0 0.0
        %2243 = vmatprep.subr.mxu0 0.0
        %2244 = vmatpush1.msra.mxu0 0.0
        %2245 = vmatprep.subr.mxu0 0.0
        %2246 = vmatpush1.msra.mxu0 0.0
        %2247 = vmatprep.subr.mxu0 0.0
        %2248 = vmatpush1.msra.mxu0 0.0
        %2249 = vmatprep.subr.mxu0 0.0
        %2250 = vmatpush1.msra.mxu0 0.0
        %2251 = vmatprep.mubr.f32.mxu0 0.0
        %2252 = vmatmul.mubr.f32.gmra.mrb[0].mxu0 %v2182
        %v2253 = vpop.f32.mrb[0].mxu0
        %v2254 = vadd.f32 0.0, %v2253
        %v2255 = vpop.f32.mrb[0].mxu0
        %2256 = vmatprep.mubr.f32.mxu0 0.0
        %2257 = vmatmul.mubr.f32.gmra.mrb[0].mxu0 %v2185
        %v2258 = vpop.f32.mrb[0].mxu0
        %v2259 = vadd.f32 0.0, %v2258
        %v2260 = vpop.f32.mrb[0].mxu0
        %2261 = vdwg.mxu0
        %2262 = vrot.lane.b32.xlu0 %v1459, 80
        %v2263 = vpop.permute.xlu0 %2262
        %2264 = vrot.lane.b32.xlu0 %v1464, 80
        %v2265 = vpop.permute.xlu0 %2264
        %2266 = vrot.lane.b32.xlu0 %v1557, 80
        %v2267 = vpop.permute.xlu0 %2266
        %2268 = vrot.lane.b32.xlu0 %v1562, 80
        %v2269 = vpop.permute.xlu0 %2268
        %v2270 = vsel %vm1663, %v2263, 0
        %v2272 = vsel %vm1663, %v2265, 0
        %v2274 = vsel %vm1663, %v2267, 0
        %v2276 = vsel %vm1663, %v2269, 0
        %2278 = vmatprep.subr.mxu0 0.0
        %2279 = vmatpush1.xpose.msra.mxu0 %v2274
        %2280 = vmatprep.subr.mxu0 0.0
        %2281 = vmatpush1.xpose.msra.mxu0 %v2276
        %2282 = vmatprep.subr.mxu0 0.0
        %2283 = vmatpush1.xpose.msra.mxu0 0.0
        %2284 = vmatprep.subr.mxu0 0.0
        %2285 = vmatpush1.xpose.msra.mxu0 0.0
        %2286 = vmatprep.subr.mxu0 0.0
        %2287 = vmatpush1.xpose.msra.mxu0 0.0
        %2288 = vmatprep.subr.mxu0 0.0
        %2289 = vmatpush1.xpose.msra.mxu0 0.0
        %2290 = vmatprep.subr.mxu0 0.0
        %2291 = vmatpush1.xpose.msra.mxu0 0.0
        %2292 = vmatprep.subr.mxu0 0.0
        %2293 = vmatpush1.xpose.msra.mxu0 0.0
        %2294 = vmatprep.subr.mxu0 0.0
        %2295 = vmatpush1.xpose.msra.mxu0 0.0
        %2296 = vmatprep.subr.mxu0 0.0
        %2297 = vmatpush1.xpose.msra.mxu0 0.0
        %2298 = vmatprep.subr.mxu0 0.0
        %2299 = vmatpush1.xpose.msra.mxu0 0.0
        %2300 = vmatprep.subr.mxu0 0.0
        %2301 = vmatpush1.xpose.msra.mxu0 0.0
        %2302 = vmatprep.subr.mxu0 0.0
        %2303 = vmatpush1.xpose.msra.mxu0 0.0
        %2304 = vmatprep.subr.mxu0 0.0
        %2305 = vmatpush1.xpose.msra.mxu0 0.0
        %2306 = vmatprep.subr.mxu0 0.0
        %2307 = vmatpush1.xpose.msra.mxu0 0.0
        %2308 = vmatprep.subr.mxu0 0.0
        %2309 = vmatpush1.xpose.msra.mxu0 0.0
        %2310 = vmatprep.subr.mxu0 0.0
        %2311 = vmatpush1.xpose.msra.mxu0 0.0
        %2312 = vmatprep.subr.mxu0 0.0
        %2313 = vmatpush1.xpose.msra.mxu0 0.0
        %2314 = vmatprep.subr.mxu0 0.0
        %2315 = vmatpush1.xpose.msra.mxu0 0.0
        %2316 = vmatprep.subr.mxu0 0.0
        %2317 = vmatpush1.xpose.msra.mxu0 0.0
        %2318 = vmatprep.subr.mxu0 0.0
        %2319 = vmatpush1.xpose.msra.mxu0 0.0
        %2320 = vmatprep.subr.mxu0 0.0
        %2321 = vmatpush1.xpose.msra.mxu0 0.0
        %2322 = vmatprep.subr.mxu0 0.0
        %2323 = vmatpush1.xpose.msra.mxu0 0.0
        %2324 = vmatprep.subr.mxu0 0.0
        %2325 = vmatpush1.xpose.msra.mxu0 0.0
        %2326 = vmatprep.subr.mxu0 0.0
        %2327 = vmatpush1.xpose.msra.mxu0 0.0
        %2328 = vmatprep.subr.mxu0 0.0
        %2329 = vmatpush1.xpose.msra.mxu0 0.0
        %2330 = vmatprep.subr.mxu0 0.0
        %2331 = vmatpush1.xpose.msra.mxu0 0.0
        %2332 = vmatprep.subr.mxu0 0.0
        %2333 = vmatpush1.xpose.msra.mxu0 0.0
        %2334 = vmatprep.subr.mxu0 0.0
        %2335 = vmatpush1.xpose.msra.mxu0 0.0
        %2336 = vmatprep.subr.mxu0 0.0
        %2337 = vmatpush1.xpose.msra.mxu0 0.0
        %2338 = vmatprep.subr.mxu0 0.0
        %2339 = vmatpush1.xpose.msra.mxu0 0.0
        %2340 = vmatprep.subr.mxu0 0.0
        %2341 = vmatpush1.xpose.msra.mxu0 0.0
        %2342 = vmatprep.mubr.f32.mxu0 0.0
        %2343 = vmatmul.mubr.f32.gmra.mrb[0].mxu0 %v2270
        %v2344 = vpop.f32.mrb[0].mxu0
        %v2345 = vadd.f32 0.0, %v2344
        %v2346 = vpop.f32.mrb[0].mxu0
        %2347 = vmatprep.mubr.f32.mxu0 0.0
        %2348 = vmatmul.mubr.f32.gmra.mrb[0].mxu0 %v2272
        %v2349 = vpop.f32.mrb[0].mxu0
        %v2350 = vadd.f32 0.0, %v2349
        %v2351 = vpop.f32.mrb[0].mxu0
        %2352 = vdwg.mxu0
        %v2353 = vmul.f32 %v2345, 0.25
        %v2354 = vmul.f32 %v2350, 0.25
        %v2355 = vsel %vm1663, %v2353, -inf
        %2356 = vmax.xlane.f32.xlu0 %v2355
        %v2357 = vpop.xlane.xlu0 %2356
        %v2358 = vsel %vm1663, %v2354, -inf
        %2359 = vmax.xlane.f32.xlu0 %v2358
        %v2360 = vpop.xlane.xlu0 %2359
        %v2361 = vsub.f32 %v2353, %v2357
        %v2362 = vsub.f32 %v2354, %v2360
        %v2363 = vmul.f32 %v2361, 1.442695
        %v2364 = vpow.pop %v2363
        %v2365 = vmul.f32 %v2362, 1.442695
        %v2366 = vpow.pop %v2365
        %v2367 = vsel %vm1663, %v2364, 0.0
        %2368 = vadd.xlane.f32.xlu0 %v2367
        %v2369 = vpop.xlane.xlu0 %2368
        %v2370 = vsel %vm1663, %v2366, 0.0
        %2371 = vadd.xlane.f32.xlu0 %v2370
        %v2372 = vpop.xlane.xlu0 %2371
        %v2373 = vrcp.pop %v2369
        %v2374 = vrcp.pop %v2372
        %v2375 = vmul.f32 %v2364, %v2373
        %v2376 = vmul.f32 %v2366, %v2374
        %2377 = vrot.lane.b32.xlu0 %v1655, 80
        %v2378 = vpop.permute.xlu0 %2377
        %2379 = vrot.lane.b32.xlu0 %v1660, 80
        %v2380 = vpop.permute.xlu0 %2379
        %v2384 = vsel %vm1663, %v2375, 0
        %v2387 = vsel %vm1663, %v2376, 0
        %2389 = vmatprep.subr.mxu0 0.0
        %2390 = vmatpush1.msra.mxu0 %v2378
        %2391 = vmatprep.subr.mxu0 0.0
        %2392 = vmatpush1.msra.mxu0 %v2380
        %2393 = vmatprep.subr.mxu0 0.0
        %2394 = vmatpush1.msra.mxu0 0.0
        %2395 = vmatprep.subr.mxu0 0.0
        %2396 = vmatpush1.msra.mxu0 0.0
        %2397 = vmatprep.subr.mxu0 0.0
        %2398 = vmatpush1.msra.mxu0 0.0
        %2399 = vmatprep.subr.mxu0 0.0
        %2400 = vmatpush1.msra.mxu0 0.0
        %2401 = vmatprep.subr.mxu0 0.0
        %2402 = vmatpush1.msra.mxu0 0.0
        %2403 = vmatprep.subr.mxu0 0.0
        %2404 = vmatpush1.msra.mxu0 0.0
        %2405 = vmatprep.subr.mxu0 0.0
        %2406 = vmatpush1.msra.mxu0 0.0
        %2407 = vmatprep.subr.mxu0 0.0
        %2408 = vmatpush1.msra.mxu0 0.0
        %2409 = vmatprep.subr.mxu0 0.0
        %2410 = vmatpush1.msra.mxu0 0.0
        %2411 = vmatprep.subr.mxu0 0.0
        %2412 = vmatpush1.msra.mxu0 0.0
        %2413 = vmatprep.subr.mxu0 0.0
        %2414 = vmatpush1.msra.mxu0 0.0
        %2415 = vmatprep.subr.mxu0 0.0
        %2416 = vmatpush1.msra.mxu0 0.0
        %2417 = vmatprep.subr.mxu0 0.0
        %2418 = vmatpush1.msra.mxu0 0.0
        %2419 = vmatprep.subr.mxu0 0.0
        %2420 = vmatpush1.msra.mxu0 0.0
        %2421 = vmatprep.subr.mxu0 0.0
        %2422 = vmatpush1.msra.mxu0 0.0
        %2423 = vmatprep.subr.mxu0 0.0
        %2424 = vmatpush1.msra.mxu0 0.0
        %2425 = vmatprep.subr.mxu0 0.0
        %2426 = vmatpush1.msra.mxu0 0.0
        %2427 = vmatprep.subr.mxu0 0.0
        %2428 = vmatpush1.msra.mxu0 0.0
        %2429 = vmatprep.subr.mxu0 0.0
        %2430 = vmatpush1.msra.mxu0 0.0
        %2431 = vmatprep.subr.mxu0 0.0
        %2432 = vmatpush1.msra.mxu0 0.0
        %2433 = vmatprep.subr.mxu0 0.0
        %2434 = vmatpush1.msra.mxu0 0.0
        %2435 = vmatprep.subr.mxu0 0.0
        %2436 = vmatpush1.msra.mxu0 0.0
        %2437 = vmatprep.subr.mxu0 0.0
        %2438 = vmatpush1.msra.mxu0 0.0
        %2439 = vmatprep.subr.mxu0 0.0
        %2440 = vmatpush1.msra.mxu0 0.0
        %2441 = vmatprep.subr.mxu0 0.0
        %2442 = vmatpush1.msra.mxu0 0.0
        %2443 = vmatprep.subr.mxu0 0.0
        %2444 = vmatpush1.msra.mxu0 0.0
        %2445 = vmatprep.subr.mxu0 0.0
        %2446 = vmatpush1.msra.mxu0 0.0
        %2447 = vmatprep.subr.mxu0 0.0
        %2448 = vmatpush1.msra.mxu0 0.0
        %2449 = vmatprep.subr.mxu0 0.0
        %2450 = vmatpush1.msra.mxu0 0.0
        %2451 = vmatprep.subr.mxu0 0.0
        %2452 = vmatpush1.msra.mxu0 0.0
        %2453 = vmatprep.mubr.f32.mxu0 0.0
        %2454 = vmatmul.mubr.f32.gmra.mrb[0].mxu0 %v2384
        %v2455 = vpop.f32.mrb[0].mxu0
        %v2456 = vadd.f32 0.0, %v2455
        %v2457 = vpop.f32.mrb[0].mxu0
        %2458 = vmatprep.mubr.f32.mxu0 0.0
        %2459 = vmatmul.mubr.f32.gmra.mrb[0].mxu0 %v2387
        %v2460 = vpop.f32.mrb[0].mxu0
        %v2461 = vadd.f32 0.0, %v2460
        %v2462 = vpop.f32.mrb[0].mxu0
        %2463 = vdwg.mxu0
        %2464 = vrot.lane.b32.xlu0 %v1459, 64
        %v2465 = vpop.permute.xlu0 %2464
        %2466 = vrot.lane.b32.xlu0 %v1464, 64
        %v2467 = vpop.permute.xlu0 %2466
        %2468 = vrot.lane.b32.xlu0 %v1557, 64
        %v2469 = vpop.permute.xlu0 %2468
        %2470 = vrot.lane.b32.xlu0 %v1562, 64
        %v2471 = vpop.permute.xlu0 %2470
        %v2472 = vsel %vm1663, %v2465, 0
        %v2474 = vsel %vm1663, %v2467, 0
        %v2476 = vsel %vm1663, %v2469, 0
        %v2478 = vsel %vm1663, %v2471, 0
        %2480 = vmatprep.subr.mxu0 0.0
        %2481 = vmatpush1.xpose.msra.mxu0 %v2476
        %2482 = vmatprep.subr.mxu0 0.0
        %2483 = vmatpush1.xpose.msra.mxu0 %v2478
        %2484 = vmatprep.subr.mxu0 0.0
        %2485 = vmatpush1.xpose.msra.mxu0 0.0
        %2486 = vmatprep.subr.mxu0 0.0
        %2487 = vmatpush1.xpose.msra.mxu0 0.0
        %2488 = vmatprep.subr.mxu0 0.0
        %2489 = vmatpush1.xpose.msra.mxu0 0.0
        %2490 = vmatprep.subr.mxu0 0.0
        %2491 = vmatpush1.xpose.msra.mxu0 0.0
        %2492 = vmatprep.subr.mxu0 0.0
        %2493 = vmatpush1.xpose.msra.mxu0 0.0
        %2494 = vmatprep.subr.mxu0 0.0
        %2495 = vmatpush1.xpose.msra.mxu0 0.0
        %2496 = vmatprep.subr.mxu0 0.0
        %2497 = vmatpush1.xpose.msra.mxu0 0.0
        %2498 = vmatprep.subr.mxu0 0.0
        %2499 = vmatpush1.xpose.msra.mxu0 0.0
        %2500 = vmatprep.subr.mxu0 0.0
        %2501 = vmatpush1.xpose.msra.mxu0 0.0
        %2502 = vmatprep.subr.mxu0 0.0
        %2503 = vmatpush1.xpose.msra.mxu0 0.0
        %2504 = vmatprep.subr.mxu0 0.0
        %2505 = vmatpush1.xpose.msra.mxu0 0.0
        %2506 = vmatprep.subr.mxu0 0.0
        %2507 = vmatpush1.xpose.msra.mxu0 0.0
        %2508 = vmatprep.subr.mxu0 0.0
        %2509 = vmatpush1.xpose.msra.mxu0 0.0
        %2510 = vmatprep.subr.mxu0 0.0
        %2511 = vmatpush1.xpose.msra.mxu0 0.0
        %2512 = vmatprep.subr.mxu0 0.0
        %2513 = vmatpush1.xpose.msra.mxu0 0.0
        %2514 = vmatprep.subr.mxu0 0.0
        %2515 = vmatpush1.xpose.msra.mxu0 0.0
        %2516 = vmatprep.subr.mxu0 0.0
        %2517 = vmatpush1.xpose.msra.mxu0 0.0
        %2518 = vmatprep.subr.mxu0 0.0
        %2519 = vmatpush1.xpose.msra.mxu0 0.0
        %2520 = vmatprep.subr.mxu0 0.0
        %2521 = vmatpush1.xpose.msra.mxu0 0.0
        %2522 = vmatprep.subr.mxu0 0.0
        %2523 = vmatpush1.xpose.msra.mxu0 0.0
        %2524 = vmatprep.subr.mxu0 0.0
        %2525 = vmatpush1.xpose.msra.mxu0 0.0
        %2526 = vmatprep.subr.mxu0 0.0
        %2527 = vmatpush1.xpose.msra.mxu0 0.0
        %2528 = vmatprep.subr.mxu0 0.0
        %2529 = vmatpush1.xpose.msra.mxu0 0.0
        %2530 = vmatprep.subr.mxu0 0.0
        %2531 = vmatpush1.xpose.msra.mxu0 0.0
        %2532 = vmatprep.subr.mxu0 0.0
        %2533 = vmatpush1.xpose.msra.mxu0 0.0
        %2534 = vmatprep.subr.mxu0 0.0
        %2535 = vmatpush1.xpose.msra.mxu0 0.0
        %2536 = vmatprep.subr.mxu0 0.0
        %2537 = vmatpush1.xpose.msra.mxu0 0.0
        %2538 = vmatprep.subr.mxu0 0.0
        %2539 = vmatpush1.xpose.msra.mxu0 0.0
        %2540 = vmatprep.subr.mxu0 0.0
        %2541 = vmatpush1.xpose.msra.mxu0 0.0
        %2542 = vmatprep.subr.mxu0 0.0
        %2543 = vmatpush1.xpose.msra.mxu0 0.0
        %2544 = vmatprep.mubr.f32.mxu0 0.0
        %2545 = vmatmul.mubr.f32.gmra.mrb[0].mxu0 %v2472
        %v2546 = vpop.f32.mrb[0].mxu0
        %v2547 = vadd.f32 0.0, %v2546
        %v2548 = vpop.f32.mrb[0].mxu0
        %2549 = vmatprep.mubr.f32.mxu0 0.0
        %2550 = vmatmul.mubr.f32.gmra.mrb[0].mxu0 %v2474
        %v2551 = vpop.f32.mrb[0].mxu0
        %v2552 = vadd.f32 0.0, %v2551
        %v2553 = vpop.f32.mrb[0].mxu0
        %2554 = vdwg.mxu0
        %v2555 = vmul.f32 %v2547, 0.25
        %v2556 = vmul.f32 %v2552, 0.25
        %v2557 = vsel %vm1663, %v2555, -inf
        %2558 = vmax.xlane.f32.xlu0 %v2557
        %v2559 = vpop.xlane.xlu0 %2558
        %v2560 = vsel %vm1663, %v2556, -inf
        %2561 = vmax.xlane.f32.xlu0 %v2560
        %v2562 = vpop.xlane.xlu0 %2561
        %v2563 = vsub.f32 %v2555, %v2559
        %v2564 = vsub.f32 %v2556, %v2562
        %v2565 = vmul.f32 %v2563, 1.442695
        %v2566 = vpow.pop %v2565
        %v2567 = vmul.f32 %v2564, 1.442695
        %v2568 = vpow.pop %v2567
        %v2569 = vsel %vm1663, %v2566, 0.0
        %2570 = vadd.xlane.f32.xlu0 %v2569
        %v2571 = vpop.xlane.xlu0 %2570
        %v2572 = vsel %vm1663, %v2568, 0.0
        %2573 = vadd.xlane.f32.xlu0 %v2572
        %v2574 = vpop.xlane.xlu0 %2573
        %v2575 = vrcp.pop %v2571
        %v2576 = vrcp.pop %v2574
        %v2577 = vmul.f32 %v2566, %v2575
        %v2578 = vmul.f32 %v2568, %v2576
        %2579 = vrot.lane.b32.xlu0 %v1655, 64
        %v2580 = vpop.permute.xlu0 %2579
        %2581 = vrot.lane.b32.xlu0 %v1660, 64
        %v2582 = vpop.permute.xlu0 %2581
        %v2586 = vsel %vm1663, %v2577, 0
        %v2589 = vsel %vm1663, %v2578, 0
        %2591 = vmatprep.subr.mxu0 0.0
        %2592 = vmatpush1.msra.mxu0 %v2580
        %2593 = vmatprep.subr.mxu0 0.0
        %2594 = vmatpush1.msra.mxu0 %v2582
        %2595 = vmatprep.subr.mxu0 0.0
        %2596 = vmatpush1.msra.mxu0 0.0
        %2597 = vmatprep.subr.mxu0 0.0
        %2598 = vmatpush1.msra.mxu0 0.0
        %2599 = vmatprep.subr.mxu0 0.0
        %2600 = vmatpush1.msra.mxu0 0.0
        %2601 = vmatprep.subr.mxu0 0.0
        %2602 = vmatpush1.msra.mxu0 0.0
        %2603 = vmatprep.subr.mxu0 0.0
        %2604 = vmatpush1.msra.mxu0 0.0
        %2605 = vmatprep.subr.mxu0 0.0
        %2606 = vmatpush1.msra.mxu0 0.0
        %2607 = vmatprep.subr.mxu0 0.0
        %2608 = vmatpush1.msra.mxu0 0.0
        %2609 = vmatprep.subr.mxu0 0.0
        %2610 = vmatpush1.msra.mxu0 0.0
        %2611 = vmatprep.subr.mxu0 0.0
        %2612 = vmatpush1.msra.mxu0 0.0
        %2613 = vmatprep.subr.mxu0 0.0
        %2614 = vmatpush1.msra.mxu0 0.0
        %2615 = vmatprep.subr.mxu0 0.0
        %2616 = vmatpush1.msra.mxu0 0.0
        %2617 = vmatprep.subr.mxu0 0.0
        %2618 = vmatpush1.msra.mxu0 0.0
        %2619 = vmatprep.subr.mxu0 0.0
        %2620 = vmatpush1.msra.mxu0 0.0
        %2621 = vmatprep.subr.mxu0 0.0
        %2622 = vmatpush1.msra.mxu0 0.0
        %2623 = vmatprep.subr.mxu0 0.0
        %2624 = vmatpush1.msra.mxu0 0.0
        %2625 = vmatprep.subr.mxu0 0.0
        %2626 = vmatpush1.msra.mxu0 0.0
        %2627 = vmatprep.subr.mxu0 0.0
        %2628 = vmatpush1.msra.mxu0 0.0
        %2629 = vmatprep.subr.mxu0 0.0
        %2630 = vmatpush1.msra.mxu0 0.0
        %2631 = vmatprep.subr.mxu0 0.0
        %2632 = vmatpush1.msra.mxu0 0.0
        %2633 = vmatprep.subr.mxu0 0.0
        %2634 = vmatpush1.msra.mxu0 0.0
        %2635 = vmatprep.subr.mxu0 0.0
        %2636 = vmatpush1.msra.mxu0 0.0
        %2637 = vmatprep.subr.mxu0 0.0
        %2638 = vmatpush1.msra.mxu0 0.0
        %2639 = vmatprep.subr.mxu0 0.0
        %2640 = vmatpush1.msra.mxu0 0.0
        %2641 = vmatprep.subr.mxu0 0.0
        %2642 = vmatpush1.msra.mxu0 0.0
        %2643 = vmatprep.subr.mxu0 0.0
        %2644 = vmatpush1.msra.mxu0 0.0
        %2645 = vmatprep.subr.mxu0 0.0
        %2646 = vmatpush1.msra.mxu0 0.0
        %2647 = vmatprep.subr.mxu0 0.0
        %2648 = vmatpush1.msra.mxu0 0.0
        %2649 = vmatprep.subr.mxu0 0.0
        %2650 = vmatpush1.msra.mxu0 0.0
        %2651 = vmatprep.subr.mxu0 0.0
        %2652 = vmatpush1.msra.mxu0 0.0
        %2653 = vmatprep.subr.mxu0 0.0
        %2654 = vmatpush1.msra.mxu0 0.0
        %2655 = vmatprep.mubr.f32.mxu0 0.0
        %2656 = vmatmul.mubr.f32.gmra.mrb[0].mxu0 %v2586
        %v2657 = vpop.f32.mrb[0].mxu0
        %v2658 = vadd.f32 0.0, %v2657
        %v2659 = vpop.f32.mrb[0].mxu0
        %2660 = vmatprep.mubr.f32.mxu0 0.0
        %2661 = vmatmul.mubr.f32.gmra.mrb[0].mxu0 %v2589
        %v2662 = vpop.f32.mrb[0].mxu0
        %v2663 = vadd.f32 0.0, %v2662
        %v2664 = vpop.f32.mrb[0].mxu0
        %2665 = vdwg.mxu0
        %2666 = vrot.lane.b32.xlu0 %v1459, 48
        %v2667 = vpop.permute.xlu0 %2666
        %2668 = vrot.lane.b32.xlu0 %v1464, 48
        %v2669 = vpop.permute.xlu0 %2668
        %2670 = vrot.lane.b32.xlu0 %v1557, 48
        %v2671 = vpop.permute.xlu0 %2670
        %2672 = vrot.lane.b32.xlu0 %v1562, 48
        %v2673 = vpop.permute.xlu0 %2672
        %v2674 = vsel %vm1663, %v2667, 0
        %v2676 = vsel %vm1663, %v2669, 0
        %v2678 = vsel %vm1663, %v2671, 0
        %v2680 = vsel %vm1663, %v2673, 0
        %2682 = vmatprep.subr.mxu0 0.0
        %2683 = vmatpush1.xpose.msra.mxu0 %v2678
        %2684 = vmatprep.subr.mxu0 0.0
        %2685 = vmatpush1.xpose.msra.mxu0 %v2680
        %2686 = vmatprep.subr.mxu0 0.0
        %2687 = vmatpush1.xpose.msra.mxu0 0.0
        %2688 = vmatprep.subr.mxu0 0.0
        %2689 = vmatpush1.xpose.msra.mxu0 0.0
        %2690 = vmatprep.subr.mxu0 0.0
        %2691 = vmatpush1.xpose.msra.mxu0 0.0
        %2692 = vmatprep.subr.mxu0 0.0
        %2693 = vmatpush1.xpose.msra.mxu0 0.0
        %2694 = vmatprep.subr.mxu0 0.0
        %2695 = vmatpush1.xpose.msra.mxu0 0.0
        %2696 = vmatprep.subr.mxu0 0.0
        %2697 = vmatpush1.xpose.msra.mxu0 0.0
        %2698 = vmatprep.subr.mxu0 0.0
        %2699 = vmatpush1.xpose.msra.mxu0 0.0
        %2700 = vmatprep.subr.mxu0 0.0
        %2701 = vmatpush1.xpose.msra.mxu0 0.0
        %2702 = vmatprep.subr.mxu0 0.0
        %2703 = vmatpush1.xpose.msra.mxu0 0.0
        %2704 = vmatprep.subr.mxu0 0.0
        %2705 = vmatpush1.xpose.msra.mxu0 0.0
        %2706 = vmatprep.subr.mxu0 0.0
        %2707 = vmatpush1.xpose.msra.mxu0 0.0
        %2708 = vmatprep.subr.mxu0 0.0
        %2709 = vmatpush1.xpose.msra.mxu0 0.0
        %2710 = vmatprep.subr.mxu0 0.0
        %2711 = vmatpush1.xpose.msra.mxu0 0.0
        %2712 = vmatprep.subr.mxu0 0.0
        %2713 = vmatpush1.xpose.msra.mxu0 0.0
        %2714 = vmatprep.subr.mxu0 0.0
        %2715 = vmatpush1.xpose.msra.mxu0 0.0
        %2716 = vmatprep.subr.mxu0 0.0
        %2717 = vmatpush1.xpose.msra.mxu0 0.0
        %2718 = vmatprep.subr.mxu0 0.0
        %2719 = vmatpush1.xpose.msra.mxu0 0.0
        %2720 = vmatprep.subr.mxu0 0.0
        %2721 = vmatpush1.xpose.msra.mxu0 0.0
        %2722 = vmatprep.subr.mxu0 0.0
        %2723 = vmatpush1.xpose.msra.mxu0 0.0
        %2724 = vmatprep.subr.mxu0 0.0
        %2725 = vmatpush1.xpose.msra.mxu0 0.0
        %2726 = vmatprep.subr.mxu0 0.0
        %2727 = vmatpush1.xpose.msra.mxu0 0.0
        %2728 = vmatprep.subr.mxu0 0.0
        %2729 = vmatpush1.xpose.msra.mxu0 0.0
        %2730 = vmatprep.subr.mxu0 0.0
        %2731 = vmatpush1.xpose.msra.mxu0 0.0
        %2732 = vmatprep.subr.mxu0 0.0
        %2733 = vmatpush1.xpose.msra.mxu0 0.0
        %2734 = vmatprep.subr.mxu0 0.0
        %2735 = vmatpush1.xpose.msra.mxu0 0.0
        %2736 = vmatprep.subr.mxu0 0.0
        %2737 = vmatpush1.xpose.msra.mxu0 0.0
        %2738 = vmatprep.subr.mxu0 0.0
        %2739 = vmatpush1.xpose.msra.mxu0 0.0
        %2740 = vmatprep.subr.mxu0 0.0
        %2741 = vmatpush1.xpose.msra.mxu0 0.0
        %2742 = vmatprep.subr.mxu0 0.0
        %2743 = vmatpush1.xpose.msra.mxu0 0.0
        %2744 = vmatprep.subr.mxu0 0.0
        %2745 = vmatpush1.xpose.msra.mxu0 0.0
        %2746 = vmatprep.mubr.f32.mxu0 0.0
        %2747 = vmatmul.mubr.f32.gmra.mrb[0].mxu0 %v2674
        %v2748 = vpop.f32.mrb[0].mxu0
        %v2749 = vadd.f32 0.0, %v2748
        %v2750 = vpop.f32.mrb[0].mxu0
        %2751 = vmatprep.mubr.f32.mxu0 0.0
        %2752 = vmatmul.mubr.f32.gmra.mrb[0].mxu0 %v2676
        %v2753 = vpop.f32.mrb[0].mxu0
        %v2754 = vadd.f32 0.0, %v2753
        %v2755 = vpop.f32.mrb[0].mxu0
        %2756 = vdwg.mxu0
        %v2757 = vmul.f32 %v2749, 0.25
        %v2758 = vmul.f32 %v2754, 0.25
        %v2759 = vsel %vm1663, %v2757, -inf
        %2760 = vmax.xlane.f32.xlu0 %v2759
        %v2761 = vpop.xlane.xlu0 %2760
        %v2762 = vsel %vm1663, %v2758, -inf
        %2763 = vmax.xlane.f32.xlu0 %v2762
        %v2764 = vpop.xlane.xlu0 %2763
        %v2765 = vsub.f32 %v2757, %v2761
        %v2766 = vsub.f32 %v2758, %v2764
        %v2767 = vmul.f32 %v2765, 1.442695
        %v2768 = vpow.pop %v2767
        %v2769 = vmul.f32 %v2766, 1.442695
        %v2770 = vpow.pop %v2769
        %v2771 = vsel %vm1663, %v2768, 0.0
        %2772 = vadd.xlane.f32.xlu0 %v2771
        %v2773 = vpop.xlane.xlu0 %2772
        %v2774 = vsel %vm1663, %v2770, 0.0
        %2775 = vadd.xlane.f32.xlu0 %v2774
        %v2776 = vpop.xlane.xlu0 %2775
        %v2777 = vrcp.pop %v2773
        %v2778 = vrcp.pop %v2776
        %v2779 = vmul.f32 %v2768, %v2777
        %v2780 = vmul.f32 %v2770, %v2778
        %2781 = vrot.lane.b32.xlu0 %v1655, 48
        %v2782 = vpop.permute.xlu0 %2781
        %2783 = vrot.lane.b32.xlu0 %v1660, 48
        %v2784 = vpop.permute.xlu0 %2783
        %v2788 = vsel %vm1663, %v2779, 0
        %v2791 = vsel %vm1663, %v2780, 0
        %2793 = vmatprep.subr.mxu0 0.0
        %2794 = vmatpush1.msra.mxu0 %v2782
        %2795 = vmatprep.subr.mxu0 0.0
        %2796 = vmatpush1.msra.mxu0 %v2784
        %2797 = vmatprep.subr.mxu0 0.0
        %2798 = vmatpush1.msra.mxu0 0.0
        %2799 = vmatprep.subr.mxu0 0.0
        %2800 = vmatpush1.msra.mxu0 0.0
        %2801 = vmatprep.subr.mxu0 0.0
        %2802 = vmatpush1.msra.mxu0 0.0
        %2803 = vmatprep.subr.mxu0 0.0
        %2804 = vmatpush1.msra.mxu0 0.0
        %2805 = vmatprep.subr.mxu0 0.0
        %2806 = vmatpush1.msra.mxu0 0.0
        %2807 = vmatprep.subr.mxu0 0.0
        %2808 = vmatpush1.msra.mxu0 0.0
        %2809 = vmatprep.subr.mxu0 0.0
        %2810 = vmatpush1.msra.mxu0 0.0
        %2811 = vmatprep.subr.mxu0 0.0
        %2812 = vmatpush1.msra.mxu0 0.0
        %2813 = vmatprep.subr.mxu0 0.0
        %2814 = vmatpush1.msra.mxu0 0.0
        %2815 = vmatprep.subr.mxu0 0.0
        %2816 = vmatpush1.msra.mxu0 0.0
        %2817 = vmatprep.subr.mxu0 0.0
        %2818 = vmatpush1.msra.mxu0 0.0
        %2819 = vmatprep.subr.mxu0 0.0
        %2820 = vmatpush1.msra.mxu0 0.0
        %2821 = vmatprep.subr.mxu0 0.0
        %2822 = vmatpush1.msra.mxu0 0.0
        %2823 = vmatprep.subr.mxu0 0.0
        %2824 = vmatpush1.msra.mxu0 0.0
        %2825 = vmatprep.subr.mxu0 0.0
        %2826 = vmatpush1.msra.mxu0 0.0
        %2827 = vmatprep.subr.mxu0 0.0
        %2828 = vmatpush1.msra.mxu0 0.0
        %2829 = vmatprep.subr.mxu0 0.0
        %2830 = vmatpush1.msra.mxu0 0.0
        %2831 = vmatprep.subr.mxu0 0.0
        %2832 = vmatpush1.msra.mxu0 0.0
        %2833 = vmatprep.subr.mxu0 0.0
        %2834 = vmatpush1.msra.mxu0 0.0
        %2835 = vmatprep.subr.mxu0 0.0
        %2836 = vmatpush1.msra.mxu0 0.0
        %2837 = vmatprep.subr.mxu0 0.0
        %2838 = vmatpush1.msra.mxu0 0.0
        %2839 = vmatprep.subr.mxu0 0.0
        %2840 = vmatpush1.msra.mxu0 0.0
        %2841 = vmatprep.subr.mxu0 0.0
        %2842 = vmatpush1.msra.mxu0 0.0
        %2843 = vmatprep.subr.mxu0 0.0
        %2844 = vmatpush1.msra.mxu0 0.0
        %2845 = vmatprep.subr.mxu0 0.0
        %2846 = vmatpush1.msra.mxu0 0.0
        %2847 = vmatprep.subr.mxu0 0.0
        %2848 = vmatpush1.msra.mxu0 0.0
        %2849 = vmatprep.subr.mxu0 0.0
        %2850 = vmatpush1.msra.mxu0 0.0
        %2851 = vmatprep.subr.mxu0 0.0
        %2852 = vmatpush1.msra.mxu0 0.0
        %2853 = vmatprep.subr.mxu0 0.0
        %2854 = vmatpush1.msra.mxu0 0.0
        %2855 = vmatprep.subr.mxu0 0.0
        %2856 = vmatpush1.msra.mxu0 0.0
        %2857 = vmatprep.mubr.f32.mxu0 0.0
        %2858 = vmatmul.mubr.f32.gmra.mrb[0].mxu0 %v2788
        %v2859 = vpop.f32.mrb[0].mxu0
        %v2860 = vadd.f32 0.0, %v2859
        %v2861 = vpop.f32.mrb[0].mxu0
        %2862 = vmatprep.mubr.f32.mxu0 0.0
        %2863 = vmatmul.mubr.f32.gmra.mrb[0].mxu0 %v2791
        %v2864 = vpop.f32.mrb[0].mxu0
        %v2865 = vadd.f32 0.0, %v2864
        %v2866 = vpop.f32.mrb[0].mxu0
        %2867 = vdwg.mxu0
        %2868 = vrot.lane.b32.xlu0 %v1459, 32
        %v2869 = vpop.permute.xlu0 %2868
        %2870 = vrot.lane.b32.xlu0 %v1464, 32
        %v2871 = vpop.permute.xlu0 %2870
        %2872 = vrot.lane.b32.xlu0 %v1557, 32
        %v2873 = vpop.permute.xlu0 %2872
        %2874 = vrot.lane.b32.xlu0 %v1562, 32
        %v2875 = vpop.permute.xlu0 %2874
        %v2876 = vsel %vm1663, %v2869, 0
        %v2878 = vsel %vm1663, %v2871, 0
        %v2880 = vsel %vm1663, %v2873, 0
        %v2882 = vsel %vm1663, %v2875, 0
        %2884 = vmatprep.subr.mxu0 0.0
        %2885 = vmatpush1.xpose.msra.mxu0 %v2880
        %2886 = vmatprep.subr.mxu0 0.0
        %2887 = vmatpush1.xpose.msra.mxu0 %v2882
        %2888 = vmatprep.subr.mxu0 0.0
        %2889 = vmatpush1.xpose.msra.mxu0 0.0
        %2890 = vmatprep.subr.mxu0 0.0
        %2891 = vmatpush1.xpose.msra.mxu0 0.0
        %2892 = vmatprep.subr.mxu0 0.0
        %2893 = vmatpush1.xpose.msra.mxu0 0.0
        %2894 = vmatprep.subr.mxu0 0.0
        %2895 = vmatpush1.xpose.msra.mxu0 0.0
        %2896 = vmatprep.subr.mxu0 0.0
        %2897 = vmatpush1.xpose.msra.mxu0 0.0
        %2898 = vmatprep.subr.mxu0 0.0
        %2899 = vmatpush1.xpose.msra.mxu0 0.0
        %2900 = vmatprep.subr.mxu0 0.0
        %2901 = vmatpush1.xpose.msra.mxu0 0.0
        %2902 = vmatprep.subr.mxu0 0.0
        %2903 = vmatpush1.xpose.msra.mxu0 0.0
        %2904 = vmatprep.subr.mxu0 0.0
        %2905 = vmatpush1.xpose.msra.mxu0 0.0
        %2906 = vmatprep.subr.mxu0 0.0
        %2907 = vmatpush1.xpose.msra.mxu0 0.0
        %2908 = vmatprep.subr.mxu0 0.0
        %2909 = vmatpush1.xpose.msra.mxu0 0.0
        %2910 = vmatprep.subr.mxu0 0.0
        %2911 = vmatpush1.xpose.msra.mxu0 0.0
        %2912 = vmatprep.subr.mxu0 0.0
        %2913 = vmatpush1.xpose.msra.mxu0 0.0
        %2914 = vmatprep.subr.mxu0 0.0
        %2915 = vmatpush1.xpose.msra.mxu0 0.0
        %2916 = vmatprep.subr.mxu0 0.0
        %2917 = vmatpush1.xpose.msra.mxu0 0.0
        %2918 = vmatprep.subr.mxu0 0.0
        %2919 = vmatpush1.xpose.msra.mxu0 0.0
        %2920 = vmatprep.subr.mxu0 0.0
        %2921 = vmatpush1.xpose.msra.mxu0 0.0
        %2922 = vmatprep.subr.mxu0 0.0
        %2923 = vmatpush1.xpose.msra.mxu0 0.0
        %2924 = vmatprep.subr.mxu0 0.0
        %2925 = vmatpush1.xpose.msra.mxu0 0.0
        %2926 = vmatprep.subr.mxu0 0.0
        %2927 = vmatpush1.xpose.msra.mxu0 0.0
        %2928 = vmatprep.subr.mxu0 0.0
        %2929 = vmatpush1.xpose.msra.mxu0 0.0
        %2930 = vmatprep.subr.mxu0 0.0
        %2931 = vmatpush1.xpose.msra.mxu0 0.0
        %2932 = vmatprep.subr.mxu0 0.0
        %2933 = vmatpush1.xpose.msra.mxu0 0.0
        %2934 = vmatprep.subr.mxu0 0.0
        %2935 = vmatpush1.xpose.msra.mxu0 0.0
        %2936 = vmatprep.subr.mxu0 0.0
        %2937 = vmatpush1.xpose.msra.mxu0 0.0
        %2938 = vmatprep.subr.mxu0 0.0
        %2939 = vmatpush1.xpose.msra.mxu0 0.0
        %2940 = vmatprep.subr.mxu0 0.0
        %2941 = vmatpush1.xpose.msra.mxu0 0.0
        %2942 = vmatprep.subr.mxu0 0.0
        %2943 = vmatpush1.xpose.msra.mxu0 0.0
        %2944 = vmatprep.subr.mxu0 0.0
        %2945 = vmatpush1.xpose.msra.mxu0 0.0
        %2946 = vmatprep.subr.mxu0 0.0
        %2947 = vmatpush1.xpose.msra.mxu0 0.0
        %2948 = vmatprep.mubr.f32.mxu0 0.0
        %2949 = vmatmul.mubr.f32.gmra.mrb[0].mxu0 %v2876
        %v2950 = vpop.f32.mrb[0].mxu0
        %v2951 = vadd.f32 0.0, %v2950
        %v2952 = vpop.f32.mrb[0].mxu0
        %2953 = vmatprep.mubr.f32.mxu0 0.0
        %2954 = vmatmul.mubr.f32.gmra.mrb[0].mxu0 %v2878
        %v2955 = vpop.f32.mrb[0].mxu0
        %v2956 = vadd.f32 0.0, %v2955
        %v2957 = vpop.f32.mrb[0].mxu0
        %2958 = vdwg.mxu0
        %v2959 = vmul.f32 %v2951, 0.25
        %v2960 = vmul.f32 %v2956, 0.25
        %v2961 = vsel %vm1663, %v2959, -inf
        %2962 = vmax.xlane.f32.xlu0 %v2961
        %v2963 = vpop.xlane.xlu0 %2962
        %v2964 = vsel %vm1663, %v2960, -inf
        %2965 = vmax.xlane.f32.xlu0 %v2964
        %v2966 = vpop.xlane.xlu0 %2965
        %v2967 = vsub.f32 %v2959, %v2963
        %v2968 = vsub.f32 %v2960, %v2966
        %v2969 = vmul.f32 %v2967, 1.442695
        %v2970 = vpow.pop %v2969
        %v2971 = vmul.f32 %v2968, 1.442695
        %v2972 = vpow.pop %v2971
        %v2973 = vsel %vm1663, %v2970, 0.0
        %2974 = vadd.xlane.f32.xlu0 %v2973
        %v2975 = vpop.xlane.xlu0 %2974
        %v2976 = vsel %vm1663, %v2972, 0.0
        %2977 = vadd.xlane.f32.xlu0 %v2976
        %v2978 = vpop.xlane.xlu0 %2977
        %v2979 = vrcp.pop %v2975
        %v2980 = vrcp.pop %v2978
        %v2981 = vmul.f32 %v2970, %v2979
        %v2982 = vmul.f32 %v2972, %v2980
        %2983 = vrot.lane.b32.xlu0 %v1655, 32
        %v2984 = vpop.permute.xlu0 %2983
        %2985 = vrot.lane.b32.xlu0 %v1660, 32
        %v2986 = vpop.permute.xlu0 %2985
        %v2990 = vsel %vm1663, %v2981, 0
        %v2993 = vsel %vm1663, %v2982, 0
        %2995 = vmatprep.subr.mxu0 0.0
        %2996 = vmatpush1.msra.mxu0 %v2984
        %2997 = vmatprep.subr.mxu0 0.0
        %2998 = vmatpush1.msra.mxu0 %v2986
        %2999 = vmatprep.subr.mxu0 0.0
        %3000 = vmatpush1.msra.mxu0 0.0
        %3001 = vmatprep.subr.mxu0 0.0
        %3002 = vmatpush1.msra.mxu0 0.0
        %3003 = vmatprep.subr.mxu0 0.0
        %3004 = vmatpush1.msra.mxu0 0.0
        %3005 = vmatprep.subr.mxu0 0.0
        %3006 = vmatpush1.msra.mxu0 0.0
        %3007 = vmatprep.subr.mxu0 0.0
        %3008 = vmatpush1.msra.mxu0 0.0
        %3009 = vmatprep.subr.mxu0 0.0
        %3010 = vmatpush1.msra.mxu0 0.0
        %3011 = vmatprep.subr.mxu0 0.0
        %3012 = vmatpush1.msra.mxu0 0.0
        %3013 = vmatprep.subr.mxu0 0.0
        %3014 = vmatpush1.msra.mxu0 0.0
        %3015 = vmatprep.subr.mxu0 0.0
        %3016 = vmatpush1.msra.mxu0 0.0
        %3017 = vmatprep.subr.mxu0 0.0
        %3018 = vmatpush1.msra.mxu0 0.0
        %3019 = vmatprep.subr.mxu0 0.0
        %3020 = vmatpush1.msra.mxu0 0.0
        %3021 = vmatprep.subr.mxu0 0.0
        %3022 = vmatpush1.msra.mxu0 0.0
        %3023 = vmatprep.subr.mxu0 0.0
        %3024 = vmatpush1.msra.mxu0 0.0
        %3025 = vmatprep.subr.mxu0 0.0
        %3026 = vmatpush1.msra.mxu0 0.0
        %3027 = vmatprep.subr.mxu0 0.0
        %3028 = vmatpush1.msra.mxu0 0.0
        %3029 = vmatprep.subr.mxu0 0.0
        %3030 = vmatpush1.msra.mxu0 0.0
        %3031 = vmatprep.subr.mxu0 0.0
        %3032 = vmatpush1.msra.mxu0 0.0
        %3033 = vmatprep.subr.mxu0 0.0
        %3034 = vmatpush1.msra.mxu0 0.0
        %3035 = vmatprep.subr.mxu0 0.0
        %3036 = vmatpush1.msra.mxu0 0.0
        %3037 = vmatprep.subr.mxu0 0.0
        %3038 = vmatpush1.msra.mxu0 0.0
        %3039 = vmatprep.subr.mxu0 0.0
        %3040 = vmatpush1.msra.mxu0 0.0
        %3041 = vmatprep.subr.mxu0 0.0
        %3042 = vmatpush1.msra.mxu0 0.0
        %3043 = vmatprep.subr.mxu0 0.0
        %3044 = vmatpush1.msra.mxu0 0.0
        %3045 = vmatprep.subr.mxu0 0.0
        %3046 = vmatpush1.msra.mxu0 0.0
        %3047 = vmatprep.subr.mxu0 0.0
        %3048 = vmatpush1.msra.mxu0 0.0
        %3049 = vmatprep.subr.mxu0 0.0
        %3050 = vmatpush1.msra.mxu0 0.0
        %3051 = vmatprep.subr.mxu0 0.0
        %3052 = vmatpush1.msra.mxu0 0.0
        %3053 = vmatprep.subr.mxu0 0.0
        %3054 = vmatpush1.msra.mxu0 0.0
        %3055 = vmatprep.subr.mxu0 0.0
        %3056 = vmatpush1.msra.mxu0 0.0
        %3057 = vmatprep.subr.mxu0 0.0
        %3058 = vmatpush1.msra.mxu0 0.0
        %3059 = vmatprep.mubr.f32.mxu0 0.0
        %3060 = vmatmul.mubr.f32.gmra.mrb[0].mxu0 %v2990
        %v3061 = vpop.f32.mrb[0].mxu0
        %v3062 = vadd.f32 0.0, %v3061
        %v3063 = vpop.f32.mrb[0].mxu0
        %3064 = vmatprep.mubr.f32.mxu0 0.0
        %3065 = vmatmul.mubr.f32.gmra.mrb[0].mxu0 %v2993
        %v3066 = vpop.f32.mrb[0].mxu0
        %v3067 = vadd.f32 0.0, %v3066
        %v3068 = vpop.f32.mrb[0].mxu0
        %3069 = vdwg.mxu0
        %3070 = vrot.lane.b32.xlu0 %v1459, 16
        %v3071 = vpop.permute.xlu0 %3070
        %3072 = vrot.lane.b32.xlu0 %v1464, 16
        %v3073 = vpop.permute.xlu0 %3072
        %3074 = vrot.lane.b32.xlu0 %v1557, 16
        %v3075 = vpop.permute.xlu0 %3074
        %3076 = vrot.lane.b32.xlu0 %v1562, 16
        %v3077 = vpop.permute.xlu0 %3076
        %v3078 = vsel %vm1663, %v3071, 0
        %v3080 = vsel %vm1663, %v3073, 0
        %v3082 = vsel %vm1663, %v3075, 0
        %v3084 = vsel %vm1663, %v3077, 0
        %3086 = vmatprep.subr.mxu0 0.0
        %3087 = vmatpush1.xpose.msra.mxu0 %v3082
        %3088 = vmatprep.subr.mxu0 0.0
        %3089 = vmatpush1.xpose.msra.mxu0 %v3084
        %3090 = vmatprep.subr.mxu0 0.0
        %3091 = vmatpush1.xpose.msra.mxu0 0.0
        %3092 = vmatprep.subr.mxu0 0.0
        %3093 = vmatpush1.xpose.msra.mxu0 0.0
        %3094 = vmatprep.subr.mxu0 0.0
        %3095 = vmatpush1.xpose.msra.mxu0 0.0
        %3096 = vmatprep.subr.mxu0 0.0
        %3097 = vmatpush1.xpose.msra.mxu0 0.0
        %3098 = vmatprep.subr.mxu0 0.0
        %3099 = vmatpush1.xpose.msra.mxu0 0.0
        %3100 = vmatprep.subr.mxu0 0.0
        %3101 = vmatpush1.xpose.msra.mxu0 0.0
        %3102 = vmatprep.subr.mxu0 0.0
        %3103 = vmatpush1.xpose.msra.mxu0 0.0
        %3104 = vmatprep.subr.mxu0 0.0
        %3105 = vmatpush1.xpose.msra.mxu0 0.0
        %3106 = vmatprep.subr.mxu0 0.0
        %3107 = vmatpush1.xpose.msra.mxu0 0.0
        %3108 = vmatprep.subr.mxu0 0.0
        %3109 = vmatpush1.xpose.msra.mxu0 0.0
        %3110 = vmatprep.subr.mxu0 0.0
        %3111 = vmatpush1.xpose.msra.mxu0 0.0
        %3112 = vmatprep.subr.mxu0 0.0
        %3113 = vmatpush1.xpose.msra.mxu0 0.0
        %3114 = vmatprep.subr.mxu0 0.0
        %3115 = vmatpush1.xpose.msra.mxu0 0.0
        %3116 = vmatprep.subr.mxu0 0.0
        %3117 = vmatpush1.xpose.msra.mxu0 0.0
        %3118 = vmatprep.subr.mxu0 0.0
        %3119 = vmatpush1.xpose.msra.mxu0 0.0
        %3120 = vmatprep.subr.mxu0 0.0
        %3121 = vmatpush1.xpose.msra.mxu0 0.0
        %3122 = vmatprep.subr.mxu0 0.0
        %3123 = vmatpush1.xpose.msra.mxu0 0.0
        %3124 = vmatprep.subr.mxu0 0.0
        %3125 = vmatpush1.xpose.msra.mxu0 0.0
        %3126 = vmatprep.subr.mxu0 0.0
        %3127 = vmatpush1.xpose.msra.mxu0 0.0
        %3128 = vmatprep.subr.mxu0 0.0
        %3129 = vmatpush1.xpose.msra.mxu0 0.0
        %3130 = vmatprep.subr.mxu0 0.0
        %3131 = vmatpush1.xpose.msra.mxu0 0.0
        %3132 = vmatprep.subr.mxu0 0.0
        %3133 = vmatpush1.xpose.msra.mxu0 0.0
        %3134 = vmatprep.subr.mxu0 0.0
        %3135 = vmatpush1.xpose.msra.mxu0 0.0
        %3136 = vmatprep.subr.mxu0 0.0
        %3137 = vmatpush1.xpose.msra.mxu0 0.0
        %3138 = vmatprep.subr.mxu0 0.0
        %3139 = vmatpush1.xpose.msra.mxu0 0.0
        %3140 = vmatprep.subr.mxu0 0.0
        %3141 = vmatpush1.xpose.msra.mxu0 0.0
        %3142 = vmatprep.subr.mxu0 0.0
        %3143 = vmatpush1.xpose.msra.mxu0 0.0
        %3144 = vmatprep.subr.mxu0 0.0
        %3145 = vmatpush1.xpose.msra.mxu0 0.0
        %3146 = vmatprep.subr.mxu0 0.0
        %3147 = vmatpush1.xpose.msra.mxu0 0.0
        %3148 = vmatprep.subr.mxu0 0.0
        %3149 = vmatpush1.xpose.msra.mxu0 0.0
        %3150 = vmatprep.mubr.f32.mxu0 0.0
        %3151 = vmatmul.mubr.f32.gmra.mrb[0].mxu0 %v3078
        %v3152 = vpop.f32.mrb[0].mxu0
        %v3153 = vadd.f32 0.0, %v3152
        %v3154 = vpop.f32.mrb[0].mxu0
        %3155 = vmatprep.mubr.f32.mxu0 0.0
        %3156 = vmatmul.mubr.f32.gmra.mrb[0].mxu0 %v3080
        %v3157 = vpop.f32.mrb[0].mxu0
        %v3158 = vadd.f32 0.0, %v3157
        %v3159 = vpop.f32.mrb[0].mxu0
        %3160 = vdwg.mxu0
        %v3161 = vmul.f32 %v3153, 0.25
        %v3162 = vmul.f32 %v3158, 0.25
        %v3163 = vsel %vm1663, %v3161, -inf
        %3164 = vmax.xlane.f32.xlu0 %v3163
        %v3165 = vpop.xlane.xlu0 %3164
        %v3166 = vsel %vm1663, %v3162, -inf
        %3167 = vmax.xlane.f32.xlu0 %v3166
        %v3168 = vpop.xlane.xlu0 %3167
        %v3169 = vsub.f32 %v3161, %v3165
        %v3170 = vsub.f32 %v3162, %v3168
        %v3171 = vmul.f32 %v3169, 1.442695
        %v3172 = vpow.pop %v3171
        %v3173 = vmul.f32 %v3170, 1.442695
        %v3174 = vpow.pop %v3173
        %v3175 = vsel %vm1663, %v3172, 0.0
        %3176 = vadd.xlane.f32.xlu0 %v3175
        %v3177 = vpop.xlane.xlu0 %3176
        %v3178 = vsel %vm1663, %v3174, 0.0
        %3179 = vadd.xlane.f32.xlu0 %v3178
        %v3180 = vpop.xlane.xlu0 %3179
        %v3181 = vrcp.pop %v3177
        %v3182 = vrcp.pop %v3180
        %v3183 = vmul.f32 %v3172, %v3181
        %v3184 = vmul.f32 %v3174, %v3182
        %3185 = vrot.lane.b32.xlu0 %v1655, 16
        %v3186 = vpop.permute.xlu0 %3185
        %3187 = vrot.lane.b32.xlu0 %v1660, 16
        %v3188 = vpop.permute.xlu0 %3187
        %v3192 = vsel %vm1663, %v3183, 0
        %v3195 = vsel %vm1663, %v3184, 0
        %3197 = vmatprep.subr.mxu0 0.0
        %3198 = vmatpush1.msra.mxu0 %v3186
        %3199 = vmatprep.subr.mxu0 0.0
        %3200 = vmatpush1.msra.mxu0 %v3188
        %3201 = vmatprep.subr.mxu0 0.0
        %3202 = vmatpush1.msra.mxu0 0.0
        %3203 = vmatprep.subr.mxu0 0.0
        %3204 = vmatpush1.msra.mxu0 0.0
        %3205 = vmatprep.subr.mxu0 0.0
        %3206 = vmatpush1.msra.mxu0 0.0
        %3207 = vmatprep.subr.mxu0 0.0
        %3208 = vmatpush1.msra.mxu0 0.0
        %3209 = vmatprep.subr.mxu0 0.0
        %3210 = vmatpush1.msra.mxu0 0.0
        %3211 = vmatprep.subr.mxu0 0.0
        %3212 = vmatpush1.msra.mxu0 0.0
        %3213 = vmatprep.subr.mxu0 0.0
        %3214 = vmatpush1.msra.mxu0 0.0
        %3215 = vmatprep.subr.mxu0 0.0
        %3216 = vmatpush1.msra.mxu0 0.0
        %3217 = vmatprep.subr.mxu0 0.0
        %3218 = vmatpush1.msra.mxu0 0.0
        %3219 = vmatprep.subr.mxu0 0.0
        %3220 = vmatpush1.msra.mxu0 0.0
        %3221 = vmatprep.subr.mxu0 0.0
        %3222 = vmatpush1.msra.mxu0 0.0
        %3223 = vmatprep.subr.mxu0 0.0
        %3224 = vmatpush1.msra.mxu0 0.0
        %3225 = vmatprep.subr.mxu0 0.0
        %3226 = vmatpush1.msra.mxu0 0.0
        %3227 = vmatprep.subr.mxu0 0.0
        %3228 = vmatpush1.msra.mxu0 0.0
        %3229 = vmatprep.subr.mxu0 0.0
        %3230 = vmatpush1.msra.mxu0 0.0
        %3231 = vmatprep.subr.mxu0 0.0
        %3232 = vmatpush1.msra.mxu0 0.0
        %3233 = vmatprep.subr.mxu0 0.0
        %3234 = vmatpush1.msra.mxu0 0.0
        %3235 = vmatprep.subr.mxu0 0.0
        %3236 = vmatpush1.msra.mxu0 0.0
        %3237 = vmatprep.subr.mxu0 0.0
        %3238 = vmatpush1.msra.mxu0 0.0
        %3239 = vmatprep.subr.mxu0 0.0
        %3240 = vmatpush1.msra.mxu0 0.0
        %3241 = vmatprep.subr.mxu0 0.0
        %3242 = vmatpush1.msra.mxu0 0.0
        %3243 = vmatprep.subr.mxu0 0.0
        %3244 = vmatpush1.msra.mxu0 0.0
        %3245 = vmatprep.subr.mxu0 0.0
        %3246 = vmatpush1.msra.mxu0 0.0
        %3247 = vmatprep.subr.mxu0 0.0
        %3248 = vmatpush1.msra.mxu0 0.0
        %3249 = vmatprep.subr.mxu0 0.0
        %3250 = vmatpush1.msra.mxu0 0.0
        %3251 = vmatprep.subr.mxu0 0.0
        %3252 = vmatpush1.msra.mxu0 0.0
        %3253 = vmatprep.subr.mxu0 0.0
        %3254 = vmatpush1.msra.mxu0 0.0
        %3255 = vmatprep.subr.mxu0 0.0
        %3256 = vmatpush1.msra.mxu0 0.0
        %3257 = vmatprep.subr.mxu0 0.0
        %3258 = vmatpush1.msra.mxu0 0.0
        %3259 = vmatprep.subr.mxu0 0.0
        %3260 = vmatpush1.msra.mxu0 0.0
        %3261 = vmatprep.mubr.f32.mxu0 0.0
        %3262 = vmatmul.mubr.f32.gmra.mrb[0].mxu0 %v3192
        %v3263 = vpop.f32.mrb[0].mxu0
        %v3264 = vadd.f32 0.0, %v3263
        %v3265 = vpop.f32.mrb[0].mxu0
        %3266 = vmatprep.mubr.f32.mxu0 0.0
        %3267 = vmatmul.mubr.f32.gmra.mrb[0].mxu0 %v3195
        %v3268 = vpop.f32.mrb[0].mxu0
        %v3269 = vadd.f32 0.0, %v3268
        %v3270 = vpop.f32.mrb[0].mxu0
        %3271 = vdwg.mxu0
        %3274 = vrot.lane.b32.xlu0 %v2052, 16
        %v3275 = vpop.permute.xlu0 %3274
        %3276 = vrot.lane.b32.xlu0 %v2057, 16
        %v3277 = vpop.permute.xlu0 %3276
        %3282 = vrot.lane.b32.xlu0 %v2254, 32
        %v3283 = vpop.permute.xlu0 %3282
        %3284 = vrot.lane.b32.xlu0 %v2259, 32
        %v3285 = vpop.permute.xlu0 %3284
        %3290 = vrot.lane.b32.xlu0 %v2456, 48
        %v3291 = vpop.permute.xlu0 %3290
        %3292 = vrot.lane.b32.xlu0 %v2461, 48
        %v3293 = vpop.permute.xlu0 %3292
        %3298 = vrot.lane.b32.xlu0 %v2658, 64
        %v3299 = vpop.permute.xlu0 %3298
        %3300 = vrot.lane.b32.xlu0 %v2663, 64
        %v3301 = vpop.permute.xlu0 %3300
        %3306 = vrot.lane.b32.xlu0 %v2860, 80
        %v3307 = vpop.permute.xlu0 %3306
        %3308 = vrot.lane.b32.xlu0 %v2865, 80
        %v3309 = vpop.permute.xlu0 %3308
        %3314 = vrot.lane.b32.xlu0 %v3062, 96
        %v3315 = vpop.permute.xlu0 %3314
        %3316 = vrot.lane.b32.xlu0 %v3067, 96
        %v3317 = vpop.permute.xlu0 %3316
        %3322 = vrot.lane.b32.xlu0 %v3264, 112
        %v3323 = vpop.permute.xlu0 %3322
        %3324 = vrot.lane.b32.xlu0 %v3269, 112
        %v3325 = vpop.permute.xlu0 %3324
        %v3328 = vsel %vm1663, %v1848, %v3275
        %v3329 = vsel %vm1663, %v1853, %v3277
        %vm3330 = vcmask 261120
        %v3331 = vsel %vm3330, %v3328, %v3283
        %v3332 = vsel %vm3330, %v3329, %v3285
        %vm3333 = vcmask 392192
        %v3334 = vsel %vm3333, %v3331, %v3291
        %v3335 = vsel %vm3333, %v3332, %v3293
        %vm3336 = vcmask 523264
        %v3337 = vsel %vm3336, %v3334, %v3299
        %v3338 = vsel %vm3336, %v3335, %v3301
        %vm3339 = vcmask 654336
        %v3340 = vsel %vm3339, %v3337, %v3307
        %v3341 = vsel %vm3339, %v3338, %v3309
        %vm3342 = vcmask 785408
        %v3343 = vsel %vm3342, %v3340, %v3315
        %v3344 = vsel %vm3342, %v3341, %v3317
        %vm3345 = vcmask 916480
        %v3346 = vsel %vm3345, %v3343, %v3323
        %v3347 = vsel %vm3345, %v3344, %v3325
        %v3348 = vld [vmem:[#allocation17] sm:$0xff]
        %v3349 = vld [vmem:[#allocation17 + $0x8] sm:$0xff]
        %v3350 = vld [vmem:[#allocation17 + $0x10] sm:$0xff]
        %v3351 = vld [vmem:[#allocation17 + $0x18] sm:$0xff]
        %v3352 = vld [vmem:[#allocation17 + $0x20] sm:$0xff]
        %v3353 = vld [vmem:[#allocation17 + $0x28] sm:$0xff]
        %v3354 = vld [vmem:[#allocation17 + $0x30] sm:$0xff]
        %v3355 = vld [vmem:[#allocation17 + $0x38] sm:$0xff]
        %v3356 = vld [vmem:[#allocation17 + $0x40] sm:$0xff]
        %v3357 = vld [vmem:[#allocation17 + $0x48] sm:$0xff]
        %v3358 = vld [vmem:[#allocation17 + $0x50] sm:$0xff]
        %v3359 = vld [vmem:[#allocation17 + $0x58] sm:$0xff]
        %v3360 = vld [vmem:[#allocation17 + $0x60] sm:$0xff]
        %v3361 = vld [vmem:[#allocation17 + $0x68] sm:$0xff]
        %v3362 = vld [vmem:[#allocation17 + $0x70] sm:$0xff]
        %v3363 = vld [vmem:[#allocation17 + $0x78] sm:$0xff]
        %v3364 = vld [vmem:[#allocation19] sm:$0x1]
        %v3366 = vlaneseq
        %v3367 = vshrl.u32 %v3366, 7
        %v3368 = vsub.s32 0, %v3367
        %v3369 = vrot.slane %v3364, %v3368
        %3371 = vmatprep.subr.mxu0 0.0
        %3372 = vmatpush1.msra.mxu0 %v3348
        %3373 = vmatprep.subr.mxu0 0.0
        %3374 = vmatpush1.msra.mxu0 %v3349
        %3375 = vmatprep.subr.mxu0 0.0
        %3376 = vmatpush1.msra.mxu0 %v3350
        %3377 = vmatprep.subr.mxu0 0.0
        %3378 = vmatpush1.msra.mxu0 %v3351
        %3379 = vmatprep.subr.mxu0 0.0
        %3380 = vmatpush1.msra.mxu0 %v3352
        %3381 = vmatprep.subr.mxu0 0.0
        %3382 = vmatpush1.msra.mxu0 %v3353
        %3383 = vmatprep.subr.mxu0 0.0
        %3384 = vmatpush1.msra.mxu0 %v3354
        %3385 = vmatprep.subr.mxu0 0.0
        %3386 = vmatpush1.msra.mxu0 %v3355
        %3387 = vmatprep.subr.mxu0 0.0
        %3388 = vmatpush1.msra.mxu0 %v3356
        %3389 = vmatprep.subr.mxu0 0.0
        %3390 = vmatpush1.msra.mxu0 %v3357
        %3391 = vmatprep.subr.mxu0 0.0
        %3392 = vmatpush1.msra.mxu0 %v3358
        %3393 = vmatprep.subr.mxu0 0.0
        %3394 = vmatpush1.msra.mxu0 %v3359
        %3395 = vmatprep.subr.mxu0 0.0
        %3396 = vmatpush1.msra.mxu0 %v3360
        %3397 = vmatprep.subr.mxu0 0.0
        %3398 = vmatpush1.msra.mxu0 %v3361
        %3399 = vmatprep.subr.mxu0 0.0
        %3400 = vmatpush1.msra.mxu0 %v3362
        %3401 = vmatprep.subr.mxu0 0.0
        %3402 = vmatpush1.msra.mxu0 %v3363
        %3403 = vmatprep.subr.mxu0 0.0
        %3404 = vmatpush1.msra.mxu0 0.0
        %3405 = vmatprep.subr.mxu0 0.0
        %3406 = vmatpush1.msra.mxu0 0.0
        %3407 = vmatprep.subr.mxu0 0.0
        %3408 = vmatpush1.msra.mxu0 0.0
        %3409 = vmatprep.subr.mxu0 0.0
        %3410 = vmatpush1.msra.mxu0 0.0
        %3411 = vmatprep.subr.mxu0 0.0
        %3412 = vmatpush1.msra.mxu0 0.0
        %3413 = vmatprep.subr.mxu0 0.0
        %3414 = vmatpush1.msra.mxu0 0.0
        %3415 = vmatprep.subr.mxu0 0.0
        %3416 = vmatpush1.msra.mxu0 0.0
        %3417 = vmatprep.subr.mxu0 0.0
        %3418 = vmatpush1.msra.mxu0 0.0
        %3419 = vmatprep.subr.mxu0 0.0
        %3420 = vmatpush1.msra.mxu0 0.0
        %3421 = vmatprep.subr.mxu0 0.0
        %3422 = vmatpush1.msra.mxu0 0.0
        %3423 = vmatprep.subr.mxu0 0.0
        %3424 = vmatpush1.msra.mxu0 0.0
        %3425 = vmatprep.subr.mxu0 0.0
        %3426 = vmatpush1.msra.mxu0 0.0
        %3427 = vmatprep.subr.mxu0 0.0
        %3428 = vmatpush1.msra.mxu0 0.0
        %3429 = vmatprep.subr.mxu0 0.0
        %3430 = vmatpush1.msra.mxu0 0.0
        %3431 = vmatprep.subr.mxu0 0.0
        %3432 = vmatpush1.msra.mxu0 0.0
        %3433 = vmatprep.subr.mxu0 0.0
        %3434 = vmatpush1.msra.mxu0 0.0
        %3435 = vmatprep.mubr.f32.mxu0 0.0
        %3436 = vmatmul.mubr.f32.gmra.mrb[0].mxu0 %v3346
        %v3437 = vpop.f32.mrb[0].mxu0
        %v3438 = vadd.f32 %v3369, %v3437
        %v3439 = vpop.f32.mrb[0].mxu0
        %3440 = vmatprep.mubr.f32.mxu0 0.0
        %3441 = vmatmul.mubr.f32.gmra.mrb[0].mxu0 %v3347
        %v3442 = vpop.f32.mrb[0].mxu0
        %v3443 = vadd.f32 %v3369, %v3442
        %v3444 = vpop.f32.mrb[0].mxu0
        %3445 = vdwg.mxu0
        %v3446 = vadd.f32 %v1363, %v3438
        %v3447 = vadd.f32 %v1364, %v3443
        %v3448 = vld [vmem:[#allocation20] sm:$0x1]
        %v3449 = vld [vmem:[#allocation22] sm:$0x1]
        %3450 = vadd.xlane.f32.xlu0 %v3446
        %v3451 = vpop.xlane.xlu0 %3450
        %3452 = vadd.xlane.f32.xlu0 %v3447
        %v3453 = vpop.xlane.xlu0 %3452
        %v3454 = vrcp.pop 128.0
        %v3455 = vmul.f32 %v3451, %v3454
        %v3456 = vmul.f32 %v3453, %v3454
        %v3457 = vsub.f32 %v3446, %v3455
        %v3458 = vsub.f32 %v3447, %v3456
        %v3459 = vmul.f32 %v3457, %v3457
        %v3460 = vmul.f32 %v3458, %v3458
        %3461 = vadd.xlane.f32.xlu0 %v3459
        %v3462 = vpop.xlane.xlu0 %3461
        %3463 = vadd.xlane.f32.xlu0 %v3460
        %v3464 = vpop.xlane.xlu0 %3463
        %v3465 = vmul.f32 %v3462, %v3454
        %v3466 = vmul.f32 %v3464, %v3454
        %v3467 = vadd.f32 %v3465, 1e-05
        %v3468 = vadd.f32 %v3466, 1e-05
        %v3469 = vrsqrt.pop %v3467
        %v3470 = vrsqrt.pop %v3468
        %v3471 = vmul.f32 %v3457, %v3469
        %v3472 = vmul.f32 %v3458, %v3470
        %v3474 = vlaneseq
        %v3475 = vshrl.u32 %v3474, 7
        %v3476 = vsub.s32 0, %v3475
        %v3477 = vrot.slane %v3448, %v3476
        %v3479 = vmul.f32 %v3471, %v3477
        %v3480 = vmul.f32 %v3472, %v3477
        %v3482 = vlaneseq
        %v3483 = vshrl.u32 %v3482, 7
        %v3484 = vsub.s32 0, %v3483
        %v3485 = vrot.slane %v3449, %v3484
        %v3487 = vadd.f32 %v3479, %v3485
        %v3488 = vadd.f32 %v3480, %v3485
        %v3489 = vld [vmem:[#allocation23] sm:$0xff]
        %v3490 = vld [vmem:[#allocation23 + $0x8] sm:$0xff]
        %v3491 = vld [vmem:[#allocation23 + $0x10] sm:$0xff]
        %v3492 = vld [vmem:[#allocation23 + $0x18] sm:$0xff]
        %v3493 = vld [vmem:[#allocation23 + $0x20] sm:$0xff]
        %v3494 = vld [vmem:[#allocation23 + $0x28] sm:$0xff]
        %v3495 = vld [vmem:[#allocation23 + $0x30] sm:$0xff]
        %v3496 = vld [vmem:[#allocation23 + $0x38] sm:$0xff]
        %v3497 = vld [vmem:[#allocation23 + $0x40] sm:$0xff]
        %v3498 = vld [vmem:[#allocation23 + $0x48] sm:$0xff]
        %v3499 = vld [vmem:[#allocation23 + $0x50] sm:$0xff]
        %v3500 = vld [vmem:[#allocation23 + $0x58] sm:$0xff]
        %v3501 = vld [vmem:[#allocation23 + $0x60] sm:$0xff]
        %v3502 = vld [vmem:[#allocation23 + $0x68] sm:$0xff]
        %v3503 = vld [vmem:[#allocation23 + $0x70] sm:$0xff]
        %v3504 = vld [vmem:[#allocation23 + $0x78] sm:$0xff]
        %v3505 = vld [vmem:[#allocation25] sm:$0x1]
        %v3507 = vlaneseq
        %v3508 = vshrl.u32 %v3507, 7
        %v3509 = vsub.s32 0, %v3508
        %v3510 = vrot.slane %v3505, %v3509
        %3512 = vmatprep.subr.mxu0 0.0
        %3513 = vmatpush1.msra.mxu0 %v3489
        %3514 = vmatprep.subr.mxu0 0.0
        %3515 = vmatpush1.msra.mxu0 %v3490
        %3516 = vmatprep.subr.mxu0 0.0
        %3517 = vmatpush1.msra.mxu0 %v3491
        %3518 = vmatprep.subr.mxu0 0.0
        %3519 = vmatpush1.msra.mxu0 %v3492
        %3520 = vmatprep.subr.mxu0 0.0
        %3521 = vmatpush1.msra.mxu0 %v3493
        %3522 = vmatprep.subr.mxu0 0.0
        %3523 = vmatpush1.msra.mxu0 %v3494
        %3524 = vmatprep.subr.mxu0 0.0
        %3525 = vmatpush1.msra.mxu0 %v3495
        %3526 = vmatprep.subr.mxu0 0.0
        %3527 = vmatpush1.msra.mxu0 %v3496
        %3528 = vmatprep.subr.mxu0 0.0
        %3529 = vmatpush1.msra.mxu0 %v3497
        %3530 = vmatprep.subr.mxu0 0.0
        %3531 = vmatpush1.msra.mxu0 %v3498
        %3532 = vmatprep.subr.mxu0 0.0
        %3533 = vmatpush1.msra.mxu0 %v3499
        %3534 = vmatprep.subr.mxu0 0.0
        %3535 = vmatpush1.msra.mxu0 %v3500
        %3536 = vmatprep.subr.mxu0 0.0
        %3537 = vmatpush1.msra.mxu0 %v3501
        %3538 = vmatprep.subr.mxu0 0.0
        %3539 = vmatpush1.msra.mxu0 %v3502
        %3540 = vmatprep.subr.mxu0 0.0
        %3541 = vmatpush1.msra.mxu0 %v3503
        %3542 = vmatprep.subr.mxu0 0.0
        %3543 = vmatpush1.msra.mxu0 %v3504
        %3544 = vmatprep.subr.mxu0 0.0
        %3545 = vmatpush1.msra.mxu0 0.0
        %3546 = vmatprep.subr.mxu0 0.0
        %3547 = vmatpush1.msra.mxu0 0.0
        %3548 = vmatprep.subr.mxu0 0.0
        %3549 = vmatpush1.msra.mxu0 0.0
        %3550 = vmatprep.subr.mxu0 0.0
        %3551 = vmatpush1.msra.mxu0 0.0
        %3552 = vmatprep.subr.mxu0 0.0
        %3553 = vmatpush1.msra.mxu0 0.0
        %3554 = vmatprep.subr.mxu0 0.0
        %3555 = vmatpush1.msra.mxu0 0.0
        %3556 = vmatprep.subr.mxu0 0.0
        %3557 = vmatpush1.msra.mxu0 0.0
        %3558 = vmatprep.subr.mxu0 0.0
        %3559 = vmatpush1.msra.mxu0 0.0
        %3560 = vmatprep.subr.mxu0 0.0
        %3561 = vmatpush1.msra.mxu0 0.0
        %3562 = vmatprep.subr.mxu0 0.0
        %3563 = vmatpush1.msra.mxu0 0.0
        %3564 = vmatprep.subr.mxu0 0.0
        %3565 = vmatpush1.msra.mxu0 0.0
        %3566 = vmatprep.subr.mxu0 0.0
        %3567 = vmatpush1.msra.mxu0 0.0
        %3568 = vmatprep.subr.mxu0 0.0
        %3569 = vmatpush1.msra.mxu0 0.0
        %3570 = vmatprep.subr.mxu0 0.0
        %3571 = vmatpush1.msra.mxu0 0.0
        %3572 = vmatprep.subr.mxu0 0.0
        %3573 = vmatpush1.msra.mxu0 0.0
        %3574 = vmatprep.subr.mxu0 0.0
        %3575 = vmatpush1.msra.mxu0 0.0
        %3576 = vmatprep.mubr.f32.mxu0 0.0
        %3577 = vmatmul.mubr.f32.gmra.mrb[0].mxu0 %v3487
        %v3578 = vpop.f32.mrb[0].mxu0
        %v3579 = vadd.f32 %v3510, %v3578
        %v3580 = vpop.f32.mrb[0].mxu0
        %3581 = vmatprep.mubr.f32.mxu0 0.0
        %3582 = vmatmul.mubr.f32.gmra.mrb[0].mxu0 %v3488
        %v3583 = vpop.f32.mrb[0].mxu0
        %v3584 = vadd.f32 %v3510, %v3583
        %v3585 = vpop.f32.mrb[0].mxu0
        %3586 = vdwg.mxu0
        %v3587 = vld [vmem:[#allocation26] sm:$0xff]
        %v3588 = vld [vmem:[#allocation26 + $0x8] sm:$0xff]
        %v3589 = vld [vmem:[#allocation26 + $0x10] sm:$0xff]
        %v3590 = vld [vmem:[#allocation26 + $0x18] sm:$0xff]
        %v3591 = vld [vmem:[#allocation26 + $0x20] sm:$0xff]
        %v3592 = vld [vmem:[#allocation26 + $0x28] sm:$0xff]
        %v3593 = vld [vmem:[#allocation26 + $0x30] sm:$0xff]
        %v3594 = vld [vmem:[#allocation26 + $0x38] sm:$0xff]
        %v3595 = vld [vmem:[#allocation26 + $0x40] sm:$0xff]
        %v3596 = vld [vmem:[#allocation26 + $0x48] sm:$0xff]
        %v3597 = vld [vmem:[#allocation26 + $0x50] sm:$0xff]
        %v3598 = vld [vmem:[#allocation26 + $0x58] sm:$0xff]
        %v3599 = vld [vmem:[#allocation26 + $0x60] sm:$0xff]
        %v3600 = vld [vmem:[#allocation26 + $0x68] sm:$0xff]
        %v3601 = vld [vmem:[#allocation26 + $0x70] sm:$0xff]
        %v3602 = vld [vmem:[#allocation26 + $0x78] sm:$0xff]
        %v3603 = vld [vmem:[#allocation28] sm:$0x1]
        %v3605 = vlaneseq
        %v3606 = vshrl.u32 %v3605, 7
        %v3607 = vsub.s32 0, %v3606
        %v3608 = vrot.slane %v3603, %v3607
        %3610 = vmatprep.subr.mxu0 0.0
        %3611 = vmatpush1.msra.mxu0 %v3587
        %3612 = vmatprep.subr.mxu0 0.0
        %3613 = vmatpush1.msra.mxu0 %v3588
        %3614 = vmatprep.subr.mxu0 0.0
        %3615 = vmatpush1.msra.mxu0 %v3589
        %3616 = vmatprep.subr.mxu0 0.0
        %3617 = vmatpush1.msra.mxu0 %v3590
        %3618 = vmatprep.subr.mxu0 0.0
        %3619 = vmatpush1.msra.mxu0 %v3591
        %3620 = vmatprep.subr.mxu0 0.0
        %3621 = vmatpush1.msra.mxu0 %v3592
        %3622 = vmatprep.subr.mxu0 0.0
        %3623 = vmatpush1.msra.mxu0 %v3593
        %3624 = vmatprep.subr.mxu0 0.0
        %3625 = vmatpush1.msra.mxu0 %v3594
        %3626 = vmatprep.subr.mxu0 0.0
        %3627 = vmatpush1.msra.mxu0 %v3595
        %3628 = vmatprep.subr.mxu0 0.0
        %3629 = vmatpush1.msra.mxu0 %v3596
        %3630 = vmatprep.subr.mxu0 0.0
        %3631 = vmatpush1.msra.mxu0 %v3597
        %3632 = vmatprep.subr.mxu0 0.0
        %3633 = vmatpush1.msra.mxu0 %v3598
        %3634 = vmatprep.subr.mxu0 0.0
        %3635 = vmatpush1.msra.mxu0 %v3599
        %3636 = vmatprep.subr.mxu0 0.0
        %3637 = vmatpush1.msra.mxu0 %v3600
        %3638 = vmatprep.subr.mxu0 0.0
        %3639 = vmatpush1.msra.mxu0 %v3601
        %3640 = vmatprep.subr.mxu0 0.0
        %3641 = vmatpush1.msra.mxu0 %v3602
        %3642 = vmatprep.subr.mxu0 0.0
        %3643 = vmatpush1.msra.mxu0 0.0
        %3644 = vmatprep.subr.mxu0 0.0
        %3645 = vmatpush1.msra.mxu0 0.0
        %3646 = vmatprep.subr.mxu0 0.0
        %3647 = vmatpush1.msra.mxu0 0.0
        %3648 = vmatprep.subr.mxu0 0.0
        %3649 = vmatpush1.msra.mxu0 0.0
        %3650 = vmatprep.subr.mxu0 0.0
        %3651 = vmatpush1.msra.mxu0 0.0
        %3652 = vmatprep.subr.mxu0 0.0
        %3653 = vmatpush1.msra.mxu0 0.0
        %3654 = vmatprep.subr.mxu0 0.0
        %3655 = vmatpush1.msra.mxu0 0.0
        %3656 = vmatprep.subr.mxu0 0.0
        %3657 = vmatpush1.msra.mxu0 0.0
        %3658 = vmatprep.subr.mxu0 0.0
        %3659 = vmatpush1.msra.mxu0 0.0
        %3660 = vmatprep.subr.mxu0 0.0
        %3661 = vmatpush1.msra.mxu0 0.0
        %3662 = vmatprep.subr.mxu0 0.0
        %3663 = vmatpush1.msra.mxu0 0.0
        %3664 = vmatprep.subr.mxu0 0.0
        %3665 = vmatpush1.msra.mxu0 0.0
        %3666 = vmatprep.subr.mxu0 0.0
        %3667 = vmatpush1.msra.mxu0 0.0
        %3668 = vmatprep.subr.mxu0 0.0
        %3669 = vmatpush1.msra.mxu0 0.0
        %3670 = vmatprep.subr.mxu0 0.0
        %3671 = vmatpush1.msra.mxu0 0.0
        %3672 = vmatprep.subr.mxu0 0.0
        %3673 = vmatpush1.msra.mxu0 0.0
        %3674 = vmatprep.mubr.f32.mxu0 0.0
        %3675 = vmatmul.mubr.f32.gmra.mrb[0].mxu0 %v1367
        %v3676 = vpop.f32.mrb[0].mxu0
        %v3677 = vadd.f32 %v3608, %v3676
        %v3678 = vpop.f32.mrb[0].mxu0
        %3679 = vmatprep.mubr.f32.mxu0 0.0
        %3680 = vmatmul.mubr.f32.gmra.mrb[0].mxu0 %v1368
        %v3681 = vpop.f32.mrb[0].mxu0
        %v3682 = vadd.f32 %v3608, %v3681
        %v3683 = vpop.f32.mrb[0].mxu0
        %3684 = vdwg.mxu0
        %v3685 = vld [vmem:[#allocation29] sm:$0xff]
        %v3686 = vld [vmem:[#allocation29 + $0x8] sm:$0xff]
        %v3687 = vld [vmem:[#allocation29 + $0x10] sm:$0xff]
        %v3688 = vld [vmem:[#allocation29 + $0x18] sm:$0xff]
        %v3689 = vld [vmem:[#allocation29 + $0x20] sm:$0xff]
        %v3690 = vld [vmem:[#allocation29 + $0x28] sm:$0xff]
        %v3691 = vld [vmem:[#allocation29 + $0x30] sm:$0xff]
        %v3692 = vld [vmem:[#allocation29 + $0x38] sm:$0xff]
        %v3693 = vld [vmem:[#allocation29 + $0x40] sm:$0xff]
        %v3694 = vld [vmem:[#allocation29 + $0x48] sm:$0xff]
        %v3695 = vld [vmem:[#allocation29 + $0x50] sm:$0xff]
        %v3696 = vld [vmem:[#allocation29 + $0x58] sm:$0xff]
        %v3697 = vld [vmem:[#allocation29 + $0x60] sm:$0xff]
        %v3698 = vld [vmem:[#allocation29 + $0x68] sm:$0xff]
        %v3699 = vld [vmem:[#allocation29 + $0x70] sm:$0xff]
        %v3700 = vld [vmem:[#allocation29 + $0x78] sm:$0xff]
        %v3701 = vld [vmem:[#allocation31] sm:$0x1]
        %v3703 = vlaneseq
        %v3704 = vshrl.u32 %v3703, 7
        %v3705 = vsub.s32 0, %v3704
        %v3706 = vrot.slane %v3701, %v3705
        %3708 = vmatprep.subr.mxu0 0.0
        %3709 = vmatpush1.msra.mxu0 %v3685
        %3710 = vmatprep.subr.mxu0 0.0
        %3711 = vmatpush1.msra.mxu0 %v3686
        %3712 = vmatprep.subr.mxu0 0.0
        %3713 = vmatpush1.msra.mxu0 %v3687
        %3714 = vmatprep.subr.mxu0 0.0
        %3715 = vmatpush1.msra.mxu0 %v3688
        %3716 = vmatprep.subr.mxu0 0.0
        %3717 = vmatpush1.msra.mxu0 %v3689
        %3718 = vmatprep.subr.mxu0 0.0
        %3719 = vmatpush1.msra.mxu0 %v3690
        %3720 = vmatprep.subr.mxu0 0.0
        %3721 = vmatpush1.msra.mxu0 %v3691
        %3722 = vmatprep.subr.mxu0 0.0
        %3723 = vmatpush1.msra.mxu0 %v3692
        %3724 = vmatprep.subr.mxu0 0.0
        %3725 = vmatpush1.msra.mxu0 %v3693
        %3726 = vmatprep.subr.mxu0 0.0
        %3727 = vmatpush1.msra.mxu0 %v3694
        %3728 = vmatprep.subr.mxu0 0.0
        %3729 = vmatpush1.msra.mxu0 %v3695
        %3730 = vmatprep.subr.mxu0 0.0
        %3731 = vmatpush1.msra.mxu0 %v3696
        %3732 = vmatprep.subr.mxu0 0.0
        %3733 = vmatpush1.msra.mxu0 %v3697
        %3734 = vmatprep.subr.mxu0 0.0
        %3735 = vmatpush1.msra.mxu0 %v3698
        %3736 = vmatprep.subr.mxu0 0.0
        %3737 = vmatpush1.msra.mxu0 %v3699
        %3738 = vmatprep.subr.mxu0 0.0
        %3739 = vmatpush1.msra.mxu0 %v3700
        %3740 = vmatprep.subr.mxu0 0.0
        %3741 = vmatpush1.msra.mxu0 0.0
        %3742 = vmatprep.subr.mxu0 0.0
        %3743 = vmatpush1.msra.mxu0 0.0
        %3744 = vmatprep.subr.mxu0 0.0
        %3745 = vmatpush1.msra.mxu0 0.0
        %3746 = vmatprep.subr.mxu0 0.0
        %3747 = vmatpush1.msra.mxu0 0.0
        %3748 = vmatprep.subr.mxu0 0.0
        %3749 = vmatpush1.msra.mxu0 0.0
        %3750 = vmatprep.subr.mxu0 0.0
        %3751 = vmatpush1.msra.mxu0 0.0
        %3752 = vmatprep.subr.mxu0 0.0
        %3753 = vmatpush1.msra.mxu0 0.0
        %3754 = vmatprep.subr.mxu0 0.0
        %3755 = vmatpush1.msra.mxu0 0.0
        %3756 = vmatprep.subr.mxu0 0.0
        %3757 = vmatpush1.msra.mxu0 0.0
        %3758 = vmatprep.subr.mxu0 0.0
        %3759 = vmatpush1.msra.mxu0 0.0
        %3760 = vmatprep.subr.mxu0 0.0
        %3761 = vmatpush1.msra.mxu0 0.0
        %3762 = vmatprep.subr.mxu0 0.0
        %3763 = vmatpush1.msra.mxu0 0.0
        %3764 = vmatprep.subr.mxu0 0.0
        %3765 = vmatpush1.msra.mxu0 0.0
        %3766 = vmatprep.subr.mxu0 0.0
        %3767 = vmatpush1.msra.mxu0 0.0
        %3768 = vmatprep.subr.mxu0 0.0
        %3769 = vmatpush1.msra.mxu0 0.0
        %3770 = vmatprep.subr.mxu0 0.0
        %3771 = vmatpush1.msra.mxu0 0.0
        %3772 = vmatprep.mubr.f32.mxu0 0.0
        %3773 = vmatmul.mubr.f32.gmra.mrb[0].mxu0 %v1367
        %v3774 = vpop.f32.mrb[0].mxu0
        %v3775 = vadd.f32 %v3706, %v3774
        %v3776 = vpop.f32.mrb[0].mxu0
        %3777 = vmatprep.mubr.f32.mxu0 0.0
        %3778 = vmatmul.mubr.f32.gmra.mrb[0].mxu0 %v1368
        %v3779 = vpop.f32.mrb[0].mxu0
        %v3780 = vadd.f32 %v3706, %v3779
        %v3781 = vpop.f32.mrb[0].mxu0
        %3782 = vdwg.mxu0
        %v3784 = vsel %vm1663, %v3579, 0
        %v3787 = vsel %vm1663, %v3584, 0
        %v3790 = vsel %vm1663, %v3677, 0
        %v3793 = vsel %vm1663, %v3682, 0
        %3795 = vmatprep.subr.mxu0 0.0
        %3796 = vmatpush1.xpose.msra.mxu0 %v3790
        %3797 = vmatprep.subr.mxu0 0.0
        %3798 = vmatpush1.xpose.msra.mxu0 %v3793
        %3799 = vmatprep.subr.mxu0 0.0
        %3800 = vmatpush1.xpose.msra.mxu0 0.0
        %3801 = vmatprep.subr.mxu0 0.0
        %3802 = vmatpush1.xpose.msra.mxu0 0.0
        %3803 = vmatprep.subr.mxu0 0.0
        %3804 = vmatpush1.xpose.msra.mxu0 0.0
        %3805 = vmatprep.subr.mxu0 0.0
        %3806 = vmatpush1.xpose.msra.mxu0 0.0
        %3807 = vmatprep.subr.mxu0 0.0
        %3808 = vmatpush1.xpose.msra.mxu0 0.0
        %3809 = vmatprep.subr.mxu0 0.0
        %3810 = vmatpush1.xpose.msra.mxu0 0.0
        %3811 = vmatprep.subr.mxu0 0.0
        %3812 = vmatpush1.xpose.msra.mxu0 0.0
        %3813 = vmatprep.subr.mxu0 0.0
        %3814 = vmatpush1.xpose.msra.mxu0 0.0
        %3815 = vmatprep.subr.mxu0 0.0
        %3816 = vmatpush1.xpose.msra.mxu0 0.0
        %3817 = vmatprep.subr.mxu0 0.0
        %3818 = vmatpush1.xpose.msra.mxu0 0.0
        %3819 = vmatprep.subr.mxu0 0.0
        %3820 = vmatpush1.xpose.msra.mxu0 0.0
        %3821 = vmatprep.subr.mxu0 0.0
        %3822 = vmatpush1.xpose.msra.mxu0 0.0
        %3823 = vmatprep.subr.mxu0 0.0
        %3824 = vmatpush1.xpose.msra.mxu0 0.0
        %3825 = vmatprep.subr.mxu0 0.0
        %3826 = vmatpush1.xpose.msra.mxu0 0.0
        %3827 = vmatprep.subr.mxu0 0.0
        %3828 = vmatpush1.xpose.msra.mxu0 0.0
        %3829 = vmatprep.subr.mxu0 0.0
        %3830 = vmatpush1.xpose.msra.mxu0 0.0
        %3831 = vmatprep.subr.mxu0 0.0
        %3832 = vmatpush1.xpose.msra.mxu0 0.0
        %3833 = vmatprep.subr.mxu0 0.0
        %3834 = vmatpush1.xpose.msra.mxu0 0.0
        %3835 = vmatprep.subr.mxu0 0.0
        %3836 = vmatpush1.xpose.msra.mxu0 0.0
        %3837 = vmatprep.subr.mxu0 0.0
        %3838 = vmatpush1.xpose.msra.mxu0 0.0
        %3839 = vmatprep.subr.mxu0 0.0
        %3840 = vmatpush1.xpose.msra.mxu0 0.0
        %3841 = vmatprep.subr.mxu0 0.0
        %3842 = vmatpush1.xpose.msra.mxu0 0.0
        %3843 = vmatprep.subr.mxu0 0.0
        %3844 = vmatpush1.xpose.msra.mxu0 0.0
        %3845 = vmatprep.subr.mxu0 0.0
        %3846 = vmatpush1.xpose.msra.mxu0 0.0
        %3847 = vmatprep.subr.mxu0 0.0
        %3848 = vmatpush1.xpose.msra.mxu0 0.0
        %3849 = vmatprep.subr.mxu0 0.0
        %3850 = vmatpush1.xpose.msra.mxu0 0.0
        %3851 = vmatprep.subr.mxu0 0.0
        %3852 = vmatpush1.xpose.msra.mxu0 0.0
        %3853 = vmatprep.subr.mxu0 0.0
        %3854 = vmatpush1.xpose.msra.mxu0 0.0
        %3855 = vmatprep.subr.mxu0 0.0
        %3856 = vmatpush1.xpose.msra.mxu0 0.0
        %3857 = vmatprep.subr.mxu0 0.0
        %3858 = vmatpush1.xpose.msra.mxu0 0.0
        %3859 = vmatprep.mubr.f32.mxu0 0.0
        %3860 = vmatmul.mubr.f32.gmra.mrb[0].mxu0 %v3784
        %v3861 = vpop.f32.mrb[0].mxu0
        %v3862 = vadd.f32 0.0, %v3861
        %v3863 = vpop.f32.mrb[0].mxu0
        %3864 = vmatprep.mubr.f32.mxu0 0.0
        %3865 = vmatmul.mubr.f32.gmra.mrb[0].mxu0 %v3787
        %v3866 = vpop.f32.mrb[0].mxu0
        %v3867 = vadd.f32 0.0, %v3866
        %v3868 = vpop.f32.mrb[0].mxu0
        %3869 = vdwg.mxu0
        %v3870 = vmul.f32 %v3862, 0.25
        %v3871 = vmul.f32 %v3867, 0.25
        %v3872 = vsel %vm1663, %v3870, -inf
        %3873 = vmax.xlane.f32.xlu0 %v3872
        %v3874 = vpop.xlane.xlu0 %3873
        %v3875 = vsel %vm1663, %v3871, -inf
        %3876 = vmax.xlane.f32.xlu0 %v3875
        %v3877 = vpop.xlane.xlu0 %3876
        %v3878 = vsub.f32 %v3870, %v3874
        %v3879 = vsub.f32 %v3871, %v3877
        %v3880 = vmul.f32 %v3878, 1.442695
        %v3881 = vpow.pop %v3880
        %v3882 = vmul.f32 %v3879, 1.442695
        %v3883 = vpow.pop %v3882
        %v3884 = vsel %vm1663, %v3881, 0.0
        %3885 = vadd.xlane.f32.xlu0 %v3884
        %v3886 = vpop.xlane.xlu0 %3885
        %v3887 = vsel %vm1663, %v3883, 0.0
        %3888 = vadd.xlane.f32.xlu0 %v3887
        %v3889 = vpop.xlane.xlu0 %3888
        %v3890 = vrcp.pop %v3886
        %v3891 = vrcp.pop %v3889
        %v3892 = vmul.f32 %v3881, %v3890
        %v3893 = vmul.f32 %v3883, %v3891
        %v3895 = vsel %vm1663, %v3892, 0
        %v3898 = vsel %vm1663, %v3893, 0
        %3900 = vmatprep.subr.mxu0 0.0
        %3901 = vmatpush1.msra.mxu0 %v3775
        %3902 = vmatprep.subr.mxu0 0.0
        %3903 = vmatpush1.msra.mxu0 %v3780
        %3904 = vmatprep.subr.mxu0 0.0
        %3905 = vmatpush1.msra.mxu0 0.0
        %3906 = vmatprep.subr.mxu0 0.0
        %3907 = vmatpush1.msra.mxu0 0.0
        %3908 = vmatprep.subr.mxu0 0.0
        %3909 = vmatpush1.msra.mxu0 0.0
        %3910 = vmatprep.subr.mxu0 0.0
        %3911 = vmatpush1.msra.mxu0 0.0
        %3912 = vmatprep.subr.mxu0 0.0
        %3913 = vmatpush1.msra.mxu0 0.0
        %3914 = vmatprep.subr.mxu0 0.0
        %3915 = vmatpush1.msra.mxu0 0.0
        %3916 = vmatprep.subr.mxu0 0.0
        %3917 = vmatpush1.msra.mxu0 0.0
        %3918 = vmatprep.subr.mxu0 0.0
        %3919 = vmatpush1.msra.mxu0 0.0
        %3920 = vmatprep.subr.mxu0 0.0
        %3921 = vmatpush1.msra.mxu0 0.0
        %3922 = vmatprep.subr.mxu0 0.0
        %3923 = vmatpush1.msra.mxu0 0.0
        %3924 = vmatprep.subr.mxu0 0.0
        %3925 = vmatpush1.msra.mxu0 0.0
        %3926 = vmatprep.subr.mxu0 0.0
        %3927 = vmatpush1.msra.mxu0 0.0
        %3928 = vmatprep.subr.mxu0 0.0
        %3929 = vmatpush1.msra.mxu0 0.0
        %3930 = vmatprep.subr.mxu0 0.0
        %3931 = vmatpush1.msra.mxu0 0.0
        %3932 = vmatprep.subr.mxu0 0.0
        %3933 = vmatpush1.msra.mxu0 0.0
        %3934 = vmatprep.subr.mxu0 0.0
        %3935 = vmatpush1.msra.mxu0 0.0
        %3936 = vmatprep.subr.mxu0 0.0
        %3937 = vmatpush1.msra.mxu0 0.0
        %3938 = vmatprep.subr.mxu0 0.0
        %3939 = vmatpush1.msra.mxu0 0.0
        %3940 = vmatprep.subr.mxu0 0.0
        %3941 = vmatpush1.msra.mxu0 0.0
        %3942 = vmatprep.subr.mxu0 0.0
        %3943 = vmatpush1.msra.mxu0 0.0
        %3944 = vmatprep.subr.mxu0 0.0
        %3945 = vmatpush1.msra.mxu0 0.0
        %3946 = vmatprep.subr.mxu0 0.0
        %3947 = vmatpush1.msra.mxu0 0.0
        %3948 = vmatprep.subr.mxu0 0.0
        %3949 = vmatpush1.msra.mxu0 0.0
        %3950 = vmatprep.subr.mxu0 0.0
        %3951 = vmatpush1.msra.mxu0 0.0
        %3952 = vmatprep.subr.mxu0 0.0
        %3953 = vmatpush1.msra.mxu0 0.0
        %3954 = vmatprep.subr.mxu0 0.0
        %3955 = vmatpush1.msra.mxu0 0.0
        %3956 = vmatprep.subr.mxu0 0.0
        %3957 = vmatpush1.msra.mxu0 0.0
        %3958 = vmatprep.subr.mxu0 0.0
        %3959 = vmatpush1.msra.mxu0 0.0
        %3960 = vmatprep.subr.mxu0 0.0
        %3961 = vmatpush1.msra.mxu0 0.0
        %3962 = vmatprep.subr.mxu0 0.0
        %3963 = vmatpush1.msra.mxu0 0.0
        %3964 = vmatprep.mubr.f32.mxu0 0.0
        %3965 = vmatmul.mubr.f32.gmra.mrb[0].mxu0 %v3895
        %v3966 = vpop.f32.mrb[0].mxu0
        %v3967 = vadd.f32 0.0, %v3966
        %v3968 = vpop.f32.mrb[0].mxu0
        %3969 = vmatprep.mubr.f32.mxu0 0.0
        %3970 = vmatmul.mubr.f32.gmra.mrb[0].mxu0 %v3898
        %v3971 = vpop.f32.mrb[0].mxu0
        %v3972 = vadd.f32 0.0, %v3971
        %v3973 = vpop.f32.mrb[0].mxu0
        %3974 = vdwg.mxu0
        %3975 = vrot.lane.b32.xlu0 %v3579, 112
        %v3976 = vpop.permute.xlu0 %3975
        %3977 = vrot.lane.b32.xlu0 %v3584, 112
        %v3978 = vpop.permute.xlu0 %3977
        %3979 = vrot.lane.b32.xlu0 %v3677, 112
        %v3980 = vpop.permute.xlu0 %3979
        %3981 = vrot.lane.b32.xlu0 %v3682, 112
        %v3982 = vpop.permute.xlu0 %3981
        %v3983 = vsel %vm1663, %v3976, 0
        %v3985 = vsel %vm1663, %v3978, 0
        %v3987 = vsel %vm1663, %v3980, 0
        %v3989 = vsel %vm1663, %v3982, 0
        %3991 = vmatprep.subr.mxu0 0.0
        %3992 = vmatpush1.xpose.msra.mxu0 %v3987
        %3993 = vmatprep.subr.mxu0 0.0
        %3994 = vmatpush1.xpose.msra.mxu0 %v3989
        %3995 = vmatprep.subr.mxu0 0.0
        %3996 = vmatpush1.xpose.msra.mxu0 0.0
        %3997 = vmatprep.subr.mxu0 0.0
        %3998 = vmatpush1.xpose.msra.mxu0 0.0
        %3999 = vmatprep.subr.mxu0 0.0
        %4000 = vmatpush1.xpose.msra.mxu0 0.0
        %4001 = vmatprep.subr.mxu0 0.0
        %4002 = vmatpush1.xpose.msra.mxu0 0.0
        %4003 = vmatprep.subr.mxu0 0.0
        %4004 = vmatpush1.xpose.msra.mxu0 0.0
        %4005 = vmatprep.subr.mxu0 0.0
        %4006 = vmatpush1.xpose.msra.mxu0 0.0
        %4007 = vmatprep.subr.mxu0 0.0
        %4008 = vmatpush1.xpose.msra.mxu0 0.0
        %4009 = vmatprep.subr.mxu0 0.0
        %4010 = vmatpush1.xpose.msra.mxu0 0.0
        %4011 = vmatprep.subr.mxu0 0.0
        %4012 = vmatpush1.xpose.msra.mxu0 0.0
        %4013 = vmatprep.subr.mxu0 0.0
        %4014 = vmatpush1.xpose.msra.mxu0 0.0
        %4015 = vmatprep.subr.mxu0 0.0
        %4016 = vmatpush1.xpose.msra.mxu0 0.0
        %4017 = vmatprep.subr.mxu0 0.0
        %4018 = vmatpush1.xpose.msra.mxu0 0.0
        %4019 = vmatprep.subr.mxu0 0.0
        %4020 = vmatpush1.xpose.msra.mxu0 0.0
        %4021 = vmatprep.subr.mxu0 0.0
        %4022 = vmatpush1.xpose.msra.mxu0 0.0
        %4023 = vmatprep.subr.mxu0 0.0
        %4024 = vmatpush1.xpose.msra.mxu0 0.0
        %4025 = vmatprep.subr.mxu0 0.0
        %4026 = vmatpush1.xpose.msra.mxu0 0.0
        %4027 = vmatprep.subr.mxu0 0.0
        %4028 = vmatpush1.xpose.msra.mxu0 0.0
        %4029 = vmatprep.subr.mxu0 0.0
        %4030 = vmatpush1.xpose.msra.mxu0 0.0
        %4031 = vmatprep.subr.mxu0 0.0
        %4032 = vmatpush1.xpose.msra.mxu0 0.0
        %4033 = vmatprep.subr.mxu0 0.0
        %4034 = vmatpush1.xpose.msra.mxu0 0.0
        %4035 = vmatprep.subr.mxu0 0.0
        %4036 = vmatpush1.xpose.msra.mxu0 0.0
        %4037 = vmatprep.subr.mxu0 0.0
        %4038 = vmatpush1.xpose.msra.mxu0 0.0
        %4039 = vmatprep.subr.mxu0 0.0
        %4040 = vmatpush1.xpose.msra.mxu0 0.0
        %4041 = vmatprep.subr.mxu0 0.0
        %4042 = vmatpush1.xpose.msra.mxu0 0.0
        %4043 = vmatprep.subr.mxu0 0.0
        %4044 = vmatpush1.xpose.msra.mxu0 0.0
        %4045 = vmatprep.subr.mxu0 0.0
        %4046 = vmatpush1.xpose.msra.mxu0 0.0
        %4047 = vmatprep.subr.mxu0 0.0
        %4048 = vmatpush1.xpose.msra.mxu0 0.0
        %4049 = vmatprep.subr.mxu0 0.0
        %4050 = vmatpush1.xpose.msra.mxu0 0.0
        %4051 = vmatprep.subr.mxu0 0.0
        %4052 = vmatpush1.xpose.msra.mxu0 0.0
        %4053 = vmatprep.subr.mxu0 0.0
        %4054 = vmatpush1.xpose.msra.mxu0 0.0
        %4055 = vmatprep.mubr.f32.mxu0 0.0
        %4056 = vmatmul.mubr.f32.gmra.mrb[0].mxu0 %v3983
        %v4057 = vpop.f32.mrb[0].mxu0
        %v4058 = vadd.f32 0.0, %v4057
        %v4059 = vpop.f32.mrb[0].mxu0
        %4060 = vmatprep.mubr.f32.mxu0 0.0
        %4061 = vmatmul.mubr.f32.gmra.mrb[0].mxu0 %v3985
        %v4062 = vpop.f32.mrb[0].mxu0
        %v4063 = vadd.f32 0.0, %v4062
        %v4064 = vpop.f32.mrb[0].mxu0
        %4065 = vdwg.mxu0
        %v4066 = vmul.f32 %v4058, 0.25
        %v4067 = vmul.f32 %v4063, 0.25
        %v4068 = vsel %vm1663, %v4066, -inf
        %4069 = vmax.xlane.f32.xlu0 %v4068
        %v4070 = vpop.xlane.xlu0 %4069
        %v4071 = vsel %vm1663, %v4067, -inf
        %4072 = vmax.xlane.f32.xlu0 %v4071
        %v4073 = vpop.xlane.xlu0 %4072
        %v4074 = vsub.f32 %v4066, %v4070
        %v4075 = vsub.f32 %v4067, %v4073
        %v4076 = vmul.f32 %v4074, 1.442695
        %v4077 = vpow.pop %v4076
        %v4078 = vmul.f32 %v4075, 1.442695
        %v4079 = vpow.pop %v4078
        %v4080 = vsel %vm1663, %v4077, 0.0
        %4081 = vadd.xlane.f32.xlu0 %v4080
        %v4082 = vpop.xlane.xlu0 %4081
        %v4083 = vsel %vm1663, %v4079, 0.0
        %4084 = vadd.xlane.f32.xlu0 %v4083
        %v4085 = vpop.xlane.xlu0 %4084
        %v4086 = vrcp.pop %v4082
        %v4087 = vrcp.pop %v4085
        %v4088 = vmul.f32 %v4077, %v4086
        %v4089 = vmul.f32 %v4079, %v4087
        %4092 = vrot.lane.b32.xlu0 %v3775, 112
        %v4093 = vpop.permute.xlu0 %4092
        %4094 = vrot.lane.b32.xlu0 %v3780, 112
        %v4095 = vpop.permute.xlu0 %4094
        %v4099 = vsel %vm1663, %v4088, 0
        %v4102 = vsel %vm1663, %v4089, 0
        %4104 = vmatprep.subr.mxu0 0.0
        %4105 = vmatpush1.msra.mxu0 %v4093
        %4106 = vmatprep.subr.mxu0 0.0
        %4107 = vmatpush1.msra.mxu0 %v4095
        %4108 = vmatprep.subr.mxu0 0.0
        %4109 = vmatpush1.msra.mxu0 0.0
        %4110 = vmatprep.subr.mxu0 0.0
        %4111 = vmatpush1.msra.mxu0 0.0
        %4112 = vmatprep.subr.mxu0 0.0
        %4113 = vmatpush1.msra.mxu0 0.0
        %4114 = vmatprep.subr.mxu0 0.0
        %4115 = vmatpush1.msra.mxu0 0.0
        %4116 = vmatprep.subr.mxu0 0.0
        %4117 = vmatpush1.msra.mxu0 0.0
        %4118 = vmatprep.subr.mxu0 0.0
        %4119 = vmatpush1.msra.mxu0 0.0
        %4120 = vmatprep.subr.mxu0 0.0
        %4121 = vmatpush1.msra.mxu0 0.0
        %4122 = vmatprep.subr.mxu0 0.0
        %4123 = vmatpush1.msra.mxu0 0.0
        %4124 = vmatprep.subr.mxu0 0.0
        %4125 = vmatpush1.msra.mxu0 0.0
        %4126 = vmatprep.subr.mxu0 0.0
        %4127 = vmatpush1.msra.mxu0 0.0
        %4128 = vmatprep.subr.mxu0 0.0
        %4129 = vmatpush1.msra.mxu0 0.0
        %4130 = vmatprep.subr.mxu0 0.0
        %4131 = vmatpush1.msra.mxu0 0.0
        %4132 = vmatprep.subr.mxu0 0.0
        %4133 = vmatpush1.msra.mxu0 0.0
        %4134 = vmatprep.subr.mxu0 0.0
        %4135 = vmatpush1.msra.mxu0 0.0
        %4136 = vmatprep.subr.mxu0 0.0
        %4137 = vmatpush1.msra.mxu0 0.0
        %4138 = vmatprep.subr.mxu0 0.0
        %4139 = vmatpush1.msra.mxu0 0.0
        %4140 = vmatprep.subr.mxu0 0.0
        %4141 = vmatpush1.msra.mxu0 0.0
        %4142 = vmatprep.subr.mxu0 0.0
        %4143 = vmatpush1.msra.mxu0 0.0
        %4144 = vmatprep.subr.mxu0 0.0
        %4145 = vmatpush1.msra.mxu0 0.0
        %4146 = vmatprep.subr.mxu0 0.0
        %4147 = vmatpush1.msra.mxu0 0.0
        %4148 = vmatprep.subr.mxu0 0.0
        %4149 = vmatpush1.msra.mxu0 0.0
        %4150 = vmatprep.subr.mxu0 0.0
        %4151 = vmatpush1.msra.mxu0 0.0
        %4152 = vmatprep.subr.mxu0 0.0
        %4153 = vmatpush1.msra.mxu0 0.0
        %4154 = vmatprep.subr.mxu0 0.0
        %4155 = vmatpush1.msra.mxu0 0.0
        %4156 = vmatprep.subr.mxu0 0.0
        %4157 = vmatpush1.msra.mxu0 0.0
        %4158 = vmatprep.subr.mxu0 0.0
        %4159 = vmatpush1.msra.mxu0 0.0
        %4160 = vmatprep.subr.mxu0 0.0
        %4161 = vmatpush1.msra.mxu0 0.0
        %4162 = vmatprep.subr.mxu0 0.0
        %4163 = vmatpush1.msra.mxu0 0.0
        %4164 = vmatprep.subr.mxu0 0.0
        %4165 = vmatpush1.msra.mxu0 0.0
        %4166 = vmatprep.subr.mxu0 0.0
        %4167 = vmatpush1.msra.mxu0 0.0
        %4168 = vmatprep.mubr.f32.mxu0 0.0
        %4169 = vmatmul.mubr.f32.gmra.mrb[0].mxu0 %v4099
        %v4170 = vpop.f32.mrb[0].mxu0
        %v4171 = vadd.f32 0.0, %v4170
        %v4172 = vpop.f32.mrb[0].mxu0
        %4173 = vmatprep.mubr.f32.mxu0 0.0
        %4174 = vmatmul.mubr.f32.gmra.mrb[0].mxu0 %v4102
        %v4175 = vpop.f32.mrb[0].mxu0
        %v4176 = vadd.f32 0.0, %v4175
        %v4177 = vpop.f32.mrb[0].mxu0
        %4178 = vdwg.mxu0
        %4179 = vrot.lane.b32.xlu0 %v3579, 96
        %v4180 = vpop.permute.xlu0 %4179
        %4181 = vrot.lane.b32.xlu0 %v3584, 96
        %v4182 = vpop.permute.xlu0 %4181
        %4183 = vrot.lane.b32.xlu0 %v3677, 96
        %v4184 = vpop.permute.xlu0 %4183
        %4185 = vrot.lane.b32.xlu0 %v3682, 96
        %v4186 = vpop.permute.xlu0 %4185
        %v4187 = vsel %vm1663, %v4180, 0
        %v4189 = vsel %vm1663, %v4182, 0
        %v4191 = vsel %vm1663, %v4184, 0
        %v4193 = vsel %vm1663, %v4186, 0
        %4195 = vmatprep.subr.mxu0 0.0
        %4196 = vmatpush1.xpose.msra.mxu0 %v4191
        %4197 = vmatprep.subr.mxu0 0.0
        %4198 = vmatpush1.xpose.msra.mxu0 %v4193
        %4199 = vmatprep.subr.mxu0 0.0
        %4200 = vmatpush1.xpose.msra.mxu0 0.0
        %4201 = vmatprep.subr.mxu0 0.0
        %4202 = vmatpush1.xpose.msra.mxu0 0.0
        %4203 = vmatprep.subr.mxu0 0.0
        %4204 = vmatpush1.xpose.msra.mxu0 0.0
        %4205 = vmatprep.subr.mxu0 0.0
        %4206 = vmatpush1.xpose.msra.mxu0 0.0
        %4207 = vmatprep.subr.mxu0 0.0
        %4208 = vmatpush1.xpose.msra.mxu0 0.0
        %4209 = vmatprep.subr.mxu0 0.0
        %4210 = vmatpush1.xpose.msra.mxu0 0.0
        %4211 = vmatprep.subr.mxu0 0.0
        %4212 = vmatpush1.xpose.msra.mxu0 0.0
        %4213 = vmatprep.subr.mxu0 0.0
        %4214 = vmatpush1.xpose.msra.mxu0 0.0
        %4215 = vmatprep.subr.mxu0 0.0
        %4216 = vmatpush1.xpose.msra.mxu0 0.0
        %4217 = vmatprep.subr.mxu0 0.0
        %4218 = vmatpush1.xpose.msra.mxu0 0.0
        %4219 = vmatprep.subr.mxu0 0.0
        %4220 = vmatpush1.xpose.msra.mxu0 0.0
        %4221 = vmatprep.subr.mxu0 0.0
        %4222 = vmatpush1.xpose.msra.mxu0 0.0
        %4223 = vmatprep.subr.mxu0 0.0
        %4224 = vmatpush1.xpose.msra.mxu0 0.0
        %4225 = vmatprep.subr.mxu0 0.0
        %4226 = vmatpush1.xpose.msra.mxu0 0.0
        %4227 = vmatprep.subr.mxu0 0.0
        %4228 = vmatpush1.xpose.msra.mxu0 0.0
        %4229 = vmatprep.subr.mxu0 0.0
        %4230 = vmatpush1.xpose.msra.mxu0 0.0
        %4231 = vmatprep.subr.mxu0 0.0
        %4232 = vmatpush1.xpose.msra.mxu0 0.0
        %4233 = vmatprep.subr.mxu0 0.0
        %4234 = vmatpush1.xpose.msra.mxu0 0.0
        %4235 = vmatprep.subr.mxu0 0.0
        %4236 = vmatpush1.xpose.msra.mxu0 0.0
        %4237 = vmatprep.subr.mxu0 0.0
        %4238 = vmatpush1.xpose.msra.mxu0 0.0
        %4239 = vmatprep.subr.mxu0 0.0
        %4240 = vmatpush1.xpose.msra.mxu0 0.0
        %4241 = vmatprep.subr.mxu0 0.0
        %4242 = vmatpush1.xpose.msra.mxu0 0.0
        %4243 = vmatprep.subr.mxu0 0.0
        %4244 = vmatpush1.xpose.msra.mxu0 0.0
        %4245 = vmatprep.subr.mxu0 0.0
        %4246 = vmatpush1.xpose.msra.mxu0 0.0
        %4247 = vmatprep.subr.mxu0 0.0
        %4248 = vmatpush1.xpose.msra.mxu0 0.0
        %4249 = vmatprep.subr.mxu0 0.0
        %4250 = vmatpush1.xpose.msra.mxu0 0.0
        %4251 = vmatprep.subr.mxu0 0.0
        %4252 = vmatpush1.xpose.msra.mxu0 0.0
        %4253 = vmatprep.subr.mxu0 0.0
        %4254 = vmatpush1.xpose.msra.mxu0 0.0
        %4255 = vmatprep.subr.mxu0 0.0
        %4256 = vmatpush1.xpose.msra.mxu0 0.0
        %4257 = vmatprep.subr.mxu0 0.0
        %4258 = vmatpush1.xpose.msra.mxu0 0.0
        %4259 = vmatprep.mubr.f32.mxu0 0.0
        %4260 = vmatmul.mubr.f32.gmra.mrb[0].mxu0 %v4187
        %v4261 = vpop.f32.mrb[0].mxu0
        %v4262 = vadd.f32 0.0, %v4261
        %v4263 = vpop.f32.mrb[0].mxu0
        %4264 = vmatprep.mubr.f32.mxu0 0.0
        %4265 = vmatmul.mubr.f32.gmra.mrb[0].mxu0 %v4189
        %v4266 = vpop.f32.mrb[0].mxu0
        %v4267 = vadd.f32 0.0, %v4266
        %v4268 = vpop.f32.mrb[0].mxu0
        %4269 = vdwg.mxu0
        %v4270 = vmul.f32 %v4262, 0.25
        %v4271 = vmul.f32 %v4267, 0.25
        %v4272 = vsel %vm1663, %v4270, -inf
        %4273 = vmax.xlane.f32.xlu0 %v4272
        %v4274 = vpop.xlane.xlu0 %4273
        %v4275 = vsel %vm1663, %v4271, -inf
        %4276 = vmax.xlane.f32.xlu0 %v4275
        %v4277 = vpop.xlane.xlu0 %4276
        %v4278 = vsub.f32 %v4270, %v4274
        %v4279 = vsub.f32 %v4271, %v4277
        %v4280 = vmul.f32 %v4278, 1.442695
        %v4281 = vpow.pop %v4280
        %v4282 = vmul.f32 %v4279, 1.442695
        %v4283 = vpow.pop %v4282
        %v4284 = vsel %vm1663, %v4281, 0.0
        %4285 = vadd.xlane.f32.xlu0 %v4284
        %v4286 = vpop.xlane.xlu0 %4285
        %v4287 = vsel %vm1663, %v4283, 0.0
        %4288 = vadd.xlane.f32.xlu0 %v4287
        %v4289 = vpop.xlane.xlu0 %4288
        %v4290 = vrcp.pop %v4286
        %v4291 = vrcp.pop %v4289
        %v4292 = vmul.f32 %v4281, %v4290
        %v4293 = vmul.f32 %v4283, %v4291
        %4294 = vrot.lane.b32.xlu0 %v3775, 96
        %v4295 = vpop.permute.xlu0 %4294
        %4296 = vrot.lane.b32.xlu0 %v3780, 96
        %v4297 = vpop.permute.xlu0 %4296
        %v4301 = vsel %vm1663, %v4292, 0
        %v4304 = vsel %vm1663, %v4293, 0
        %4306 = vmatprep.subr.mxu0 0.0
        %4307 = vmatpush1.msra.mxu0 %v4295
        %4308 = vmatprep.subr.mxu0 0.0
        %4309 = vmatpush1.msra.mxu0 %v4297
        %4310 = vmatprep.subr.mxu0 0.0
        %4311 = vmatpush1.msra.mxu0 0.0
        %4312 = vmatprep.subr.mxu0 0.0
        %4313 = vmatpush1.msra.mxu0 0.0
        %4314 = vmatprep.subr.mxu0 0.0
        %4315 = vmatpush1.msra.mxu0 0.0
        %4316 = vmatprep.subr.mxu0 0.0
        %4317 = vmatpush1.msra.mxu0 0.0
        %4318 = vmatprep.subr.mxu0 0.0
        %4319 = vmatpush1.msra.mxu0 0.0
        %4320 = vmatprep.subr.mxu0 0.0
        %4321 = vmatpush1.msra.mxu0 0.0
        %4322 = vmatprep.subr.mxu0 0.0
        %4323 = vmatpush1.msra.mxu0 0.0
        %4324 = vmatprep.subr.mxu0 0.0
        %4325 = vmatpush1.msra.mxu0 0.0
        %4326 = vmatprep.subr.mxu0 0.0
        %4327 = vmatpush1.msra.mxu0 0.0
        %4328 = vmatprep.subr.mxu0 0.0
        %4329 = vmatpush1.msra.mxu0 0.0
        %4330 = vmatprep.subr.mxu0 0.0
        %4331 = vmatpush1.msra.mxu0 0.0
        %4332 = vmatprep.subr.mxu0 0.0
        %4333 = vmatpush1.msra.mxu0 0.0
        %4334 = vmatprep.subr.mxu0 0.0
        %4335 = vmatpush1.msra.mxu0 0.0
        %4336 = vmatprep.subr.mxu0 0.0
        %4337 = vmatpush1.msra.mxu0 0.0
        %4338 = vmatprep.subr.mxu0 0.0
        %4339 = vmatpush1.msra.mxu0 0.0
        %4340 = vmatprep.subr.mxu0 0.0
        %4341 = vmatpush1.msra.mxu0 0.0
        %4342 = vmatprep.subr.mxu0 0.0
        %4343 = vmatpush1.msra.mxu0 0.0
        %4344 = vmatprep.subr.mxu0 0.0
        %4345 = vmatpush1.msra.mxu0 0.0
        %4346 = vmatprep.subr.mxu0 0.0
        %4347 = vmatpush1.msra.mxu0 0.0
        %4348 = vmatprep.subr.mxu0 0.0
        %4349 = vmatpush1.msra.mxu0 0.0
        %4350 = vmatprep.subr.mxu0 0.0
        %4351 = vmatpush1.msra.mxu0 0.0
        %4352 = vmatprep.subr.mxu0 0.0
        %4353 = vmatpush1.msra.mxu0 0.0
        %4354 = vmatprep.subr.mxu0 0.0
        %4355 = vmatpush1.msra.mxu0 0.0
        %4356 = vmatprep.subr.mxu0 0.0
        %4357 = vmatpush1.msra.mxu0 0.0
        %4358 = vmatprep.subr.mxu0 0.0
        %4359 = vmatpush1.msra.mxu0 0.0
        %4360 = vmatprep.subr.mxu0 0.0
        %4361 = vmatpush1.msra.mxu0 0.0
        %4362 = vmatprep.subr.mxu0 0.0
        %4363 = vmatpush1.msra.mxu0 0.0
        %4364 = vmatprep.subr.mxu0 0.0
        %4365 = vmatpush1.msra.mxu0 0.0
        %4366 = vmatprep.subr.mxu0 0.0
        %4367 = vmatpush1.msra.mxu0 0.0
        %4368 = vmatprep.subr.mxu0 0.0
        %4369 = vmatpush1.msra.mxu0 0.0
        %4370 = vmatprep.mubr.f32.mxu0 0.0
        %4371 = vmatmul.mubr.f32.gmra.mrb[0].mxu0 %v4301
        %v4372 = vpop.f32.mrb[0].mxu0
        %v4373 = vadd.f32 0.0, %v4372
        %v4374 = vpop.f32.mrb[0].mxu0
        %4375 = vmatprep.mubr.f32.mxu0 0.0
        %4376 = vmatmul.mubr.f32.gmra.mrb[0].mxu0 %v4304
        %v4377 = vpop.f32.mrb[0].mxu0
        %v4378 = vadd.f32 0.0, %v4377
        %v4379 = vpop.f32.mrb[0].mxu0
        %4380 = vdwg.mxu0
        %4381 = vrot.lane.b32.xlu0 %v3579, 80
        %v4382 = vpop.permute.xlu0 %4381
        %4383 = vrot.lane.b32.xlu0 %v3584, 80
        %v4384 = vpop.permute.xlu0 %4383
        %4385 = vrot.lane.b32.xlu0 %v3677, 80
        %v4386 = vpop.permute.xlu0 %4385
        %4387 = vrot.lane.b32.xlu0 %v3682, 80
        %v4388 = vpop.permute.xlu0 %4387
        %v4389 = vsel %vm1663, %v4382, 0
        %v4391 = vsel %vm1663, %v4384, 0
        %v4393 = vsel %vm1663, %v4386, 0
        %v4395 = vsel %vm1663, %v4388, 0
        %4397 = vmatprep.subr.mxu0 0.0
        %4398 = vmatpush1.xpose.msra.mxu0 %v4393
        %4399 = vmatprep.subr.mxu0 0.0
        %4400 = vmatpush1.xpose.msra.mxu0 %v4395
        %4401 = vmatprep.subr.mxu0 0.0
        %4402 = vmatpush1.xpose.msra.mxu0 0.0
        %4403 = vmatprep.subr.mxu0 0.0
        %4404 = vmatpush1.xpose.msra.mxu0 0.0
        %4405 = vmatprep.subr.mxu0 0.0
        %4406 = vmatpush1.xpose.msra.mxu0 0.0
        %4407 = vmatprep.subr.mxu0 0.0
        %4408 = vmatpush1.xpose.msra.mxu0 0.0
        %4409 = vmatprep.subr.mxu0 0.0
        %4410 = vmatpush1.xpose.msra.mxu0 0.0
        %4411 = vmatprep.subr.mxu0 0.0
        %4412 = vmatpush1.xpose.msra.mxu0 0.0
        %4413 = vmatprep.subr.mxu0 0.0
        %4414 = vmatpush1.xpose.msra.mxu0 0.0
        %4415 = vmatprep.subr.mxu0 0.0
        %4416 = vmatpush1.xpose.msra.mxu0 0.0
        %4417 = vmatprep.subr.mxu0 0.0
        %4418 = vmatpush1.xpose.msra.mxu0 0.0
        %4419 = vmatprep.subr.mxu0 0.0
        %4420 = vmatpush1.xpose.msra.mxu0 0.0
        %4421 = vmatprep.subr.mxu0 0.0
        %4422 = vmatpush1.xpose.msra.mxu0 0.0
        %4423 = vmatprep.subr.mxu0 0.0
        %4424 = vmatpush1.xpose.msra.mxu0 0.0
        %4425 = vmatprep.subr.mxu0 0.0
        %4426 = vmatpush1.xpose.msra.mxu0 0.0
        %4427 = vmatprep.subr.mxu0 0.0
        %4428 = vmatpush1.xpose.msra.mxu0 0.0
        %4429 = vmatprep.subr.mxu0 0.0
        %4430 = vmatpush1.xpose.msra.mxu0 0.0
        %4431 = vmatprep.subr.mxu0 0.0
        %4432 = vmatpush1.xpose.msra.mxu0 0.0
        %4433 = vmatprep.subr.mxu0 0.0
        %4434 = vmatpush1.xpose.msra.mxu0 0.0
        %4435 = vmatprep.subr.mxu0 0.0
        %4436 = vmatpush1.xpose.msra.mxu0 0.0
        %4437 = vmatprep.subr.mxu0 0.0
        %4438 = vmatpush1.xpose.msra.mxu0 0.0
        %4439 = vmatprep.subr.mxu0 0.0
        %4440 = vmatpush1.xpose.msra.mxu0 0.0
        %4441 = vmatprep.subr.mxu0 0.0
        %4442 = vmatpush1.xpose.msra.mxu0 0.0
        %4443 = vmatprep.subr.mxu0 0.0
        %4444 = vmatpush1.xpose.msra.mxu0 0.0
        %4445 = vmatprep.subr.mxu0 0.0
        %4446 = vmatpush1.xpose.msra.mxu0 0.0
        %4447 = vmatprep.subr.mxu0 0.0
        %4448 = vmatpush1.xpose.msra.mxu0 0.0
        %4449 = vmatprep.subr.mxu0 0.0
        %4450 = vmatpush1.xpose.msra.mxu0 0.0
        %4451 = vmatprep.subr.mxu0 0.0
        %4452 = vmatpush1.xpose.msra.mxu0 0.0
        %4453 = vmatprep.subr.mxu0 0.0
        %4454 = vmatpush1.xpose.msra.mxu0 0.0
        %4455 = vmatprep.subr.mxu0 0.0
        %4456 = vmatpush1.xpose.msra.mxu0 0.0
        %4457 = vmatprep.subr.mxu0 0.0
        %4458 = vmatpush1.xpose.msra.mxu0 0.0
        %4459 = vmatprep.subr.mxu0 0.0
        %4460 = vmatpush1.xpose.msra.mxu0 0.0
        %4461 = vmatprep.mubr.f32.mxu0 0.0
        %4462 = vmatmul.mubr.f32.gmra.mrb[0].mxu0 %v4389
        %v4463 = vpop.f32.mrb[0].mxu0
        %v4464 = vadd.f32 0.0, %v4463
        %v4465 = vpop.f32.mrb[0].mxu0
        %4466 = vmatprep.mubr.f32.mxu0 0.0
        %4467 = vmatmul.mubr.f32.gmra.mrb[0].mxu0 %v4391
        %v4468 = vpop.f32.mrb[0].mxu0
        %v4469 = vadd.f32 0.0, %v4468
        %v4470 = vpop.f32.mrb[0].mxu0
        %4471 = vdwg.mxu0
        %v4472 = vmul.f32 %v4464, 0.25
        %v4473 = vmul.f32 %v4469, 0.25
        %v4474 = vsel %vm1663, %v4472, -inf
        %4475 = vmax.xlane.f32.xlu0 %v4474
        %v4476 = vpop.xlane.xlu0 %4475
        %v4477 = vsel %vm1663, %v4473, -inf
        %4478 = vmax.xlane.f32.xlu0 %v4477
        %v4479 = vpop.xlane.xlu0 %4478
        %v4480 = vsub.f32 %v4472, %v4476
        %v4481 = vsub.f32 %v4473, %v4479
        %v4482 = vmul.f32 %v4480, 1.442695
        %v4483 = vpow.pop %v4482
        %v4484 = vmul.f32 %v4481, 1.442695
        %v4485 = vpow.pop %v4484
        %v4486 = vsel %vm1663, %v4483, 0.0
        %4487 = vadd.xlane.f32.xlu0 %v4486
        %v4488 = vpop.xlane.xlu0 %4487
        %v4489 = vsel %vm1663, %v4485, 0.0
        %4490 = vadd.xlane.f32.xlu0 %v4489
        %v4491 = vpop.xlane.xlu0 %4490
        %v4492 = vrcp.pop %v4488
        %v4493 = vrcp.pop %v4491
        %v4494 = vmul.f32 %v4483, %v4492
        %v4495 = vmul.f32 %v4485, %v4493
        %4496 = vrot.lane.b32.xlu0 %v3775, 80
        %v4497 = vpop.permute.xlu0 %4496
        %4498 = vrot.lane.b32.xlu0 %v3780, 80
        %v4499 = vpop.permute.xlu0 %4498
        %v4503 = vsel %vm1663, %v4494, 0
        %v4506 = vsel %vm1663, %v4495, 0
        %4508 = vmatprep.subr.mxu0 0.0
        %4509 = vmatpush1.msra.mxu0 %v4497
        %4510 = vmatprep.subr.mxu0 0.0
        %4511 = vmatpush1.msra.mxu0 %v4499
        %4512 = vmatprep.subr.mxu0 0.0
        %4513 = vmatpush1.msra.mxu0 0.0
        %4514 = vmatprep.subr.mxu0 0.0
        %4515 = vmatpush1.msra.mxu0 0.0
        %4516 = vmatprep.subr.mxu0 0.0
        %4517 = vmatpush1.msra.mxu0 0.0
        %4518 = vmatprep.subr.mxu0 0.0
        %4519 = vmatpush1.msra.mxu0 0.0
        %4520 = vmatprep.subr.mxu0 0.0
        %4521 = vmatpush1.msra.mxu0 0.0
        %4522 = vmatprep.subr.mxu0 0.0
        %4523 = vmatpush1.msra.mxu0 0.0
        %4524 = vmatprep.subr.mxu0 0.0
        %4525 = vmatpush1.msra.mxu0 0.0
        %4526 = vmatprep.subr.mxu0 0.0
        %4527 = vmatpush1.msra.mxu0 0.0
        %4528 = vmatprep.subr.mxu0 0.0
        %4529 = vmatpush1.msra.mxu0 0.0
        %4530 = vmatprep.subr.mxu0 0.0
        %4531 = vmatpush1.msra.mxu0 0.0
        %4532 = vmatprep.subr.mxu0 0.0
        %4533 = vmatpush1.msra.mxu0 0.0
        %4534 = vmatprep.subr.mxu0 0.0
        %4535 = vmatpush1.msra.mxu0 0.0
        %4536 = vmatprep.subr.mxu0 0.0
        %4537 = vmatpush1.msra.mxu0 0.0
        %4538 = vmatprep.subr.mxu0 0.0
        %4539 = vmatpush1.msra.mxu0 0.0
        %4540 = vmatprep.subr.mxu0 0.0
        %4541 = vmatpush1.msra.mxu0 0.0
        %4542 = vmatprep.subr.mxu0 0.0
        %4543 = vmatpush1.msra.mxu0 0.0
        %4544 = vmatprep.subr.mxu0 0.0
        %4545 = vmatpush1.msra.mxu0 0.0
        %4546 = vmatprep.subr.mxu0 0.0
        %4547 = vmatpush1.msra.mxu0 0.0
        %4548 = vmatprep.subr.mxu0 0.0
        %4549 = vmatpush1.msra.mxu0 0.0
        %4550 = vmatprep.subr.mxu0 0.0
        %4551 = vmatpush1.msra.mxu0 0.0
        %4552 = vmatprep.subr.mxu0 0.0
        %4553 = vmatpush1.msra.mxu0 0.0
        %4554 = vmatprep.subr.mxu0 0.0
        %4555 = vmatpush1.msra.mxu0 0.0
        %4556 = vmatprep.subr.mxu0 0.0
        %4557 = vmatpush1.msra.mxu0 0.0
        %4558 = vmatprep.subr.mxu0 0.0
        %4559 = vmatpush1.msra.mxu0 0.0
        %4560 = vmatprep.subr.mxu0 0.0
        %4561 = vmatpush1.msra.mxu0 0.0
        %4562 = vmatprep.subr.mxu0 0.0
        %4563 = vmatpush1.msra.mxu0 0.0
        %4564 = vmatprep.subr.mxu0 0.0
        %4565 = vmatpush1.msra.mxu0 0.0
        %4566 = vmatprep.subr.mxu0 0.0
        %4567 = vmatpush1.msra.mxu0 0.0
        %4568 = vmatprep.subr.mxu0 0.0
        %4569 = vmatpush1.msra.mxu0 0.0
        %4570 = vmatprep.subr.mxu0 0.0
        %4571 = vmatpush1.msra.mxu0 0.0
        %4572 = vmatprep.mubr.f32.mxu0 0.0
        %4573 = vmatmul.mubr.f32.gmra.mrb[0].mxu0 %v4503
        %v4574 = vpop.f32.mrb[0].mxu0
        %v4575 = vadd.f32 0.0, %v4574
        %v4576 = vpop.f32.mrb[0].mxu0
        %4577 = vmatprep.mubr.f32.mxu0 0.0
        %4578 = vmatmul.mubr.f32.gmra.mrb[0].mxu0 %v4506
        %v4579 = vpop.f32.mrb[0].mxu0
        %v4580 = vadd.f32 0.0, %v4579
        %v4581 = vpop.f32.mrb[0].mxu0
        %4582 = vdwg.mxu0
        %4583 = vrot.lane.b32.xlu0 %v3579, 64
        %v4584 = vpop.permute.xlu0 %4583
        %4585 = vrot.lane.b32.xlu0 %v3584, 64
        %v4586 = vpop.permute.xlu0 %4585
        %4587 = vrot.lane.b32.xlu0 %v3677, 64
        %v4588 = vpop.permute.xlu0 %4587
        %4589 = vrot.lane.b32.xlu0 %v3682, 64
        %v4590 = vpop.permute.xlu0 %4589
        %v4591 = vsel %vm1663, %v4584, 0
        %v4593 = vsel %vm1663, %v4586, 0
        %v4595 = vsel %vm1663, %v4588, 0
        %v4597 = vsel %vm1663, %v4590, 0
        %4599 = vmatprep.subr.mxu0 0.0
        %4600 = vmatpush1.xpose.msra.mxu0 %v4595
        %4601 = vmatprep.subr.mxu0 0.0
        %4602 = vmatpush1.xpose.msra.mxu0 %v4597
        %4603 = vmatprep.subr.mxu0 0.0
        %4604 = vmatpush1.xpose.msra.mxu0 0.0
        %4605 = vmatprep.subr.mxu0 0.0
        %4606 = vmatpush1.xpose.msra.mxu0 0.0
        %4607 = vmatprep.subr.mxu0 0.0
        %4608 = vmatpush1.xpose.msra.mxu0 0.0
        %4609 = vmatprep.subr.mxu0 0.0
        %4610 = vmatpush1.xpose.msra.mxu0 0.0
        %4611 = vmatprep.subr.mxu0 0.0
        %4612 = vmatpush1.xpose.msra.mxu0 0.0
        %4613 = vmatprep.subr.mxu0 0.0
        %4614 = vmatpush1.xpose.msra.mxu0 0.0
        %4615 = vmatprep.subr.mxu0 0.0
        %4616 = vmatpush1.xpose.msra.mxu0 0.0
        %4617 = vmatprep.subr.mxu0 0.0
        %4618 = vmatpush1.xpose.msra.mxu0 0.0
        %4619 = vmatprep.subr.mxu0 0.0
        %4620 = vmatpush1.xpose.msra.mxu0 0.0
        %4621 = vmatprep.subr.mxu0 0.0
        %4622 = vmatpush1.xpose.msra.mxu0 0.0
        %4623 = vmatprep.subr.mxu0 0.0
        %4624 = vmatpush1.xpose.msra.mxu0 0.0
        %4625 = vmatprep.subr.mxu0 0.0
        %4626 = vmatpush1.xpose.msra.mxu0 0.0
        %4627 = vmatprep.subr.mxu0 0.0
        %4628 = vmatpush1.xpose.msra.mxu0 0.0
        %4629 = vmatprep.subr.mxu0 0.0
        %4630 = vmatpush1.xpose.msra.mxu0 0.0
        %4631 = vmatprep.subr.mxu0 0.0
        %4632 = vmatpush1.xpose.msra.mxu0 0.0
        %4633 = vmatprep.subr.mxu0 0.0
        %4634 = vmatpush1.xpose.msra.mxu0 0.0
        %4635 = vmatprep.subr.mxu0 0.0
        %4636 = vmatpush1.xpose.msra.mxu0 0.0
        %4637 = vmatprep.subr.mxu0 0.0
        %4638 = vmatpush1.xpose.msra.mxu0 0.0
        %4639 = vmatprep.subr.mxu0 0.0
        %4640 = vmatpush1.xpose.msra.mxu0 0.0
        %4641 = vmatprep.subr.mxu0 0.0
        %4642 = vmatpush1.xpose.msra.mxu0 0.0
        %4643 = vmatprep.subr.mxu0 0.0
        %4644 = vmatpush1.xpose.msra.mxu0 0.0
        %4645 = vmatprep.subr.mxu0 0.0
        %4646 = vmatpush1.xpose.msra.mxu0 0.0
        %4647 = vmatprep.subr.mxu0 0.0
        %4648 = vmatpush1.xpose.msra.mxu0 0.0
        %4649 = vmatprep.subr.mxu0 0.0
        %4650 = vmatpush1.xpose.msra.mxu0 0.0
        %4651 = vmatprep.subr.mxu0 0.0
        %4652 = vmatpush1.xpose.msra.mxu0 0.0
        %4653 = vmatprep.subr.mxu0 0.0
        %4654 = vmatpush1.xpose.msra.mxu0 0.0
        %4655 = vmatprep.subr.mxu0 0.0
        %4656 = vmatpush1.xpose.msra.mxu0 0.0
        %4657 = vmatprep.subr.mxu0 0.0
        %4658 = vmatpush1.xpose.msra.mxu0 0.0
        %4659 = vmatprep.subr.mxu0 0.0
        %4660 = vmatpush1.xpose.msra.mxu0 0.0
        %4661 = vmatprep.subr.mxu0 0.0
        %4662 = vmatpush1.xpose.msra.mxu0 0.0
        %4663 = vmatprep.mubr.f32.mxu0 0.0
        %4664 = vmatmul.mubr.f32.gmra.mrb[0].mxu0 %v4591
        %v4665 = vpop.f32.mrb[0].mxu0
        %v4666 = vadd.f32 0.0, %v4665
        %v4667 = vpop.f32.mrb[0].mxu0
        %4668 = vmatprep.mubr.f32.mxu0 0.0
        %4669 = vmatmul.mubr.f32.gmra.mrb[0].mxu0 %v4593
        %v4670 = vpop.f32.mrb[0].mxu0
        %v4671 = vadd.f32 0.0, %v4670
        %v4672 = vpop.f32.mrb[0].mxu0
        %4673 = vdwg.mxu0
        %v4674 = vmul.f32 %v4666, 0.25
        %v4675 = vmul.f32 %v4671, 0.25
        %v4676 = vsel %vm1663, %v4674, -inf
        %4677 = vmax.xlane.f32.xlu0 %v4676
        %v4678 = vpop.xlane.xlu0 %4677
        %v4679 = vsel %vm1663, %v4675, -inf
        %4680 = vmax.xlane.f32.xlu0 %v4679
        %v4681 = vpop.xlane.xlu0 %4680
        %v4682 = vsub.f32 %v4674, %v4678
        %v4683 = vsub.f32 %v4675, %v4681
        %v4684 = vmul.f32 %v4682, 1.442695
        %v4685 = vpow.pop %v4684
        %v4686 = vmul.f32 %v4683, 1.442695
        %v4687 = vpow.pop %v4686
        %v4688 = vsel %vm1663, %v4685, 0.0
        %4689 = vadd.xlane.f32.xlu0 %v4688
        %v4690 = vpop.xlane.xlu0 %4689
        %v4691 = vsel %vm1663, %v4687, 0.0
        %4692 = vadd.xlane.f32.xlu0 %v4691
        %v4693 = vpop.xlane.xlu0 %4692
        %v4694 = vrcp.pop %v4690
        %v4695 = vrcp.pop %v4693
        %v4696 = vmul.f32 %v4685, %v4694
        %v4697 = vmul.f32 %v4687, %v4695
        %4698 = vrot.lane.b32.xlu0 %v3775, 64
        %v4699 = vpop.permute.xlu0 %4698
        %4700 = vrot.lane.b32.xlu0 %v3780, 64
        %v4701 = vpop.permute.xlu0 %4700
        %v4705 = vsel %vm1663, %v4696, 0
        %v4708 = vsel %vm1663, %v4697, 0
        %4710 = vmatprep.subr.mxu0 0.0
        %4711 = vmatpush1.msra.mxu0 %v4699
        %4712 = vmatprep.subr.mxu0 0.0
        %4713 = vmatpush1.msra.mxu0 %v4701
        %4714 = vmatprep.subr.mxu0 0.0
        %4715 = vmatpush1.msra.mxu0 0.0
        %4716 = vmatprep.subr.mxu0 0.0
        %4717 = vmatpush1.msra.mxu0 0.0
        %4718 = vmatprep.subr.mxu0 0.0
        %4719 = vmatpush1.msra.mxu0 0.0
        %4720 = vmatprep.subr.mxu0 0.0
        %4721 = vmatpush1.msra.mxu0 0.0
        %4722 = vmatprep.subr.mxu0 0.0
        %4723 = vmatpush1.msra.mxu0 0.0
        %4724 = vmatprep.subr.mxu0 0.0
        %4725 = vmatpush1.msra.mxu0 0.0
        %4726 = vmatprep.subr.mxu0 0.0
        %4727 = vmatpush1.msra.mxu0 0.0
        %4728 = vmatprep.subr.mxu0 0.0
        %4729 = vmatpush1.msra.mxu0 0.0
        %4730 = vmatprep.subr.mxu0 0.0
        %4731 = vmatpush1.msra.mxu0 0.0
        %4732 = vmatprep.subr.mxu0 0.0
        %4733 = vmatpush1.msra.mxu0 0.0
        %4734 = vmatprep.subr.mxu0 0.0
        %4735 = vmatpush1.msra.mxu0 0.0
        %4736 = vmatprep.subr.mxu0 0.0
        %4737 = vmatpush1.msra.mxu0 0.0
        %4738 = vmatprep.subr.mxu0 0.0
        %4739 = vmatpush1.msra.mxu0 0.0
        %4740 = vmatprep.subr.mxu0 0.0
        %4741 = vmatpush1.msra.mxu0 0.0
        %4742 = vmatprep.subr.mxu0 0.0
        %4743 = vmatpush1.msra.mxu0 0.0
        %4744 = vmatprep.subr.mxu0 0.0
        %4745 = vmatpush1.msra.mxu0 0.0
        %4746 = vmatprep.subr.mxu0 0.0
        %4747 = vmatpush1.msra.mxu0 0.0
        %4748 = vmatprep.subr.mxu0 0.0
        %4749 = vmatpush1.msra.mxu0 0.0
        %4750 = vmatprep.subr.mxu0 0.0
        %4751 = vmatpush1.msra.mxu0 0.0
        %4752 = vmatprep.subr.mxu0 0.0
        %4753 = vmatpush1.msra.mxu0 0.0
        %4754 = vmatprep.subr.mxu0 0.0
        %4755 = vmatpush1.msra.mxu0 0.0
        %4756 = vmatprep.subr.mxu0 0.0
        %4757 = vmatpush1.msra.mxu0 0.0
        %4758 = vmatprep.subr.mxu0 0.0
        %4759 = vmatpush1.msra.mxu0 0.0
        %4760 = vmatprep.subr.mxu0 0.0
        %4761 = vmatpush1.msra.mxu0 0.0
        %4762 = vmatprep.subr.mxu0 0.0
        %4763 = vmatpush1.msra.mxu0 0.0
        %4764 = vmatprep.subr.mxu0 0.0
        %4765 = vmatpush1.msra.mxu0 0.0
        %4766 = vmatprep.subr.mxu0 0.0
        %4767 = vmatpush1.msra.mxu0 0.0
        %4768 = vmatprep.subr.mxu0 0.0
        %4769 = vmatpush1.msra.mxu0 0.0
        %4770 = vmatprep.subr.mxu0 0.0
        %4771 = vmatpush1.msra.mxu0 0.0
        %4772 = vmatprep.subr.mxu0 0.0
        %4773 = vmatpush1.msra.mxu0 0.0
        %4774 = vmatprep.mubr.f32.mxu0 0.0
        %4775 = vmatmul.mubr.f32.gmra.mrb[0].mxu0 %v4705
        %v4776 = vpop.f32.mrb[0].mxu0
        %v4777 = vadd.f32 0.0, %v4776
        %v4778 = vpop.f32.mrb[0].mxu0
        %4779 = vmatprep.mubr.f32.mxu0 0.0
        %4780 = vmatmul.mubr.f32.gmra.mrb[0].mxu0 %v4708
        %v4781 = vpop.f32.mrb[0].mxu0
        %v4782 = vadd.f32 0.0, %v4781
        %v4783 = vpop.f32.mrb[0].mxu0
        %4784 = vdwg.mxu0
        %4785 = vrot.lane.b32.xlu0 %v3579, 48
        %v4786 = vpop.permute.xlu0 %4785
        %4787 = vrot.lane.b32.xlu0 %v3584, 48
        %v4788 = vpop.permute.xlu0 %4787
        %4789 = vrot.lane.b32.xlu0 %v3677, 48
        %v4790 = vpop.permute.xlu0 %4789
        %4791 = vrot.lane.b32.xlu0 %v3682, 48
        %v4792 = vpop.permute.xlu0 %4791
        %v4793 = vsel %vm1663, %v4786, 0
        %v4795 = vsel %vm1663, %v4788, 0
        %v4797 = vsel %vm1663, %v4790, 0
        %v4799 = vsel %vm1663, %v4792, 0
        %4801 = vmatprep.subr.mxu0 0.0
        %4802 = vmatpush1.xpose.msra.mxu0 %v4797
        %4803 = vmatprep.subr.mxu0 0.0
        %4804 = vmatpush1.xpose.msra.mxu0 %v4799
        %4805 = vmatprep.subr.mxu0 0.0
        %4806 = vmatpush1.xpose.msra.mxu0 0.0
        %4807 = vmatprep.subr.mxu0 0.0
        %4808 = vmatpush1.xpose.msra.mxu0 0.0
        %4809 = vmatprep.subr.mxu0 0.0
        %4810 = vmatpush1.xpose.msra.mxu0 0.0
        %4811 = vmatprep.subr.mxu0 0.0
        %4812 = vmatpush1.xpose.msra.mxu0 0.0
        %4813 = vmatprep.subr.mxu0 0.0
        %4814 = vmatpush1.xpose.msra.mxu0 0.0
        %4815 = vmatprep.subr.mxu0 0.0
        %4816 = vmatpush1.xpose.msra.mxu0 0.0
        %4817 = vmatprep.subr.mxu0 0.0
        %4818 = vmatpush1.xpose.msra.mxu0 0.0
        %4819 = vmatprep.subr.mxu0 0.0
        %4820 = vmatpush1.xpose.msra.mxu0 0.0
        %4821 = vmatprep.subr.mxu0 0.0
        %4822 = vmatpush1.xpose.msra.mxu0 0.0
        %4823 = vmatprep.subr.mxu0 0.0
        %4824 = vmatpush1.xpose.msra.mxu0 0.0
        %4825 = vmatprep.subr.mxu0 0.0
        %4826 = vmatpush1.xpose.msra.mxu0 0.0
        %4827 = vmatprep.subr.mxu0 0.0
        %4828 = vmatpush1.xpose.msra.mxu0 0.0
        %4829 = vmatprep.subr.mxu0 0.0
        %4830 = vmatpush1.xpose.msra.mxu0 0.0
        %4831 = vmatprep.subr.mxu0 0.0
        %4832 = vmatpush1.xpose.msra.mxu0 0.0
        %4833 = vmatprep.subr.mxu0 0.0
        %4834 = vmatpush1.xpose.msra.mxu0 0.0
        %4835 = vmatprep.subr.mxu0 0.0
        %4836 = vmatpush1.xpose.msra.mxu0 0.0
        %4837 = vmatprep.subr.mxu0 0.0
        %4838 = vmatpush1.xpose.msra.mxu0 0.0
        %4839 = vmatprep.subr.mxu0 0.0
        %4840 = vmatpush1.xpose.msra.mxu0 0.0
        %4841 = vmatprep.subr.mxu0 0.0
        %4842 = vmatpush1.xpose.msra.mxu0 0.0
        %4843 = vmatprep.subr.mxu0 0.0
        %4844 = vmatpush1.xpose.msra.mxu0 0.0
        %4845 = vmatprep.subr.mxu0 0.0
        %4846 = vmatpush1.xpose.msra.mxu0 0.0
        %4847 = vmatprep.subr.mxu0 0.0
        %4848 = vmatpush1.xpose.msra.mxu0 0.0
        %4849 = vmatprep.subr.mxu0 0.0
        %4850 = vmatpush1.xpose.msra.mxu0 0.0
        %4851 = vmatprep.subr.mxu0 0.0
        %4852 = vmatpush1.xpose.msra.mxu0 0.0
        %4853 = vmatprep.subr.mxu0 0.0
        %4854 = vmatpush1.xpose.msra.mxu0 0.0
        %4855 = vmatprep.subr.mxu0 0.0
        %4856 = vmatpush1.xpose.msra.mxu0 0.0
        %4857 = vmatprep.subr.mxu0 0.0
        %4858 = vmatpush1.xpose.msra.mxu0 0.0
        %4859 = vmatprep.subr.mxu0 0.0
        %4860 = vmatpush1.xpose.msra.mxu0 0.0
        %4861 = vmatprep.subr.mxu0 0.0
        %4862 = vmatpush1.xpose.msra.mxu0 0.0
        %4863 = vmatprep.subr.mxu0 0.0
        %4864 = vmatpush1.xpose.msra.mxu0 0.0
        %4865 = vmatprep.mubr.f32.mxu0 0.0
        %4866 = vmatmul.mubr.f32.gmra.mrb[0].mxu0 %v4793
        %v4867 = vpop.f32.mrb[0].mxu0
        %v4868 = vadd.f32 0.0, %v4867
        %v4869 = vpop.f32.mrb[0].mxu0
        %4870 = vmatprep.mubr.f32.mxu0 0.0
        %4871 = vmatmul.mubr.f32.gmra.mrb[0].mxu0 %v4795
        %v4872 = vpop.f32.mrb[0].mxu0
        %v4873 = vadd.f32 0.0, %v4872
        %v4874 = vpop.f32.mrb[0].mxu0
        %4875 = vdwg.mxu0
        %v4876 = vmul.f32 %v4868, 0.25
        %v4877 = vmul.f32 %v4873, 0.25
        %v4878 = vsel %vm1663, %v4876, -inf
        %4879 = vmax.xlane.f32.xlu0 %v4878
        %v4880 = vpop.xlane.xlu0 %4879
        %v4881 = vsel %vm1663, %v4877, -inf
        %4882 = vmax.xlane.f32.xlu0 %v4881
        %v4883 = vpop.xlane.xlu0 %4882
        %v4884 = vsub.f32 %v4876, %v4880
        %v4885 = vsub.f32 %v4877, %v4883
        %v4886 = vmul.f32 %v4884, 1.442695
        %v4887 = vpow.pop %v4886
        %v4888 = vmul.f32 %v4885, 1.442695
        %v4889 = vpow.pop %v4888
        %v4890 = vsel %vm1663, %v4887, 0.0
        %4891 = vadd.xlane.f32.xlu0 %v4890
        %v4892 = vpop.xlane.xlu0 %4891
        %v4893 = vsel %vm1663, %v4889, 0.0
        %4894 = vadd.xlane.f32.xlu0 %v4893
        %v4895 = vpop.xlane.xlu0 %4894
        %v4896 = vrcp.pop %v4892
        %v4897 = vrcp.pop %v4895
        %v4898 = vmul.f32 %v4887, %v4896
        %v4899 = vmul.f32 %v4889, %v4897
        %4900 = vrot.lane.b32.xlu0 %v3775, 48
        %v4901 = vpop.permute.xlu0 %4900
        %4902 = vrot.lane.b32.xlu0 %v3780, 48
        %v4903 = vpop.permute.xlu0 %4902
        %v4907 = vsel %vm1663, %v4898, 0
        %v4910 = vsel %vm1663, %v4899, 0
        %4912 = vmatprep.subr.mxu0 0.0
        %4913 = vmatpush1.msra.mxu0 %v4901
        %4914 = vmatprep.subr.mxu0 0.0
        %4915 = vmatpush1.msra.mxu0 %v4903
        %4916 = vmatprep.subr.mxu0 0.0
        %4917 = vmatpush1.msra.mxu0 0.0
        %4918 = vmatprep.subr.mxu0 0.0
        %4919 = vmatpush1.msra.mxu0 0.0
        %4920 = vmatprep.subr.mxu0 0.0
        %4921 = vmatpush1.msra.mxu0 0.0
        %4922 = vmatprep.subr.mxu0 0.0
        %4923 = vmatpush1.msra.mxu0 0.0
        %4924 = vmatprep.subr.mxu0 0.0
        %4925 = vmatpush1.msra.mxu0 0.0
        %4926 = vmatprep.subr.mxu0 0.0
        %4927 = vmatpush1.msra.mxu0 0.0
        %4928 = vmatprep.subr.mxu0 0.0
        %4929 = vmatpush1.msra.mxu0 0.0
        %4930 = vmatprep.subr.mxu0 0.0
        %4931 = vmatpush1.msra.mxu0 0.0
        %4932 = vmatprep.subr.mxu0 0.0
        %4933 = vmatpush1.msra.mxu0 0.0
        %4934 = vmatprep.subr.mxu0 0.0
        %4935 = vmatpush1.msra.mxu0 0.0
        %4936 = vmatprep.subr.mxu0 0.0
        %4937 = vmatpush1.msra.mxu0 0.0
        %4938 = vmatprep.subr.mxu0 0.0
        %4939 = vmatpush1.msra.mxu0 0.0
        %4940 = vmatprep.subr.mxu0 0.0
        %4941 = vmatpush1.msra.mxu0 0.0
        %4942 = vmatprep.subr.mxu0 0.0
        %4943 = vmatpush1.msra.mxu0 0.0
        %4944 = vmatprep.subr.mxu0 0.0
        %4945 = vmatpush1.msra.mxu0 0.0
        %4946 = vmatprep.subr.mxu0 0.0
        %4947 = vmatpush1.msra.mxu0 0.0
        %4948 = vmatprep.subr.mxu0 0.0
        %4949 = vmatpush1.msra.mxu0 0.0
        %4950 = vmatprep.subr.mxu0 0.0
        %4951 = vmatpush1.msra.mxu0 0.0
        %4952 = vmatprep.subr.mxu0 0.0
        %4953 = vmatpush1.msra.mxu0 0.0
        %4954 = vmatprep.subr.mxu0 0.0
        %4955 = vmatpush1.msra.mxu0 0.0
        %4956 = vmatprep.subr.mxu0 0.0
        %4957 = vmatpush1.msra.mxu0 0.0
        %4958 = vmatprep.subr.mxu0 0.0
        %4959 = vmatpush1.msra.mxu0 0.0
        %4960 = vmatprep.subr.mxu0 0.0
        %4961 = vmatpush1.msra.mxu0 0.0
        %4962 = vmatprep.subr.mxu0 0.0
        %4963 = vmatpush1.msra.mxu0 0.0
        %4964 = vmatprep.subr.mxu0 0.0
        %4965 = vmatpush1.msra.mxu0 0.0
        %4966 = vmatprep.subr.mxu0 0.0
        %4967 = vmatpush1.msra.mxu0 0.0
        %4968 = vmatprep.subr.mxu0 0.0
        %4969 = vmatpush1.msra.mxu0 0.0
        %4970 = vmatprep.subr.mxu0 0.0
        %4971 = vmatpush1.msra.mxu0 0.0
        %4972 = vmatprep.subr.mxu0 0.0
        %4973 = vmatpush1.msra.mxu0 0.0
        %4974 = vmatprep.subr.mxu0 0.0
        %4975 = vmatpush1.msra.mxu0 0.0
        %4976 = vmatprep.mubr.f32.mxu0 0.0
        %4977 = vmatmul.mubr.f32.gmra.mrb[0].mxu0 %v4907
        %v4978 = vpop.f32.mrb[0].mxu0
        %v4979 = vadd.f32 0.0, %v4978
        %v4980 = vpop.f32.mrb[0].mxu0
        %4981 = vmatprep.mubr.f32.mxu0 0.0
        %4982 = vmatmul.mubr.f32.gmra.mrb[0].mxu0 %v4910
        %v4983 = vpop.f32.mrb[0].mxu0
        %v4984 = vadd.f32 0.0, %v4983
        %v4985 = vpop.f32.mrb[0].mxu0
        %4986 = vdwg.mxu0
        %4987 = vrot.lane.b32.xlu0 %v3579, 32
        %v4988 = vpop.permute.xlu0 %4987
        %4989 = vrot.lane.b32.xlu0 %v3584, 32
        %v4990 = vpop.permute.xlu0 %4989
        %4991 = vrot.lane.b32.xlu0 %v3677, 32
        %v4992 = vpop.permute.xlu0 %4991
        %4993 = vrot.lane.b32.xlu0 %v3682, 32
        %v4994 = vpop.permute.xlu0 %4993
        %v4995 = vsel %vm1663, %v4988, 0
        %v4997 = vsel %vm1663, %v4990, 0
        %v4999 = vsel %vm1663, %v4992, 0
        %v5001 = vsel %vm1663, %v4994, 0
        %5003 = vmatprep.subr.mxu0 0.0
        %5004 = vmatpush1.xpose.msra.mxu0 %v4999
        %5005 = vmatprep.subr.mxu0 0.0
        %5006 = vmatpush1.xpose.msra.mxu0 %v5001
        %5007 = vmatprep.subr.mxu0 0.0
        %5008 = vmatpush1.xpose.msra.mxu0 0.0
        %5009 = vmatprep.subr.mxu0 0.0
        %5010 = vmatpush1.xpose.msra.mxu0 0.0
        %5011 = vmatprep.subr.mxu0 0.0
        %5012 = vmatpush1.xpose.msra.mxu0 0.0
        %5013 = vmatprep.subr.mxu0 0.0
        %5014 = vmatpush1.xpose.msra.mxu0 0.0
        %5015 = vmatprep.subr.mxu0 0.0
        %5016 = vmatpush1.xpose.msra.mxu0 0.0
        %5017 = vmatprep.subr.mxu0 0.0
        %5018 = vmatpush1.xpose.msra.mxu0 0.0
        %5019 = vmatprep.subr.mxu0 0.0
        %5020 = vmatpush1.xpose.msra.mxu0 0.0
        %5021 = vmatprep.subr.mxu0 0.0
        %5022 = vmatpush1.xpose.msra.mxu0 0.0
        %5023 = vmatprep.subr.mxu0 0.0
        %5024 = vmatpush1.xpose.msra.mxu0 0.0
        %5025 = vmatprep.subr.mxu0 0.0
        %5026 = vmatpush1.xpose.msra.mxu0 0.0
        %5027 = vmatprep.subr.mxu0 0.0
        %5028 = vmatpush1.xpose.msra.mxu0 0.0
        %5029 = vmatprep.subr.mxu0 0.0
        %5030 = vmatpush1.xpose.msra.mxu0 0.0
        %5031 = vmatprep.subr.mxu0 0.0
        %5032 = vmatpush1.xpose.msra.mxu0 0.0
        %5033 = vmatprep.subr.mxu0 0.0
        %5034 = vmatpush1.xpose.msra.mxu0 0.0
        %5035 = vmatprep.subr.mxu0 0.0
        %5036 = vmatpush1.xpose.msra.mxu0 0.0
        %5037 = vmatprep.subr.mxu0 0.0
        %5038 = vmatpush1.xpose.msra.mxu0 0.0
        %5039 = vmatprep.subr.mxu0 0.0
        %5040 = vmatpush1.xpose.msra.mxu0 0.0
        %5041 = vmatprep.subr.mxu0 0.0
        %5042 = vmatpush1.xpose.msra.mxu0 0.0
        %5043 = vmatprep.subr.mxu0 0.0
        %5044 = vmatpush1.xpose.msra.mxu0 0.0
        %5045 = vmatprep.subr.mxu0 0.0
        %5046 = vmatpush1.xpose.msra.mxu0 0.0
        %5047 = vmatprep.subr.mxu0 0.0
        %5048 = vmatpush1.xpose.msra.mxu0 0.0
        %5049 = vmatprep.subr.mxu0 0.0
        %5050 = vmatpush1.xpose.msra.mxu0 0.0
        %5051 = vmatprep.subr.mxu0 0.0
        %5052 = vmatpush1.xpose.msra.mxu0 0.0
        %5053 = vmatprep.subr.mxu0 0.0
        %5054 = vmatpush1.xpose.msra.mxu0 0.0
        %5055 = vmatprep.subr.mxu0 0.0
        %5056 = vmatpush1.xpose.msra.mxu0 0.0
        %5057 = vmatprep.subr.mxu0 0.0
        %5058 = vmatpush1.xpose.msra.mxu0 0.0
        %5059 = vmatprep.subr.mxu0 0.0
        %5060 = vmatpush1.xpose.msra.mxu0 0.0
        %5061 = vmatprep.subr.mxu0 0.0
        %5062 = vmatpush1.xpose.msra.mxu0 0.0
        %5063 = vmatprep.subr.mxu0 0.0
        %5064 = vmatpush1.xpose.msra.mxu0 0.0
        %5065 = vmatprep.subr.mxu0 0.0
        %5066 = vmatpush1.xpose.msra.mxu0 0.0
        %5067 = vmatprep.mubr.f32.mxu0 0.0
        %5068 = vmatmul.mubr.f32.gmra.mrb[0].mxu0 %v4995
        %v5069 = vpop.f32.mrb[0].mxu0
        %v5070 = vadd.f32 0.0, %v5069
        %v5071 = vpop.f32.mrb[0].mxu0
        %5072 = vmatprep.mubr.f32.mxu0 0.0
        %5073 = vmatmul.mubr.f32.gmra.mrb[0].mxu0 %v4997
        %v5074 = vpop.f32.mrb[0].mxu0
        %v5075 = vadd.f32 0.0, %v5074
        %v5076 = vpop.f32.mrb[0].mxu0
        %5077 = vdwg.mxu0
        %v5078 = vmul.f32 %v5070, 0.25
        %v5079 = vmul.f32 %v5075, 0.25
        %v5080 = vsel %vm1663, %v5078, -inf
        %5081 = vmax.xlane.f32.xlu0 %v5080
        %v5082 = vpop.xlane.xlu0 %5081
        %v5083 = vsel %vm1663, %v5079, -inf
        %5084 = vmax.xlane.f32.xlu0 %v5083
        %v5085 = vpop.xlane.xlu0 %5084
        %v5086 = vsub.f32 %v5078, %v5082
        %v5087 = vsub.f32 %v5079, %v5085
        %v5088 = vmul.f32 %v5086, 1.442695
        %v5089 = vpow.pop %v5088
        %v5090 = vmul.f32 %v5087, 1.442695
        %v5091 = vpow.pop %v5090
        %v5092 = vsel %vm1663, %v5089, 0.0
        %5093 = vadd.xlane.f32.xlu0 %v5092
        %v5094 = vpop.xlane.xlu0 %5093
        %v5095 = vsel %vm1663, %v5091, 0.0
        %5096 = vadd.xlane.f32.xlu0 %v5095
        %v5097 = vpop.xlane.xlu0 %5096
        %v5098 = vrcp.pop %v5094
        %v5099 = vrcp.pop %v5097
        %v5100 = vmul.f32 %v5089, %v5098
        %v5101 = vmul.f32 %v5091, %v5099
        %5102 = vrot.lane.b32.xlu0 %v3775, 32
        %v5103 = vpop.permute.xlu0 %5102
        %5104 = vrot.lane.b32.xlu0 %v3780, 32
        %v5105 = vpop.permute.xlu0 %5104
        %v5109 = vsel %vm1663, %v5100, 0
        %v5112 = vsel %vm1663, %v5101, 0
        %5114 = vmatprep.subr.mxu0 0.0
        %5115 = vmatpush1.msra.mxu0 %v5103
        %5116 = vmatprep.subr.mxu0 0.0
        %5117 = vmatpush1.msra.mxu0 %v5105
        %5118 = vmatprep.subr.mxu0 0.0
        %5119 = vmatpush1.msra.mxu0 0.0
        %5120 = vmatprep.subr.mxu0 0.0
        %5121 = vmatpush1.msra.mxu0 0.0
        %5122 = vmatprep.subr.mxu0 0.0
        %5123 = vmatpush1.msra.mxu0 0.0
        %5124 = vmatprep.subr.mxu0 0.0
        %5125 = vmatpush1.msra.mxu0 0.0
        %5126 = vmatprep.subr.mxu0 0.0
        %5127 = vmatpush1.msra.mxu0 0.0
        %5128 = vmatprep.subr.mxu0 0.0
        %5129 = vmatpush1.msra.mxu0 0.0
        %5130 = vmatprep.subr.mxu0 0.0
        %5131 = vmatpush1.msra.mxu0 0.0
        %5132 = vmatprep.subr.mxu0 0.0
        %5133 = vmatpush1.msra.mxu0 0.0
        %5134 = vmatprep.subr.mxu0 0.0
        %5135 = vmatpush1.msra.mxu0 0.0
        %5136 = vmatprep.subr.mxu0 0.0
        %5137 = vmatpush1.msra.mxu0 0.0
        %5138 = vmatprep.subr.mxu0 0.0
        %5139 = vmatpush1.msra.mxu0 0.0
        %5140 = vmatprep.subr.mxu0 0.0
        %5141 = vmatpush1.msra.mxu0 0.0
        %5142 = vmatprep.subr.mxu0 0.0
        %5143 = vmatpush1.msra.mxu0 0.0
        %5144 = vmatprep.subr.mxu0 0.0
        %5145 = vmatpush1.msra.mxu0 0.0
        %5146 = vmatprep.subr.mxu0 0.0
        %5147 = vmatpush1.msra.mxu0 0.0
        %5148 = vmatprep.subr.mxu0 0.0
        %5149 = vmatpush1.msra.mxu0 0.0
        %5150 = vmatprep.subr.mxu0 0.0
        %5151 = vmatpush1.msra.mxu0 0.0
        %5152 = vmatprep.subr.mxu0 0.0
        %5153 = vmatpush1.msra.mxu0 0.0
        %5154 = vmatprep.subr.mxu0 0.0
        %5155 = vmatpush1.msra.mxu0 0.0
        %5156 = vmatprep.subr.mxu0 0.0
        %5157 = vmatpush1.msra.mxu0 0.0
        %5158 = vmatprep.subr.mxu0 0.0
        %5159 = vmatpush1.msra.mxu0 0.0
        %5160 = vmatprep.subr.mxu0 0.0
        %5161 = vmatpush1.msra.mxu0 0.0
        %5162 = vmatprep.subr.mxu0 0.0
        %5163 = vmatpush1.msra.mxu0 0.0
        %5164 = vmatprep.subr.mxu0 0.0
        %5165 = vmatpush1.msra.mxu0 0.0
        %5166 = vmatprep.subr.mxu0 0.0
        %5167 = vmatpush1.msra.mxu0 0.0
        %5168 = vmatprep.subr.mxu0 0.0
        %5169 = vmatpush1.msra.mxu0 0.0
        %5170 = vmatprep.subr.mxu0 0.0
        %5171 = vmatpush1.msra.mxu0 0.0
        %5172 = vmatprep.subr.mxu0 0.0
        %5173 = vmatpush1.msra.mxu0 0.0
        %5174 = vmatprep.subr.mxu0 0.0
        %5175 = vmatpush1.msra.mxu0 0.0
        %5176 = vmatprep.subr.mxu0 0.0
        %5177 = vmatpush1.msra.mxu0 0.0
        %5178 = vmatprep.mubr.f32.mxu0 0.0
        %5179 = vmatmul.mubr.f32.gmra.mrb[0].mxu0 %v5109
        %v5180 = vpop.f32.mrb[0].mxu0
        %v5181 = vadd.f32 0.0, %v5180
        %v5182 = vpop.f32.mrb[0].mxu0
        %5183 = vmatprep.mubr.f32.mxu0 0.0
        %5184 = vmatmul.mubr.f32.gmra.mrb[0].mxu0 %v5112
        %v5185 = vpop.f32.mrb[0].mxu0
        %v5186 = vadd.f32 0.0, %v5185
        %v5187 = vpop.f32.mrb[0].mxu0
        %5188 = vdwg.mxu0
        %5189 = vrot.lane.b32.xlu0 %v3579, 16
        %v5190 = vpop.permute.xlu0 %5189
        %5191 = vrot.lane.b32.xlu0 %v3584, 16
        %v5192 = vpop.permute.xlu0 %5191
        %5193 = vrot.lane.b32.xlu0 %v3677, 16
        %v5194 = vpop.permute.xlu0 %5193
        %5195 = vrot.lane.b32.xlu0 %v3682, 16
        %v5196 = vpop.permute.xlu0 %5195
        %v5197 = vsel %vm1663, %v5190, 0
        %v5199 = vsel %vm1663, %v5192, 0
        %v5201 = vsel %vm1663, %v5194, 0
        %v5203 = vsel %vm1663, %v5196, 0
        %5205 = vmatprep.subr.mxu0 0.0
        %5206 = vmatpush1.xpose.msra.mxu0 %v5201
        %5207 = vmatprep.subr.mxu0 0.0
        %5208 = vmatpush1.xpose.msra.mxu0 %v5203
        %5209 = vmatprep.subr.mxu0 0.0
        %5210 = vmatpush1.xpose.msra.mxu0 0.0
        %5211 = vmatprep.subr.mxu0 0.0
        %5212 = vmatpush1.xpose.msra.mxu0 0.0
        %5213 = vmatprep.subr.mxu0 0.0
        %5214 = vmatpush1.xpose.msra.mxu0 0.0
        %5215 = vmatprep.subr.mxu0 0.0
        %5216 = vmatpush1.xpose.msra.mxu0 0.0
        %5217 = vmatprep.subr.mxu0 0.0
        %5218 = vmatpush1.xpose.msra.mxu0 0.0
        %5219 = vmatprep.subr.mxu0 0.0
        %5220 = vmatpush1.xpose.msra.mxu0 0.0
        %5221 = vmatprep.subr.mxu0 0.0
        %5222 = vmatpush1.xpose.msra.mxu0 0.0
        %5223 = vmatprep.subr.mxu0 0.0
        %5224 = vmatpush1.xpose.msra.mxu0 0.0
        %5225 = vmatprep.subr.mxu0 0.0
        %5226 = vmatpush1.xpose.msra.mxu0 0.0
        %5227 = vmatprep.subr.mxu0 0.0
        %5228 = vmatpush1.xpose.msra.mxu0 0.0
        %5229 = vmatprep.subr.mxu0 0.0
        %5230 = vmatpush1.xpose.msra.mxu0 0.0
        %5231 = vmatprep.subr.mxu0 0.0
        %5232 = vmatpush1.xpose.msra.mxu0 0.0
        %5233 = vmatprep.subr.mxu0 0.0
        %5234 = vmatpush1.xpose.msra.mxu0 0.0
        %5235 = vmatprep.subr.mxu0 0.0
        %5236 = vmatpush1.xpose.msra.mxu0 0.0
        %5237 = vmatprep.subr.mxu0 0.0
        %5238 = vmatpush1.xpose.msra.mxu0 0.0
        %5239 = vmatprep.subr.mxu0 0.0
        %5240 = vmatpush1.xpose.msra.mxu0 0.0
        %5241 = vmatprep.subr.mxu0 0.0
        %5242 = vmatpush1.xpose.msra.mxu0 0.0
        %5243 = vmatprep.subr.mxu0 0.0
        %5244 = vmatpush1.xpose.msra.mxu0 0.0
        %5245 = vmatprep.subr.mxu0 0.0
        %5246 = vmatpush1.xpose.msra.mxu0 0.0
        %5247 = vmatprep.subr.mxu0 0.0
        %5248 = vmatpush1.xpose.msra.mxu0 0.0
        %5249 = vmatprep.subr.mxu0 0.0
        %5250 = vmatpush1.xpose.msra.mxu0 0.0
        %5251 = vmatprep.subr.mxu0 0.0
        %5252 = vmatpush1.xpose.msra.mxu0 0.0
        %5253 = vmatprep.subr.mxu0 0.0
        %5254 = vmatpush1.xpose.msra.mxu0 0.0
        %5255 = vmatprep.subr.mxu0 0.0
        %5256 = vmatpush1.xpose.msra.mxu0 0.0
        %5257 = vmatprep.subr.mxu0 0.0
        %5258 = vmatpush1.xpose.msra.mxu0 0.0
        %5259 = vmatprep.subr.mxu0 0.0
        %5260 = vmatpush1.xpose.msra.mxu0 0.0
        %5261 = vmatprep.subr.mxu0 0.0
        %5262 = vmatpush1.xpose.msra.mxu0 0.0
        %5263 = vmatprep.subr.mxu0 0.0
        %5264 = vmatpush1.xpose.msra.mxu0 0.0
        %5265 = vmatprep.subr.mxu0 0.0
        %5266 = vmatpush1.xpose.msra.mxu0 0.0
        %5267 = vmatprep.subr.mxu0 0.0
        %5268 = vmatpush1.xpose.msra.mxu0 0.0
        %5269 = vmatprep.mubr.f32.mxu0 0.0
        %5270 = vmatmul.mubr.f32.gmra.mrb[0].mxu0 %v5197
        %v5271 = vpop.f32.mrb[0].mxu0
        %v5272 = vadd.f32 0.0, %v5271
        %v5273 = vpop.f32.mrb[0].mxu0
        %5274 = vmatprep.mubr.f32.mxu0 0.0
        %5275 = vmatmul.mubr.f32.gmra.mrb[0].mxu0 %v5199
        %v5276 = vpop.f32.mrb[0].mxu0
        %v5277 = vadd.f32 0.0, %v5276
        %v5278 = vpop.f32.mrb[0].mxu0
        %5279 = vdwg.mxu0
        %v5280 = vmul.f32 %v5272, 0.25
        %v5281 = vmul.f32 %v5277, 0.25
        %v5282 = vsel %vm1663, %v5280, -inf
        %5283 = vmax.xlane.f32.xlu0 %v5282
        %v5284 = vpop.xlane.xlu0 %5283
        %v5285 = vsel %vm1663, %v5281, -inf
        %5286 = vmax.xlane.f32.xlu0 %v5285
        %v5287 = vpop.xlane.xlu0 %5286
        %v5288 = vsub.f32 %v5280, %v5284
        %v5289 = vsub.f32 %v5281, %v5287
        %v5290 = vmul.f32 %v5288, 1.442695
        %v5291 = vpow.pop %v5290
        %v5292 = vmul.f32 %v5289, 1.442695
        %v5293 = vpow.pop %v5292
        %v5294 = vsel %vm1663, %v5291, 0.0
        %5295 = vadd.xlane.f32.xlu0 %v5294
        %v5296 = vpop.xlane.xlu0 %5295
        %v5297 = vsel %vm1663, %v5293, 0.0
        %5298 = vadd.xlane.f32.xlu0 %v5297
        %v5299 = vpop.xlane.xlu0 %5298
        %v5300 = vrcp.pop %v5296
        %v5301 = vrcp.pop %v5299
        %v5302 = vmul.f32 %v5291, %v5300
        %v5303 = vmul.f32 %v5293, %v5301
        %5304 = vrot.lane.b32.xlu0 %v3775, 16
        %v5305 = vpop.permute.xlu0 %5304
        %5306 = vrot.lane.b32.xlu0 %v3780, 16
        %v5307 = vpop.permute.xlu0 %5306
        %v5311 = vsel %vm1663, %v5302, 0
        %v5314 = vsel %vm1663, %v5303, 0
        %5316 = vmatprep.subr.mxu0 0.0
        %5317 = vmatpush1.msra.mxu0 %v5305
        %5318 = vmatprep.subr.mxu0 0.0
        %5319 = vmatpush1.msra.mxu0 %v5307
        %5320 = vmatprep.subr.mxu0 0.0
        %5321 = vmatpush1.msra.mxu0 0.0
        %5322 = vmatprep.subr.mxu0 0.0
        %5323 = vmatpush1.msra.mxu0 0.0
        %5324 = vmatprep.subr.mxu0 0.0
        %5325 = vmatpush1.msra.mxu0 0.0
        %5326 = vmatprep.subr.mxu0 0.0
        %5327 = vmatpush1.msra.mxu0 0.0
        %5328 = vmatprep.subr.mxu0 0.0
        %5329 = vmatpush1.msra.mxu0 0.0
        %5330 = vmatprep.subr.mxu0 0.0
        %5331 = vmatpush1.msra.mxu0 0.0
        %5332 = vmatprep.subr.mxu0 0.0
        %5333 = vmatpush1.msra.mxu0 0.0
        %5334 = vmatprep.subr.mxu0 0.0
        %5335 = vmatpush1.msra.mxu0 0.0
        %5336 = vmatprep.subr.mxu0 0.0
        %5337 = vmatpush1.msra.mxu0 0.0
        %5338 = vmatprep.subr.mxu0 0.0
        %5339 = vmatpush1.msra.mxu0 0.0
        %5340 = vmatprep.subr.mxu0 0.0
        %5341 = vmatpush1.msra.mxu0 0.0
        %5342 = vmatprep.subr.mxu0 0.0
        %5343 = vmatpush1.msra.mxu0 0.0
        %5344 = vmatprep.subr.mxu0 0.0
        %5345 = vmatpush1.msra.mxu0 0.0
        %5346 = vmatprep.subr.mxu0 0.0
        %5347 = vmatpush1.msra.mxu0 0.0
        %5348 = vmatprep.subr.mxu0 0.0
        %5349 = vmatpush1.msra.mxu0 0.0
        %5350 = vmatprep.subr.mxu0 0.0
        %5351 = vmatpush1.msra.mxu0 0.0
        %5352 = vmatprep.subr.mxu0 0.0
        %5353 = vmatpush1.msra.mxu0 0.0
        %5354 = vmatprep.subr.mxu0 0.0
        %5355 = vmatpush1.msra.mxu0 0.0
        %5356 = vmatprep.subr.mxu0 0.0
        %5357 = vmatpush1.msra.mxu0 0.0
        %5358 = vmatprep.subr.mxu0 0.0
        %5359 = vmatpush1.msra.mxu0 0.0
        %5360 = vmatprep.subr.mxu0 0.0
        %5361 = vmatpush1.msra.mxu0 0.0
        %5362 = vmatprep.subr.mxu0 0.0
        %5363 = vmatpush1.msra.mxu0 0.0
        %5364 = vmatprep.subr.mxu0 0.0
        %5365 = vmatpush1.msra.mxu0 0.0
        %5366 = vmatprep.subr.mxu0 0.0
        %5367 = vmatpush1.msra.mxu0 0.0
        %5368 = vmatprep.subr.mxu0 0.0
        %5369 = vmatpush1.msra.mxu0 0.0
        %5370 = vmatprep.subr.mxu0 0.0
        %5371 = vmatpush1.msra.mxu0 0.0
        %5372 = vmatprep.subr.mxu0 0.0
        %5373 = vmatpush1.msra.mxu0 0.0
        %5374 = vmatprep.subr.mxu0 0.0
        %5375 = vmatpush1.msra.mxu0 0.0
        %5376 = vmatprep.subr.mxu0 0.0
        %5377 = vmatpush1.msra.mxu0 0.0
        %5378 = vmatprep.subr.mxu0 0.0
        %5379 = vmatpush1.msra.mxu0 0.0
        %5380 = vmatprep.mubr.f32.mxu0 0.0
        %5381 = vmatmul.mubr.f32.gmra.mrb[0].mxu0 %v5311
        %v5382 = vpop.f32.mrb[0].mxu0
        %v5383 = vadd.f32 0.0, %v5382
        %v5384 = vpop.f32.mrb[0].mxu0
        %5385 = vmatprep.mubr.f32.mxu0 0.0
        %5386 = vmatmul.mubr.f32.gmra.mrb[0].mxu0 %v5314
        %v5387 = vpop.f32.mrb[0].mxu0
        %v5388 = vadd.f32 0.0, %v5387
        %v5389 = vpop.f32.mrb[0].mxu0
        %5390 = vdwg.mxu0
        %5393 = vrot.lane.b32.xlu0 %v4171, 16
        %v5394 = vpop.permute.xlu0 %5393
        %5395 = vrot.lane.b32.xlu0 %v4176, 16
        %v5396 = vpop.permute.xlu0 %5395
        %5401 = vrot.lane.b32.xlu0 %v4373, 32
        %v5402 = vpop.permute.xlu0 %5401
        %5403 = vrot.lane.b32.xlu0 %v4378, 32
        %v5404 = vpop.permute.xlu0 %5403
        %5409 = vrot.lane.b32.xlu0 %v4575, 48
        %v5410 = vpop.permute.xlu0 %5409
        %5411 = vrot.lane.b32.xlu0 %v4580, 48
        %v5412 = vpop.permute.xlu0 %5411
        %5417 = vrot.lane.b32.xlu0 %v4777, 64
        %v5418 = vpop.permute.xlu0 %5417
        %5419 = vrot.lane.b32.xlu0 %v4782, 64
        %v5420 = vpop.permute.xlu0 %5419
        %5425 = vrot.lane.b32.xlu0 %v4979, 80
        %v5426 = vpop.permute.xlu0 %5425
        %5427 = vrot.lane.b32.xlu0 %v4984, 80
        %v5428 = vpop.permute.xlu0 %5427
        %5433 = vrot.lane.b32.xlu0 %v5181, 96
        %v5434 = vpop.permute.xlu0 %5433
        %5435 = vrot.lane.b32.xlu0 %v5186, 96
        %v5436 = vpop.permute.xlu0 %5435
        %5441 = vrot.lane.b32.xlu0 %v5383, 112
        %v5442 = vpop.permute.xlu0 %5441
        %5443 = vrot.lane.b32.xlu0 %v5388, 112
        %v5444 = vpop.permute.xlu0 %5443
        %v5447 = vsel %vm1663, %v3967, %v5394
        %v5448 = vsel %vm1663, %v3972, %v5396
        %v5449 = vsel %vm3330, %v5447, %v5402
        %v5450 = vsel %vm3330, %v5448, %v5404
        %v5451 = vsel %vm3333, %v5449, %v5410
        %v5452 = vsel %vm3333, %v5450, %v5412
        %v5453 = vsel %vm3336, %v5451, %v5418
        %v5454 = vsel %vm3336, %v5452, %v5420
        %v5455 = vsel %vm3339, %v5453, %v5426
        %v5456 = vsel %vm3339, %v5454, %v5428
        %v5457 = vsel %vm3342, %v5455, %v5434
        %v5458 = vsel %vm3342, %v5456, %v5436
        %v5459 = vsel %vm3345, %v5457, %v5442
        %v5460 = vsel %vm3345, %v5458, %v5444
        %v5461 = vld [vmem:[#allocation32] sm:$0xff]
        %v5462 = vld [vmem:[#allocation32 + $0x8] sm:$0xff]
        %v5463 = vld [vmem:[#allocation32 + $0x10] sm:$0xff]
        %v5464 = vld [vmem:[#allocation32 + $0x18] sm:$0xff]
        %v5465 = vld [vmem:[#allocation32 + $0x20] sm:$0xff]
        %v5466 = vld [vmem:[#allocation32 + $0x28] sm:$0xff]
        %v5467 = vld [vmem:[#allocation32 + $0x30] sm:$0xff]
        %v5468 = vld [vmem:[#allocation32 + $0x38] sm:$0xff]
        %v5469 = vld [vmem:[#allocation32 + $0x40] sm:$0xff]
        %v5470 = vld [vmem:[#allocation32 + $0x48] sm:$0xff]
        %v5471 = vld [vmem:[#allocation32 + $0x50] sm:$0xff]
        %v5472 = vld [vmem:[#allocation32 + $0x58] sm:$0xff]
        %v5473 = vld [vmem:[#allocation32 + $0x60] sm:$0xff]
        %v5474 = vld [vmem:[#allocation32 + $0x68] sm:$0xff]
        %v5475 = vld [vmem:[#allocation32 + $0x70] sm:$0xff]
        %v5476 = vld [vmem:[#allocation32 + $0x78] sm:$0xff]
        %v5477 = vld [vmem:[#allocation34] sm:$0x1]
        %v5479 = vlaneseq
        %v5480 = vshrl.u32 %v5479, 7
        %v5481 = vsub.s32 0, %v5480
        %v5482 = vrot.slane %v5477, %v5481
        %5484 = vmatprep.subr.mxu0 0.0
        %5485 = vmatpush1.msra.mxu0 %v5461
        %5486 = vmatprep.subr.mxu0 0.0
        %5487 = vmatpush1.msra.mxu0 %v5462
        %5488 = vmatprep.subr.mxu0 0.0
        %5489 = vmatpush1.msra.mxu0 %v5463
        %5490 = vmatprep.subr.mxu0 0.0
        %5491 = vmatpush1.msra.mxu0 %v5464
        %5492 = vmatprep.subr.mxu0 0.0
        %5493 = vmatpush1.msra.mxu0 %v5465
        %5494 = vmatprep.subr.mxu0 0.0
        %5495 = vmatpush1.msra.mxu0 %v5466
        %5496 = vmatprep.subr.mxu0 0.0
        %5497 = vmatpush1.msra.mxu0 %v5467
        %5498 = vmatprep.subr.mxu0 0.0
        %5499 = vmatpush1.msra.mxu0 %v5468
        %5500 = vmatprep.subr.mxu0 0.0
        %5501 = vmatpush1.msra.mxu0 %v5469
        %5502 = vmatprep.subr.mxu0 0.0
        %5503 = vmatpush1.msra.mxu0 %v5470
        %5504 = vmatprep.subr.mxu0 0.0
        %5505 = vmatpush1.msra.mxu0 %v5471
        %5506 = vmatprep.subr.mxu0 0.0
        %5507 = vmatpush1.msra.mxu0 %v5472
        %5508 = vmatprep.subr.mxu0 0.0
        %5509 = vmatpush1.msra.mxu0 %v5473
        %5510 = vmatprep.subr.mxu0 0.0
        %5511 = vmatpush1.msra.mxu0 %v5474
        %5512 = vmatprep.subr.mxu0 0.0
        %5513 = vmatpush1.msra.mxu0 %v5475
        %5514 = vmatprep.subr.mxu0 0.0
        %5515 = vmatpush1.msra.mxu0 %v5476
        %5516 = vmatprep.subr.mxu0 0.0
        %5517 = vmatpush1.msra.mxu0 0.0
        %5518 = vmatprep.subr.mxu0 0.0
        %5519 = vmatpush1.msra.mxu0 0.0
        %5520 = vmatprep.subr.mxu0 0.0
        %5521 = vmatpush1.msra.mxu0 0.0
        %5522 = vmatprep.subr.mxu0 0.0
        %5523 = vmatpush1.msra.mxu0 0.0
        %5524 = vmatprep.subr.mxu0 0.0
        %5525 = vmatpush1.msra.mxu0 0.0
        %5526 = vmatprep.subr.mxu0 0.0
        %5527 = vmatpush1.msra.mxu0 0.0
        %5528 = vmatprep.subr.mxu0 0.0
        %5529 = vmatpush1.msra.mxu0 0.0
        %5530 = vmatprep.subr.mxu0 0.0
        %5531 = vmatpush1.msra.mxu0 0.0
        %5532 = vmatprep.subr.mxu0 0.0
        %5533 = vmatpush1.msra.mxu0 0.0
        %5534 = vmatprep.subr.mxu0 0.0
        %5535 = vmatpush1.msra.mxu0 0.0
        %5536 = vmatprep.subr.mxu0 0.0
        %5537 = vmatpush1.msra.mxu0 0.0
        %5538 = vmatprep.subr.mxu0 0.0
        %5539 = vmatpush1.msra.mxu0 0.0
        %5540 = vmatprep.subr.mxu0 0.0
        %5541 = vmatpush1.msra.mxu0 0.0
        %5542 = vmatprep.subr.mxu0 0.0
        %5543 = vmatpush1.msra.mxu0 0.0
        %5544 = vmatprep.subr.mxu0 0.0
        %5545 = vmatpush1.msra.mxu0 0.0
        %5546 = vmatprep.subr.mxu0 0.0
        %5547 = vmatpush1.msra.mxu0 0.0
        %5548 = vmatprep.mubr.f32.mxu0 0.0
        %5549 = vmatmul.mubr.f32.gmra.mrb[0].mxu0 %v5459
        %v5550 = vpop.f32.mrb[0].mxu0
        %v5551 = vadd.f32 %v5482, %v5550
        %v5552 = vpop.f32.mrb[0].mxu0
        %5553 = vmatprep.mubr.f32.mxu0 0.0
        %5554 = vmatmul.mubr.f32.gmra.mrb[0].mxu0 %v5460
        %v5555 = vpop.f32.mrb[0].mxu0
        %v5556 = vadd.f32 %v5482, %v5555
        %v5557 = vpop.f32.mrb[0].mxu0
        %5558 = vdwg.mxu0
        %v5559 = vadd.f32 %v3487, %v5551
        %v5560 = vadd.f32 %v3488, %v5556
        %v5561 = vld [vmem:[#allocation35] sm:$0x1]
        %v5562 = vld [vmem:[#allocation37] sm:$0x1]
        %5563 = vadd.xlane.f32.xlu0 %v5559
        %v5564 = vpop.xlane.xlu0 %5563
        %5565 = vadd.xlane.f32.xlu0 %v5560
        %v5566 = vpop.xlane.xlu0 %5565
        %v5567 = vmul.f32 %v5564, %v3454
        %v5568 = vmul.f32 %v5566, %v3454
        %v5569 = vsub.f32 %v5559, %v5567
        %v5570 = vsub.f32 %v5560, %v5568
        %v5571 = vmul.f32 %v5569, %v5569
        %v5572 = vmul.f32 %v5570, %v5570
        %5573 = vadd.xlane.f32.xlu0 %v5571
        %v5574 = vpop.xlane.xlu0 %5573
        %5575 = vadd.xlane.f32.xlu0 %v5572
        %v5576 = vpop.xlane.xlu0 %5575
        %v5577 = vmul.f32 %v5574, %v3454
        %v5578 = vmul.f32 %v5576, %v3454
        %v5579 = vadd.f32 %v5577, 1e-05
        %v5580 = vadd.f32 %v5578, 1e-05
        %v5581 = vrsqrt.pop %v5579
        %v5582 = vrsqrt.pop %v5580
        %v5583 = vmul.f32 %v5569, %v5581
        %v5584 = vmul.f32 %v5570, %v5582
        %v5586 = vlaneseq
        %v5587 = vshrl.u32 %v5586, 7
        %v5588 = vsub.s32 0, %v5587
        %v5589 = vrot.slane %v5561, %v5588
        %v5591 = vmul.f32 %v5583, %v5589
        %v5592 = vmul.f32 %v5584, %v5589
        %v5594 = vlaneseq
        %v5595 = vshrl.u32 %v5594, 7
        %v5596 = vsub.s32 0, %v5595
        %v5597 = vrot.slane %v5562, %v5596
        %v5599 = vadd.f32 %v5591, %v5597
        %v5600 = vadd.f32 %v5592, %v5597
        %v5601 = vld [vmem:[#allocation38] sm:$0xff]
        %v5602 = vld [vmem:[#allocation38 + $0x8] sm:$0xff]
        %v5603 = vld [vmem:[#allocation38 + $0x10] sm:$0xff]
        %v5604 = vld [vmem:[#allocation38 + $0x18] sm:$0xff]
        %v5605 = vld [vmem:[#allocation38 + $0x20] sm:$0xff]
        %v5606 = vld [vmem:[#allocation38 + $0x28] sm:$0xff]
        %v5607 = vld [vmem:[#allocation38 + $0x30] sm:$0xff]
        %v5608 = vld [vmem:[#allocation38 + $0x38] sm:$0xff]
        %v5609 = vld [vmem:[#allocation38 + $0x40] sm:$0xff]
        %v5610 = vld [vmem:[#allocation38 + $0x48] sm:$0xff]
        %v5611 = vld [vmem:[#allocation38 + $0x50] sm:$0xff]
        %v5612 = vld [vmem:[#allocation38 + $0x58] sm:$0xff]
        %v5613 = vld [vmem:[#allocation38 + $0x60] sm:$0xff]
        %v5614 = vld [vmem:[#allocation38 + $0x68] sm:$0xff]
        %v5615 = vld [vmem:[#allocation38 + $0x70] sm:$0xff]
        %v5616 = vld [vmem:[#allocation38 + $0x78] sm:$0xff]
        %v5617 = vld [vmem:[#allocation38 + $0x80] sm:$0xff]
        %v5618 = vld [vmem:[#allocation38 + $0x88] sm:$0xff]
        %v5619 = vld [vmem:[#allocation38 + $0x90] sm:$0xff]
        %v5620 = vld [vmem:[#allocation38 + $0x98] sm:$0xff]
        %v5621 = vld [vmem:[#allocation38 + $0xa0] sm:$0xff]
        %v5622 = vld [vmem:[#allocation38 + $0xa8] sm:$0xff]
        %v5623 = vld [vmem:[#allocation38 + $0xb0] sm:$0xff]
        %v5624 = vld [vmem:[#allocation38 + $0xb8] sm:$0xff]
        %v5625 = vld [vmem:[#allocation38 + $0xc0] sm:$0xff]
        %v5626 = vld [vmem:[#allocation38 + $0xc8] sm:$0xff]
        %v5627 = vld [vmem:[#allocation38 + $0xd0] sm:$0xff]
        %v5628 = vld [vmem:[#allocation38 + $0xd8] sm:$0xff]
        %v5629 = vld [vmem:[#allocation38 + $0xe0] sm:$0xff]
        %v5630 = vld [vmem:[#allocation38 + $0xe8] sm:$0xff]
        %v5631 = vld [vmem:[#allocation38 + $0xf0] sm:$0xff]
        %v5632 = vld [vmem:[#allocation38 + $0xf8] sm:$0xff]
        %v5633 = vld [vmem:[#allocation40] sm:$0x3]
        %v5635 = vlaneseq
        %v5636 = vshrl.u32 %v5635, 7
        %v5637 = vsub.s32 0, %v5636
        %v5638 = vrot.slane %v5633, %v5637
        %v5639 = vlaneseq
        %v5640 = vshrl.u32 %v5639, 7
        %v5641 = vsub.s32 1, %v5640
        %v5642 = vrot.slane %v5633, %v5641
        %5645 = vmatprep.subr.mxu0 %v5602
        %5646 = vmatpush1.msra.mxu0 %v5601
        %5647 = vmatprep.subr.mxu0 %v5604
        %5648 = vmatpush1.msra.mxu0 %v5603
        %5649 = vmatprep.subr.mxu0 %v5606
        %5650 = vmatpush1.msra.mxu0 %v5605
        %5651 = vmatprep.subr.mxu0 %v5608
        %5652 = vmatpush1.msra.mxu0 %v5607
        %5653 = vmatprep.subr.mxu0 %v5610
        %5654 = vmatpush1.msra.mxu0 %v5609
        %5655 = vmatprep.subr.mxu0 %v5612
        %5656 = vmatpush1.msra.mxu0 %v5611
        %5657 = vmatprep.subr.mxu0 %v5614
        %5658 = vmatpush1.msra.mxu0 %v5613
        %5659 = vmatprep.subr.mxu0 %v5616
        %5660 = vmatpush1.msra.mxu0 %v5615
        %5661 = vmatprep.subr.mxu0 %v5618
        %5662 = vmatpush1.msra.mxu0 %v5617
        %5663 = vmatprep.subr.mxu0 %v5620
        %5664 = vmatpush1.msra.mxu0 %v5619
        %5665 = vmatprep.subr.mxu0 %v5622
        %5666 = vmatpush1.msra.mxu0 %v5621
        %5667 = vmatprep.subr.mxu0 %v5624
        %5668 = vmatpush1.msra.mxu0 %v5623
        %5669 = vmatprep.subr.mxu0 %v5626
        %5670 = vmatpush1.msra.mxu0 %v5625
        %5671 = vmatprep.subr.mxu0 %v5628
        %5672 = vmatpush1.msra.mxu0 %v5627
        %5673 = vmatprep.subr.mxu0 %v5630
        %5674 = vmatpush1.msra.mxu0 %v5629
        %5675 = vmatprep.subr.mxu0 %v5632
        %5676 = vmatpush1.msra.mxu0 %v5631
        %5677 = vmatprep.subr.mxu0 0.0
        %5678 = vmatpush1.msra.mxu0 0.0
        %5679 = vmatprep.subr.mxu0 0.0
        %5680 = vmatpush1.msra.mxu0 0.0
        %5681 = vmatprep.subr.mxu0 0.0
        %5682 = vmatpush1.msra.mxu0 0.0
        %5683 = vmatprep.subr.mxu0 0.0
        %5684 = vmatpush1.msra.mxu0 0.0
        %5685 = vmatprep.subr.mxu0 0.0
        %5686 = vmatpush1.msra.mxu0 0.0
        %5687 = vmatprep.subr.mxu0 0.0
        %5688 = vmatpush1.msra.mxu0 0.0
        %5689 = vmatprep.subr.mxu0 0.0
        %5690 = vmatpush1.msra.mxu0 0.0
        %5691 = vmatprep.subr.mxu0 0.0
        %5692 = vmatpush1.msra.mxu0 0.0
        %5693 = vmatprep.subr.mxu0 0.0
        %5694 = vmatpush1.msra.mxu0 0.0
        %5695 = vmatprep.subr.mxu0 0.0
        %5696 = vmatpush1.msra.mxu0 0.0
        %5697 = vmatprep.subr.mxu0 0.0
        %5698 = vmatpush1.msra.mxu0 0.0
        %5699 = vmatprep.subr.mxu0 0.0
        %5700 = vmatpush1.msra.mxu0 0.0
        %5701 = vmatprep.subr.mxu0 0.0
        %5702 = vmatpush1.msra.mxu0 0.0
        %5703 = vmatprep.subr.mxu0 0.0
        %5704 = vmatpush1.msra.mxu0 0.0
        %5705 = vmatprep.subr.mxu0 0.0
        %5706 = vmatpush1.msra.mxu0 0.0
        %5707 = vmatprep.subr.mxu0 0.0
        %5708 = vmatpush1.msra.mxu0 0.0
        %5709 = vmatprep.mubr.f32.mxu0 0.0
        %5710 = vmatmul.mubr.f32.gmra.mrb[0].mxu0 %v5599
        %v5711 = vpop.f32.mrb[0].mxu0
        %v5712 = vadd.f32 %v5638, %v5711
        %v5713 = vpop.f32.mrb[0].mxu0
        %v5714 = vadd.f32 %v5642, %v5713
        %5715 = vmatprep.mubr.f32.mxu0 0.0
        %5716 = vmatmul.mubr.f32.gmra.mrb[0].mxu0 %v5600
        %v5717 = vpop.f32.mrb[0].mxu0
        %v5718 = vadd.f32 %v5638, %v5717
        %v5719 = vpop.f32.mrb[0].mxu0
        %v5720 = vadd.f32 %v5642, %v5719
        %5721 = vdwg.mxu0
        %v5722 = vmax.f32 %v5712, 0.0
        %v5723 = vmax.f32 %v5714, 0.0
        %v5724 = vmax.f32 %v5718, 0.0
        %v5725 = vmax.f32 %v5720, 0.0
        %v5726 = vld [vmem:[#allocation41] sm:$0xff]
        %v5727 = vld [vmem:[#allocation41 + $0x8] sm:$0xff]
        %v5728 = vld [vmem:[#allocation41 + $0x10] sm:$0xff]
        %v5729 = vld [vmem:[#allocation41 + $0x18] sm:$0xff]
        %v5730 = vld [vmem:[#allocation41 + $0x20] sm:$0xff]
        %v5731 = vld [vmem:[#allocation41 + $0x28] sm:$0xff]
        %v5732 = vld [vmem:[#allocation41 + $0x30] sm:$0xff]
        %v5733 = vld [vmem:[#allocation41 + $0x38] sm:$0xff]
        %v5734 = vld [vmem:[#allocation41 + $0x40] sm:$0xff]
        %v5735 = vld [vmem:[#allocation41 + $0x48] sm:$0xff]
        %v5736 = vld [vmem:[#allocation41 + $0x50] sm:$0xff]
        %v5737 = vld [vmem:[#allocation41 + $0x58] sm:$0xff]
        %v5738 = vld [vmem:[#allocation41 + $0x60] sm:$0xff]
        %v5739 = vld [vmem:[#allocation41 + $0x68] sm:$0xff]
        %v5740 = vld [vmem:[#allocation41 + $0x70] sm:$0xff]
        %v5741 = vld [vmem:[#allocation41 + $0x78] sm:$0xff]
        %v5742 = vld [vmem:[#allocation41 + $0x80] sm:$0xff]
        %v5743 = vld [vmem:[#allocation41 + $0x88] sm:$0xff]
        %v5744 = vld [vmem:[#allocation41 + $0x90] sm:$0xff]
        %v5745 = vld [vmem:[#allocation41 + $0x98] sm:$0xff]
        %v5746 = vld [vmem:[#allocation41 + $0xa0] sm:$0xff]
        %v5747 = vld [vmem:[#allocation41 + $0xa8] sm:$0xff]
        %v5748 = vld [vmem:[#allocation41 + $0xb0] sm:$0xff]
        %v5749 = vld [vmem:[#allocation41 + $0xb8] sm:$0xff]
        %v5750 = vld [vmem:[#allocation41 + $0xc0] sm:$0xff]
        %v5751 = vld [vmem:[#allocation41 + $0xc8] sm:$0xff]
        %v5752 = vld [vmem:[#allocation41 + $0xd0] sm:$0xff]
        %v5753 = vld [vmem:[#allocation41 + $0xd8] sm:$0xff]
        %v5754 = vld [vmem:[#allocation41 + $0xe0] sm:$0xff]
        %v5755 = vld [vmem:[#allocation41 + $0xe8] sm:$0xff]
        %v5756 = vld [vmem:[#allocation41 + $0xf0] sm:$0xff]
        %v5757 = vld [vmem:[#allocation41 + $0xf8] sm:$0xff]
        %v5758 = vld [vmem:[#allocation43] sm:$0x1]
        %v5760 = vlaneseq
        %v5761 = vshrl.u32 %v5760, 7
        %v5762 = vsub.s32 0, %v5761
        %v5763 = vrot.slane %v5758, %v5762
        %5765 = vmatprep.subr.mxu0 0.0
        %5766 = vmatpush1.msra.mxu0 %v5726
        %5767 = vmatprep.subr.mxu0 0.0
        %5768 = vmatpush1.msra.mxu0 %v5727
        %5769 = vmatprep.subr.mxu0 0.0
        %5770 = vmatpush1.msra.mxu0 %v5728
        %5771 = vmatprep.subr.mxu0 0.0
        %5772 = vmatpush1.msra.mxu0 %v5729
        %5773 = vmatprep.subr.mxu0 0.0
        %5774 = vmatpush1.msra.mxu0 %v5730
        %5775 = vmatprep.subr.mxu0 0.0
        %5776 = vmatpush1.msra.mxu0 %v5731
        %5777 = vmatprep.subr.mxu0 0.0
        %5778 = vmatpush1.msra.mxu0 %v5732
        %5779 = vmatprep.subr.mxu0 0.0
        %5780 = vmatpush1.msra.mxu0 %v5733
        %5781 = vmatprep.subr.mxu0 0.0
        %5782 = vmatpush1.msra.mxu0 %v5734
        %5783 = vmatprep.subr.mxu0 0.0
        %5784 = vmatpush1.msra.mxu0 %v5735
        %5785 = vmatprep.subr.mxu0 0.0
        %5786 = vmatpush1.msra.mxu0 %v5736
        %5787 = vmatprep.subr.mxu0 0.0
        %5788 = vmatpush1.msra.mxu0 %v5737
        %5789 = vmatprep.subr.mxu0 0.0
        %5790 = vmatpush1.msra.mxu0 %v5738
        %5791 = vmatprep.subr.mxu0 0.0
        %5792 = vmatpush1.msra.mxu0 %v5739
        %5793 = vmatprep.subr.mxu0 0.0
        %5794 = vmatpush1.msra.mxu0 %v5740
        %5795 = vmatprep.subr.mxu0 0.0
        %5796 = vmatpush1.msra.mxu0 %v5741
        %5797 = vmatprep.subr.mxu0 0.0
        %5798 = vmatpush1.msra.mxu0 %v5742
        %5799 = vmatprep.subr.mxu0 0.0
        %5800 = vmatpush1.msra.mxu0 %v5743
        %5801 = vmatprep.subr.mxu0 0.0
        %5802 = vmatpush1.msra.mxu0 %v5744
        %5803 = vmatprep.subr.mxu0 0.0
        %5804 = vmatpush1.msra.mxu0 %v5745
        %5805 = vmatprep.subr.mxu0 0.0
        %5806 = vmatpush1.msra.mxu0 %v5746
        %5807 = vmatprep.subr.mxu0 0.0
        %5808 = vmatpush1.msra.mxu0 %v5747
        %5809 = vmatprep.subr.mxu0 0.0
        %5810 = vmatpush1.msra.mxu0 %v5748
        %5811 = vmatprep.subr.mxu0 0.0
        %5812 = vmatpush1.msra.mxu0 %v5749
        %5813 = vmatprep.subr.mxu0 0.0
        %5814 = vmatpush1.msra.mxu0 %v5750
        %5815 = vmatprep.subr.mxu0 0.0
        %5816 = vmatpush1.msra.mxu0 %v5751
        %5817 = vmatprep.subr.mxu0 0.0
        %5818 = vmatpush1.msra.mxu0 %v5752
        %5819 = vmatprep.subr.mxu0 0.0
        %5820 = vmatpush1.msra.mxu0 %v5753
        %5821 = vmatprep.subr.mxu0 0.0
        %5822 = vmatpush1.msra.mxu0 %v5754
        %5823 = vmatprep.subr.mxu0 0.0
        %5824 = vmatpush1.msra.mxu0 %v5755
        %5825 = vmatprep.subr.mxu0 0.0
        %5826 = vmatpush1.msra.mxu0 %v5756
        %5827 = vmatprep.subr.mxu0 0.0
        %5828 = vmatpush1.msra.mxu0 %v5757
        %5829 = vmatprep.mubr.f32.mxu0 %v5723
        %5830 = vmatmul.mubr.f32.gmra.mrb[0].mxu0 %v5722
        %v5831 = vpop.f32.mrb[0].mxu0
        %v5832 = vadd.f32 %v5763, %v5831
        %v5833 = vpop.f32.mrb[0].mxu0
        %5834 = vmatprep.mubr.f32.mxu0 %v5725
        %5835 = vmatmul.mubr.f32.gmra.mrb[0].mxu0 %v5724
        %v5836 = vpop.f32.mrb[0].mxu0
        %v5837 = vadd.f32 %v5763, %v5836
        %v5838 = vpop.f32.mrb[0].mxu0
        %5839 = vdwg.mxu0
        %v5840 = vadd.f32 %v5599, %v5832
        %v5841 = vadd.f32 %v5600, %v5837
        %v5842 = vld [vmem:[#allocation44] sm:$0x1]
        %v5843 = vld [vmem:[#allocation46] sm:$0x1]
        %5844 = vadd.xlane.f32.xlu0 %v5840
        %v5845 = vpop.xlane.xlu0 %5844
        %5846 = vadd.xlane.f32.xlu0 %v5841
        %v5847 = vpop.xlane.xlu0 %5846
        %v5848 = vmul.f32 %v5845, %v3454
        %v5849 = vmul.f32 %v5847, %v3454
        %v5850 = vsub.f32 %v5840, %v5848
        %v5851 = vsub.f32 %v5841, %v5849
        %v5852 = vmul.f32 %v5850, %v5850
        %v5853 = vmul.f32 %v5851, %v5851
        %5854 = vadd.xlane.f32.xlu0 %v5852
        %v5855 = vpop.xlane.xlu0 %5854
        %5856 = vadd.xlane.f32.xlu0 %v5853
        %v5857 = vpop.xlane.xlu0 %5856
        %v5858 = vmul.f32 %v5855, %v3454
        %v5859 = vmul.f32 %v5857, %v3454
        %v5860 = vadd.f32 %v5858, 1e-05
        %v5861 = vadd.f32 %v5859, 1e-05
        %v5862 = vrsqrt.pop %v5860
        %v5863 = vrsqrt.pop %v5861
        %v5864 = vmul.f32 %v5850, %v5862
        %v5865 = vmul.f32 %v5851, %v5863
        %v5867 = vlaneseq
        %v5868 = vshrl.u32 %v5867, 7
        %v5869 = vsub.s32 0, %v5868
        %v5870 = vrot.slane %v5842, %v5869
        %v5872 = vmul.f32 %v5864, %v5870
        %v5873 = vmul.f32 %v5865, %v5870
        %v5875 = vlaneseq
        %v5876 = vshrl.u32 %v5875, 7
        %v5877 = vsub.s32 0, %v5876
        %v5878 = vrot.slane %v5843, %v5877
        %v5880 = vadd.f32 %v5872, %v5878
        %v5881 = vadd.f32 %v5873, %v5878
        %5882 = vst [vmem:[%s1360] sm:$0xff] %v5880
        %5883 = vst [vmem:[%s1360 + $0x8] sm:$0xff] %v5881
        %s5884 = sand.u32 %s740, 1
        %s5885 = scalar_lea.sflag [#allocation4], %s5884
        %s5886 = sand.u32 %s740, 1
        %s5887 = smul.addr %s5886, 16
        %s5888 = scalar_lea.vmem [#allocation47], %s5887
        // Predicated region
        $region253: #{tpu_custom_call.1} parent=135 // pred_check
          %p5889 = pneg %p750
        $region254: #{tpu_custom_call.1} parent=135 // pred_check_branch
          %5891 = sbr.rel (%p5889) target = $region256
        $region255: #{tpu_custom_call.1} parent=135 // pred_region
          %s5892 = smul.u32 2, %s97
          %s5894 = ssub.s32 256, 256
          %5895 = vsyncadd %s5885, %s5894
          %s5896 = smul.addr %s96, 2
          %s5897 = sadd.s32 %s5892, %s5896
          %s5898 = smul.addr %s5897, 128
          %s5899 = scalar_lea.hbm %s59, %s5898
          %s5900 = sshll.u32 %s5888, 4
          %s5901 = int_to_ptr.vmem [resolvable:$true] %s5900
          %5906 = dma.vmem_to_hbm [thread:$0]  %s5901, 256, %s5899, %s5885, 128, 128, 8
        $region256: #{tpu_custom_call.1} parent=135 // pred_fallthru
          _
      $region136: #{tpu_custom_call.1} parent=5 // pred_fallthru
        _
      %p5907 = scmp.le.s32.totalorder 2, %s87
      // Predicated region
      $region257: #{tpu_custom_call.1} parent=5 // pred_check
        %p5908 = pneg %p5907
      $region258: #{tpu_custom_call.1} parent=5 // pred_check_branch
        %5910 = sbr.rel (%p5908) target = $region260
      $region259: #{tpu_custom_call.1} parent=5 // pred_region
        %s5911 = ssub.s32 %s87, 2
        // Predicated region
        $region261: #{tpu_custom_call.1} parent=259 // pred_check
          %p5912 = pneg %p756
        $region262: #{tpu_custom_call.1} parent=259 // pred_check_branch
          %5914 = sbr.rel (%p5912) target = $region264
        $region263: #{tpu_custom_call.1} parent=259 // pred_region
          %s5915 = sand.u32 %s741, 1
          %s5916 = scalar_lea.sflag [#allocation4], %s5915
          %s5917 = sand.u32 %s741, 1
          %s5918 = smul.addr %s5917, 16
          %s5919 = scalar_lea.vmem [#allocation47], %s5918
          %5920 = dma.done %s5916, 256
        $region264: #{tpu_custom_call.1} parent=259 // pred_fallthru
          _
      $region260: #{tpu_custom_call.1} parent=5 // pred_fallthru
        _
    $region6: #{tpu_custom_call.1} parent=1 // loop_footer
      %s91 = sadd.s32 1, %s87
    $region7: #{tpu_custom_call.1} parent=1 // loop_footer_branch
      %86 = sbr.rel target = $region3
    $region8: #{tpu_custom_call.1} parent=1 // loop_exit
      _
    %5921 = vsyncpa [#allocation3], 1
    %s5922 = scalar_lea.sflag [#allocation3], 1
    %5923 = vsyncpa %s5922, 1
    %5924 = vsyncpa [#allocation6], 1
    %s5925 = scalar_lea.sflag [#allocation6], 1
    %5926 = vsyncpa %s5925, 1
    %5927 = vsyncpa [#allocation9], 1
    %5928 = vsyncpa [#allocation12], 1
    %5929 = vsyncpa [#allocation15], 1
    %5930 = vsyncpa [#allocation18], 1
    %5931 = vsyncpa [#allocation21], 1
    %5932 = vsyncpa [#allocation24], 1
    %5933 = vsyncpa [#allocation27], 1
    %5934 = vsyncpa [#allocation30], 1
    %5935 = vsyncpa [#allocation33], 1
    %5936 = vsyncpa [#allocation36], 1
    %5937 = vsyncpa [#allocation39], 1
    %5938 = vsyncpa [#allocation42], 1
    %5939 = vsyncpa [#allocation45], 1
    %5940 = vsyncpa [#allocation4], 1
    %s5941 = scalar_lea.sflag [#allocation4], 1
    %5942 = vsyncpa %s5941, 1

</llo_original>
